<compile_context>
chip_gen: v5e
topology: v5e:2x2
jax: 0.10.0
libtpu: 0.0.40
codegen_flags: <defaults>
</compile_context>

<pallas_src>
import numpy as np
import jax
import jax.numpy as jnp
from jax.experimental import pallas as pl
from jax.experimental.pallas import tpu as pltpu


# ---------------------------------------------------------------------------
# Fused kernel: all DGHAN layers for G graphs per grid step.
# ---------------------------------------------------------------------------
def _make_dghan_fused_kernel(layer_cfgs):
    """layer_cfgs: tuple of (heads, f_out, concat) per layer (static)."""
    n_layers = len(layer_cfgs)

    def kernel(x_ref, bias_ref, pmat_ref, *rest):
        h_out_ref, pool_ref = rest[-2], rest[-1]
        param_refs = rest[:-2]
        assert len(param_refs) == 3 * n_layers

        h = x_ref[0]                                   # [N, f_in]  (N = G*n)  f32
        bias = bias_ref[0].astype(jnp.float32)         # [2, N, N]  0 on edges / -1e30 off
        N = h.shape[0]

        for l, (heads, f_out, concat) in enumerate(layer_cfgs):
            w_all = param_refs[3 * l + 0][...]         # [f_in_l, 2H*f_out]  bf16
            de    = param_refs[3 * l + 1][...]         # [f_in_l, 4H]        f32
            b_all = param_refs[3 * l + 2][...]         # [2, out_dim]        f32
            two_h = 2 * heads

            # pc + mc projections for all heads in one wide bf16 MXU matmul.
            h_all = jnp.dot(h.astype(jnp.bfloat16), w_all,
                            preferred_element_type=jnp.float32)             # [N, 2H*f_out]
            # Folded attention terms (f32 for score accuracy); one tiny transpose per layer.
            e_t = jnp.dot(h, de, preferred_element_type=jnp.float32).T      # [4H, N]
            e_dst = e_t[:two_h]                                             # [2H, N]
            e_src = e_t[two_h:]                                             # [2H, N]

            # Batched scores for all (graph-type, head) pairs in one elementwise pass.
            s = e_dst[:, :, None] + e_src[:, None, :]                       # [2H, N, N]
            s = jnp.where(s > 0, s, 0.2 * s)                                # LeakyReLU(0.2)
            s = s.reshape(2, heads, N, N) + bias[:, None, :, :]             # additive mask
            s = s - jnp.max(s, axis=-1, keepdims=True)
            p = jnp.exp(s)                         # masked entries underflow to exactly 0
            denom = jnp.sum(p, axis=-1, keepdims=True)
            inv = pl.reciprocal(denom, approx=True)
            inv = inv * (2.0 - denom * inv)        # one Newton step -> near-exact divide
            alpha = (p * inv).astype(jnp.bfloat16)                          # [2, H, N, N]
            h_all_b = h_all.astype(jnp.bfloat16)

            graph_outs = []
            for t in range(2):                      # 0 -> pc graph, 1 -> mc graph
                head_outs = []
                for hd in range(heads):
                    col = t * heads + hd
                    hh = h_all_b[:, col * f_out:(col + 1) * f_out]          # [N, f_out]
                    head_outs.append(jnp.dot(alpha[t, hd], hh,
                                             preferred_element_type=jnp.float32))
                if concat:
                    o = jnp.concatenate(head_outs, axis=-1)                 # [N, H*f_out]
                else:
                    o = head_outs[0]
                    for extra in head_outs[1:]:
                        o = o + extra
                    o = o * jnp.float32(1.0 / heads)                        # [N, f_out]
                o = o + b_all[t:t + 1, :]
                # ELU (alpha=1); exp argument clamped to <= 0.
                o = jnp.where(o > 0, o, jnp.exp(jnp.minimum(o, 0.0)) - 1.0)
                graph_outs.append(o)
            h = 0.5 * (graph_outs[0] + graph_outs[1])

        # Lane-dense store: [out_dim, N] -> full 128-lane unmasked vector stores.
        h_out_ref[0] = h.T
        # Fused per-graph mean pooling via a tiny averaging matmul (pmat: [G, N], 1/n blocks).
        pool_ref[0] = jnp.dot(pmat_ref[...], h, preferred_element_type=jnp.float32)

    return kernel


# ---------------------------------------------------------------------------
# Parameter construction / host-side fusion.
# ---------------------------------------------------------------------------
def init_gat_params(key, f_in, f_out, heads, concat):
    k1, k2, k3 = jax.random.split(key, 3)
    scale = 1.0 / jnp.sqrt(jnp.float32(f_in))
    w = jax.random.normal(k1, (f_in, heads * f_out), jnp.float32) * scale
    asrc = jax.random.normal(k2, (heads, f_out), jnp.float32) * 0.1
    adst = jax.random.normal(k3, (heads, f_out), jnp.float32) * 0.1
    out_dim = heads * f_out if concat else f_out
    b = jnp.zeros((1, out_dim), jnp.float32)
    return {'w': w, 'asrc': asrc, 'adst': adst, 'b': b}


def init_dghan_params(key, in_dim, hidden_dim, layer_dghan, heads):
    """Mirrors DGHAN.__init__ layer configuration."""
    configs = []   # (f_in, f_out, heads, concat)
    if layer_dghan == 1:
        configs.append((in_dim, hidden_dim, heads, False))
    else:
        configs.append((in_dim, hidden_dim, heads, True))
        for _ in range(layer_dghan - 2):
            configs.append((heads * hidden_dim, hidden_dim, heads, True))
        configs.append((heads * hidden_dim, hidden_dim, 1, False))

    layers = []
    for i, (f_in, f_out, h, concat) in enumerate(configs):
        kpc = jax.random.fold_in(key, 2 * i)
        kmc = jax.random.fold_in(key, 2 * i + 1)
        params = {'pc': init_gat_params(kpc, f_in, f_out, h, concat),
                  'mc': init_gat_params(kmc, f_in, f_out, h, concat)}
        layers.append((h, f_out, concat, params))
    return layers


def _prepare_fused_params(layers):
    """Fuse pc/mc weights; fold attention vectors into the projection (no zero-padded matmuls)."""
    cfgs, fused = [], []
    for (heads, f_out, concat, p) in layers:
        w_pc, w_mc = p['pc']['w'], p['mc']['w']                       # [f_in, H*f_out]
        w_all = jnp.concatenate([w_pc, w_mc], axis=1)                 # [f_in, 2H*f_out]

        def fold(w, avec):                                            # -> [f_in, H]
            f_in = w.shape[0]
            wr = w.reshape(f_in, heads, f_out)
            return jnp.einsum('fhk,hk->fh', wr, avec)

        dst_eff = jnp.concatenate([fold(w_pc, p['pc']['adst']),
                                   fold(w_mc, p['mc']['adst'])], axis=1)   # [f_in, 2H]
        src_eff = jnp.concatenate([fold(w_pc, p['pc']['asrc']),
                                   fold(w_mc, p['mc']['asrc'])], axis=1)   # [f_in, 2H]
        de_eff = jnp.concatenate([dst_eff, src_eff], axis=1)               # [f_in, 4H]
        b_all = jnp.concatenate([p['pc']['b'], p['mc']['b']], axis=0)      # [2, out_dim]
        fused.append((w_all.astype(jnp.bfloat16),
                      de_eff.astype(jnp.float32),
                      b_all.astype(jnp.float32)))
        cfgs.append((heads, f_out, concat))
    return tuple(cfgs), fused


def _pick_graphs_per_step(batch_size, n, max_rows=512):
    """Largest divisor G of batch_size with G*n <= max_rows, preferring >=2 grid steps."""
    divs = [g for g in range(1, batch_size + 1) if batch_size % g == 0 and g * n <= max_rows]
    if not divs:
        return 1
    pref = [g for g in divs if batch_size // g >= 2]
    return max(pref) if pref else max(divs)


def _build_step_bias(adj_pc, adj_mc, G):
    """[B, n, n] adjacencies -> block-diagonal additive bias [S, 2, G*n, G*n] in bf16."""
    def one(adj):
        B, n, _ = adj.shape
        S = B // G
        a = adj.reshape(S, G, n, n)
        bg = jnp.where(a > 0, jnp.float32(0.0), jnp.float32(-1e30))      # [S, G, n, n]
        eye_g = jnp.eye(G, dtype=jnp.float32) > 0
        big = jnp.where(eye_g[None, :, None, :, None],
                        bg[:, :, :, None, :], jnp.float32(-1e30))        # [S, G, n, G, n]
        return big.reshape(S, G * n, G * n)
    return jnp.stack([one(adj_pc), one(adj_mc)], axis=1).astype(jnp.bfloat16)


# ---------------------------------------------------------------------------
# Wrapper: single pallas_call over all layers; G graphs per grid step.
# ---------------------------------------------------------------------------
def dghan_apply(x, adj_pc, adj_mc, batch_size, layers, graphs_per_step=None):
    """x: [B*n, f_in]; adj_*: [B, n, n]. Returns (h_b: [B, n, out], pooled: [B, out])."""
    n_total, f_in = x.shape
    n = n_total // batch_size
    G = graphs_per_step or _pick_graphs_per_step(batch_size, n)
    assert batch_size % G == 0, "batch_size must be divisible by graphs-per-step"
    S = batch_size // G
    N = G * n

    cfgs, fused = _prepare_fused_params(layers)
    heads_l, f_out_l, concat_l = cfgs[-1]
    out_dim = heads_l * f_out_l if concat_l else f_out_l
    kernel = _make_dghan_fused_kernel(cfgs)

    x_s = x.reshape(S, N, f_in).astype(jnp.float32)
    bias = _build_step_bias(adj_pc, adj_mc, G)                             # [S, 2, N, N] bf16
    pool_mat = jnp.kron(jnp.eye(G, dtype=jnp.float32),
                        jnp.ones((1, n), jnp.float32) / jnp.float32(n))   # [G, N]

    in_specs = [pl.BlockSpec((1, N, f_in), lambda s: (s, 0, 0)),
                pl.BlockSpec((1, 2, N, N), lambda s: (s, 0, 0, 0)),
                pl.BlockSpec(pool_mat.shape, lambda s: (0, 0))]
    args = [x_s, bias, pool_mat]
    for (w_all, de_eff, b_all) in fused:
        for a in (w_all, de_eff, b_all):
            args.append(a)
            # Constant block index -> each weight block is DMA'd once across the grid.
            in_specs.append(pl.BlockSpec(a.shape, lambda s: (0, 0)))

    out_shape = (jax.ShapeDtypeStruct((S, out_dim, N), jnp.float32),   # node emb, transposed
                 jax.ShapeDtypeStruct((S, G, out_dim), jnp.float32))   # per-graph pooled
    out_specs = [pl.BlockSpec((1, out_dim, N), lambda s: (s, 0, 0)),
                 pl.BlockSpec((1, G, out_dim), lambda s: (s, 0, 0))]

    h_s, pool_s = pl.pallas_call(
        kernel,
        out_shape=out_shape,
        grid_spec=pltpu.PrefetchScalarGridSpec(
            num_scalar_prefetch=0,
            grid=(S,),
            in_specs=in_specs,
            out_specs=out_specs,
        ),
        compiler_params=pltpu.CompilerParams(
            dimension_semantics=("parallel",),        # independent graph blocks (v7x megacore)
            vmem_limit_bytes=32 * 1024 * 1024,        # well above per-step residency here
        ),
    )(*args)

    # Host-side unpack of the lane-dense layout (single tiny XLA transpose).
    h_b = jnp.transpose(h_s, (0, 2, 1)).reshape(batch_size, n, out_dim)
    pooled = pool_s.reshape(batch_size, out_dim)
    return h_b, pooled


def dghan_forward(x, adj_pc, adj_mc, batch_size, hidden_dim, layers):
    h_b, pooled = dghan_apply(x, adj_pc, adj_mc, batch_size, layers)
    h_node = h_b.reshape(-1, hidden_dim)
    return h_node, pooled, h_b


# ---------------------------------------------------------------------------
# Pure-JAX reference (same GATConv semantics), vmapped over graphs.
# ---------------------------------------------------------------------------
def dghan_reference(x_b, adj_pc, adj_mc, layers):
    def gat(h, adj, p, heads, f_out, concat):
        hp = h @ p['w']
        outs = []
        for hd in range(heads):
            hh = hp[:, hd * f_out:(hd + 1) * f_out]
            es = hh @ p['asrc'][hd]
            ed = hh @ p['adst'][hd]
            e = ed[:, None] + es[None, :]
            e = jnp.where(e > 0, e, 0.2 * e)
            e = jnp.where(adj > 0, e, -1e30)
            e = e - jnp.max(e, axis=-1, keepdims=True)
            pe = jnp.exp(e)
            pe = jnp.where(adj > 0, pe, 0.0)
            alpha = pe / jnp.sum(pe, axis=-1, keepdims=True)
            outs.append(alpha @ hh)
        o = jnp.concatenate(outs, axis=-1) if concat else sum(outs) / heads
        o = o + p['b']
        return jnp.where(o > 0, o, jnp.exp(jnp.minimum(o, 0.0)) - 1.0)

    def per_graph(h, apc, amc):
        for (heads, f_out, concat, params) in layers:
            opc = gat(h, apc, params['pc'], heads, f_out, concat)
            omc = gat(h, amc, params['mc'], heads, f_out, concat)
            h = 0.5 * (opc + omc)
        return h

    return jax.vmap(per_graph)(x_b, adj_pc, adj_mc)


# ---------------------------------------------------------------------------
# Example inputs (per-graph adjacency with self-loops; block-diagonal batch).
# ---------------------------------------------------------------------------
def make_batched_adj(key, batch_size, n, n_edges):
    adjs = []
    for g in range(batch_size):
        kg = jax.random.fold_in(key, g)
        src = jax.random.randint(jax.random.fold_in(kg, 0), (n_edges,), 0, n)
        dst = jax.random.randint(jax.random.fold_in(kg, 1), (n_edges,), 0, n)
        a = jnp.zeros((n, n), jnp.float32).at[dst, src].set(1.0)    # a[target, source]
        a = jnp.minimum(a + jnp.eye(n, dtype=jnp.float32), 1.0)     # add self-loops (required)
        adjs.append(a)
    return jnp.stack(adjs)                                          # [B, n, n]


if __name__ == "__main__":
    key = jax.random.PRNGKey(0)

    batch_size = 32          # graphs; G=16 graphs/step -> N=128 rows, grid of 2 steps
    n_per_graph = 8
    n_nodes = batch_size * n_per_graph
    in_dim = 8
    hidden_dim = 16
    heads = 2
    layer_dghan = 4
    dropout = 0.0            # eval-mode forward; dropout is identity

    kx, kpc, kmc, kp = jax.random.split(key, 4)
    x = jax.random.normal(kx, (n_nodes, in_dim), jnp.float32)
    adj_pc = make_batched_adj(kpc, batch_size, n_per_graph, 12)
    adj_mc = make_batched_adj(kmc, batch_size, n_per_graph, 12)

    layers = init_dghan_params(kp, in_dim, hidden_dim, layer_dghan, heads)

    h_node, pooled, h_b = dghan_forward(x, adj_pc, adj_mc, batch_size, hidden_dim, layers)
    jax.block_until_ready((h_node, pooled))

    assert h_node.shape == (n_nodes, hidden_dim)
    assert pooled.shape == (batch_size, hidden_dim)
    assert bool(jnp.all(jnp.isfinite(h_node))) and bool(jnp.all(jnp.isfinite(pooled)))

    # Correctness self-check vs. a pure-f32 JAX reference.
    # Tolerance covers bf16 MXU operands across 4 layers (f32 accumulation preserved).
    ref = dghan_reference(x.reshape(batch_size, n_per_graph, in_dim), adj_pc, adj_mc, layers)
    np.testing.assert_allclose(np.asarray(h_b), np.asarray(ref), rtol=5e-2, atol=5e-2)
    np.testing.assert_allclose(np.asarray(pooled), np.asarray(ref.mean(axis=1)),
                               rtol=5e-2, atol=5e-2)

    print("KERNEL_OK")
</pallas_src>

<mosaic_0001>
module attributes {stable_mosaic.version = 11 : i64} {
  func.func @kernel(%arg0: i32, %arg1: memref<1x128x8xf32, #tpu.memory_space<vmem>>, %arg2: memref<1x2x128x128xbf16, #tpu.memory_space<vmem>>, %arg3: memref<16x128xf32, #tpu.memory_space<vmem>>, %arg4: memref<8x64xbf16, #tpu.memory_space<vmem>>, %arg5: memref<8x8xf32, #tpu.memory_space<vmem>>, %arg6: memref<2x32xf32, #tpu.memory_space<vmem>>, %arg7: memref<32x64xbf16, #tpu.memory_space<vmem>>, %arg8: memref<32x8xf32, #tpu.memory_space<vmem>>, %arg9: memref<2x32xf32, #tpu.memory_space<vmem>>, %arg10: memref<32x64xbf16, #tpu.memory_space<vmem>>, %arg11: memref<32x8xf32, #tpu.memory_space<vmem>>, %arg12: memref<2x32xf32, #tpu.memory_space<vmem>>, %arg13: memref<32x32xbf16, #tpu.memory_space<vmem>>, %arg14: memref<32x4xf32, #tpu.memory_space<vmem>>, %arg15: memref<2x16xf32, #tpu.memory_space<vmem>>, %arg16: memref<1x16x128xf32, #tpu.memory_space<vmem>>, %arg17: memref<1x16x16xf32, #tpu.memory_space<vmem>>) attributes {dimension_semantics = [#tpu.dimension_semantics<parallel>], iteration_bounds = array<i64: 2>, scalar_prefetch = 0 : i64, scratch_operands = 0 : i64, tpu.core_type = #tpu.core_type<tc>, window_params = [{transform_indices = @transform_0, window_bounds = array<i64: 1, 128, 8>}, {transform_indices = @transform_1, window_bounds = array<i64: 1, 2, 128, 128>}, {pipeline_mode = #tpu.pipeline_mode<synchronous>, transform_indices = @transform_2, window_bounds = array<i64: 16, 128>}, {pipeline_mode = #tpu.pipeline_mode<synchronous>, transform_indices = @transform_3, window_bounds = array<i64: 8, 64>}, {pipeline_mode = #tpu.pipeline_mode<synchronous>, transform_indices = @transform_4, window_bounds = array<i64: 8, 8>}, {pipeline_mode = #tpu.pipeline_mode<synchronous>, transform_indices = @transform_5, window_bounds = array<i64: 2, 32>}, {pipeline_mode = #tpu.pipeline_mode<synchronous>, transform_indices = @transform_6, window_bounds = array<i64: 32, 64>}, {pipeline_mode = #tpu.pipeline_mode<synchronous>, transform_indices = @transform_7, window_bounds = array<i64: 32, 8>}, {pipeline_mode = #tpu.pipeline_mode<synchronous>, transform_indices = @transform_8, window_bounds = array<i64: 2, 32>}, {pipeline_mode = #tpu.pipeline_mode<synchronous>, transform_indices = @transform_9, window_bounds = array<i64: 32, 64>}, {pipeline_mode = #tpu.pipeline_mode<synchronous>, transform_indices = @transform_10, window_bounds = array<i64: 32, 8>}, {pipeline_mode = #tpu.pipeline_mode<synchronous>, transform_indices = @transform_11, window_bounds = array<i64: 2, 32>}, {pipeline_mode = #tpu.pipeline_mode<synchronous>, transform_indices = @transform_12, window_bounds = array<i64: 32, 32>}, {pipeline_mode = #tpu.pipeline_mode<synchronous>, transform_indices = @transform_13, window_bounds = array<i64: 32, 4>}, {pipeline_mode = #tpu.pipeline_mode<synchronous>, transform_indices = @transform_14, window_bounds = array<i64: 2, 16>}, {transform_indices = @transform_15, window_bounds = array<i64: 1, 16, 128>}, {transform_indices = @transform_16, window_bounds = array<i64: 1, 16, 16>}]} {
    %c0 = arith.constant 0 : index
    %c0_0 = arith.constant 0 : index
    %c0_1 = arith.constant 0 : index
    %0 = vector.load %arg1[%c0, %c0_0, %c0_1] : memref<1x128x8xf32, #tpu.memory_space<vmem>>, vector<1x128x8xf32>
    %1 = vector.shape_cast %0 : vector<1x128x8xf32> to vector<128x8xf32>
    %c0_2 = arith.constant 0 : index
    %c0_3 = arith.constant 0 : index
    %c0_4 = arith.constant 0 : index
    %c0_5 = arith.constant 0 : index
    %2 = vector.load %arg2[%c0_2, %c0_3, %c0_4, %c0_5] : memref<1x2x128x128xbf16, #tpu.memory_space<vmem>>, vector<1x2x128x128xbf16>
    %3 = vector.shape_cast %2 : vector<1x2x128x128xbf16> to vector<2x128x128xbf16>
    %4 = arith.extf %3 : vector<2x128x128xbf16> to vector<2x128x128xf32>
    %c0_6 = arith.constant 0 : index
    %c0_7 = arith.constant 0 : index
    %5 = vector.load %arg4[%c0_6, %c0_7] : memref<8x64xbf16, #tpu.memory_space<vmem>>, vector<8x64xbf16>
    %c0_8 = arith.constant 0 : index
    %c0_9 = arith.constant 0 : index
    %6 = vector.load %arg5[%c0_8, %c0_9] : memref<8x8xf32, #tpu.memory_space<vmem>>, vector<8x8xf32>
    %c0_10 = arith.constant 0 : index
    %c0_11 = arith.constant 0 : index
    %7 = vector.load %arg6[%c0_10, %c0_11] : memref<2x32xf32, #tpu.memory_space<vmem>>, vector<2x32xf32>
    %8 = arith.truncf %1 : vector<128x8xf32> to vector<128x8xbf16>
    %cst = arith.constant dense<0.000000e+00> : vector<128x64xf32>
    %9 = tpu.matmul %8, %5, %cst {dimension_numbers = #tpu.dot_dimension_numbers<[1], [0], [0], [1], [0, 0, 1, 1], [], []>} : vector<128x8xbf16>, vector<8x64xbf16>, vector<128x64xf32> -> vector<128x64xf32>
    %cst_12 = arith.constant dense<0.000000e+00> : vector<128x8xf32>
    %10 = tpu.matmul %1, %6, %cst_12 {dimension_numbers = #tpu.dot_dimension_numbers<[1], [0], [0], [1], [0, 0, 1, 1], [], []>} : vector<128x8xf32>, vector<8x8xf32>, vector<128x8xf32> -> vector<128x8xf32>
    %11 = tpu.transpose %10, [1, 0] : vector<128x8xf32> -> vector<8x128xf32>
    %12 = vector.extract_strided_slice %11 {offsets = [0, 0], sizes = [4, 128], strides = [1, 1]} : vector<8x128xf32> to vector<4x128xf32>
    %13 = vector.extract_strided_slice %11 {offsets = [4, 0], sizes = [4, 128], strides = [1, 1]} : vector<8x128xf32> to vector<4x128xf32>
    %14 = vector.shape_cast %12 : vector<4x128xf32> to vector<4x128x1xf32>
    %15 = vector.shape_cast %13 : vector<4x128xf32> to vector<4x1x128xf32>
    %16 = vector.broadcast %14 : vector<4x128x1xf32> to vector<4x128x128xf32>
    %17 = vector.broadcast %15 : vector<4x1x128xf32> to vector<4x128x128xf32>
    %18 = arith.addf %16, %17 : vector<4x128x128xf32>
    %cst_13 = arith.constant 0.000000e+00 : f32
    %19 = vector.broadcast %cst_13 : f32 to vector<4x128x128xf32>
    %20 = arith.cmpf ogt, %18, %19 : vector<4x128x128xf32>
    %cst_14 = arith.constant 2.000000e-01 : f32
    %21 = vector.broadcast %cst_14 : f32 to vector<4x128x128xf32>
    %22 = arith.mulf %21, %18 : vector<4x128x128xf32>
    %23 = arith.select %20, %18, %22 : vector<4x128x128xi1>, vector<4x128x128xf32>
    %24 = vector.shape_cast %23 : vector<4x128x128xf32> to vector<2x2x128x128xf32>
    %25 = vector.shape_cast %4 : vector<2x128x128xf32> to vector<2x1x128x128xf32>
    %26 = vector.broadcast %25 : vector<2x1x128x128xf32> to vector<2x2x128x128xf32>
    %27 = arith.addf %24, %26 : vector<2x2x128x128xf32>
    %cst_15 = arith.constant dense<0xFF800000> : vector<2x2x128xf32>
    %28 = vector.multi_reduction <maximumf>, %27, %cst_15 [3] : vector<2x2x128x128xf32> to vector<2x2x128xf32>
    %29 = vector.shape_cast %28 : vector<2x2x128xf32> to vector<2x2x128x1xf32>
    %30 = vector.broadcast %29 : vector<2x2x128x1xf32> to vector<2x2x128x128xf32>
    %31 = arith.subf %27, %30 : vector<2x2x128x128xf32>
    %32 = math.exp %31 : vector<2x2x128x128xf32>
    %cst_16 = arith.constant dense<0.000000e+00> : vector<2x2x128xf32>
    %33 = vector.multi_reduction <add>, %32, %cst_16 [3] : vector<2x2x128x128xf32> to vector<2x2x128xf32>
    %34 = vector.shape_cast %33 : vector<2x2x128xf32> to vector<2x2x128x1xf32>
    %35 = tpu.reciprocal %34 {approx = true} : vector<2x2x128x1xf32> -> vector<2x2x128x1xf32>
    %36 = arith.mulf %34, %35 : vector<2x2x128x1xf32>
    %cst_17 = arith.constant 2.000000e+00 : f32
    %37 = vector.broadcast %cst_17 : f32 to vector<2x2x128x1xf32>
    %38 = arith.subf %37, %36 : vector<2x2x128x1xf32>
    %39 = arith.mulf %35, %38 : vector<2x2x128x1xf32>
    %40 = vector.broadcast %39 : vector<2x2x128x1xf32> to vector<2x2x128x128xf32>
    %41 = arith.mulf %32, %40 : vector<2x2x128x128xf32>
    %42 = arith.truncf %41 : vector<2x2x128x128xf32> to vector<2x2x128x128xbf16>
    %43 = arith.truncf %9 : vector<128x64xf32> to vector<128x64xbf16>
    %44 = vector.extract_strided_slice %43 {offsets = [0, 0], sizes = [128, 16], strides = [1, 1]} : vector<128x64xbf16> to vector<128x16xbf16>
    %45 = vector.extract_strided_slice %42 {offsets = [0, 0, 0, 0], sizes = [1, 1, 128, 128], strides = [1, 1, 1, 1]} : vector<2x2x128x128xbf16> to vector<1x1x128x128xbf16>
    %46 = vector.shape_cast %45 : vector<1x1x128x128xbf16> to vector<128x128xbf16>
    %cst_18 = arith.constant dense<0.000000e+00> : vector<128x16xf32>
    %47 = tpu.matmul %46, %44, %cst_18 {dimension_numbers = #tpu.dot_dimension_numbers<[1], [0], [0], [1], [0, 0, 1, 1], [], []>} : vector<128x128xbf16>, vector<128x16xbf16>, vector<128x16xf32> -> vector<128x16xf32>
    %48 = vector.extract_strided_slice %43 {offsets = [0, 16], sizes = [128, 16], strides = [1, 1]} : vector<128x64xbf16> to vector<128x16xbf16>
    %49 = vector.extract_strided_slice %42 {offsets = [0, 1, 0, 0], sizes = [1, 1, 128, 128], strides = [1, 1, 1, 1]} : vector<2x2x128x128xbf16> to vector<1x1x128x128xbf16>
    %50 = vector.shape_cast %49 : vector<1x1x128x128xbf16> to vector<128x128xbf16>
    %cst_19 = arith.constant dense<0.000000e+00> : vector<128x16xf32>
    %51 = tpu.matmul %50, %48, %cst_19 {dimension_numbers = #tpu.dot_dimension_numbers<[1], [0], [0], [1], [0, 0, 1, 1], [], []>} : vector<128x128xbf16>, vector<128x16xbf16>, vector<128x16xf32> -> vector<128x16xf32>
    %52 = tpu.concatenate %47, %51 in 1 : vector<128x16xf32>, vector<128x16xf32> -> vector<128x32xf32>
    %53 = vector.extract_strided_slice %7 {offsets = [0, 0], sizes = [1, 32], strides = [1, 1]} : vector<2x32xf32> to vector<1x32xf32>
    %54 = vector.broadcast %53 : vector<1x32xf32> to vector<128x32xf32>
    %55 = arith.addf %52, %54 : vector<128x32xf32>
    %cst_20 = arith.constant 0.000000e+00 : f32
    %56 = vector.broadcast %cst_20 : f32 to vector<128x32xf32>
    %57 = arith.cmpf ogt, %55, %56 : vector<128x32xf32>
    %cst_21 = arith.constant 0.000000e+00 : f32
    %58 = vector.broadcast %cst_21 : f32 to vector<128x32xf32>
    %59 = arith.minimumf %55, %58 : vector<128x32xf32>
    %60 = math.exp %59 : vector<128x32xf32>
    %cst_22 = arith.constant 1.000000e+00 : f32
    %61 = vector.broadcast %cst_22 : f32 to vector<128x32xf32>
    %62 = arith.subf %60, %61 : vector<128x32xf32>
    %63 = arith.select %57, %55, %62 : vector<128x32xi1>, vector<128x32xf32>
    %64 = vector.extract_strided_slice %43 {offsets = [0, 32], sizes = [128, 16], strides = [1, 1]} : vector<128x64xbf16> to vector<128x16xbf16>
    %65 = vector.extract_strided_slice %42 {offsets = [1, 0, 0, 0], sizes = [1, 1, 128, 128], strides = [1, 1, 1, 1]} : vector<2x2x128x128xbf16> to vector<1x1x128x128xbf16>
    %66 = vector.shape_cast %65 : vector<1x1x128x128xbf16> to vector<128x128xbf16>
    %cst_23 = arith.constant dense<0.000000e+00> : vector<128x16xf32>
    %67 = tpu.matmul %66, %64, %cst_23 {dimension_numbers = #tpu.dot_dimension_numbers<[1], [0], [0], [1], [0, 0, 1, 1], [], []>} : vector<128x128xbf16>, vector<128x16xbf16>, vector<128x16xf32> -> vector<128x16xf32>
    %68 = vector.extract_strided_slice %43 {offsets = [0, 48], sizes = [128, 16], strides = [1, 1]} : vector<128x64xbf16> to vector<128x16xbf16>
    %69 = vector.extract_strided_slice %42 {offsets = [1, 1, 0, 0], sizes = [1, 1, 128, 128], strides = [1, 1, 1, 1]} : vector<2x2x128x128xbf16> to vector<1x1x128x128xbf16>
    %70 = vector.shape_cast %69 : vector<1x1x128x128xbf16> to vector<128x128xbf16>
    %cst_24 = arith.constant dense<0.000000e+00> : vector<128x16xf32>
    %71 = tpu.matmul %70, %68, %cst_24 {dimension_numbers = #tpu.dot_dimension_numbers<[1], [0], [0], [1], [0, 0, 1, 1], [], []>} : vector<128x128xbf16>, vector<128x16xbf16>, vector<128x16xf32> -> vector<128x16xf32>
    %72 = tpu.concatenate %67, %71 in 1 : vector<128x16xf32>, vector<128x16xf32> -> vector<128x32xf32>
    %73 = vector.extract_strided_slice %7 {offsets = [1, 0], sizes = [1, 32], strides = [1, 1]} : vector<2x32xf32> to vector<1x32xf32>
    %74 = vector.broadcast %73 : vector<1x32xf32> to vector<128x32xf32>
    %75 = arith.addf %72, %74 : vector<128x32xf32>
    %cst_25 = arith.constant 0.000000e+00 : f32
    %76 = vector.broadcast %cst_25 : f32 to vector<128x32xf32>
    %77 = arith.cmpf ogt, %75, %76 : vector<128x32xf32>
    %cst_26 = arith.constant 0.000000e+00 : f32
    %78 = vector.broadcast %cst_26 : f32 to vector<128x32xf32>
    %79 = arith.minimumf %75, %78 : vector<128x32xf32>
    %80 = math.exp %79 : vector<128x32xf32>
    %cst_27 = arith.constant 1.000000e+00 : f32
    %81 = vector.broadcast %cst_27 : f32 to vector<128x32xf32>
    %82 = arith.subf %80, %81 : vector<128x32xf32>
    %83 = arith.select %77, %75, %82 : vector<128x32xi1>, vector<128x32xf32>
    %84 = arith.addf %63, %83 : vector<128x32xf32>
    %cst_28 = arith.constant 5.000000e-01 : f32
    %85 = vector.broadcast %cst_28 : f32 to vector<128x32xf32>
    %86 = arith.mulf %85, %84 : vector<128x32xf32>
    %c0_29 = arith.constant 0 : index
    %c0_30 = arith.constant 0 : index
    %87 = vector.load %arg7[%c0_29, %c0_30] : memref<32x64xbf16, #tpu.memory_space<vmem>>, vector<32x64xbf16>
    %c0_31 = arith.constant 0 : index
    %c0_32 = arith.constant 0 : index
    %88 = vector.load %arg8[%c0_31, %c0_32] : memref<32x8xf32, #tpu.memory_space<vmem>>, vector<32x8xf32>
    %c0_33 = arith.constant 0 : index
    %c0_34 = arith.constant 0 : index
    %89 = vector.load %arg9[%c0_33, %c0_34] : memref<2x32xf32, #tpu.memory_space<vmem>>, vector<2x32xf32>
    %90 = arith.truncf %86 : vector<128x32xf32> to vector<128x32xbf16>
    %cst_35 = arith.constant dense<0.000000e+00> : vector<128x64xf32>
    %91 = tpu.matmul %90, %87, %cst_35 {dimension_numbers = #tpu.dot_dimension_numbers<[1], [0], [0], [1], [0, 0, 1, 1], [], []>} : vector<128x32xbf16>, vector<32x64xbf16>, vector<128x64xf32> -> vector<128x64xf32>
    %cst_36 = arith.constant dense<0.000000e+00> : vector<128x8xf32>
    %92 = tpu.matmul %86, %88, %cst_36 {dimension_numbers = #tpu.dot_dimension_numbers<[1], [0], [0], [1], [0, 0, 1, 1], [], []>} : vector<128x32xf32>, vector<32x8xf32>, vector<128x8xf32> -> vector<128x8xf32>
    %93 = tpu.transpose %92, [1, 0] : vector<128x8xf32> -> vector<8x128xf32>
    %94 = vector.extract_strided_slice %93 {offsets = [0, 0], sizes = [4, 128], strides = [1, 1]} : vector<8x128xf32> to vector<4x128xf32>
    %95 = vector.extract_strided_slice %93 {offsets = [4, 0], sizes = [4, 128], strides = [1, 1]} : vector<8x128xf32> to vector<4x128xf32>
    %96 = vector.shape_cast %94 : vector<4x128xf32> to vector<4x128x1xf32>
    %97 = vector.shape_cast %95 : vector<4x128xf32> to vector<4x1x128xf32>
    %98 = vector.broadcast %96 : vector<4x128x1xf32> to vector<4x128x128xf32>
    %99 = vector.broadcast %97 : vector<4x1x128xf32> to vector<4x128x128xf32>
    %100 = arith.addf %98, %99 : vector<4x128x128xf32>
    %cst_37 = arith.constant 0.000000e+00 : f32
    %101 = vector.broadcast %cst_37 : f32 to vector<4x128x128xf32>
    %102 = arith.cmpf ogt, %100, %101 : vector<4x128x128xf32>
    %cst_38 = arith.constant 2.000000e-01 : f32
    %103 = vector.broadcast %cst_38 : f32 to vector<4x128x128xf32>
    %104 = arith.mulf %103, %100 : vector<4x128x128xf32>
    %105 = arith.select %102, %100, %104 : vector<4x128x128xi1>, vector<4x128x128xf32>
    %106 = vector.shape_cast %105 : vector<4x128x128xf32> to vector<2x2x128x128xf32>
    %107 = vector.shape_cast %4 : vector<2x128x128xf32> to vector<2x1x128x128xf32>
    %108 = vector.broadcast %107 : vector<2x1x128x128xf32> to vector<2x2x128x128xf32>
    %109 = arith.addf %106, %108 : vector<2x2x128x128xf32>
    %cst_39 = arith.constant dense<0xFF800000> : vector<2x2x128xf32>
    %110 = vector.multi_reduction <maximumf>, %109, %cst_39 [3] : vector<2x2x128x128xf32> to vector<2x2x128xf32>
    %111 = vector.shape_cast %110 : vector<2x2x128xf32> to vector<2x2x128x1xf32>
    %112 = vector.broadcast %111 : vector<2x2x128x1xf32> to vector<2x2x128x128xf32>
    %113 = arith.subf %109, %112 : vector<2x2x128x128xf32>
    %114 = math.exp %113 : vector<2x2x128x128xf32>
    %cst_40 = arith.constant dense<0.000000e+00> : vector<2x2x128xf32>
    %115 = vector.multi_reduction <add>, %114, %cst_40 [3] : vector<2x2x128x128xf32> to vector<2x2x128xf32>
    %116 = vector.shape_cast %115 : vector<2x2x128xf32> to vector<2x2x128x1xf32>
    %117 = tpu.reciprocal %116 {approx = true} : vector<2x2x128x1xf32> -> vector<2x2x128x1xf32>
    %118 = arith.mulf %116, %117 : vector<2x2x128x1xf32>
    %cst_41 = arith.constant 2.000000e+00 : f32
    %119 = vector.broadcast %cst_41 : f32 to vector<2x2x128x1xf32>
    %120 = arith.subf %119, %118 : vector<2x2x128x1xf32>
    %121 = arith.mulf %117, %120 : vector<2x2x128x1xf32>
    %122 = vector.broadcast %121 : vector<2x2x128x1xf32> to vector<2x2x128x128xf32>
    %123 = arith.mulf %114, %122 : vector<2x2x128x128xf32>
    %124 = arith.truncf %123 : vector<2x2x128x128xf32> to vector<2x2x128x128xbf16>
    %125 = arith.truncf %91 : vector<128x64xf32> to vector<128x64xbf16>
    %126 = vector.extract_strided_slice %125 {offsets = [0, 0], sizes = [128, 16], strides = [1, 1]} : vector<128x64xbf16> to vector<128x16xbf16>
    %127 = vector.extract_strided_slice %124 {offsets = [0, 0, 0, 0], sizes = [1, 1, 128, 128], strides = [1, 1, 1, 1]} : vector<2x2x128x128xbf16> to vector<1x1x128x128xbf16>
    %128 = vector.shape_cast %127 : vector<1x1x128x128xbf16> to vector<128x128xbf16>
    %cst_42 = arith.constant dense<0.000000e+00> : vector<128x16xf32>
    %129 = tpu.matmul %128, %126, %cst_42 {dimension_numbers = #tpu.dot_dimension_numbers<[1], [0], [0], [1], [0, 0, 1, 1], [], []>} : vector<128x128xbf16>, vector<128x16xbf16>, vector<128x16xf32> -> vector<128x16xf32>
    %130 = vector.extract_strided_slice %125 {offsets = [0, 16], sizes = [128, 16], strides = [1, 1]} : vector<128x64xbf16> to vector<128x16xbf16>
    %131 = vector.extract_strided_slice %124 {offsets = [0, 1, 0, 0], sizes = [1, 1, 128, 128], strides = [1, 1, 1, 1]} : vector<2x2x128x128xbf16> to vector<1x1x128x128xbf16>
    %132 = vector.shape_cast %131 : vector<1x1x128x128xbf16> to vector<128x128xbf16>
    %cst_43 = arith.constant dense<0.000000e+00> : vector<128x16xf32>
    %133 = tpu.matmul %132, %130, %cst_43 {dimension_numbers = #tpu.dot_dimension_numbers<[1], [0], [0], [1], [0, 0, 1, 1], [], []>} : vector<128x128xbf16>, vector<128x16xbf16>, vector<128x16xf32> -> vector<128x16xf32>
    %134 = tpu.concatenate %129, %133 in 1 : vector<128x16xf32>, vector<128x16xf32> -> vector<128x32xf32>
    %135 = vector.extract_strided_slice %89 {offsets = [0, 0], sizes = [1, 32], strides = [1, 1]} : vector<2x32xf32> to vector<1x32xf32>
    %136 = vector.broadcast %135 : vector<1x32xf32> to vector<128x32xf32>
    %137 = arith.addf %134, %136 : vector<128x32xf32>
    %cst_44 = arith.constant 0.000000e+00 : f32
    %138 = vector.broadcast %cst_44 : f32 to vector<128x32xf32>
    %139 = arith.cmpf ogt, %137, %138 : vector<128x32xf32>
    %cst_45 = arith.constant 0.000000e+00 : f32
    %140 = vector.broadcast %cst_45 : f32 to vector<128x32xf32>
    %141 = arith.minimumf %137, %140 : vector<128x32xf32>
    %142 = math.exp %141 : vector<128x32xf32>
    %cst_46 = arith.constant 1.000000e+00 : f32
    %143 = vector.broadcast %cst_46 : f32 to vector<128x32xf32>
    %144 = arith.subf %142, %143 : vector<128x32xf32>
    %145 = arith.select %139, %137, %144 : vector<128x32xi1>, vector<128x32xf32>
    %146 = vector.extract_strided_slice %125 {offsets = [0, 32], sizes = [128, 16], strides = [1, 1]} : vector<128x64xbf16> to vector<128x16xbf16>
    %147 = vector.extract_strided_slice %124 {offsets = [1, 0, 0, 0], sizes = [1, 1, 128, 128], strides = [1, 1, 1, 1]} : vector<2x2x128x128xbf16> to vector<1x1x128x128xbf16>
    %148 = vector.shape_cast %147 : vector<1x1x128x128xbf16> to vector<128x128xbf16>
    %cst_47 = arith.constant dense<0.000000e+00> : vector<128x16xf32>
    %149 = tpu.matmul %148, %146, %cst_47 {dimension_numbers = #tpu.dot_dimension_numbers<[1], [0], [0], [1], [0, 0, 1, 1], [], []>} : vector<128x128xbf16>, vector<128x16xbf16>, vector<128x16xf32> -> vector<128x16xf32>
    %150 = vector.extract_strided_slice %125 {offsets = [0, 48], sizes = [128, 16], strides = [1, 1]} : vector<128x64xbf16> to vector<128x16xbf16>
    %151 = vector.extract_strided_slice %124 {offsets = [1, 1, 0, 0], sizes = [1, 1, 128, 128], strides = [1, 1, 1, 1]} : vector<2x2x128x128xbf16> to vector<1x1x128x128xbf16>
    %152 = vector.shape_cast %151 : vector<1x1x128x128xbf16> to vector<128x128xbf16>
    %cst_48 = arith.constant dense<0.000000e+00> : vector<128x16xf32>
    %153 = tpu.matmul %152, %150, %cst_48 {dimension_numbers = #tpu.dot_dimension_numbers<[1], [0], [0], [1], [0, 0, 1, 1], [], []>} : vector<128x128xbf16>, vector<128x16xbf16>, vector<128x16xf32> -> vector<128x16xf32>
    %154 = tpu.concatenate %149, %153 in 1 : vector<128x16xf32>, vector<128x16xf32> -> vector<128x32xf32>
    %155 = vector.extract_strided_slice %89 {offsets = [1, 0], sizes = [1, 32], strides = [1, 1]} : vector<2x32xf32> to vector<1x32xf32>
    %156 = vector.broadcast %155 : vector<1x32xf32> to vector<128x32xf32>
    %157 = arith.addf %154, %156 : vector<128x32xf32>
    %cst_49 = arith.constant 0.000000e+00 : f32
    %158 = vector.broadcast %cst_49 : f32 to vector<128x32xf32>
    %159 = arith.cmpf ogt, %157, %158 : vector<128x32xf32>
    %cst_50 = arith.constant 0.000000e+00 : f32
    %160 = vector.broadcast %cst_50 : f32 to vector<128x32xf32>
    %161 = arith.minimumf %157, %160 : vector<128x32xf32>
    %162 = math.exp %161 : vector<128x32xf32>
    %cst_51 = arith.constant 1.000000e+00 : f32
    %163 = vector.broadcast %cst_51 : f32 to vector<128x32xf32>
    %164 = arith.subf %162, %163 : vector<128x32xf32>
    %165 = arith.select %159, %157, %164 : vector<128x32xi1>, vector<128x32xf32>
    %166 = arith.addf %145, %165 : vector<128x32xf32>
    %cst_52 = arith.constant 5.000000e-01 : f32
    %167 = vector.broadcast %cst_52 : f32 to vector<128x32xf32>
    %168 = arith.mulf %167, %166 : vector<128x32xf32>
    %c0_53 = arith.constant 0 : index
    %c0_54 = arith.constant 0 : index
    %169 = vector.load %arg10[%c0_53, %c0_54] : memref<32x64xbf16, #tpu.memory_space<vmem>>, vector<32x64xbf16>
    %c0_55 = arith.constant 0 : index
    %c0_56 = arith.constant 0 : index
    %170 = vector.load %arg11[%c0_55, %c0_56] : memref<32x8xf32, #tpu.memory_space<vmem>>, vector<32x8xf32>
    %c0_57 = arith.constant 0 : index
    %c0_58 = arith.constant 0 : index
    %171 = vector.load %arg12[%c0_57, %c0_58] : memref<2x32xf32, #tpu.memory_space<vmem>>, vector<2x32xf32>
    %172 = arith.truncf %168 : vector<128x32xf32> to vector<128x32xbf16>
    %cst_59 = arith.constant dense<0.000000e+00> : vector<128x64xf32>
    %173 = tpu.matmul %172, %169, %cst_59 {dimension_numbers = #tpu.dot_dimension_numbers<[1], [0], [0], [1], [0, 0, 1, 1], [], []>} : vector<128x32xbf16>, vector<32x64xbf16>, vector<128x64xf32> -> vector<128x64xf32>
    %cst_60 = arith.constant dense<0.000000e+00> : vector<128x8xf32>
    %174 = tpu.matmul %168, %170, %cst_60 {dimension_numbers = #tpu.dot_dimension_numbers<[1], [0], [0], [1], [0, 0, 1, 1], [], []>} : vector<128x32xf32>, vector<32x8xf32>, vector<128x8xf32> -> vector<128x8xf32>
    %175 = tpu.transpose %174, [1, 0] : vector<128x8xf32> -> vector<8x128xf32>
    %176 = vector.extract_strided_slice %175 {offsets = [0, 0], sizes = [4, 128], strides = [1, 1]} : vector<8x128xf32> to vector<4x128xf32>
    %177 = vector.extract_strided_slice %175 {offsets = [4, 0], sizes = [4, 128], strides = [1, 1]} : vector<8x128xf32> to vector<4x128xf32>
    %178 = vector.shape_cast %176 : vector<4x128xf32> to vector<4x128x1xf32>
    %179 = vector.shape_cast %177 : vector<4x128xf32> to vector<4x1x128xf32>
    %180 = vector.broadcast %178 : vector<4x128x1xf32> to vector<4x128x128xf32>
    %181 = vector.broadcast %179 : vector<4x1x128xf32> to vector<4x128x128xf32>
    %182 = arith.addf %180, %181 : vector<4x128x128xf32>
    %cst_61 = arith.constant 0.000000e+00 : f32
    %183 = vector.broadcast %cst_61 : f32 to vector<4x128x128xf32>
    %184 = arith.cmpf ogt, %182, %183 : vector<4x128x128xf32>
    %cst_62 = arith.constant 2.000000e-01 : f32
    %185 = vector.broadcast %cst_62 : f32 to vector<4x128x128xf32>
    %186 = arith.mulf %185, %182 : vector<4x128x128xf32>
    %187 = arith.select %184, %182, %186 : vector<4x128x128xi1>, vector<4x128x128xf32>
    %188 = vector.shape_cast %187 : vector<4x128x128xf32> to vector<2x2x128x128xf32>
    %189 = vector.shape_cast %4 : vector<2x128x128xf32> to vector<2x1x128x128xf32>
    %190 = vector.broadcast %189 : vector<2x1x128x128xf32> to vector<2x2x128x128xf32>
    %191 = arith.addf %188, %190 : vector<2x2x128x128xf32>
    %cst_63 = arith.constant dense<0xFF800000> : vector<2x2x128xf32>
    %192 = vector.multi_reduction <maximumf>, %191, %cst_63 [3] : vector<2x2x128x128xf32> to vector<2x2x128xf32>
    %193 = vector.shape_cast %192 : vector<2x2x128xf32> to vector<2x2x128x1xf32>
    %194 = vector.broadcast %193 : vector<2x2x128x1xf32> to vector<2x2x128x128xf32>
    %195 = arith.subf %191, %194 : vector<2x2x128x128xf32>
    %196 = math.exp %195 : vector<2x2x128x128xf32>
    %cst_64 = arith.constant dense<0.000000e+00> : vector<2x2x128xf32>
    %197 = vector.multi_reduction <add>, %196, %cst_64 [3] : vector<2x2x128x128xf32> to vector<2x2x128xf32>
    %198 = vector.shape_cast %197 : vector<2x2x128xf32> to vector<2x2x128x1xf32>
    %199 = tpu.reciprocal %198 {approx = true} : vector<2x2x128x1xf32> -> vector<2x2x128x1xf32>
    %200 = arith.mulf %198, %199 : vector<2x2x128x1xf32>
    %cst_65 = arith.constant 2.000000e+00 : f32
    %201 = vector.broadcast %cst_65 : f32 to vector<2x2x128x1xf32>
    %202 = arith.subf %201, %200 : vector<2x2x128x1xf32>
    %203 = arith.mulf %199, %202 : vector<2x2x128x1xf32>
    %204 = vector.broadcast %203 : vector<2x2x128x1xf32> to vector<2x2x128x128xf32>
    %205 = arith.mulf %196, %204 : vector<2x2x128x128xf32>
    %206 = arith.truncf %205 : vector<2x2x128x128xf32> to vector<2x2x128x128xbf16>
    %207 = arith.truncf %173 : vector<128x64xf32> to vector<128x64xbf16>
    %208 = vector.extract_strided_slice %207 {offsets = [0, 0], sizes = [128, 16], strides = [1, 1]} : vector<128x64xbf16> to vector<128x16xbf16>
    %209 = vector.extract_strided_slice %206 {offsets = [0, 0, 0, 0], sizes = [1, 1, 128, 128], strides = [1, 1, 1, 1]} : vector<2x2x128x128xbf16> to vector<1x1x128x128xbf16>
    %210 = vector.shape_cast %209 : vector<1x1x128x128xbf16> to vector<128x128xbf16>
    %cst_66 = arith.constant dense<0.000000e+00> : vector<128x16xf32>
    %211 = tpu.matmul %210, %208, %cst_66 {dimension_numbers = #tpu.dot_dimension_numbers<[1], [0], [0], [1], [0, 0, 1, 1], [], []>} : vector<128x128xbf16>, vector<128x16xbf16>, vector<128x16xf32> -> vector<128x16xf32>
    %212 = vector.extract_strided_slice %207 {offsets = [0, 16], sizes = [128, 16], strides = [1, 1]} : vector<128x64xbf16> to vector<128x16xbf16>
    %213 = vector.extract_strided_slice %206 {offsets = [0, 1, 0, 0], sizes = [1, 1, 128, 128], strides = [1, 1, 1, 1]} : vector<2x2x128x128xbf16> to vector<1x1x128x128xbf16>
    %214 = vector.shape_cast %213 : vector<1x1x128x128xbf16> to vector<128x128xbf16>
    %cst_67 = arith.constant dense<0.000000e+00> : vector<128x16xf32>
    %215 = tpu.matmul %214, %212, %cst_67 {dimension_numbers = #tpu.dot_dimension_numbers<[1], [0], [0], [1], [0, 0, 1, 1], [], []>} : vector<128x128xbf16>, vector<128x16xbf16>, vector<128x16xf32> -> vector<128x16xf32>
    %216 = tpu.concatenate %211, %215 in 1 : vector<128x16xf32>, vector<128x16xf32> -> vector<128x32xf32>
    %217 = vector.extract_strided_slice %171 {offsets = [0, 0], sizes = [1, 32], strides = [1, 1]} : vector<2x32xf32> to vector<1x32xf32>
    %218 = vector.broadcast %217 : vector<1x32xf32> to vector<128x32xf32>
    %219 = arith.addf %216, %218 : vector<128x32xf32>
    %cst_68 = arith.constant 0.000000e+00 : f32
    %220 = vector.broadcast %cst_68 : f32 to vector<128x32xf32>
    %221 = arith.cmpf ogt, %219, %220 : vector<128x32xf32>
    %cst_69 = arith.constant 0.000000e+00 : f32
    %222 = vector.broadcast %cst_69 : f32 to vector<128x32xf32>
    %223 = arith.minimumf %219, %222 : vector<128x32xf32>
    %224 = math.exp %223 : vector<128x32xf32>
    %cst_70 = arith.constant 1.000000e+00 : f32
    %225 = vector.broadcast %cst_70 : f32 to vector<128x32xf32>
    %226 = arith.subf %224, %225 : vector<128x32xf32>
    %227 = arith.select %221, %219, %226 : vector<128x32xi1>, vector<128x32xf32>
    %228 = vector.extract_strided_slice %207 {offsets = [0, 32], sizes = [128, 16], strides = [1, 1]} : vector<128x64xbf16> to vector<128x16xbf16>
    %229 = vector.extract_strided_slice %206 {offsets = [1, 0, 0, 0], sizes = [1, 1, 128, 128], strides = [1, 1, 1, 1]} : vector<2x2x128x128xbf16> to vector<1x1x128x128xbf16>
    %230 = vector.shape_cast %229 : vector<1x1x128x128xbf16> to vector<128x128xbf16>
    %cst_71 = arith.constant dense<0.000000e+00> : vector<128x16xf32>
    %231 = tpu.matmul %230, %228, %cst_71 {dimension_numbers = #tpu.dot_dimension_numbers<[1], [0], [0], [1], [0, 0, 1, 1], [], []>} : vector<128x128xbf16>, vector<128x16xbf16>, vector<128x16xf32> -> vector<128x16xf32>
    %232 = vector.extract_strided_slice %207 {offsets = [0, 48], sizes = [128, 16], strides = [1, 1]} : vector<128x64xbf16> to vector<128x16xbf16>
    %233 = vector.extract_strided_slice %206 {offsets = [1, 1, 0, 0], sizes = [1, 1, 128, 128], strides = [1, 1, 1, 1]} : vector<2x2x128x128xbf16> to vector<1x1x128x128xbf16>
    %234 = vector.shape_cast %233 : vector<1x1x128x128xbf16> to vector<128x128xbf16>
    %cst_72 = arith.constant dense<0.000000e+00> : vector<128x16xf32>
    %235 = tpu.matmul %234, %232, %cst_72 {dimension_numbers = #tpu.dot_dimension_numbers<[1], [0], [0], [1], [0, 0, 1, 1], [], []>} : vector<128x128xbf16>, vector<128x16xbf16>, vector<128x16xf32> -> vector<128x16xf32>
    %236 = tpu.concatenate %231, %235 in 1 : vector<128x16xf32>, vector<128x16xf32> -> vector<128x32xf32>
    %237 = vector.extract_strided_slice %171 {offsets = [1, 0], sizes = [1, 32], strides = [1, 1]} : vector<2x32xf32> to vector<1x32xf32>
    %238 = vector.broadcast %237 : vector<1x32xf32> to vector<128x32xf32>
    %239 = arith.addf %236, %238 : vector<128x32xf32>
    %cst_73 = arith.constant 0.000000e+00 : f32
    %240 = vector.broadcast %cst_73 : f32 to vector<128x32xf32>
    %241 = arith.cmpf ogt, %239, %240 : vector<128x32xf32>
    %cst_74 = arith.constant 0.000000e+00 : f32
    %242 = vector.broadcast %cst_74 : f32 to vector<128x32xf32>
    %243 = arith.minimumf %239, %242 : vector<128x32xf32>
    %244 = math.exp %243 : vector<128x32xf32>
    %cst_75 = arith.constant 1.000000e+00 : f32
    %245 = vector.broadcast %cst_75 : f32 to vector<128x32xf32>
    %246 = arith.subf %244, %245 : vector<128x32xf32>
    %247 = arith.select %241, %239, %246 : vector<128x32xi1>, vector<128x32xf32>
    %248 = arith.addf %227, %247 : vector<128x32xf32>
    %cst_76 = arith.constant 5.000000e-01 : f32
    %249 = vector.broadcast %cst_76 : f32 to vector<128x32xf32>
    %250 = arith.mulf %249, %248 : vector<128x32xf32>
    %c0_77 = arith.constant 0 : index
    %c0_78 = arith.constant 0 : index
    %251 = vector.load %arg13[%c0_77, %c0_78] : memref<32x32xbf16, #tpu.memory_space<vmem>>, vector<32x32xbf16>
    %c0_79 = arith.constant 0 : index
    %c0_80 = arith.constant 0 : index
    %252 = vector.load %arg14[%c0_79, %c0_80] : memref<32x4xf32, #tpu.memory_space<vmem>>, vector<32x4xf32>
    %c0_81 = arith.constant 0 : index
    %c0_82 = arith.constant 0 : index
    %253 = vector.load %arg15[%c0_81, %c0_82] : memref<2x16xf32, #tpu.memory_space<vmem>>, vector<2x16xf32>
    %254 = arith.truncf %250 : vector<128x32xf32> to vector<128x32xbf16>
    %cst_83 = arith.constant dense<0.000000e+00> : vector<128x32xf32>
    %255 = tpu.matmul %254, %251, %cst_83 {dimension_numbers = #tpu.dot_dimension_numbers<[1], [0], [0], [1], [0, 0, 1, 1], [], []>} : vector<128x32xbf16>, vector<32x32xbf16>, vector<128x32xf32> -> vector<128x32xf32>
    %cst_84 = arith.constant dense<0.000000e+00> : vector<128x4xf32>
    %256 = tpu.matmul %250, %252, %cst_84 {dimension_numbers = #tpu.dot_dimension_numbers<[1], [0], [0], [1], [0, 0, 1, 1], [], []>} : vector<128x32xf32>, vector<32x4xf32>, vector<128x4xf32> -> vector<128x4xf32>
    %257 = tpu.transpose %256, [1, 0] : vector<128x4xf32> -> vector<4x128xf32>
    %258 = vector.extract_strided_slice %257 {offsets = [0, 0], sizes = [2, 128], strides = [1, 1]} : vector<4x128xf32> to vector<2x128xf32>
    %259 = vector.extract_strided_slice %257 {offsets = [2, 0], sizes = [2, 128], strides = [1, 1]} : vector<4x128xf32> to vector<2x128xf32>
    %260 = vector.shape_cast %258 : vector<2x128xf32> to vector<2x128x1xf32>
    %261 = vector.shape_cast %259 : vector<2x128xf32> to vector<2x1x128xf32>
    %262 = vector.broadcast %260 : vector<2x128x1xf32> to vector<2x128x128xf32>
    %263 = vector.broadcast %261 : vector<2x1x128xf32> to vector<2x128x128xf32>
    %264 = arith.addf %262, %263 : vector<2x128x128xf32>
    %cst_85 = arith.constant 0.000000e+00 : f32
    %265 = vector.broadcast %cst_85 : f32 to vector<2x128x128xf32>
    %266 = arith.cmpf ogt, %264, %265 : vector<2x128x128xf32>
    %cst_86 = arith.constant 2.000000e-01 : f32
    %267 = vector.broadcast %cst_86 : f32 to vector<2x128x128xf32>
    %268 = arith.mulf %267, %264 : vector<2x128x128xf32>
    %269 = arith.select %266, %264, %268 : vector<2x128x128xi1>, vector<2x128x128xf32>
    %270 = vector.shape_cast %269 : vector<2x128x128xf32> to vector<2x1x128x128xf32>
    %271 = vector.shape_cast %4 : vector<2x128x128xf32> to vector<2x1x128x128xf32>
    %272 = arith.addf %270, %271 : vector<2x1x128x128xf32>
    %cst_87 = arith.constant dense<0xFF800000> : vector<2x1x128xf32>
    %273 = vector.multi_reduction <maximumf>, %272, %cst_87 [3] : vector<2x1x128x128xf32> to vector<2x1x128xf32>
    %274 = vector.shape_cast %273 : vector<2x1x128xf32> to vector<2x1x128x1xf32>
    %275 = vector.broadcast %274 : vector<2x1x128x1xf32> to vector<2x1x128x128xf32>
    %276 = arith.subf %272, %275 : vector<2x1x128x128xf32>
    %277 = math.exp %276 : vector<2x1x128x128xf32>
    %cst_88 = arith.constant dense<0.000000e+00> : vector<2x1x128xf32>
    %278 = vector.multi_reduction <add>, %277, %cst_88 [3] : vector<2x1x128x128xf32> to vector<2x1x128xf32>
    %279 = vector.shape_cast %278 : vector<2x1x128xf32> to vector<2x1x128x1xf32>
    %280 = tpu.reciprocal %279 {approx = true} : vector<2x1x128x1xf32> -> vector<2x1x128x1xf32>
    %281 = arith.mulf %279, %280 : vector<2x1x128x1xf32>
    %cst_89 = arith.constant 2.000000e+00 : f32
    %282 = vector.broadcast %cst_89 : f32 to vector<2x1x128x1xf32>
    %283 = arith.subf %282, %281 : vector<2x1x128x1xf32>
    %284 = arith.mulf %280, %283 : vector<2x1x128x1xf32>
    %285 = vector.broadcast %284 : vector<2x1x128x1xf32> to vector<2x1x128x128xf32>
    %286 = arith.mulf %277, %285 : vector<2x1x128x128xf32>
    %287 = arith.truncf %286 : vector<2x1x128x128xf32> to vector<2x1x128x128xbf16>
    %288 = arith.truncf %255 : vector<128x32xf32> to vector<128x32xbf16>
    %289 = vector.extract_strided_slice %288 {offsets = [0, 0], sizes = [128, 16], strides = [1, 1]} : vector<128x32xbf16> to vector<128x16xbf16>
    %290 = vector.extract_strided_slice %287 {offsets = [0, 0, 0, 0], sizes = [1, 1, 128, 128], strides = [1, 1, 1, 1]} : vector<2x1x128x128xbf16> to vector<1x1x128x128xbf16>
    %291 = vector.shape_cast %290 : vector<1x1x128x128xbf16> to vector<128x128xbf16>
    %cst_90 = arith.constant dense<0.000000e+00> : vector<128x16xf32>
    %292 = tpu.matmul %291, %289, %cst_90 {dimension_numbers = #tpu.dot_dimension_numbers<[1], [0], [0], [1], [0, 0, 1, 1], [], []>} : vector<128x128xbf16>, vector<128x16xbf16>, vector<128x16xf32> -> vector<128x16xf32>
    %cst_91 = arith.constant 1.000000e+00 : f32
    %293 = vector.broadcast %cst_91 : f32 to vector<128x16xf32>
    %294 = arith.mulf %292, %293 : vector<128x16xf32>
    %295 = vector.extract_strided_slice %253 {offsets = [0, 0], sizes = [1, 16], strides = [1, 1]} : vector<2x16xf32> to vector<1x16xf32>
    %296 = vector.broadcast %295 : vector<1x16xf32> to vector<128x16xf32>
    %297 = arith.addf %294, %296 : vector<128x16xf32>
    %cst_92 = arith.constant 0.000000e+00 : f32
    %298 = vector.broadcast %cst_92 : f32 to vector<128x16xf32>
    %299 = arith.cmpf ogt, %297, %298 : vector<128x16xf32>
    %cst_93 = arith.constant 0.000000e+00 : f32
    %300 = vector.broadcast %cst_93 : f32 to vector<128x16xf32>
    %301 = arith.minimumf %297, %300 : vector<128x16xf32>
    %302 = math.exp %301 : vector<128x16xf32>
    %cst_94 = arith.constant 1.000000e+00 : f32
    %303 = vector.broadcast %cst_94 : f32 to vector<128x16xf32>
    %304 = arith.subf %302, %303 : vector<128x16xf32>
    %305 = arith.select %299, %297, %304 : vector<128x16xi1>, vector<128x16xf32>
    %306 = vector.extract_strided_slice %288 {offsets = [0, 16], sizes = [128, 16], strides = [1, 1]} : vector<128x32xbf16> to vector<128x16xbf16>
    %307 = vector.extract_strided_slice %287 {offsets = [1, 0, 0, 0], sizes = [1, 1, 128, 128], strides = [1, 1, 1, 1]} : vector<2x1x128x128xbf16> to vector<1x1x128x128xbf16>
    %308 = vector.shape_cast %307 : vector<1x1x128x128xbf16> to vector<128x128xbf16>
    %cst_95 = arith.constant dense<0.000000e+00> : vector<128x16xf32>
    %309 = tpu.matmul %308, %306, %cst_95 {dimension_numbers = #tpu.dot_dimension_numbers<[1], [0], [0], [1], [0, 0, 1, 1], [], []>} : vector<128x128xbf16>, vector<128x16xbf16>, vector<128x16xf32> -> vector<128x16xf32>
    %cst_96 = arith.constant 1.000000e+00 : f32
    %310 = vector.broadcast %cst_96 : f32 to vector<128x16xf32>
    %311 = arith.mulf %309, %310 : vector<128x16xf32>
    %312 = vector.extract_strided_slice %253 {offsets = [1, 0], sizes = [1, 16], strides = [1, 1]} : vector<2x16xf32> to vector<1x16xf32>
    %313 = vector.broadcast %312 : vector<1x16xf32> to vector<128x16xf32>
    %314 = arith.addf %311, %313 : vector<128x16xf32>
    %cst_97 = arith.constant 0.000000e+00 : f32
    %315 = vector.broadcast %cst_97 : f32 to vector<128x16xf32>
    %316 = arith.cmpf ogt, %314, %315 : vector<128x16xf32>
    %cst_98 = arith.constant 0.000000e+00 : f32
    %317 = vector.broadcast %cst_98 : f32 to vector<128x16xf32>
    %318 = arith.minimumf %314, %317 : vector<128x16xf32>
    %319 = math.exp %318 : vector<128x16xf32>
    %cst_99 = arith.constant 1.000000e+00 : f32
    %320 = vector.broadcast %cst_99 : f32 to vector<128x16xf32>
    %321 = arith.subf %319, %320 : vector<128x16xf32>
    %322 = arith.select %316, %314, %321 : vector<128x16xi1>, vector<128x16xf32>
    %323 = arith.addf %305, %322 : vector<128x16xf32>
    %cst_100 = arith.constant 5.000000e-01 : f32
    %324 = vector.broadcast %cst_100 : f32 to vector<128x16xf32>
    %325 = arith.mulf %324, %323 : vector<128x16xf32>
    %326 = tpu.transpose %325, [1, 0] : vector<128x16xf32> -> vector<16x128xf32>
    %c0_101 = arith.constant 0 : index
    %c0_102 = arith.constant 0 : index
    %c0_103 = arith.constant 0 : index
    %327 = vector.load %arg16[%c0_101, %c0_102, %c0_103] : memref<1x16x128xf32, #tpu.memory_space<vmem>>, vector<1x16x128xf32>
    %328 = vector.shape_cast %327 : vector<1x16x128xf32> to vector<16x128xf32>
    %329 = vector.shape_cast %326 : vector<16x128xf32> to vector<1x16x128xf32>
    tpu.vector_store %arg16[%c0_101, %c0_102, %c0_103], %329 {strides = array<i32>} : memref<1x16x128xf32, #tpu.memory_space<vmem>>, vector<1x16x128xf32>,
    %c0_104 = arith.constant 0 : index
    %c0_105 = arith.constant 0 : index
    %330 = vector.load %arg3[%c0_104, %c0_105] : memref<16x128xf32, #tpu.memory_space<vmem>>, vector<16x128xf32>
    %cst_106 = arith.constant dense<0.000000e+00> : vector<16x16xf32>
    %331 = tpu.matmul %330, %325, %cst_106 {dimension_numbers = #tpu.dot_dimension_numbers<[1], [0], [0], [1], [0, 0, 1, 1], [], []>} : vector<16x128xf32>, vector<128x16xf32>, vector<16x16xf32> -> vector<16x16xf32>
    %c0_107 = arith.constant 0 : index
    %c0_108 = arith.constant 0 : index
    %c0_109 = arith.constant 0 : index
    %332 = vector.load %arg17[%c0_107, %c0_108, %c0_109] : memref<1x16x16xf32, #tpu.memory_space<vmem>>, vector<1x16x16xf32>
    %333 = vector.shape_cast %332 : vector<1x16x16xf32> to vector<16x16xf32>
    %334 = vector.shape_cast %331 : vector<16x16xf32> to vector<1x16x16xf32>
    tpu.vector_store %arg17[%c0_107, %c0_108, %c0_109], %334 {strides = array<i32>} : memref<1x16x16xf32, #tpu.memory_space<vmem>>, vector<1x16x16xf32>,
    return
  }
  func.func @transform_0(%arg0: i32) -> (i32, i32, i32) {
    %c0_i32 = arith.constant 0 : i32
    %c0_i32_0 = arith.constant 0 : i32
    %c0_i32_1 = arith.constant 0 : i32
    return %arg0, %c0_i32, %c0_i32_0 : i32, i32, i32
  }
  func.func @transform_1(%arg0: i32) -> (i32, i32, i32, i32) {
    %c0_i32 = arith.constant 0 : i32
    %c0_i32_0 = arith.constant 0 : i32
    %c0_i32_1 = arith.constant 0 : i32
    %c0_i32_2 = arith.constant 0 : i32
    return %arg0, %c0_i32, %c0_i32_0, %c0_i32_1 : i32, i32, i32, i32
  }
  func.func @transform_2(%arg0: i32) -> (i32, i32) {
    %c0_i32 = arith.constant 0 : i32
    %c0_i32_0 = arith.constant 0 : i32
    %c0_i32_1 = arith.constant 0 : i32
    return %c0_i32, %c0_i32_0 : i32, i32
  }
  func.func @transform_3(%arg0: i32) -> (i32, i32) {
    %c0_i32 = arith.constant 0 : i32
    %c0_i32_0 = arith.constant 0 : i32
    %c0_i32_1 = arith.constant 0 : i32
    return %c0_i32, %c0_i32_0 : i32, i32
  }
  func.func @transform_4(%arg0: i32) -> (i32, i32) {
    %c0_i32 = arith.constant 0 : i32
    %c0_i32_0 = arith.constant 0 : i32
    %c0_i32_1 = arith.constant 0 : i32
    return %c0_i32, %c0_i32_0 : i32, i32
  }
  func.func @transform_5(%arg0: i32) -> (i32, i32) {
    %c0_i32 = arith.constant 0 : i32
    %c0_i32_0 = arith.constant 0 : i32
    %c0_i32_1 = arith.constant 0 : i32
    return %c0_i32, %c0_i32_0 : i32, i32
  }
  func.func @transform_6(%arg0: i32) -> (i32, i32) {
    %c0_i32 = arith.constant 0 : i32
    %c0_i32_0 = arith.constant 0 : i32
    %c0_i32_1 = arith.constant 0 : i32
    return %c0_i32, %c0_i32_0 : i32, i32
  }
  func.func @transform_7(%arg0: i32) -> (i32, i32) {
    %c0_i32 = arith.constant 0 : i32
    %c0_i32_0 = arith.constant 0 : i32
    %c0_i32_1 = arith.constant 0 : i32
    return %c0_i32, %c0_i32_0 : i32, i32
  }
  func.func @transform_8(%arg0: i32) -> (i32, i32) {
    %c0_i32 = arith.constant 0 : i32
    %c0_i32_0 = arith.constant 0 : i32
    %c0_i32_1 = arith.constant 0 : i32
    return %c0_i32, %c0_i32_0 : i32, i32
  }
  func.func @transform_9(%arg0: i32) -> (i32, i32) {
    %c0_i32 = arith.constant 0 : i32
    %c0_i32_0 = arith.constant 0 : i32
    %c0_i32_1 = arith.constant 0 : i32
    return %c0_i32, %c0_i32_0 : i32, i32
  }
  func.func @transform_10(%arg0: i32) -> (i32, i32) {
    %c0_i32 = arith.constant 0 : i32
    %c0_i32_0 = arith.constant 0 : i32
    %c0_i32_1 = arith.constant 0 : i32
    return %c0_i32, %c0_i32_0 : i32, i32
  }
  func.func @transform_11(%arg0: i32) -> (i32, i32) {
    %c0_i32 = arith.constant 0 : i32
    %c0_i32_0 = arith.constant 0 : i32
    %c0_i32_1 = arith.constant 0 : i32
    return %c0_i32, %c0_i32_0 : i32, i32
  }
  func.func @transform_12(%arg0: i32) -> (i32, i32) {
    %c0_i32 = arith.constant 0 : i32
    %c0_i32_0 = arith.constant 0 : i32
    %c0_i32_1 = arith.constant 0 : i32
    return %c0_i32, %c0_i32_0 : i32, i32
  }
  func.func @transform_13(%arg0: i32) -> (i32, i32) {
    %c0_i32 = arith.constant 0 : i32
    %c0_i32_0 = arith.constant 0 : i32
    %c0_i32_1 = arith.constant 0 : i32
    return %c0_i32, %c0_i32_0 : i32, i32
  }
  func.func @transform_14(%arg0: i32) -> (i32, i32) {
    %c0_i32 = arith.constant 0 : i32
    %c0_i32_0 = arith.constant 0 : i32
    %c0_i32_1 = arith.constant 0 : i32
    return %c0_i32, %c0_i32_0 : i32, i32
  }
  func.func @transform_15(%arg0: i32) -> (i32, i32, i32) {
    %c0_i32 = arith.constant 0 : i32
    %c0_i32_0 = arith.constant 0 : i32
    %c0_i32_1 = arith.constant 0 : i32
    return %arg0, %c0_i32, %c0_i32_0 : i32, i32, i32
  }
  func.func @transform_16(%arg0: i32) -> (i32, i32, i32) {
    %c0_i32 = arith.constant 0 : i32
    %c0_i32_0 = arith.constant 0 : i32
    %c0_i32_1 = arith.constant 0 : i32
    return %arg0, %c0_i32, %c0_i32_0 : i32, i32, i32
  }
}

</mosaic_0001>

<llo_original>
// kernel: tpu_custom_call.1
$region0: #{tpu_custom_call.1}
  #allocation0 [shape = 'u32[]', space=smem, size = 0x4, offset = 0x4, fixed_abs, tag = 'smem constant byte address 0x4 - core index']
  #allocation1 [shape = 'u32[72,128]{1,0:T(1,128)}', space=vmem, size = 0x9000, scoped, tag = 'internal scratch']
  %s0 = inlined_call_operand.vmem [shape: f32[2,128,8], index: 0, kind: input, shape index: {}]
  %s1 = inlined_call_operand.vmem [shape: bf16[2,2,128,128], index: 1, kind: input, shape index: {}]
  %s2 = inlined_call_operand.vmem [shape: f32[16,128], index: 2, kind: input, shape index: {}]
  %s3 = inlined_call_operand.vmem [shape: bf16[8,64], index: 3, kind: input, shape index: {}]
  %s4 = inlined_call_operand.vmem [shape: f32[8,8], index: 4, kind: input, shape index: {}]
  %s5 = inlined_call_operand.vmem [shape: f32[2,32], index: 5, kind: input, shape index: {}]
  %s6 = inlined_call_operand.vmem [shape: bf16[32,64], index: 6, kind: input, shape index: {}]
  %s7 = inlined_call_operand.vmem [shape: f32[32,8], index: 7, kind: input, shape index: {}]
  %s8 = inlined_call_operand.vmem [shape: f32[2,32], index: 8, kind: input, shape index: {}]
  %s9 = inlined_call_operand.vmem [shape: bf16[32,64], index: 9, kind: input, shape index: {}]
  %s10 = inlined_call_operand.vmem [shape: f32[32,8], index: 10, kind: input, shape index: {}]
  %s11 = inlined_call_operand.vmem [shape: f32[2,32], index: 11, kind: input, shape index: {}]
  %s12 = inlined_call_operand.vmem [shape: bf16[32,32], index: 12, kind: input, shape index: {}]
  %s13 = inlined_call_operand.vmem [shape: f32[32,4], index: 13, kind: input, shape index: {}]
  %s14 = inlined_call_operand.vmem [shape: f32[2,16], index: 14, kind: input, shape index: {}]
  %s15 = inlined_call_operand.hbm [shape: f32[2,16,128], index: 15, kind: output, shape index: {0}]
  %s16 = inlined_call_operand.hbm [shape: f32[2,16,16], index: 16, kind: output, shape index: {1}]
  %17 = xla_tuple %s15, %s16
  %s18 = sld [smem:[#allocation0]]
  $region101: #{tpu_custom_call.1} parent=0
    _
  %s20 = ssub.s32 1, %s18
  %s21 = scalar_select 0, %s20, %s18
  $region1: #{tpu_custom_call.1} parent=0
    #allocation2 [shape = 'u8[16384]{0}', space=vmem, size = 0x4000, scoped, tag = 'output window, operand 0']
    #allocation3 [shape = 's32[2]{0}', space=sflag, size = 0x8, scoped, tag = 'scoped memory for tpu_custom_call.1']
    #allocation4 [shape = 'u8[16384]{0}', space=vmem, size = 0x4000, scoped, tag = 'output window, operand 1']
    #allocation5 [shape = 's32[2]{0}', space=sflag, size = 0x8, scoped, tag = 'scoped memory for tpu_custom_call.1']
    %22 = vsyncpa [#allocation3], 0
    %s23 = scalar_lea.sflag [#allocation3], 1
    %24 = vsyncpa %s23, 0
    %25 = vsyncpa [#allocation5], 0
    %s26 = scalar_lea.sflag [#allocation5], 1
    %27 = vsyncpa %s26, 0
    loop: start=0, step=1, limit=4
    $region2: #{tpu_custom_call.1} parent=1 // loop_pre_header
      _
    $region3: #{tpu_custom_call.1} parent=1 // loop_header
      %s29 = sphi 0, %s33
      %p30 = scmp.ge.s32.totalorder %s29, 4
      %s39 = sphi 0, %s41
      %s42 = sphi 0, %s39
      %s43 = sphi 0, %s42
      %s59 = sphi 0, %s43
      %s65 = sphi 0, %s67
      %s68 = sphi 0, %s65
      %s69 = sphi 0, %s68
      %s85 = sphi 0, %s69
      %s89 = sphi 0, %s89
      %s91 = sphi 0, %s89
      %s92 = sphi 0, %s91
      %s106 = sphi 0, %s92
      %s110 = sphi 0, %s110
      %s112 = sphi 0, %s110
      %s113 = sphi 0, %s112
      %s127 = sphi 0, %s113
      %s131 = sphi 0, %s131
      %s133 = sphi 0, %s131
      %s134 = sphi 0, %s133
      %s148 = sphi 0, %s134
      %s152 = sphi 0, %s152
      %s154 = sphi 0, %s152
      %s155 = sphi 0, %s154
      %s169 = sphi 0, %s155
      %s173 = sphi 0, %s173
      %s175 = sphi 0, %s173
      %s176 = sphi 0, %s175
      %s190 = sphi 0, %s176
      %s194 = sphi 0, %s194
      %s196 = sphi 0, %s194
      %s197 = sphi 0, %s196
      %s211 = sphi 0, %s197
      %s215 = sphi 0, %s215
      %s217 = sphi 0, %s215
      %s218 = sphi 0, %s217
      %s232 = sphi 0, %s218
      %s236 = sphi 0, %s236
      %s238 = sphi 0, %s236
      %s239 = sphi 0, %s238
      %s253 = sphi 0, %s239
      %s257 = sphi 0, %s257
      %s259 = sphi 0, %s257
      %s260 = sphi 0, %s259
      %s274 = sphi 0, %s260
      %s278 = sphi 0, %s278
      %s280 = sphi 0, %s278
      %s281 = sphi 0, %s280
      %s295 = sphi 0, %s281
      %s299 = sphi 0, %s299
      %s301 = sphi 0, %s299
      %s302 = sphi 0, %s301
      %s316 = sphi 0, %s302
      %s320 = sphi 0, %s320
      %s322 = sphi 0, %s320
      %s323 = sphi 0, %s322
      %s337 = sphi 0, %s323
      %s341 = sphi 0, %s341
      %s343 = sphi 0, %s341
      %s344 = sphi 0, %s343
      %s358 = sphi 0, %s344
      %s364 = sphi 0, %s366
      %s367 = sphi 0, %s364
      %s368 = sphi 0, %s367
      %s384 = sphi 0, %s368
      %s390 = sphi 0, %s392
      %s393 = sphi 0, %s390
      %s394 = sphi 0, %s393
      %s410 = sphi 0, %s394
    $region4: #{tpu_custom_call.1} parent=1 // loop_header_branch
      %32 = sbr.rel (%p30) target = $region8
    $region5: #{tpu_custom_call.1} parent=1 // loop_body
      %s34 = ssub.s32 %s29, 1
      %s35 = ssub.s32 %s29, 2
      %s36 = sadd.s32 %s29, 1
      %s37 = ssub.s32 %s29, %s36
      %p38 = scmp.eq.s32.totalorder %s37, 0
      %s40 = sadd.s32 %s39, 1
      %s41 = scalar_select %p38, %s39, %s40
      %p44 = pneg %p38
      %p45 = scmp.eq.s32.totalorder %s29, 1
      %p46 = por %p44, %p45
      %p47 = scmp.ne.s32.totalorder %s39, %s42
      %p48 = scmp.eq.s32.totalorder %s29, 0
      %p49 = por %p47, %p48
      %p50 = scmp.ne.s32.totalorder %s39, %s42
      %p51 = scmp.eq.s32.totalorder %s34, 1
      %p52 = por %p50, %p51
      %p53 = scmp.ne.s32.totalorder %s42, %s43
      %p54 = scmp.eq.s32.totalorder %s34, 0
      %p55 = por %p53, %p54
      %p56 = scmp.ne.s32.totalorder %s42, %s43
      %p57 = scmp.eq.s32.totalorder %s35, 1
      %p58 = por %p56, %p57
      %p60 = scmp.ne.s32.totalorder %s43, %s59
      %p61 = scmp.eq.s32.totalorder %s35, 0
      %p62 = por %p60, %p61
      %s63 = ssub.s32 %s29, %s36
      %p64 = scmp.eq.s32.totalorder %s63, 0
      %s66 = sadd.s32 %s65, 1
      %s67 = scalar_select %p64, %s65, %s66
      %p70 = pneg %p64
      %p71 = scmp.eq.s32.totalorder %s29, 1
      %p72 = por %p70, %p71
      %p73 = scmp.ne.s32.totalorder %s65, %s68
      %p74 = scmp.eq.s32.totalorder %s29, 0
      %p75 = por %p73, %p74
      %p76 = scmp.ne.s32.totalorder %s65, %s68
      %p77 = scmp.eq.s32.totalorder %s34, 1
      %p78 = por %p76, %p77
      %p79 = scmp.ne.s32.totalorder %s68, %s69
      %p80 = scmp.eq.s32.totalorder %s34, 0
      %p81 = por %p79, %p80
      %p82 = scmp.ne.s32.totalorder %s68, %s69
      %p83 = scmp.eq.s32.totalorder %s35, 1
      %p84 = por %p82, %p83
      %p86 = scmp.ne.s32.totalorder %s69, %s85
      %p87 = scmp.eq.s32.totalorder %s35, 0
      %p88 = por %p86, %p87
      %s90 = sadd.s32 %s89, 1
      %p93 = scmp.eq.s32.totalorder %s29, 1
      %p94 = scmp.ne.s32.totalorder %s89, %s91
      %p95 = scmp.eq.s32.totalorder %s29, 0
      %p96 = por %p94, %p95
      %p97 = scmp.ne.s32.totalorder %s89, %s91
      %p98 = scmp.eq.s32.totalorder %s34, 1
      %p99 = por %p97, %p98
      %p100 = scmp.ne.s32.totalorder %s91, %s92
      %p101 = scmp.eq.s32.totalorder %s34, 0
      %p102 = por %p100, %p101
      %p103 = scmp.ne.s32.totalorder %s91, %s92
      %p104 = scmp.eq.s32.totalorder %s35, 1
      %p105 = por %p103, %p104
      %p107 = scmp.ne.s32.totalorder %s92, %s106
      %p108 = scmp.eq.s32.totalorder %s35, 0
      %p109 = por %p107, %p108
      %s111 = sadd.s32 %s110, 1
      %p114 = scmp.eq.s32.totalorder %s29, 1
      %p115 = scmp.ne.s32.totalorder %s110, %s112
      %p116 = scmp.eq.s32.totalorder %s29, 0
      %p117 = por %p115, %p116
      %p118 = scmp.ne.s32.totalorder %s110, %s112
      %p119 = scmp.eq.s32.totalorder %s34, 1
      %p120 = por %p118, %p119
      %p121 = scmp.ne.s32.totalorder %s112, %s113
      %p122 = scmp.eq.s32.totalorder %s34, 0
      %p123 = por %p121, %p122
      %p124 = scmp.ne.s32.totalorder %s112, %s113
      %p125 = scmp.eq.s32.totalorder %s35, 1
      %p126 = por %p124, %p125
      %p128 = scmp.ne.s32.totalorder %s113, %s127
      %p129 = scmp.eq.s32.totalorder %s35, 0
      %p130 = por %p128, %p129
      %s132 = sadd.s32 %s131, 1
      %p135 = scmp.eq.s32.totalorder %s29, 1
      %p136 = scmp.ne.s32.totalorder %s131, %s133
      %p137 = scmp.eq.s32.totalorder %s29, 0
      %p138 = por %p136, %p137
      %p139 = scmp.ne.s32.totalorder %s131, %s133
      %p140 = scmp.eq.s32.totalorder %s34, 1
      %p141 = por %p139, %p140
      %p142 = scmp.ne.s32.totalorder %s133, %s134
      %p143 = scmp.eq.s32.totalorder %s34, 0
      %p144 = por %p142, %p143
      %p145 = scmp.ne.s32.totalorder %s133, %s134
      %p146 = scmp.eq.s32.totalorder %s35, 1
      %p147 = por %p145, %p146
      %p149 = scmp.ne.s32.totalorder %s134, %s148
      %p150 = scmp.eq.s32.totalorder %s35, 0
      %p151 = por %p149, %p150
      %s153 = sadd.s32 %s152, 1
      %p156 = scmp.eq.s32.totalorder %s29, 1
      %p157 = scmp.ne.s32.totalorder %s152, %s154
      %p158 = scmp.eq.s32.totalorder %s29, 0
      %p159 = por %p157, %p158
      %p160 = scmp.ne.s32.totalorder %s152, %s154
      %p161 = scmp.eq.s32.totalorder %s34, 1
      %p162 = por %p160, %p161
      %p163 = scmp.ne.s32.totalorder %s154, %s155
      %p164 = scmp.eq.s32.totalorder %s34, 0
      %p165 = por %p163, %p164
      %p166 = scmp.ne.s32.totalorder %s154, %s155
      %p167 = scmp.eq.s32.totalorder %s35, 1
      %p168 = por %p166, %p167
      %p170 = scmp.ne.s32.totalorder %s155, %s169
      %p171 = scmp.eq.s32.totalorder %s35, 0
      %p172 = por %p170, %p171
      %s174 = sadd.s32 %s173, 1
      %p177 = scmp.eq.s32.totalorder %s29, 1
      %p178 = scmp.ne.s32.totalorder %s173, %s175
      %p179 = scmp.eq.s32.totalorder %s29, 0
      %p180 = por %p178, %p179
      %p181 = scmp.ne.s32.totalorder %s173, %s175
      %p182 = scmp.eq.s32.totalorder %s34, 1
      %p183 = por %p181, %p182
      %p184 = scmp.ne.s32.totalorder %s175, %s176
      %p185 = scmp.eq.s32.totalorder %s34, 0
      %p186 = por %p184, %p185
      %p187 = scmp.ne.s32.totalorder %s175, %s176
      %p188 = scmp.eq.s32.totalorder %s35, 1
      %p189 = por %p187, %p188
      %p191 = scmp.ne.s32.totalorder %s176, %s190
      %p192 = scmp.eq.s32.totalorder %s35, 0
      %p193 = por %p191, %p192
      %s195 = sadd.s32 %s194, 1
      %p198 = scmp.eq.s32.totalorder %s29, 1
      %p199 = scmp.ne.s32.totalorder %s194, %s196
      %p200 = scmp.eq.s32.totalorder %s29, 0
      %p201 = por %p199, %p200
      %p202 = scmp.ne.s32.totalorder %s194, %s196
      %p203 = scmp.eq.s32.totalorder %s34, 1
      %p204 = por %p202, %p203
      %p205 = scmp.ne.s32.totalorder %s196, %s197
      %p206 = scmp.eq.s32.totalorder %s34, 0
      %p207 = por %p205, %p206
      %p208 = scmp.ne.s32.totalorder %s196, %s197
      %p209 = scmp.eq.s32.totalorder %s35, 1
      %p210 = por %p208, %p209
      %p212 = scmp.ne.s32.totalorder %s197, %s211
      %p213 = scmp.eq.s32.totalorder %s35, 0
      %p214 = por %p212, %p213
      %s216 = sadd.s32 %s215, 1
      %p219 = scmp.eq.s32.totalorder %s29, 1
      %p220 = scmp.ne.s32.totalorder %s215, %s217
      %p221 = scmp.eq.s32.totalorder %s29, 0
      %p222 = por %p220, %p221
      %p223 = scmp.ne.s32.totalorder %s215, %s217
      %p224 = scmp.eq.s32.totalorder %s34, 1
      %p225 = por %p223, %p224
      %p226 = scmp.ne.s32.totalorder %s217, %s218
      %p227 = scmp.eq.s32.totalorder %s34, 0
      %p228 = por %p226, %p227
      %p229 = scmp.ne.s32.totalorder %s217, %s218
      %p230 = scmp.eq.s32.totalorder %s35, 1
      %p231 = por %p229, %p230
      %p233 = scmp.ne.s32.totalorder %s218, %s232
      %p234 = scmp.eq.s32.totalorder %s35, 0
      %p235 = por %p233, %p234
      %s237 = sadd.s32 %s236, 1
      %p240 = scmp.eq.s32.totalorder %s29, 1
      %p241 = scmp.ne.s32.totalorder %s236, %s238
      %p242 = scmp.eq.s32.totalorder %s29, 0
      %p243 = por %p241, %p242
      %p244 = scmp.ne.s32.totalorder %s236, %s238
      %p245 = scmp.eq.s32.totalorder %s34, 1
      %p246 = por %p244, %p245
      %p247 = scmp.ne.s32.totalorder %s238, %s239
      %p248 = scmp.eq.s32.totalorder %s34, 0
      %p249 = por %p247, %p248
      %p250 = scmp.ne.s32.totalorder %s238, %s239
      %p251 = scmp.eq.s32.totalorder %s35, 1
      %p252 = por %p250, %p251
      %p254 = scmp.ne.s32.totalorder %s239, %s253
      %p255 = scmp.eq.s32.totalorder %s35, 0
      %p256 = por %p254, %p255
      %s258 = sadd.s32 %s257, 1
      %p261 = scmp.eq.s32.totalorder %s29, 1
      %p262 = scmp.ne.s32.totalorder %s257, %s259
      %p263 = scmp.eq.s32.totalorder %s29, 0
      %p264 = por %p262, %p263
      %p265 = scmp.ne.s32.totalorder %s257, %s259
      %p266 = scmp.eq.s32.totalorder %s34, 1
      %p267 = por %p265, %p266
      %p268 = scmp.ne.s32.totalorder %s259, %s260
      %p269 = scmp.eq.s32.totalorder %s34, 0
      %p270 = por %p268, %p269
      %p271 = scmp.ne.s32.totalorder %s259, %s260
      %p272 = scmp.eq.s32.totalorder %s35, 1
      %p273 = por %p271, %p272
      %p275 = scmp.ne.s32.totalorder %s260, %s274
      %p276 = scmp.eq.s32.totalorder %s35, 0
      %p277 = por %p275, %p276
      %s279 = sadd.s32 %s278, 1
      %p282 = scmp.eq.s32.totalorder %s29, 1
      %p283 = scmp.ne.s32.totalorder %s278, %s280
      %p284 = scmp.eq.s32.totalorder %s29, 0
      %p285 = por %p283, %p284
      %p286 = scmp.ne.s32.totalorder %s278, %s280
      %p287 = scmp.eq.s32.totalorder %s34, 1
      %p288 = por %p286, %p287
      %p289 = scmp.ne.s32.totalorder %s280, %s281
      %p290 = scmp.eq.s32.totalorder %s34, 0
      %p291 = por %p289, %p290
      %p292 = scmp.ne.s32.totalorder %s280, %s281
      %p293 = scmp.eq.s32.totalorder %s35, 1
      %p294 = por %p292, %p293
      %p296 = scmp.ne.s32.totalorder %s281, %s295
      %p297 = scmp.eq.s32.totalorder %s35, 0
      %p298 = por %p296, %p297
      %s300 = sadd.s32 %s299, 1
      %p303 = scmp.eq.s32.totalorder %s29, 1
      %p304 = scmp.ne.s32.totalorder %s299, %s301
      %p305 = scmp.eq.s32.totalorder %s29, 0
      %p306 = por %p304, %p305
      %p307 = scmp.ne.s32.totalorder %s299, %s301
      %p308 = scmp.eq.s32.totalorder %s34, 1
      %p309 = por %p307, %p308
      %p310 = scmp.ne.s32.totalorder %s301, %s302
      %p311 = scmp.eq.s32.totalorder %s34, 0
      %p312 = por %p310, %p311
      %p313 = scmp.ne.s32.totalorder %s301, %s302
      %p314 = scmp.eq.s32.totalorder %s35, 1
      %p315 = por %p313, %p314
      %p317 = scmp.ne.s32.totalorder %s302, %s316
      %p318 = scmp.eq.s32.totalorder %s35, 0
      %p319 = por %p317, %p318
      %s321 = sadd.s32 %s320, 1
      %p324 = scmp.eq.s32.totalorder %s29, 1
      %p325 = scmp.ne.s32.totalorder %s320, %s322
      %p326 = scmp.eq.s32.totalorder %s29, 0
      %p327 = por %p325, %p326
      %p328 = scmp.ne.s32.totalorder %s320, %s322
      %p329 = scmp.eq.s32.totalorder %s34, 1
      %p330 = por %p328, %p329
      %p331 = scmp.ne.s32.totalorder %s322, %s323
      %p332 = scmp.eq.s32.totalorder %s34, 0
      %p333 = por %p331, %p332
      %p334 = scmp.ne.s32.totalorder %s322, %s323
      %p335 = scmp.eq.s32.totalorder %s35, 1
      %p336 = por %p334, %p335
      %p338 = scmp.ne.s32.totalorder %s323, %s337
      %p339 = scmp.eq.s32.totalorder %s35, 0
      %p340 = por %p338, %p339
      %s342 = sadd.s32 %s341, 1
      %p345 = scmp.eq.s32.totalorder %s29, 1
      %p346 = scmp.ne.s32.totalorder %s341, %s343
      %p347 = scmp.eq.s32.totalorder %s29, 0
      %p348 = por %p346, %p347
      %p349 = scmp.ne.s32.totalorder %s341, %s343
      %p350 = scmp.eq.s32.totalorder %s34, 1
      %p351 = por %p349, %p350
      %p352 = scmp.ne.s32.totalorder %s343, %s344
      %p353 = scmp.eq.s32.totalorder %s34, 0
      %p354 = por %p352, %p353
      %p355 = scmp.ne.s32.totalorder %s343, %s344
      %p356 = scmp.eq.s32.totalorder %s35, 1
      %p357 = por %p355, %p356
      %p359 = scmp.ne.s32.totalorder %s344, %s358
      %p360 = scmp.eq.s32.totalorder %s35, 0
      %p361 = por %p359, %p360
      %s362 = ssub.s32 %s29, %s36
      %p363 = scmp.eq.s32.totalorder %s362, 0
      %s365 = sadd.s32 %s364, 1
      %s366 = scalar_select %p363, %s364, %s365
      %p369 = pneg %p363
      %p370 = scmp.eq.s32.totalorder %s29, 1
      %p371 = por %p369, %p370
      %p372 = scmp.ne.s32.totalorder %s364, %s367
      %p373 = scmp.eq.s32.totalorder %s29, 0
      %p374 = por %p372, %p373
      %p375 = scmp.ne.s32.totalorder %s364, %s367
      %p376 = scmp.eq.s32.totalorder %s34, 1
      %p377 = por %p375, %p376
      %p378 = scmp.ne.s32.totalorder %s367, %s368
      %p379 = scmp.eq.s32.totalorder %s34, 0
      %p380 = por %p378, %p379
      %p381 = scmp.ne.s32.totalorder %s367, %s368
      %p382 = scmp.eq.s32.totalorder %s35, 1
      %p383 = por %p381, %p382
      %p385 = scmp.ne.s32.totalorder %s368, %s384
      %p386 = scmp.eq.s32.totalorder %s35, 0
      %p387 = por %p385, %p386
      %s388 = ssub.s32 %s29, %s36
      %p389 = scmp.eq.s32.totalorder %s388, 0
      %s391 = sadd.s32 %s390, 1
      %s392 = scalar_select %p389, %s390, %s391
      %p395 = pneg %p389
      %p396 = scmp.eq.s32.totalorder %s29, 1
      %p397 = por %p395, %p396
      %p398 = scmp.ne.s32.totalorder %s390, %s393
      %p399 = scmp.eq.s32.totalorder %s29, 0
      %p400 = por %p398, %p399
      %p401 = scmp.ne.s32.totalorder %s390, %s393
      %p402 = scmp.eq.s32.totalorder %s34, 1
      %p403 = por %p401, %p402
      %p404 = scmp.ne.s32.totalorder %s393, %s394
      %p405 = scmp.eq.s32.totalorder %s34, 0
      %p406 = por %p404, %p405
      %p407 = scmp.ne.s32.totalorder %s393, %s394
      %p408 = scmp.eq.s32.totalorder %s35, 1
      %p409 = por %p407, %p408
      %p411 = scmp.ne.s32.totalorder %s394, %s410
      %p412 = scmp.eq.s32.totalorder %s35, 0
      %p413 = por %p411, %p412
      %p414 = scmp.le.s32.totalorder 1, %s29
      %p415 = scmp.lt.s32.totalorder %s29, 3
      %p416 = pnand %p414, %p415
      %p417 = pneg %p416
      // Predicated region
      $region9: #{tpu_custom_call.1} parent=5 // pred_check
        _
      $region10: #{tpu_custom_call.1} parent=5 // pred_check_branch
        %419 = sbr.rel (%p416) target = $region12
      $region11: #{tpu_custom_call.1} parent=5 // pred_region
        %s420 = ssub.s32 %s29, 1
        // Predicated region
        $region13: #{tpu_custom_call.1} parent=11 // pred_check
          %p421 = pneg %p102
        $region14: #{tpu_custom_call.1} parent=11 // pred_check_branch
          %423 = sbr.rel (%p421) target = $region16
        $region15: #{tpu_custom_call.1} parent=11 // pred_region
          _
        $region16: #{tpu_custom_call.1} parent=11 // pred_fallthru
          _
        // Predicated region
        $region17: #{tpu_custom_call.1} parent=11 // pred_check
          %p424 = pneg %p123
        $region18: #{tpu_custom_call.1} parent=11 // pred_check_branch
          %426 = sbr.rel (%p424) target = $region20
        $region19: #{tpu_custom_call.1} parent=11 // pred_region
          _
        $region20: #{tpu_custom_call.1} parent=11 // pred_fallthru
          _
        // Predicated region
        $region21: #{tpu_custom_call.1} parent=11 // pred_check
          %p427 = pneg %p144
        $region22: #{tpu_custom_call.1} parent=11 // pred_check_branch
          %429 = sbr.rel (%p427) target = $region24
        $region23: #{tpu_custom_call.1} parent=11 // pred_region
          _
        $region24: #{tpu_custom_call.1} parent=11 // pred_fallthru
          _
        // Predicated region
        $region25: #{tpu_custom_call.1} parent=11 // pred_check
          %p430 = pneg %p165
        $region26: #{tpu_custom_call.1} parent=11 // pred_check_branch
          %432 = sbr.rel (%p430) target = $region28
        $region27: #{tpu_custom_call.1} parent=11 // pred_region
          _
        $region28: #{tpu_custom_call.1} parent=11 // pred_fallthru
          _
        // Predicated region
        $region29: #{tpu_custom_call.1} parent=11 // pred_check
          %p433 = pneg %p186
        $region30: #{tpu_custom_call.1} parent=11 // pred_check_branch
          %435 = sbr.rel (%p433) target = $region32
        $region31: #{tpu_custom_call.1} parent=11 // pred_region
          _
        $region32: #{tpu_custom_call.1} parent=11 // pred_fallthru
          _
        // Predicated region
        $region33: #{tpu_custom_call.1} parent=11 // pred_check
          %p436 = pneg %p207
        $region34: #{tpu_custom_call.1} parent=11 // pred_check_branch
          %438 = sbr.rel (%p436) target = $region36
        $region35: #{tpu_custom_call.1} parent=11 // pred_region
          _
        $region36: #{tpu_custom_call.1} parent=11 // pred_fallthru
          _
        // Predicated region
        $region37: #{tpu_custom_call.1} parent=11 // pred_check
          %p439 = pneg %p228
        $region38: #{tpu_custom_call.1} parent=11 // pred_check_branch
          %441 = sbr.rel (%p439) target = $region40
        $region39: #{tpu_custom_call.1} parent=11 // pred_region
          _
        $region40: #{tpu_custom_call.1} parent=11 // pred_fallthru
          _
        // Predicated region
        $region41: #{tpu_custom_call.1} parent=11 // pred_check
          %p442 = pneg %p249
        $region42: #{tpu_custom_call.1} parent=11 // pred_check_branch
          %444 = sbr.rel (%p442) target = $region44
        $region43: #{tpu_custom_call.1} parent=11 // pred_region
          _
        $region44: #{tpu_custom_call.1} parent=11 // pred_fallthru
          _
        // Predicated region
        $region45: #{tpu_custom_call.1} parent=11 // pred_check
          %p445 = pneg %p270
        $region46: #{tpu_custom_call.1} parent=11 // pred_check_branch
          %447 = sbr.rel (%p445) target = $region48
        $region47: #{tpu_custom_call.1} parent=11 // pred_region
          _
        $region48: #{tpu_custom_call.1} parent=11 // pred_fallthru
          _
        // Predicated region
        $region49: #{tpu_custom_call.1} parent=11 // pred_check
          %p448 = pneg %p291
        $region50: #{tpu_custom_call.1} parent=11 // pred_check_branch
          %450 = sbr.rel (%p448) target = $region52
        $region51: #{tpu_custom_call.1} parent=11 // pred_region
          _
        $region52: #{tpu_custom_call.1} parent=11 // pred_fallthru
          _
        // Predicated region
        $region53: #{tpu_custom_call.1} parent=11 // pred_check
          %p451 = pneg %p312
        $region54: #{tpu_custom_call.1} parent=11 // pred_check_branch
          %453 = sbr.rel (%p451) target = $region56
        $region55: #{tpu_custom_call.1} parent=11 // pred_region
          _
        $region56: #{tpu_custom_call.1} parent=11 // pred_fallthru
          _
        // Predicated region
        $region57: #{tpu_custom_call.1} parent=11 // pred_check
          %p454 = pneg %p333
        $region58: #{tpu_custom_call.1} parent=11 // pred_check_branch
          %456 = sbr.rel (%p454) target = $region60
        $region59: #{tpu_custom_call.1} parent=11 // pred_region
          _
        $region60: #{tpu_custom_call.1} parent=11 // pred_fallthru
          _
        // Predicated region
        $region61: #{tpu_custom_call.1} parent=11 // pred_check
          %p457 = pneg %p354
        $region62: #{tpu_custom_call.1} parent=11 // pred_check_branch
          %459 = sbr.rel (%p457) target = $region64
        $region63: #{tpu_custom_call.1} parent=11 // pred_region
          _
        $region64: #{tpu_custom_call.1} parent=11 // pred_fallthru
          _
      $region12: #{tpu_custom_call.1} parent=5 // pred_fallthru
        _
      %p460 = scmp.lt.s32.totalorder %s29, 2
      // Predicated region
      $region65: #{tpu_custom_call.1} parent=5 // pred_check
        %p461 = pneg %p460
      $region66: #{tpu_custom_call.1} parent=5 // pred_check_branch
        %463 = sbr.rel (%p461) target = $region68
      $region67: #{tpu_custom_call.1} parent=5 // pred_region
        // Predicated region
        $region69: #{tpu_custom_call.1} parent=67 // pred_check
          %p464 = pneg %p49
        $region70: #{tpu_custom_call.1} parent=67 // pred_check_branch
          %466 = sbr.rel (%p464) target = $region72
        $region71: #{tpu_custom_call.1} parent=67 // pred_region
          %p467 = scmp.lt.s32.totalorder %s29, 1
          %s468 = scalar_select %p467, %s29, 1
          %s469 = smul.addr %s468, 16
          %s470 = smul.addr %s469, 8
          %s471 = scalar_lea.vmem %s0, %s470
        $region72: #{tpu_custom_call.1} parent=67 // pred_fallthru
          _
        // Predicated region
        $region73: #{tpu_custom_call.1} parent=67 // pred_check
          %p472 = pneg %p75
        $region74: #{tpu_custom_call.1} parent=67 // pred_check_branch
          %474 = sbr.rel (%p472) target = $region76
        $region75: #{tpu_custom_call.1} parent=67 // pred_region
          %p475 = scmp.lt.s32.totalorder %s29, 1
          %s476 = scalar_select %p475, %s29, 1
          %s477 = smul.addr %s476, 32
          %s478 = smul.addr %s477, 4
          %s479 = scalar_lea.vmem %s1, %s478
        $region76: #{tpu_custom_call.1} parent=67 // pred_fallthru
          _
      $region68: #{tpu_custom_call.1} parent=5 // pred_fallthru
        _
      %p480 = scmp.le.s32.totalorder 1, %s29
      %p481 = scmp.lt.s32.totalorder %s29, 3
      %p482 = pnand %p480, %p481
      %p483 = pneg %p482
      // Predicated region
      $region77: #{tpu_custom_call.1} parent=5 // pred_check
        _
      $region78: #{tpu_custom_call.1} parent=5 // pred_check_branch
        %485 = sbr.rel (%p482) target = $region80
      $region79: #{tpu_custom_call.1} parent=5 // pred_region
        %s486 = ssub.s32 %s29, 1
        %p487 = scmp.lt.s32.totalorder %s34, 1
        %s488 = scalar_select %p487, %s34, 1
        %s489 = smul.addr %s488, 16
        %s490 = smul.addr %s489, 8
        %s491 = scalar_lea.vmem %s0, %s490
        %p492 = pneg %p55
        %p493 = pneg %p52
        %p494 = scmp.lt.s32.totalorder %s34, 1
        %s495 = scalar_select %p494, %s34, 1
        %s496 = smul.addr %s495, 32
        %s497 = smul.addr %s496, 4
        %s498 = scalar_lea.vmem %s1, %s497
        %p499 = pneg %p81
        %p500 = pneg %p78
        %p501 = pneg %p102
        %p502 = pneg %p99
        %p503 = pneg %p123
        %p504 = pneg %p120
        %p505 = pneg %p144
        %p506 = pneg %p141
        %p507 = pneg %p165
        %p508 = pneg %p162
        %p509 = pneg %p186
        %p510 = pneg %p183
        %p511 = pneg %p207
        %p512 = pneg %p204
        %p513 = pneg %p228
        %p514 = pneg %p225
        %p515 = pneg %p249
        %p516 = pneg %p246
        %p517 = pneg %p270
        %p518 = pneg %p267
        %p519 = pneg %p291
        %p520 = pneg %p288
        %p521 = pneg %p312
        %p522 = pneg %p309
        %p523 = pneg %p333
        %p524 = pneg %p330
        %p525 = pneg %p354
        %p526 = pneg %p351
        %p527 = pneg %p380
        %p528 = pneg %p377
        %s529 = sand.u32 %s367, 1
        %s530 = scalar_lea.sflag [#allocation3], %s529
        %s531 = sand.u32 %s367, 1
        %s532 = smul.addr %s531, 16
        %s533 = scalar_lea.vmem [#allocation2], %s532
        %p534 = pneg %p406
        %p535 = pneg %p403
        %s536 = sand.u32 %s393, 1
        %s537 = scalar_lea.sflag [#allocation5], %s536
        %s538 = sand.u32 %s393, 1
        %s539 = smul.addr %s538, 16
        %s540 = scalar_lea.vmem [#allocation4], %s539
        %p541 = scmp.lt.s32.totalorder %s34, 1
        %s542 = scalar_select %p541, %s34, 1
        %s543 = smul.addr %s542, 16
        %s544 = smul.addr %s543, 8
        %s545 = scalar_lea.vmem %s0, %s544
        %p546 = scmp.lt.s32.totalorder %s34, 1
        %s547 = scalar_select %p546, %s34, 1
        %s548 = smul.addr %s547, 32
        %s549 = smul.addr %s548, 4
        %s550 = scalar_lea.vmem %s1, %s549
        %v552 = vld [vmem:[%s545] sm:$0xff]
        %v553 = vld [vmem:[%s545 + $0x8] sm:$0xff]
        %v554 = vld [vmem:[%s545 + $0x10] sm:$0xff]
        %v555 = vld [vmem:[%s545 + $0x18] sm:$0xff]
        %v556 = vld [vmem:[%s545 + $0x20] sm:$0xff]
        %v557 = vld [vmem:[%s545 + $0x28] sm:$0xff]
        %v558 = vld [vmem:[%s545 + $0x30] sm:$0xff]
        %v559 = vld [vmem:[%s545 + $0x38] sm:$0xff]
        %v560 = vld [vmem:[%s545 + $0x40] sm:$0xff]
        %v561 = vld [vmem:[%s545 + $0x48] sm:$0xff]
        %v562 = vld [vmem:[%s545 + $0x50] sm:$0xff]
        %v563 = vld [vmem:[%s545 + $0x58] sm:$0xff]
        %v564 = vld [vmem:[%s545 + $0x60] sm:$0xff]
        %v565 = vld [vmem:[%s545 + $0x68] sm:$0xff]
        %v566 = vld [vmem:[%s545 + $0x70] sm:$0xff]
        %v567 = vld [vmem:[%s545 + $0x78] sm:$0xff]
        %v568 = vld [vmem:[%s550] sm:$0xf]
        %v569 = vld [vmem:[%s550 + $0x4] sm:$0xf]
        %v570 = vld [vmem:[%s550 + $0x8] sm:$0xf]
        %v571 = vld [vmem:[%s550 + $0xc] sm:$0xf]
        %v572 = vld [vmem:[%s550 + $0x10] sm:$0xf]
        %v573 = vld [vmem:[%s550 + $0x14] sm:$0xf]
        %v574 = vld [vmem:[%s550 + $0x18] sm:$0xf]
        %v575 = vld [vmem:[%s550 + $0x1c] sm:$0xf]
        %v576 = vld [vmem:[%s550 + $0x20] sm:$0xf]
        %v577 = vld [vmem:[%s550 + $0x24] sm:$0xf]
        %v578 = vld [vmem:[%s550 + $0x28] sm:$0xf]
        %v579 = vld [vmem:[%s550 + $0x2c] sm:$0xf]
        %v580 = vld [vmem:[%s550 + $0x30] sm:$0xf]
        %v581 = vld [vmem:[%s550 + $0x34] sm:$0xf]
        %v582 = vld [vmem:[%s550 + $0x38] sm:$0xf]
        %v583 = vld [vmem:[%s550 + $0x3c] sm:$0xf]
        %v584 = vld [vmem:[%s550 + $0x40] sm:$0xf]
        %v585 = vld [vmem:[%s550 + $0x44] sm:$0xf]
        %v586 = vld [vmem:[%s550 + $0x48] sm:$0xf]
        %v587 = vld [vmem:[%s550 + $0x4c] sm:$0xf]
        %v588 = vld [vmem:[%s550 + $0x50] sm:$0xf]
        %v589 = vld [vmem:[%s550 + $0x54] sm:$0xf]
        %v590 = vld [vmem:[%s550 + $0x58] sm:$0xf]
        %v591 = vld [vmem:[%s550 + $0x5c] sm:$0xf]
        %v592 = vld [vmem:[%s550 + $0x60] sm:$0xf]
        %v593 = vld [vmem:[%s550 + $0x64] sm:$0xf]
        %v594 = vld [vmem:[%s550 + $0x68] sm:$0xf]
        %v595 = vld [vmem:[%s550 + $0x6c] sm:$0xf]
        %v596 = vld [vmem:[%s550 + $0x70] sm:$0xf]
        %v597 = vld [vmem:[%s550 + $0x74] sm:$0xf]
        %v598 = vld [vmem:[%s550 + $0x78] sm:$0xf]
        %v599 = vld [vmem:[%s550 + $0x7c] sm:$0xf]
        %v600 = vunpack.c.l.bf16 %v568
        %v601 = vunpack.c.l.bf16 %v569
        %v602 = vunpack.c.l.bf16 %v570
        %v603 = vunpack.c.l.bf16 %v571
        %v604 = vunpack.c.l.bf16 %v572
        %v605 = vunpack.c.l.bf16 %v573
        %v606 = vunpack.c.l.bf16 %v574
        %v607 = vunpack.c.l.bf16 %v575
        %v608 = vunpack.c.l.bf16 %v576
        %v609 = vunpack.c.l.bf16 %v577
        %v610 = vunpack.c.l.bf16 %v578
        %v611 = vunpack.c.l.bf16 %v579
        %v612 = vunpack.c.l.bf16 %v580
        %v613 = vunpack.c.l.bf16 %v581
        %v614 = vunpack.c.l.bf16 %v582
        %v615 = vunpack.c.l.bf16 %v583
        %v616 = vunpack.c.l.bf16 %v584
        %v617 = vunpack.c.l.bf16 %v585
        %v618 = vunpack.c.l.bf16 %v586
        %v619 = vunpack.c.l.bf16 %v587
        %v620 = vunpack.c.l.bf16 %v588
        %v621 = vunpack.c.l.bf16 %v589
        %v622 = vunpack.c.l.bf16 %v590
        %v623 = vunpack.c.l.bf16 %v591
        %v624 = vunpack.c.l.bf16 %v592
        %v625 = vunpack.c.l.bf16 %v593
        %v626 = vunpack.c.l.bf16 %v594
        %v627 = vunpack.c.l.bf16 %v595
        %v628 = vunpack.c.l.bf16 %v596
        %v629 = vunpack.c.l.bf16 %v597
        %v630 = vunpack.c.l.bf16 %v598
        %v631 = vunpack.c.l.bf16 %v599
        %v632 = vld [vmem:[%s3] sm:$0xf]
        %v633 = vld [vmem:[%s4] sm:$0xff]
        %v634 = vld [vmem:[%s5] sm:$0x3]
        %v635 = vpack.c.bf16 %v553, %v552
        %v636 = vpack.c.bf16 %v555, %v554
        %v637 = vpack.c.bf16 %v557, %v556
        %v638 = vpack.c.bf16 %v559, %v558
        %v639 = vpack.c.bf16 %v561, %v560
        %v640 = vpack.c.bf16 %v563, %v562
        %v641 = vpack.c.bf16 %v565, %v564
        %v642 = vpack.c.bf16 %v567, %v566
        %vm643 = vcmask 64512
        %v645 = vsel %vm643, %v635, 0
        %v648 = vsel %vm643, %v636, 0
        %v651 = vsel %vm643, %v637, 0
        %v654 = vsel %vm643, %v638, 0
        %v657 = vsel %vm643, %v639, 0
        %v660 = vsel %vm643, %v640, 0
        %v663 = vsel %vm643, %v641, 0
        %v666 = vsel %vm643, %v642, 0
        %vm668 = vcmask 1043456
        %v670 = vsel %vm668, %v632, 0
        %672 = vmatpush.bf16.msra.mxu0 0
        %673 = vmatpush.bf16.msra.mxu0 0
        %674 = vmatpush.bf16.msra.mxu0 0
        %675 = vmatpush.bf16.msra.mxu0 0
        %676 = vmatpush.bf16.msra.mxu0 0
        %677 = vmatpush.bf16.msra.mxu0 0
        %678 = vmatpush.bf16.msra.mxu0 0
        %679 = vmatpush.bf16.msra.mxu0 %v670
        %680 = vmatmul.bf16.gmra.mxu0 %v645
        %v681 = vpop.f32.mrf.mxu0
        %v682 = vadd.f32 0.0, %v681
        %v683 = vpop.f32.mrf.mxu0
        %v684 = vadd.f32 0.0, %v683
        %685 = vmatmul.bf16.gmra.mxu0 %v648
        %v686 = vpop.f32.mrf.mxu0
        %v687 = vadd.f32 0.0, %v686
        %v688 = vpop.f32.mrf.mxu0
        %v689 = vadd.f32 0.0, %v688
        %690 = vmatmul.bf16.gmra.mxu0 %v651
        %v691 = vpop.f32.mrf.mxu0
        %v692 = vadd.f32 0.0, %v691
        %v693 = vpop.f32.mrf.mxu0
        %v694 = vadd.f32 0.0, %v693
        %695 = vmatmul.bf16.gmra.mxu0 %v654
        %v696 = vpop.f32.mrf.mxu0
        %v697 = vadd.f32 0.0, %v696
        %v698 = vpop.f32.mrf.mxu0
        %v699 = vadd.f32 0.0, %v698
        %700 = vmatmul.bf16.gmra.mxu0 %v657
        %v701 = vpop.f32.mrf.mxu0
        %v702 = vadd.f32 0.0, %v701
        %v703 = vpop.f32.mrf.mxu0
        %v704 = vadd.f32 0.0, %v703
        %705 = vmatmul.bf16.gmra.mxu0 %v660
        %v706 = vpop.f32.mrf.mxu0
        %v707 = vadd.f32 0.0, %v706
        %v708 = vpop.f32.mrf.mxu0
        %v709 = vadd.f32 0.0, %v708
        %710 = vmatmul.bf16.gmra.mxu0 %v663
        %v711 = vpop.f32.mrf.mxu0
        %v712 = vadd.f32 0.0, %v711
        %v713 = vpop.f32.mrf.mxu0
        %v714 = vadd.f32 0.0, %v713
        %715 = vmatmul.bf16.gmra.mxu0 %v666
        %v716 = vpop.f32.mrf.mxu0
        %v717 = vadd.f32 0.0, %v716
        %v718 = vpop.f32.mrf.mxu0
        %v719 = vadd.f32 0.0, %v718
        %720 = vdwg.mxu0
        %v722 = vsel %vm643, %v552, 0
        %v725 = vsel %vm643, %v553, 0
        %v728 = vsel %vm643, %v554, 0
        %v731 = vsel %vm643, %v555, 0
        %v734 = vsel %vm643, %v556, 0
        %v737 = vsel %vm643, %v557, 0
        %v740 = vsel %vm643, %v558, 0
        %v743 = vsel %vm643, %v559, 0
        %v746 = vsel %vm643, %v560, 0
        %v749 = vsel %vm643, %v561, 0
        %v752 = vsel %vm643, %v562, 0
        %v755 = vsel %vm643, %v563, 0
        %v758 = vsel %vm643, %v564, 0
        %v761 = vsel %vm643, %v565, 0
        %v764 = vsel %vm643, %v566, 0
        %v767 = vsel %vm643, %v567, 0
        %769 = vmatpush.msra.mxu0 0.0
        %770 = vmatpush.msra.mxu0 0.0
        %771 = vmatpush.msra.mxu0 0.0
        %772 = vmatpush.msra.mxu0 0.0
        %773 = vmatpush.msra.mxu0 0.0
        %774 = vmatpush.msra.mxu0 0.0
        %775 = vmatpush.msra.mxu0 0.0
        %776 = vmatpush.msra.mxu0 0.0
        %777 = vmatpush.msra.mxu0 0.0
        %778 = vmatpush.msra.mxu0 0.0
        %779 = vmatpush.msra.mxu0 0.0
        %780 = vmatpush.msra.mxu0 0.0
        %781 = vmatpush.msra.mxu0 0.0
        %782 = vmatpush.msra.mxu0 0.0
        %783 = vmatpush.msra.mxu0 0.0
        %784 = vmatpush.msra.mxu0 %v633
        %785 = vmatmul.f32.gmra.mxu0 %v722
        %v786 = vpop.f32.mrf.mxu0
        %v787 = vadd.f32 0.0, %v786
        %788 = vmatmul.f32.gmra.mxu0 %v725
        %v789 = vpop.f32.mrf.mxu0
        %v790 = vadd.f32 0.0, %v789
        %791 = vmatmul.f32.gmra.mxu0 %v728
        %v792 = vpop.f32.mrf.mxu0
        %v793 = vadd.f32 0.0, %v792
        %794 = vmatmul.f32.gmra.mxu0 %v731
        %v795 = vpop.f32.mrf.mxu0
        %v796 = vadd.f32 0.0, %v795
        %797 = vmatmul.f32.gmra.mxu0 %v734
        %v798 = vpop.f32.mrf.mxu0
        %v799 = vadd.f32 0.0, %v798
        %800 = vmatmul.f32.gmra.mxu0 %v737
        %v801 = vpop.f32.mrf.mxu0
        %v802 = vadd.f32 0.0, %v801
        %803 = vmatmul.f32.gmra.mxu0 %v740
        %v804 = vpop.f32.mrf.mxu0
        %v805 = vadd.f32 0.0, %v804
        %806 = vmatmul.f32.gmra.mxu0 %v743
        %v807 = vpop.f32.mrf.mxu0
        %v808 = vadd.f32 0.0, %v807
        %809 = vmatmul.f32.gmra.mxu0 %v746
        %v810 = vpop.f32.mrf.mxu0
        %v811 = vadd.f32 0.0, %v810
        %812 = vmatmul.f32.gmra.mxu0 %v749
        %v813 = vpop.f32.mrf.mxu0
        %v814 = vadd.f32 0.0, %v813
        %815 = vmatmul.f32.gmra.mxu0 %v752
        %v816 = vpop.f32.mrf.mxu0
        %v817 = vadd.f32 0.0, %v816
        %818 = vmatmul.f32.gmra.mxu0 %v755
        %v819 = vpop.f32.mrf.mxu0
        %v820 = vadd.f32 0.0, %v819
        %821 = vmatmul.f32.gmra.mxu0 %v758
        %v822 = vpop.f32.mrf.mxu0
        %v823 = vadd.f32 0.0, %v822
        %824 = vmatmul.f32.gmra.mxu0 %v761
        %v825 = vpop.f32.mrf.mxu0
        %v826 = vadd.f32 0.0, %v825
        %827 = vmatmul.f32.gmra.mxu0 %v764
        %v828 = vpop.f32.mrf.mxu0
        %v829 = vadd.f32 0.0, %v828
        %830 = vmatmul.f32.gmra.mxu0 %v767
        %v831 = vpop.f32.mrf.mxu0
        %v832 = vadd.f32 0.0, %v831
        %833 = vdwg.mxu0
        %834 = vxpose.xlu0.b32.start [1/16] %v787, 128
        %835 = vxpose.xlu0.b32.cont [2/16] %v790, 128
        %836 = vxpose.xlu0.b32.cont [3/16] %v793, 128
        %837 = vxpose.xlu0.b32.cont [4/16] %v796, 128
        %838 = vxpose.xlu0.b32.cont [5/16] %v799, 128
        %839 = vxpose.xlu0.b32.cont [6/16] %v802, 128
        %840 = vxpose.xlu0.b32.cont [7/16] %v805, 128
        %841 = vxpose.xlu0.b32.cont [8/16] %v808, 128
        %842 = vxpose.xlu0.b32.cont [9/16] %v811, 128
        %843 = vxpose.xlu0.b32.cont [10/16] %v814, 128
        %844 = vxpose.xlu0.b32.cont [11/16] %v817, 128
        %845 = vxpose.xlu0.b32.cont [12/16] %v820, 128
        %846 = vxpose.xlu0.b32.cont [13/16] %v823, 128
        %847 = vxpose.xlu0.b32.cont [14/16] %v826, 128
        %848 = vxpose.xlu0.b32.cont [15/16] %v829, 128
        %849 = vxpose.xlu0.b32.end [16/16] %v832, 128
        %v850 = vpop.trf.xlu0
        %v851 = vpop.trf.xlu0
        %v852 = vpop.trf.xlu0
        %v853 = vpop.trf.xlu0
        %v854 = vpop.trf.xlu0
        %v855 = vpop.trf.xlu0
        %v856 = vpop.trf.xlu0
        %v857 = vpop.trf.xlu0
        %v858 = vpop.trf.xlu0
        %v859 = vpop.trf.xlu0
        %v860 = vpop.trf.xlu0
        %v861 = vpop.trf.xlu0
        %v862 = vpop.trf.xlu0
        %v863 = vpop.trf.xlu0
        %v864 = vpop.trf.xlu0
        %v865 = vpop.trf.xlu0
        %v866 = vperm.slane %v850, 0
        %v867 = vlaneseq
        %v868 = vshrl.u32 %v867, 7
        %870 = vset.pattern.permute.xlu0 %v868
        %871 = vperm.xlu0 %870, %v866
        %v872 = vpop.permute.xlu0 %871
        %v873 = vlaneseq
        %v874 = vshrl.u32 %v873, 7
        %v875 = vadd.s32 %v874, 8
        %876 = vset.pattern.permute.xlu0 %v875
        %877 = vperm.xlu0 %876, %v866
        %v878 = vpop.permute.xlu0 %877
        %v879 = vlaneseq
        %v880 = vshrl.u32 %v879, 7
        %v881 = vadd.s32 %v880, 16
        %882 = vset.pattern.permute.xlu0 %v881
        %883 = vperm.xlu0 %882, %v866
        %v884 = vpop.permute.xlu0 %883
        %v885 = vlaneseq
        %v886 = vshrl.u32 %v885, 7
        %v887 = vadd.s32 %v886, 24
        %888 = vset.pattern.permute.xlu0 %v887
        %889 = vperm.xlu0 %888, %v866
        %v890 = vpop.permute.xlu0 %889
        %v891 = vlaneseq
        %v892 = vshrl.u32 %v891, 7
        %v893 = vadd.s32 %v892, 32
        %894 = vset.pattern.permute.xlu0 %v893
        %895 = vperm.xlu0 %894, %v866
        %v896 = vpop.permute.xlu0 %895
        %v897 = vlaneseq
        %v898 = vshrl.u32 %v897, 7
        %v899 = vadd.s32 %v898, 40
        %900 = vset.pattern.permute.xlu0 %v899
        %901 = vperm.xlu0 %900, %v866
        %v902 = vpop.permute.xlu0 %901
        %v903 = vlaneseq
        %v904 = vshrl.u32 %v903, 7
        %v905 = vadd.s32 %v904, 48
        %906 = vset.pattern.permute.xlu0 %v905
        %907 = vperm.xlu0 %906, %v866
        %v908 = vpop.permute.xlu0 %907
        %v909 = vlaneseq
        %v910 = vshrl.u32 %v909, 7
        %v911 = vadd.s32 %v910, 56
        %912 = vset.pattern.permute.xlu0 %v911
        %913 = vperm.xlu0 %912, %v866
        %v914 = vpop.permute.xlu0 %913
        %v915 = vlaneseq
        %v916 = vshrl.u32 %v915, 7
        %v917 = vadd.s32 %v916, 64
        %918 = vset.pattern.permute.xlu0 %v917
        %919 = vperm.xlu0 %918, %v866
        %v920 = vpop.permute.xlu0 %919
        %v921 = vlaneseq
        %v922 = vshrl.u32 %v921, 7
        %v923 = vadd.s32 %v922, 72
        %924 = vset.pattern.permute.xlu0 %v923
        %925 = vperm.xlu0 %924, %v866
        %v926 = vpop.permute.xlu0 %925
        %v927 = vlaneseq
        %v928 = vshrl.u32 %v927, 7
        %v929 = vadd.s32 %v928, 80
        %930 = vset.pattern.permute.xlu0 %v929
        %931 = vperm.xlu0 %930, %v866
        %v932 = vpop.permute.xlu0 %931
        %v933 = vlaneseq
        %v934 = vshrl.u32 %v933, 7
        %v935 = vadd.s32 %v934, 88
        %936 = vset.pattern.permute.xlu0 %v935
        %937 = vperm.xlu0 %936, %v866
        %v938 = vpop.permute.xlu0 %937
        %v939 = vlaneseq
        %v940 = vshrl.u32 %v939, 7
        %v941 = vadd.s32 %v940, 96
        %942 = vset.pattern.permute.xlu0 %v941
        %943 = vperm.xlu0 %942, %v866
        %v944 = vpop.permute.xlu0 %943
        %v945 = vlaneseq
        %v946 = vshrl.u32 %v945, 7
        %v947 = vadd.s32 %v946, 104
        %948 = vset.pattern.permute.xlu0 %v947
        %949 = vperm.xlu0 %948, %v866
        %v950 = vpop.permute.xlu0 %949
        %v951 = vlaneseq
        %v952 = vshrl.u32 %v951, 7
        %v953 = vadd.s32 %v952, 112
        %954 = vset.pattern.permute.xlu0 %v953
        %955 = vperm.xlu0 %954, %v866
        %v956 = vpop.permute.xlu0 %955
        %v957 = vlaneseq
        %v958 = vshrl.u32 %v957, 7
        %v959 = vadd.s32 %v958, 120
        %960 = vset.pattern.permute.xlu0 %v959
        %961 = vperm.xlu0 %960, %v866
        %v962 = vpop.permute.xlu0 %961
        %v963 = vperm.slane %v850, 1
        %v964 = vlaneseq
        %v965 = vshrl.u32 %v964, 7
        %967 = vset.pattern.permute.xlu0 %v965
        %968 = vperm.xlu0 %967, %v963
        %v969 = vpop.permute.xlu0 %968
        %v970 = vlaneseq
        %v971 = vshrl.u32 %v970, 7
        %v972 = vadd.s32 %v971, 8
        %973 = vset.pattern.permute.xlu0 %v972
        %974 = vperm.xlu0 %973, %v963
        %v975 = vpop.permute.xlu0 %974
        %v976 = vlaneseq
        %v977 = vshrl.u32 %v976, 7
        %v978 = vadd.s32 %v977, 16
        %979 = vset.pattern.permute.xlu0 %v978
        %980 = vperm.xlu0 %979, %v963
        %v981 = vpop.permute.xlu0 %980
        %v982 = vlaneseq
        %v983 = vshrl.u32 %v982, 7
        %v984 = vadd.s32 %v983, 24
        %985 = vset.pattern.permute.xlu0 %v984
        %986 = vperm.xlu0 %985, %v963
        %v987 = vpop.permute.xlu0 %986
        %v988 = vlaneseq
        %v989 = vshrl.u32 %v988, 7
        %v990 = vadd.s32 %v989, 32
        %991 = vset.pattern.permute.xlu0 %v990
        %992 = vperm.xlu0 %991, %v963
        %v993 = vpop.permute.xlu0 %992
        %v994 = vlaneseq
        %v995 = vshrl.u32 %v994, 7
        %v996 = vadd.s32 %v995, 40
        %997 = vset.pattern.permute.xlu0 %v996
        %998 = vperm.xlu0 %997, %v963
        %v999 = vpop.permute.xlu0 %998
        %v1000 = vlaneseq
        %v1001 = vshrl.u32 %v1000, 7
        %v1002 = vadd.s32 %v1001, 48
        %1003 = vset.pattern.permute.xlu0 %v1002
        %1004 = vperm.xlu0 %1003, %v963
        %v1005 = vpop.permute.xlu0 %1004
        %v1006 = vlaneseq
        %v1007 = vshrl.u32 %v1006, 7
        %v1008 = vadd.s32 %v1007, 56
        %1009 = vset.pattern.permute.xlu0 %v1008
        %1010 = vperm.xlu0 %1009, %v963
        %v1011 = vpop.permute.xlu0 %1010
        %v1012 = vlaneseq
        %v1013 = vshrl.u32 %v1012, 7
        %v1014 = vadd.s32 %v1013, 64
        %1015 = vset.pattern.permute.xlu0 %v1014
        %1016 = vperm.xlu0 %1015, %v963
        %v1017 = vpop.permute.xlu0 %1016
        %v1018 = vlaneseq
        %v1019 = vshrl.u32 %v1018, 7
        %v1020 = vadd.s32 %v1019, 72
        %1021 = vset.pattern.permute.xlu0 %v1020
        %1022 = vperm.xlu0 %1021, %v963
        %v1023 = vpop.permute.xlu0 %1022
        %v1024 = vlaneseq
        %v1025 = vshrl.u32 %v1024, 7
        %v1026 = vadd.s32 %v1025, 80
        %1027 = vset.pattern.permute.xlu0 %v1026
        %1028 = vperm.xlu0 %1027, %v963
        %v1029 = vpop.permute.xlu0 %1028
        %v1030 = vlaneseq
        %v1031 = vshrl.u32 %v1030, 7
        %v1032 = vadd.s32 %v1031, 88
        %1033 = vset.pattern.permute.xlu0 %v1032
        %1034 = vperm.xlu0 %1033, %v963
        %v1035 = vpop.permute.xlu0 %1034
        %v1036 = vlaneseq
        %v1037 = vshrl.u32 %v1036, 7
        %v1038 = vadd.s32 %v1037, 96
        %1039 = vset.pattern.permute.xlu0 %v1038
        %1040 = vperm.xlu0 %1039, %v963
        %v1041 = vpop.permute.xlu0 %1040
        %v1042 = vlaneseq
        %v1043 = vshrl.u32 %v1042, 7
        %v1044 = vadd.s32 %v1043, 104
        %1045 = vset.pattern.permute.xlu0 %v1044
        %1046 = vperm.xlu0 %1045, %v963
        %v1047 = vpop.permute.xlu0 %1046
        %v1048 = vlaneseq
        %v1049 = vshrl.u32 %v1048, 7
        %v1050 = vadd.s32 %v1049, 112
        %1051 = vset.pattern.permute.xlu0 %v1050
        %1052 = vperm.xlu0 %1051, %v963
        %v1053 = vpop.permute.xlu0 %1052
        %v1054 = vlaneseq
        %v1055 = vshrl.u32 %v1054, 7
        %v1056 = vadd.s32 %v1055, 120
        %1057 = vset.pattern.permute.xlu0 %v1056
        %1058 = vperm.xlu0 %1057, %v963
        %v1059 = vpop.permute.xlu0 %1058
        %v1060 = vperm.slane %v850, 2
        %v1061 = vlaneseq
        %v1062 = vshrl.u32 %v1061, 7
        %1064 = vset.pattern.permute.xlu0 %v1062
        %1065 = vperm.xlu0 %1064, %v1060
        %v1066 = vpop.permute.xlu0 %1065
        %v1067 = vlaneseq
        %v1068 = vshrl.u32 %v1067, 7
        %v1069 = vadd.s32 %v1068, 8
        %1070 = vset.pattern.permute.xlu0 %v1069
        %1071 = vperm.xlu0 %1070, %v1060
        %v1072 = vpop.permute.xlu0 %1071
        %v1073 = vlaneseq
        %v1074 = vshrl.u32 %v1073, 7
        %v1075 = vadd.s32 %v1074, 16
        %1076 = vset.pattern.permute.xlu0 %v1075
        %1077 = vperm.xlu0 %1076, %v1060
        %v1078 = vpop.permute.xlu0 %1077
        %v1079 = vlaneseq
        %v1080 = vshrl.u32 %v1079, 7
        %v1081 = vadd.s32 %v1080, 24
        %1082 = vset.pattern.permute.xlu0 %v1081
        %1083 = vperm.xlu0 %1082, %v1060
        %v1084 = vpop.permute.xlu0 %1083
        %v1085 = vlaneseq
        %v1086 = vshrl.u32 %v1085, 7
        %v1087 = vadd.s32 %v1086, 32
        %1088 = vset.pattern.permute.xlu0 %v1087
        %1089 = vperm.xlu0 %1088, %v1060
        %v1090 = vpop.permute.xlu0 %1089
        %v1091 = vlaneseq
        %v1092 = vshrl.u32 %v1091, 7
        %v1093 = vadd.s32 %v1092, 40
        %1094 = vset.pattern.permute.xlu0 %v1093
        %1095 = vperm.xlu0 %1094, %v1060
        %v1096 = vpop.permute.xlu0 %1095
        %v1097 = vlaneseq
        %v1098 = vshrl.u32 %v1097, 7
        %v1099 = vadd.s32 %v1098, 48
        %1100 = vset.pattern.permute.xlu0 %v1099
        %1101 = vperm.xlu0 %1100, %v1060
        %v1102 = vpop.permute.xlu0 %1101
        %v1103 = vlaneseq
        %v1104 = vshrl.u32 %v1103, 7
        %v1105 = vadd.s32 %v1104, 56
        %1106 = vset.pattern.permute.xlu0 %v1105
        %1107 = vperm.xlu0 %1106, %v1060
        %v1108 = vpop.permute.xlu0 %1107
        %v1109 = vlaneseq
        %v1110 = vshrl.u32 %v1109, 7
        %v1111 = vadd.s32 %v1110, 64
        %1112 = vset.pattern.permute.xlu0 %v1111
        %1113 = vperm.xlu0 %1112, %v1060
        %v1114 = vpop.permute.xlu0 %1113
        %v1115 = vlaneseq
        %v1116 = vshrl.u32 %v1115, 7
        %v1117 = vadd.s32 %v1116, 72
        %1118 = vset.pattern.permute.xlu0 %v1117
        %1119 = vperm.xlu0 %1118, %v1060
        %v1120 = vpop.permute.xlu0 %1119
        %v1121 = vlaneseq
        %v1122 = vshrl.u32 %v1121, 7
        %v1123 = vadd.s32 %v1122, 80
        %1124 = vset.pattern.permute.xlu0 %v1123
        %1125 = vperm.xlu0 %1124, %v1060
        %v1126 = vpop.permute.xlu0 %1125
        %v1127 = vlaneseq
        %v1128 = vshrl.u32 %v1127, 7
        %v1129 = vadd.s32 %v1128, 88
        %1130 = vset.pattern.permute.xlu0 %v1129
        %1131 = vperm.xlu0 %1130, %v1060
        %v1132 = vpop.permute.xlu0 %1131
        %v1133 = vlaneseq
        %v1134 = vshrl.u32 %v1133, 7
        %v1135 = vadd.s32 %v1134, 96
        %1136 = vset.pattern.permute.xlu0 %v1135
        %1137 = vperm.xlu0 %1136, %v1060
        %v1138 = vpop.permute.xlu0 %1137
        %v1139 = vlaneseq
        %v1140 = vshrl.u32 %v1139, 7
        %v1141 = vadd.s32 %v1140, 104
        %1142 = vset.pattern.permute.xlu0 %v1141
        %1143 = vperm.xlu0 %1142, %v1060
        %v1144 = vpop.permute.xlu0 %1143
        %v1145 = vlaneseq
        %v1146 = vshrl.u32 %v1145, 7
        %v1147 = vadd.s32 %v1146, 112
        %1148 = vset.pattern.permute.xlu0 %v1147
        %1149 = vperm.xlu0 %1148, %v1060
        %v1150 = vpop.permute.xlu0 %1149
        %v1151 = vlaneseq
        %v1152 = vshrl.u32 %v1151, 7
        %v1153 = vadd.s32 %v1152, 120
        %1154 = vset.pattern.permute.xlu0 %v1153
        %1155 = vperm.xlu0 %1154, %v1060
        %v1156 = vpop.permute.xlu0 %1155
        %v1157 = vperm.slane %v850, 3
        %v1158 = vlaneseq
        %v1159 = vshrl.u32 %v1158, 7
        %1161 = vset.pattern.permute.xlu0 %v1159
        %1162 = vperm.xlu0 %1161, %v1157
        %v1163 = vpop.permute.xlu0 %1162
        %v1164 = vlaneseq
        %v1165 = vshrl.u32 %v1164, 7
        %v1166 = vadd.s32 %v1165, 8
        %1167 = vset.pattern.permute.xlu0 %v1166
        %1168 = vperm.xlu0 %1167, %v1157
        %v1169 = vpop.permute.xlu0 %1168
        %v1170 = vlaneseq
        %v1171 = vshrl.u32 %v1170, 7
        %v1172 = vadd.s32 %v1171, 16
        %1173 = vset.pattern.permute.xlu0 %v1172
        %1174 = vperm.xlu0 %1173, %v1157
        %v1175 = vpop.permute.xlu0 %1174
        %v1176 = vlaneseq
        %v1177 = vshrl.u32 %v1176, 7
        %v1178 = vadd.s32 %v1177, 24
        %1179 = vset.pattern.permute.xlu0 %v1178
        %1180 = vperm.xlu0 %1179, %v1157
        %v1181 = vpop.permute.xlu0 %1180
        %v1182 = vlaneseq
        %v1183 = vshrl.u32 %v1182, 7
        %v1184 = vadd.s32 %v1183, 32
        %1185 = vset.pattern.permute.xlu0 %v1184
        %1186 = vperm.xlu0 %1185, %v1157
        %v1187 = vpop.permute.xlu0 %1186
        %v1188 = vlaneseq
        %v1189 = vshrl.u32 %v1188, 7
        %v1190 = vadd.s32 %v1189, 40
        %1191 = vset.pattern.permute.xlu0 %v1190
        %1192 = vperm.xlu0 %1191, %v1157
        %v1193 = vpop.permute.xlu0 %1192
        %v1194 = vlaneseq
        %v1195 = vshrl.u32 %v1194, 7
        %v1196 = vadd.s32 %v1195, 48
        %1197 = vset.pattern.permute.xlu0 %v1196
        %1198 = vperm.xlu0 %1197, %v1157
        %v1199 = vpop.permute.xlu0 %1198
        %v1200 = vlaneseq
        %v1201 = vshrl.u32 %v1200, 7
        %v1202 = vadd.s32 %v1201, 56
        %1203 = vset.pattern.permute.xlu0 %v1202
        %1204 = vperm.xlu0 %1203, %v1157
        %v1205 = vpop.permute.xlu0 %1204
        %v1206 = vlaneseq
        %v1207 = vshrl.u32 %v1206, 7
        %v1208 = vadd.s32 %v1207, 64
        %1209 = vset.pattern.permute.xlu0 %v1208
        %1210 = vperm.xlu0 %1209, %v1157
        %v1211 = vpop.permute.xlu0 %1210
        %v1212 = vlaneseq
        %v1213 = vshrl.u32 %v1212, 7
        %v1214 = vadd.s32 %v1213, 72
        %1215 = vset.pattern.permute.xlu0 %v1214
        %1216 = vperm.xlu0 %1215, %v1157
        %v1217 = vpop.permute.xlu0 %1216
        %v1218 = vlaneseq
        %v1219 = vshrl.u32 %v1218, 7
        %v1220 = vadd.s32 %v1219, 80
        %1221 = vset.pattern.permute.xlu0 %v1220
        %1222 = vperm.xlu0 %1221, %v1157
        %v1223 = vpop.permute.xlu0 %1222
        %v1224 = vlaneseq
        %v1225 = vshrl.u32 %v1224, 7
        %v1226 = vadd.s32 %v1225, 88
        %1227 = vset.pattern.permute.xlu0 %v1226
        %1228 = vperm.xlu0 %1227, %v1157
        %v1229 = vpop.permute.xlu0 %1228
        %v1230 = vlaneseq
        %v1231 = vshrl.u32 %v1230, 7
        %v1232 = vadd.s32 %v1231, 96
        %1233 = vset.pattern.permute.xlu0 %v1232
        %1234 = vperm.xlu0 %1233, %v1157
        %v1235 = vpop.permute.xlu0 %1234
        %v1236 = vlaneseq
        %v1237 = vshrl.u32 %v1236, 7
        %v1238 = vadd.s32 %v1237, 104
        %1239 = vset.pattern.permute.xlu0 %v1238
        %1240 = vperm.xlu0 %1239, %v1157
        %v1241 = vpop.permute.xlu0 %1240
        %v1242 = vlaneseq
        %v1243 = vshrl.u32 %v1242, 7
        %v1244 = vadd.s32 %v1243, 112
        %1245 = vset.pattern.permute.xlu0 %v1244
        %1246 = vperm.xlu0 %1245, %v1157
        %v1247 = vpop.permute.xlu0 %1246
        %v1248 = vlaneseq
        %v1249 = vshrl.u32 %v1248, 7
        %v1250 = vadd.s32 %v1249, 120
        %1251 = vset.pattern.permute.xlu0 %v1250
        %1252 = vperm.xlu0 %1251, %v1157
        %v1253 = vpop.permute.xlu0 %1252
        %1255 = vst [vmem:[#allocation1] sm:$0xff] %v850
        %s1256 = scalar_lea.vmem [#allocation1], 4
        %v1257 = vld [vmem:[%s1256] ss:$9 sm:$0xff]
        %s1258 = scalar_lea.vmem [#allocation1], 5
        %v1259 = vld [vmem:[%s1258] ss:$9 sm:$0xff]
        %s1260 = scalar_lea.vmem [#allocation1], 6
        %v1261 = vld [vmem:[%s1260] ss:$9 sm:$0xff]
        %s1262 = scalar_lea.vmem [#allocation1], 7
        %v1263 = vld [vmem:[%s1262] ss:$9 sm:$0xff]
        %v1264 = vperm.slane %v1257, 0
        %v1265 = vperm.slane %v1259, 0
        %v1266 = vperm.slane %v1261, 0
        %v1267 = vperm.slane %v1263, 0
        %v1272 = vadd.f32 %v872, %v1264
        %v1273 = vadd.f32 %v878, %v1264
        %v1274 = vadd.f32 %v884, %v1264
        %v1275 = vadd.f32 %v890, %v1264
        %v1276 = vadd.f32 %v896, %v1264
        %v1277 = vadd.f32 %v902, %v1264
        %v1278 = vadd.f32 %v908, %v1264
        %v1279 = vadd.f32 %v914, %v1264
        %v1280 = vadd.f32 %v920, %v1264
        %v1281 = vadd.f32 %v926, %v1264
        %v1282 = vadd.f32 %v932, %v1264
        %v1283 = vadd.f32 %v938, %v1264
        %v1284 = vadd.f32 %v944, %v1264
        %v1285 = vadd.f32 %v950, %v1264
        %v1286 = vadd.f32 %v956, %v1264
        %v1287 = vadd.f32 %v962, %v1264
        %v1288 = vadd.f32 %v969, %v1265
        %v1289 = vadd.f32 %v975, %v1265
        %v1290 = vadd.f32 %v981, %v1265
        %v1291 = vadd.f32 %v987, %v1265
        %v1292 = vadd.f32 %v993, %v1265
        %v1293 = vadd.f32 %v999, %v1265
        %v1294 = vadd.f32 %v1005, %v1265
        %v1295 = vadd.f32 %v1011, %v1265
        %v1296 = vadd.f32 %v1017, %v1265
        %v1297 = vadd.f32 %v1023, %v1265
        %v1298 = vadd.f32 %v1029, %v1265
        %v1299 = vadd.f32 %v1035, %v1265
        %v1300 = vadd.f32 %v1041, %v1265
        %v1301 = vadd.f32 %v1047, %v1265
        %v1302 = vadd.f32 %v1053, %v1265
        %v1303 = vadd.f32 %v1059, %v1265
        %v1304 = vadd.f32 %v1066, %v1266
        %v1305 = vadd.f32 %v1072, %v1266
        %v1306 = vadd.f32 %v1078, %v1266
        %v1307 = vadd.f32 %v1084, %v1266
        %v1308 = vadd.f32 %v1090, %v1266
        %v1309 = vadd.f32 %v1096, %v1266
        %v1310 = vadd.f32 %v1102, %v1266
        %v1311 = vadd.f32 %v1108, %v1266
        %v1312 = vadd.f32 %v1114, %v1266
        %v1313 = vadd.f32 %v1120, %v1266
        %v1314 = vadd.f32 %v1126, %v1266
        %v1315 = vadd.f32 %v1132, %v1266
        %v1316 = vadd.f32 %v1138, %v1266
        %v1317 = vadd.f32 %v1144, %v1266
        %v1318 = vadd.f32 %v1150, %v1266
        %v1319 = vadd.f32 %v1156, %v1266
        %v1320 = vadd.f32 %v1163, %v1267
        %v1321 = vadd.f32 %v1169, %v1267
        %v1322 = vadd.f32 %v1175, %v1267
        %v1323 = vadd.f32 %v1181, %v1267
        %v1324 = vadd.f32 %v1187, %v1267
        %v1325 = vadd.f32 %v1193, %v1267
        %v1326 = vadd.f32 %v1199, %v1267
        %v1327 = vadd.f32 %v1205, %v1267
        %v1328 = vadd.f32 %v1211, %v1267
        %v1329 = vadd.f32 %v1217, %v1267
        %v1330 = vadd.f32 %v1223, %v1267
        %v1331 = vadd.f32 %v1229, %v1267
        %v1332 = vadd.f32 %v1235, %v1267
        %v1333 = vadd.f32 %v1241, %v1267
        %v1334 = vadd.f32 %v1247, %v1267
        %v1335 = vadd.f32 %v1253, %v1267
        %vm1336 = vcmp.gt.f32.partialorder %v1272, 0.0
        %vm1337 = vcmp.gt.f32.partialorder %v1273, 0.0
        %vm1338 = vcmp.gt.f32.partialorder %v1274, 0.0
        %vm1339 = vcmp.gt.f32.partialorder %v1275, 0.0
        %vm1340 = vcmp.gt.f32.partialorder %v1276, 0.0
        %vm1341 = vcmp.gt.f32.partialorder %v1277, 0.0
        %vm1342 = vcmp.gt.f32.partialorder %v1278, 0.0
        %vm1343 = vcmp.gt.f32.partialorder %v1279, 0.0
        %vm1344 = vcmp.gt.f32.partialorder %v1280, 0.0
        %vm1345 = vcmp.gt.f32.partialorder %v1281, 0.0
        %vm1346 = vcmp.gt.f32.partialorder %v1282, 0.0
        %vm1347 = vcmp.gt.f32.partialorder %v1283, 0.0
        %vm1348 = vcmp.gt.f32.partialorder %v1284, 0.0
        %vm1349 = vcmp.gt.f32.partialorder %v1285, 0.0
        %vm1350 = vcmp.gt.f32.partialorder %v1286, 0.0
        %vm1351 = vcmp.gt.f32.partialorder %v1287, 0.0
        %vm1352 = vcmp.gt.f32.partialorder %v1288, 0.0
        %vm1353 = vcmp.gt.f32.partialorder %v1289, 0.0
        %vm1354 = vcmp.gt.f32.partialorder %v1290, 0.0
        %vm1355 = vcmp.gt.f32.partialorder %v1291, 0.0
        %vm1356 = vcmp.gt.f32.partialorder %v1292, 0.0
        %vm1357 = vcmp.gt.f32.partialorder %v1293, 0.0
        %vm1358 = vcmp.gt.f32.partialorder %v1294, 0.0
        %vm1359 = vcmp.gt.f32.partialorder %v1295, 0.0
        %vm1360 = vcmp.gt.f32.partialorder %v1296, 0.0
        %vm1361 = vcmp.gt.f32.partialorder %v1297, 0.0
        %vm1362 = vcmp.gt.f32.partialorder %v1298, 0.0
        %vm1363 = vcmp.gt.f32.partialorder %v1299, 0.0
        %vm1364 = vcmp.gt.f32.partialorder %v1300, 0.0
        %vm1365 = vcmp.gt.f32.partialorder %v1301, 0.0
        %vm1366 = vcmp.gt.f32.partialorder %v1302, 0.0
        %vm1367 = vcmp.gt.f32.partialorder %v1303, 0.0
        %vm1368 = vcmp.gt.f32.partialorder %v1304, 0.0
        %vm1369 = vcmp.gt.f32.partialorder %v1305, 0.0
        %vm1370 = vcmp.gt.f32.partialorder %v1306, 0.0
        %vm1371 = vcmp.gt.f32.partialorder %v1307, 0.0
        %vm1372 = vcmp.gt.f32.partialorder %v1308, 0.0
        %vm1373 = vcmp.gt.f32.partialorder %v1309, 0.0
        %vm1374 = vcmp.gt.f32.partialorder %v1310, 0.0
        %vm1375 = vcmp.gt.f32.partialorder %v1311, 0.0
        %vm1376 = vcmp.gt.f32.partialorder %v1312, 0.0
        %vm1377 = vcmp.gt.f32.partialorder %v1313, 0.0
        %vm1378 = vcmp.gt.f32.partialorder %v1314, 0.0
        %vm1379 = vcmp.gt.f32.partialorder %v1315, 0.0
        %vm1380 = vcmp.gt.f32.partialorder %v1316, 0.0
        %vm1381 = vcmp.gt.f32.partialorder %v1317, 0.0
        %vm1382 = vcmp.gt.f32.partialorder %v1318, 0.0
        %vm1383 = vcmp.gt.f32.partialorder %v1319, 0.0
        %vm1384 = vcmp.gt.f32.partialorder %v1320, 0.0
        %vm1385 = vcmp.gt.f32.partialorder %v1321, 0.0
        %vm1386 = vcmp.gt.f32.partialorder %v1322, 0.0
        %vm1387 = vcmp.gt.f32.partialorder %v1323, 0.0
        %vm1388 = vcmp.gt.f32.partialorder %v1324, 0.0
        %vm1389 = vcmp.gt.f32.partialorder %v1325, 0.0
        %vm1390 = vcmp.gt.f32.partialorder %v1326, 0.0
        %vm1391 = vcmp.gt.f32.partialorder %v1327, 0.0
        %vm1392 = vcmp.gt.f32.partialorder %v1328, 0.0
        %vm1393 = vcmp.gt.f32.partialorder %v1329, 0.0
        %vm1394 = vcmp.gt.f32.partialorder %v1330, 0.0
        %vm1395 = vcmp.gt.f32.partialorder %v1331, 0.0
        %vm1396 = vcmp.gt.f32.partialorder %v1332, 0.0
        %vm1397 = vcmp.gt.f32.partialorder %v1333, 0.0
        %vm1398 = vcmp.gt.f32.partialorder %v1334, 0.0
        %vm1399 = vcmp.gt.f32.partialorder %v1335, 0.0
        %v1400 = vmul.f32 %v1272, 0.2
        %v1401 = vmul.f32 %v1273, 0.2
        %v1402 = vmul.f32 %v1274, 0.2
        %v1403 = vmul.f32 %v1275, 0.2
        %v1404 = vmul.f32 %v1276, 0.2
        %v1405 = vmul.f32 %v1277, 0.2
        %v1406 = vmul.f32 %v1278, 0.2
        %v1407 = vmul.f32 %v1279, 0.2
        %v1408 = vmul.f32 %v1280, 0.2
        %v1409 = vmul.f32 %v1281, 0.2
        %v1410 = vmul.f32 %v1282, 0.2
        %v1411 = vmul.f32 %v1283, 0.2
        %v1412 = vmul.f32 %v1284, 0.2
        %v1413 = vmul.f32 %v1285, 0.2
        %v1414 = vmul.f32 %v1286, 0.2
        %v1415 = vmul.f32 %v1287, 0.2
        %v1416 = vmul.f32 %v1288, 0.2
        %v1417 = vmul.f32 %v1289, 0.2
        %v1418 = vmul.f32 %v1290, 0.2
        %v1419 = vmul.f32 %v1291, 0.2
        %v1420 = vmul.f32 %v1292, 0.2
        %v1421 = vmul.f32 %v1293, 0.2
        %v1422 = vmul.f32 %v1294, 0.2
        %v1423 = vmul.f32 %v1295, 0.2
        %v1424 = vmul.f32 %v1296, 0.2
        %v1425 = vmul.f32 %v1297, 0.2
        %v1426 = vmul.f32 %v1298, 0.2
        %v1427 = vmul.f32 %v1299, 0.2
        %v1428 = vmul.f32 %v1300, 0.2
        %v1429 = vmul.f32 %v1301, 0.2
        %v1430 = vmul.f32 %v1302, 0.2
        %v1431 = vmul.f32 %v1303, 0.2
        %v1432 = vmul.f32 %v1304, 0.2
        %v1433 = vmul.f32 %v1305, 0.2
        %v1434 = vmul.f32 %v1306, 0.2
        %v1435 = vmul.f32 %v1307, 0.2
        %v1436 = vmul.f32 %v1308, 0.2
        %v1437 = vmul.f32 %v1309, 0.2
        %v1438 = vmul.f32 %v1310, 0.2
        %v1439 = vmul.f32 %v1311, 0.2
        %v1440 = vmul.f32 %v1312, 0.2
        %v1441 = vmul.f32 %v1313, 0.2
        %v1442 = vmul.f32 %v1314, 0.2
        %v1443 = vmul.f32 %v1315, 0.2
        %v1444 = vmul.f32 %v1316, 0.2
        %v1445 = vmul.f32 %v1317, 0.2
        %v1446 = vmul.f32 %v1318, 0.2
        %v1447 = vmul.f32 %v1319, 0.2
        %v1448 = vmul.f32 %v1320, 0.2
        %v1449 = vmul.f32 %v1321, 0.2
        %v1450 = vmul.f32 %v1322, 0.2
        %v1451 = vmul.f32 %v1323, 0.2
        %v1452 = vmul.f32 %v1324, 0.2
        %v1453 = vmul.f32 %v1325, 0.2
        %v1454 = vmul.f32 %v1326, 0.2
        %v1455 = vmul.f32 %v1327, 0.2
        %v1456 = vmul.f32 %v1328, 0.2
        %v1457 = vmul.f32 %v1329, 0.2
        %v1458 = vmul.f32 %v1330, 0.2
        %v1459 = vmul.f32 %v1331, 0.2
        %v1460 = vmul.f32 %v1332, 0.2
        %v1461 = vmul.f32 %v1333, 0.2
        %v1462 = vmul.f32 %v1334, 0.2
        %v1463 = vmul.f32 %v1335, 0.2
        %v1464 = vsel %vm1336, %v1272, %v1400
        %v1465 = vsel %vm1337, %v1273, %v1401
        %v1466 = vsel %vm1338, %v1274, %v1402
        %v1467 = vsel %vm1339, %v1275, %v1403
        %v1468 = vsel %vm1340, %v1276, %v1404
        %v1469 = vsel %vm1341, %v1277, %v1405
        %v1470 = vsel %vm1342, %v1278, %v1406
        %v1471 = vsel %vm1343, %v1279, %v1407
        %v1472 = vsel %vm1344, %v1280, %v1408
        %v1473 = vsel %vm1345, %v1281, %v1409
        %v1474 = vsel %vm1346, %v1282, %v1410
        %v1475 = vsel %vm1347, %v1283, %v1411
        %v1476 = vsel %vm1348, %v1284, %v1412
        %v1477 = vsel %vm1349, %v1285, %v1413
        %v1478 = vsel %vm1350, %v1286, %v1414
        %v1479 = vsel %vm1351, %v1287, %v1415
        %v1480 = vsel %vm1352, %v1288, %v1416
        %v1481 = vsel %vm1353, %v1289, %v1417
        %v1482 = vsel %vm1354, %v1290, %v1418
        %v1483 = vsel %vm1355, %v1291, %v1419
        %v1484 = vsel %vm1356, %v1292, %v1420
        %v1485 = vsel %vm1357, %v1293, %v1421
        %v1486 = vsel %vm1358, %v1294, %v1422
        %v1487 = vsel %vm1359, %v1295, %v1423
        %v1488 = vsel %vm1360, %v1296, %v1424
        %v1489 = vsel %vm1361, %v1297, %v1425
        %v1490 = vsel %vm1362, %v1298, %v1426
        %v1491 = vsel %vm1363, %v1299, %v1427
        %v1492 = vsel %vm1364, %v1300, %v1428
        %v1493 = vsel %vm1365, %v1301, %v1429
        %v1494 = vsel %vm1366, %v1302, %v1430
        %v1495 = vsel %vm1367, %v1303, %v1431
        %v1496 = vsel %vm1368, %v1304, %v1432
        %v1497 = vsel %vm1369, %v1305, %v1433
        %v1498 = vsel %vm1370, %v1306, %v1434
        %v1499 = vsel %vm1371, %v1307, %v1435
        %v1500 = vsel %vm1372, %v1308, %v1436
        %v1501 = vsel %vm1373, %v1309, %v1437
        %v1502 = vsel %vm1374, %v1310, %v1438
        %v1503 = vsel %vm1375, %v1311, %v1439
        %v1504 = vsel %vm1376, %v1312, %v1440
        %v1505 = vsel %vm1377, %v1313, %v1441
        %v1506 = vsel %vm1378, %v1314, %v1442
        %v1507 = vsel %vm1379, %v1315, %v1443
        %v1508 = vsel %vm1380, %v1316, %v1444
        %v1509 = vsel %vm1381, %v1317, %v1445
        %v1510 = vsel %vm1382, %v1318, %v1446
        %v1511 = vsel %vm1383, %v1319, %v1447
        %v1512 = vsel %vm1384, %v1320, %v1448
        %v1513 = vsel %vm1385, %v1321, %v1449
        %v1514 = vsel %vm1386, %v1322, %v1450
        %v1515 = vsel %vm1387, %v1323, %v1451
        %v1516 = vsel %vm1388, %v1324, %v1452
        %v1517 = vsel %vm1389, %v1325, %v1453
        %v1518 = vsel %vm1390, %v1326, %v1454
        %v1519 = vsel %vm1391, %v1327, %v1455
        %v1520 = vsel %vm1392, %v1328, %v1456
        %v1521 = vsel %vm1393, %v1329, %v1457
        %v1522 = vsel %vm1394, %v1330, %v1458
        %v1523 = vsel %vm1395, %v1331, %v1459
        %v1524 = vsel %vm1396, %v1332, %v1460
        %v1525 = vsel %vm1397, %v1333, %v1461
        %v1526 = vsel %vm1398, %v1334, %v1462
        %v1527 = vsel %vm1399, %v1335, %v1463
        %v1528 = vadd.f32 %v1464, %v600
        %v1529 = vadd.f32 %v1465, %v601
        %v1530 = vadd.f32 %v1466, %v602
        %v1531 = vadd.f32 %v1467, %v603
        %v1532 = vadd.f32 %v1468, %v604
        %v1533 = vadd.f32 %v1469, %v605
        %v1534 = vadd.f32 %v1470, %v606
        %v1535 = vadd.f32 %v1471, %v607
        %v1536 = vadd.f32 %v1472, %v608
        %v1537 = vadd.f32 %v1473, %v609
        %v1538 = vadd.f32 %v1474, %v610
        %v1539 = vadd.f32 %v1475, %v611
        %v1540 = vadd.f32 %v1476, %v612
        %v1541 = vadd.f32 %v1477, %v613
        %v1542 = vadd.f32 %v1478, %v614
        %v1543 = vadd.f32 %v1479, %v615
        %v1544 = vadd.f32 %v1480, %v600
        %v1545 = vadd.f32 %v1481, %v601
        %v1546 = vadd.f32 %v1482, %v602
        %v1547 = vadd.f32 %v1483, %v603
        %v1548 = vadd.f32 %v1484, %v604
        %v1549 = vadd.f32 %v1485, %v605
        %v1550 = vadd.f32 %v1486, %v606
        %v1551 = vadd.f32 %v1487, %v607
        %v1552 = vadd.f32 %v1488, %v608
        %v1553 = vadd.f32 %v1489, %v609
        %v1554 = vadd.f32 %v1490, %v610
        %v1555 = vadd.f32 %v1491, %v611
        %v1556 = vadd.f32 %v1492, %v612
        %v1557 = vadd.f32 %v1493, %v613
        %v1558 = vadd.f32 %v1494, %v614
        %v1559 = vadd.f32 %v1495, %v615
        %v1560 = vadd.f32 %v1496, %v616
        %v1561 = vadd.f32 %v1497, %v617
        %v1562 = vadd.f32 %v1498, %v618
        %v1563 = vadd.f32 %v1499, %v619
        %v1564 = vadd.f32 %v1500, %v620
        %v1565 = vadd.f32 %v1501, %v621
        %v1566 = vadd.f32 %v1502, %v622
        %v1567 = vadd.f32 %v1503, %v623
        %v1568 = vadd.f32 %v1504, %v624
        %v1569 = vadd.f32 %v1505, %v625
        %v1570 = vadd.f32 %v1506, %v626
        %v1571 = vadd.f32 %v1507, %v627
        %v1572 = vadd.f32 %v1508, %v628
        %v1573 = vadd.f32 %v1509, %v629
        %v1574 = vadd.f32 %v1510, %v630
        %v1575 = vadd.f32 %v1511, %v631
        %v1576 = vadd.f32 %v1512, %v616
        %v1577 = vadd.f32 %v1513, %v617
        %v1578 = vadd.f32 %v1514, %v618
        %v1579 = vadd.f32 %v1515, %v619
        %v1580 = vadd.f32 %v1516, %v620
        %v1581 = vadd.f32 %v1517, %v621
        %v1582 = vadd.f32 %v1518, %v622
        %v1583 = vadd.f32 %v1519, %v623
        %v1584 = vadd.f32 %v1520, %v624
        %v1585 = vadd.f32 %v1521, %v625
        %v1586 = vadd.f32 %v1522, %v626
        %v1587 = vadd.f32 %v1523, %v627
        %v1588 = vadd.f32 %v1524, %v628
        %v1589 = vadd.f32 %v1525, %v629
        %v1590 = vadd.f32 %v1526, %v630
        %v1591 = vadd.f32 %v1527, %v631
        %1592 = vmax.xlane.f32.xlu0 %v1528
        %v1593 = vpop.xlane.xlu0 %1592
        %1594 = vmax.xlane.f32.xlu0 %v1529
        %v1595 = vpop.xlane.xlu0 %1594
        %1596 = vmax.xlane.f32.xlu0 %v1530
        %v1597 = vpop.xlane.xlu0 %1596
        %1598 = vmax.xlane.f32.xlu0 %v1531
        %v1599 = vpop.xlane.xlu0 %1598
        %1600 = vmax.xlane.f32.xlu0 %v1532
        %v1601 = vpop.xlane.xlu0 %1600
        %1602 = vmax.xlane.f32.xlu0 %v1533
        %v1603 = vpop.xlane.xlu0 %1602
        %1604 = vmax.xlane.f32.xlu0 %v1534
        %v1605 = vpop.xlane.xlu0 %1604
        %1606 = vmax.xlane.f32.xlu0 %v1535
        %v1607 = vpop.xlane.xlu0 %1606
        %1608 = vmax.xlane.f32.xlu0 %v1536
        %v1609 = vpop.xlane.xlu0 %1608
        %1610 = vmax.xlane.f32.xlu0 %v1537
        %v1611 = vpop.xlane.xlu0 %1610
        %1612 = vmax.xlane.f32.xlu0 %v1538
        %v1613 = vpop.xlane.xlu0 %1612
        %1614 = vmax.xlane.f32.xlu0 %v1539
        %v1615 = vpop.xlane.xlu0 %1614
        %1616 = vmax.xlane.f32.xlu0 %v1540
        %v1617 = vpop.xlane.xlu0 %1616
        %1618 = vmax.xlane.f32.xlu0 %v1541
        %v1619 = vpop.xlane.xlu0 %1618
        %1620 = vmax.xlane.f32.xlu0 %v1542
        %v1621 = vpop.xlane.xlu0 %1620
        %1622 = vmax.xlane.f32.xlu0 %v1543
        %v1623 = vpop.xlane.xlu0 %1622
        %1624 = vmax.xlane.f32.xlu0 %v1544
        %v1625 = vpop.xlane.xlu0 %1624
        %1626 = vmax.xlane.f32.xlu0 %v1545
        %v1627 = vpop.xlane.xlu0 %1626
        %1628 = vmax.xlane.f32.xlu0 %v1546
        %v1629 = vpop.xlane.xlu0 %1628
        %1630 = vmax.xlane.f32.xlu0 %v1547
        %v1631 = vpop.xlane.xlu0 %1630
        %1632 = vmax.xlane.f32.xlu0 %v1548
        %v1633 = vpop.xlane.xlu0 %1632
        %1634 = vmax.xlane.f32.xlu0 %v1549
        %v1635 = vpop.xlane.xlu0 %1634
        %1636 = vmax.xlane.f32.xlu0 %v1550
        %v1637 = vpop.xlane.xlu0 %1636
        %1638 = vmax.xlane.f32.xlu0 %v1551
        %v1639 = vpop.xlane.xlu0 %1638
        %1640 = vmax.xlane.f32.xlu0 %v1552
        %v1641 = vpop.xlane.xlu0 %1640
        %1642 = vmax.xlane.f32.xlu0 %v1553
        %v1643 = vpop.xlane.xlu0 %1642
        %1644 = vmax.xlane.f32.xlu0 %v1554
        %v1645 = vpop.xlane.xlu0 %1644
        %1646 = vmax.xlane.f32.xlu0 %v1555
        %v1647 = vpop.xlane.xlu0 %1646
        %1648 = vmax.xlane.f32.xlu0 %v1556
        %v1649 = vpop.xlane.xlu0 %1648
        %1650 = vmax.xlane.f32.xlu0 %v1557
        %v1651 = vpop.xlane.xlu0 %1650
        %1652 = vmax.xlane.f32.xlu0 %v1558
        %v1653 = vpop.xlane.xlu0 %1652
        %1654 = vmax.xlane.f32.xlu0 %v1559
        %v1655 = vpop.xlane.xlu0 %1654
        %1656 = vmax.xlane.f32.xlu0 %v1560
        %v1657 = vpop.xlane.xlu0 %1656
        %1658 = vmax.xlane.f32.xlu0 %v1561
        %v1659 = vpop.xlane.xlu0 %1658
        %1660 = vmax.xlane.f32.xlu0 %v1562
        %v1661 = vpop.xlane.xlu0 %1660
        %1662 = vmax.xlane.f32.xlu0 %v1563
        %v1663 = vpop.xlane.xlu0 %1662
        %1664 = vmax.xlane.f32.xlu0 %v1564
        %v1665 = vpop.xlane.xlu0 %1664
        %1666 = vmax.xlane.f32.xlu0 %v1565
        %v1667 = vpop.xlane.xlu0 %1666
        %1668 = vmax.xlane.f32.xlu0 %v1566
        %v1669 = vpop.xlane.xlu0 %1668
        %1670 = vmax.xlane.f32.xlu0 %v1567
        %v1671 = vpop.xlane.xlu0 %1670
        %1672 = vmax.xlane.f32.xlu0 %v1568
        %v1673 = vpop.xlane.xlu0 %1672
        %1674 = vmax.xlane.f32.xlu0 %v1569
        %v1675 = vpop.xlane.xlu0 %1674
        %1676 = vmax.xlane.f32.xlu0 %v1570
        %v1677 = vpop.xlane.xlu0 %1676
        %1678 = vmax.xlane.f32.xlu0 %v1571
        %v1679 = vpop.xlane.xlu0 %1678
        %1680 = vmax.xlane.f32.xlu0 %v1572
        %v1681 = vpop.xlane.xlu0 %1680
        %1682 = vmax.xlane.f32.xlu0 %v1573
        %v1683 = vpop.xlane.xlu0 %1682
        %1684 = vmax.xlane.f32.xlu0 %v1574
        %v1685 = vpop.xlane.xlu0 %1684
        %1686 = vmax.xlane.f32.xlu0 %v1575
        %v1687 = vpop.xlane.xlu0 %1686
        %1688 = vmax.xlane.f32.xlu0 %v1576
        %v1689 = vpop.xlane.xlu0 %1688
        %1690 = vmax.xlane.f32.xlu0 %v1577
        %v1691 = vpop.xlane.xlu0 %1690
        %1692 = vmax.xlane.f32.xlu0 %v1578
        %v1693 = vpop.xlane.xlu0 %1692
        %1694 = vmax.xlane.f32.xlu0 %v1579
        %v1695 = vpop.xlane.xlu0 %1694
        %1696 = vmax.xlane.f32.xlu0 %v1580
        %v1697 = vpop.xlane.xlu0 %1696
        %1698 = vmax.xlane.f32.xlu0 %v1581
        %v1699 = vpop.xlane.xlu0 %1698
        %1700 = vmax.xlane.f32.xlu0 %v1582
        %v1701 = vpop.xlane.xlu0 %1700
        %1702 = vmax.xlane.f32.xlu0 %v1583
        %v1703 = vpop.xlane.xlu0 %1702
        %1704 = vmax.xlane.f32.xlu0 %v1584
        %v1705 = vpop.xlane.xlu0 %1704
        %1706 = vmax.xlane.f32.xlu0 %v1585
        %v1707 = vpop.xlane.xlu0 %1706
        %1708 = vmax.xlane.f32.xlu0 %v1586
        %v1709 = vpop.xlane.xlu0 %1708
        %1710 = vmax.xlane.f32.xlu0 %v1587
        %v1711 = vpop.xlane.xlu0 %1710
        %1712 = vmax.xlane.f32.xlu0 %v1588
        %v1713 = vpop.xlane.xlu0 %1712
        %1714 = vmax.xlane.f32.xlu0 %v1589
        %v1715 = vpop.xlane.xlu0 %1714
        %1716 = vmax.xlane.f32.xlu0 %v1590
        %v1717 = vpop.xlane.xlu0 %1716
        %1718 = vmax.xlane.f32.xlu0 %v1591
        %v1719 = vpop.xlane.xlu0 %1718
        %v1720 = vsub.f32 %v1528, %v1593
        %v1721 = vsub.f32 %v1529, %v1595
        %v1722 = vsub.f32 %v1530, %v1597
        %v1723 = vsub.f32 %v1531, %v1599
        %v1724 = vsub.f32 %v1532, %v1601
        %v1725 = vsub.f32 %v1533, %v1603
        %v1726 = vsub.f32 %v1534, %v1605
        %v1727 = vsub.f32 %v1535, %v1607
        %v1728 = vsub.f32 %v1536, %v1609
        %v1729 = vsub.f32 %v1537, %v1611
        %v1730 = vsub.f32 %v1538, %v1613
        %v1731 = vsub.f32 %v1539, %v1615
        %v1732 = vsub.f32 %v1540, %v1617
        %v1733 = vsub.f32 %v1541, %v1619
        %v1734 = vsub.f32 %v1542, %v1621
        %v1735 = vsub.f32 %v1543, %v1623
        %v1736 = vsub.f32 %v1544, %v1625
        %v1737 = vsub.f32 %v1545, %v1627
        %v1738 = vsub.f32 %v1546, %v1629
        %v1739 = vsub.f32 %v1547, %v1631
        %v1740 = vsub.f32 %v1548, %v1633
        %v1741 = vsub.f32 %v1549, %v1635
        %v1742 = vsub.f32 %v1550, %v1637
        %v1743 = vsub.f32 %v1551, %v1639
        %v1744 = vsub.f32 %v1552, %v1641
        %v1745 = vsub.f32 %v1553, %v1643
        %v1746 = vsub.f32 %v1554, %v1645
        %v1747 = vsub.f32 %v1555, %v1647
        %v1748 = vsub.f32 %v1556, %v1649
        %v1749 = vsub.f32 %v1557, %v1651
        %v1750 = vsub.f32 %v1558, %v1653
        %v1751 = vsub.f32 %v1559, %v1655
        %v1752 = vsub.f32 %v1560, %v1657
        %v1753 = vsub.f32 %v1561, %v1659
        %v1754 = vsub.f32 %v1562, %v1661
        %v1755 = vsub.f32 %v1563, %v1663
        %v1756 = vsub.f32 %v1564, %v1665
        %v1757 = vsub.f32 %v1565, %v1667
        %v1758 = vsub.f32 %v1566, %v1669
        %v1759 = vsub.f32 %v1567, %v1671
        %v1760 = vsub.f32 %v1568, %v1673
        %v1761 = vsub.f32 %v1569, %v1675
        %v1762 = vsub.f32 %v1570, %v1677
        %v1763 = vsub.f32 %v1571, %v1679
        %v1764 = vsub.f32 %v1572, %v1681
        %v1765 = vsub.f32 %v1573, %v1683
        %v1766 = vsub.f32 %v1574, %v1685
        %v1767 = vsub.f32 %v1575, %v1687
        %v1768 = vsub.f32 %v1576, %v1689
        %v1769 = vsub.f32 %v1577, %v1691
        %v1770 = vsub.f32 %v1578, %v1693
        %v1771 = vsub.f32 %v1579, %v1695
        %v1772 = vsub.f32 %v1580, %v1697
        %v1773 = vsub.f32 %v1581, %v1699
        %v1774 = vsub.f32 %v1582, %v1701
        %v1775 = vsub.f32 %v1583, %v1703
        %v1776 = vsub.f32 %v1584, %v1705
        %v1777 = vsub.f32 %v1585, %v1707
        %v1778 = vsub.f32 %v1586, %v1709
        %v1779 = vsub.f32 %v1587, %v1711
        %v1780 = vsub.f32 %v1588, %v1713
        %v1781 = vsub.f32 %v1589, %v1715
        %v1782 = vsub.f32 %v1590, %v1717
        %v1783 = vsub.f32 %v1591, %v1719
        %v1784 = vmul.f32 %v1720, 1.442695
        %v1785 = vpow.pop %v1784
        %v1786 = vmul.f32 %v1721, 1.442695
        %v1787 = vpow.pop %v1786
        %v1788 = vmul.f32 %v1722, 1.442695
        %v1789 = vpow.pop %v1788
        %v1790 = vmul.f32 %v1723, 1.442695
        %v1791 = vpow.pop %v1790
        %v1792 = vmul.f32 %v1724, 1.442695
        %v1793 = vpow.pop %v1792
        %v1794 = vmul.f32 %v1725, 1.442695
        %v1795 = vpow.pop %v1794
        %v1796 = vmul.f32 %v1726, 1.442695
        %v1797 = vpow.pop %v1796
        %v1798 = vmul.f32 %v1727, 1.442695
        %v1799 = vpow.pop %v1798
        %v1800 = vmul.f32 %v1728, 1.442695
        %v1801 = vpow.pop %v1800
        %v1802 = vmul.f32 %v1729, 1.442695
        %v1803 = vpow.pop %v1802
        %v1804 = vmul.f32 %v1730, 1.442695
        %v1805 = vpow.pop %v1804
        %v1806 = vmul.f32 %v1731, 1.442695
        %v1807 = vpow.pop %v1806
        %v1808 = vmul.f32 %v1732, 1.442695
        %v1809 = vpow.pop %v1808
        %v1810 = vmul.f32 %v1733, 1.442695
        %v1811 = vpow.pop %v1810
        %v1812 = vmul.f32 %v1734, 1.442695
        %v1813 = vpow.pop %v1812
        %v1814 = vmul.f32 %v1735, 1.442695
        %v1815 = vpow.pop %v1814
        %v1816 = vmul.f32 %v1736, 1.442695
        %v1817 = vpow.pop %v1816
        %v1818 = vmul.f32 %v1737, 1.442695
        %v1819 = vpow.pop %v1818
        %v1820 = vmul.f32 %v1738, 1.442695
        %v1821 = vpow.pop %v1820
        %v1822 = vmul.f32 %v1739, 1.442695
        %v1823 = vpow.pop %v1822
        %v1824 = vmul.f32 %v1740, 1.442695
        %v1825 = vpow.pop %v1824
        %v1826 = vmul.f32 %v1741, 1.442695
        %v1827 = vpow.pop %v1826
        %v1828 = vmul.f32 %v1742, 1.442695
        %v1829 = vpow.pop %v1828
        %v1830 = vmul.f32 %v1743, 1.442695
        %v1831 = vpow.pop %v1830
        %v1832 = vmul.f32 %v1744, 1.442695
        %v1833 = vpow.pop %v1832
        %v1834 = vmul.f32 %v1745, 1.442695
        %v1835 = vpow.pop %v1834
        %v1836 = vmul.f32 %v1746, 1.442695
        %v1837 = vpow.pop %v1836
        %v1838 = vmul.f32 %v1747, 1.442695
        %v1839 = vpow.pop %v1838
        %v1840 = vmul.f32 %v1748, 1.442695
        %v1841 = vpow.pop %v1840
        %v1842 = vmul.f32 %v1749, 1.442695
        %v1843 = vpow.pop %v1842
        %v1844 = vmul.f32 %v1750, 1.442695
        %v1845 = vpow.pop %v1844
        %v1846 = vmul.f32 %v1751, 1.442695
        %v1847 = vpow.pop %v1846
        %v1848 = vmul.f32 %v1752, 1.442695
        %v1849 = vpow.pop %v1848
        %v1850 = vmul.f32 %v1753, 1.442695
        %v1851 = vpow.pop %v1850
        %v1852 = vmul.f32 %v1754, 1.442695
        %v1853 = vpow.pop %v1852
        %v1854 = vmul.f32 %v1755, 1.442695
        %v1855 = vpow.pop %v1854
        %v1856 = vmul.f32 %v1756, 1.442695
        %v1857 = vpow.pop %v1856
        %v1858 = vmul.f32 %v1757, 1.442695
        %v1859 = vpow.pop %v1858
        %v1860 = vmul.f32 %v1758, 1.442695
        %v1861 = vpow.pop %v1860
        %v1862 = vmul.f32 %v1759, 1.442695
        %v1863 = vpow.pop %v1862
        %v1864 = vmul.f32 %v1760, 1.442695
        %v1865 = vpow.pop %v1864
        %v1866 = vmul.f32 %v1761, 1.442695
        %v1867 = vpow.pop %v1866
        %v1868 = vmul.f32 %v1762, 1.442695
        %v1869 = vpow.pop %v1868
        %v1870 = vmul.f32 %v1763, 1.442695
        %v1871 = vpow.pop %v1870
        %v1872 = vmul.f32 %v1764, 1.442695
        %v1873 = vpow.pop %v1872
        %v1874 = vmul.f32 %v1765, 1.442695
        %v1875 = vpow.pop %v1874
        %v1876 = vmul.f32 %v1766, 1.442695
        %v1877 = vpow.pop %v1876
        %v1878 = vmul.f32 %v1767, 1.442695
        %v1879 = vpow.pop %v1878
        %v1880 = vmul.f32 %v1768, 1.442695
        %v1881 = vpow.pop %v1880
        %v1882 = vmul.f32 %v1769, 1.442695
        %v1883 = vpow.pop %v1882
        %v1884 = vmul.f32 %v1770, 1.442695
        %v1885 = vpow.pop %v1884
        %v1886 = vmul.f32 %v1771, 1.442695
        %v1887 = vpow.pop %v1886
        %v1888 = vmul.f32 %v1772, 1.442695
        %v1889 = vpow.pop %v1888
        %v1890 = vmul.f32 %v1773, 1.442695
        %v1891 = vpow.pop %v1890
        %v1892 = vmul.f32 %v1774, 1.442695
        %v1893 = vpow.pop %v1892
        %v1894 = vmul.f32 %v1775, 1.442695
        %v1895 = vpow.pop %v1894
        %v1896 = vmul.f32 %v1776, 1.442695
        %v1897 = vpow.pop %v1896
        %v1898 = vmul.f32 %v1777, 1.442695
        %v1899 = vpow.pop %v1898
        %v1900 = vmul.f32 %v1778, 1.442695
        %v1901 = vpow.pop %v1900
        %v1902 = vmul.f32 %v1779, 1.442695
        %v1903 = vpow.pop %v1902
        %v1904 = vmul.f32 %v1780, 1.442695
        %v1905 = vpow.pop %v1904
        %v1906 = vmul.f32 %v1781, 1.442695
        %v1907 = vpow.pop %v1906
        %v1908 = vmul.f32 %v1782, 1.442695
        %v1909 = vpow.pop %v1908
        %v1910 = vmul.f32 %v1783, 1.442695
        %v1911 = vpow.pop %v1910
        %1912 = vadd.xlane.f32.xlu0 %v1785
        %v1913 = vpop.xlane.xlu0 %1912
        %1914 = vadd.xlane.f32.xlu0 %v1787
        %v1915 = vpop.xlane.xlu0 %1914
        %1916 = vadd.xlane.f32.xlu0 %v1789
        %v1917 = vpop.xlane.xlu0 %1916
        %1918 = vadd.xlane.f32.xlu0 %v1791
        %v1919 = vpop.xlane.xlu0 %1918
        %1920 = vadd.xlane.f32.xlu0 %v1793
        %v1921 = vpop.xlane.xlu0 %1920
        %1922 = vadd.xlane.f32.xlu0 %v1795
        %v1923 = vpop.xlane.xlu0 %1922
        %1924 = vadd.xlane.f32.xlu0 %v1797
        %v1925 = vpop.xlane.xlu0 %1924
        %1926 = vadd.xlane.f32.xlu0 %v1799
        %v1927 = vpop.xlane.xlu0 %1926
        %1928 = vadd.xlane.f32.xlu0 %v1801
        %v1929 = vpop.xlane.xlu0 %1928
        %1930 = vadd.xlane.f32.xlu0 %v1803
        %v1931 = vpop.xlane.xlu0 %1930
        %1932 = vadd.xlane.f32.xlu0 %v1805
        %v1933 = vpop.xlane.xlu0 %1932
        %1934 = vadd.xlane.f32.xlu0 %v1807
        %v1935 = vpop.xlane.xlu0 %1934
        %1936 = vadd.xlane.f32.xlu0 %v1809
        %v1937 = vpop.xlane.xlu0 %1936
        %1938 = vadd.xlane.f32.xlu0 %v1811
        %v1939 = vpop.xlane.xlu0 %1938
        %1940 = vadd.xlane.f32.xlu0 %v1813
        %v1941 = vpop.xlane.xlu0 %1940
        %1942 = vadd.xlane.f32.xlu0 %v1815
        %v1943 = vpop.xlane.xlu0 %1942
        %1944 = vadd.xlane.f32.xlu0 %v1817
        %v1945 = vpop.xlane.xlu0 %1944
        %1946 = vadd.xlane.f32.xlu0 %v1819
        %v1947 = vpop.xlane.xlu0 %1946
        %1948 = vadd.xlane.f32.xlu0 %v1821
        %v1949 = vpop.xlane.xlu0 %1948
        %1950 = vadd.xlane.f32.xlu0 %v1823
        %v1951 = vpop.xlane.xlu0 %1950
        %1952 = vadd.xlane.f32.xlu0 %v1825
        %v1953 = vpop.xlane.xlu0 %1952
        %1954 = vadd.xlane.f32.xlu0 %v1827
        %v1955 = vpop.xlane.xlu0 %1954
        %1956 = vadd.xlane.f32.xlu0 %v1829
        %v1957 = vpop.xlane.xlu0 %1956
        %1958 = vadd.xlane.f32.xlu0 %v1831
        %v1959 = vpop.xlane.xlu0 %1958
        %1960 = vadd.xlane.f32.xlu0 %v1833
        %v1961 = vpop.xlane.xlu0 %1960
        %1962 = vadd.xlane.f32.xlu0 %v1835
        %v1963 = vpop.xlane.xlu0 %1962
        %1964 = vadd.xlane.f32.xlu0 %v1837
        %v1965 = vpop.xlane.xlu0 %1964
        %1966 = vadd.xlane.f32.xlu0 %v1839
        %v1967 = vpop.xlane.xlu0 %1966
        %1968 = vadd.xlane.f32.xlu0 %v1841
        %v1969 = vpop.xlane.xlu0 %1968
        %1970 = vadd.xlane.f32.xlu0 %v1843
        %v1971 = vpop.xlane.xlu0 %1970
        %1972 = vadd.xlane.f32.xlu0 %v1845
        %v1973 = vpop.xlane.xlu0 %1972
        %1974 = vadd.xlane.f32.xlu0 %v1847
        %v1975 = vpop.xlane.xlu0 %1974
        %1976 = vadd.xlane.f32.xlu0 %v1849
        %v1977 = vpop.xlane.xlu0 %1976
        %1978 = vadd.xlane.f32.xlu0 %v1851
        %v1979 = vpop.xlane.xlu0 %1978
        %1980 = vadd.xlane.f32.xlu0 %v1853
        %v1981 = vpop.xlane.xlu0 %1980
        %1982 = vadd.xlane.f32.xlu0 %v1855
        %v1983 = vpop.xlane.xlu0 %1982
        %1984 = vadd.xlane.f32.xlu0 %v1857
        %v1985 = vpop.xlane.xlu0 %1984
        %1986 = vadd.xlane.f32.xlu0 %v1859
        %v1987 = vpop.xlane.xlu0 %1986
        %1988 = vadd.xlane.f32.xlu0 %v1861
        %v1989 = vpop.xlane.xlu0 %1988
        %1990 = vadd.xlane.f32.xlu0 %v1863
        %v1991 = vpop.xlane.xlu0 %1990
        %1992 = vadd.xlane.f32.xlu0 %v1865
        %v1993 = vpop.xlane.xlu0 %1992
        %1994 = vadd.xlane.f32.xlu0 %v1867
        %v1995 = vpop.xlane.xlu0 %1994
        %1996 = vadd.xlane.f32.xlu0 %v1869
        %v1997 = vpop.xlane.xlu0 %1996
        %1998 = vadd.xlane.f32.xlu0 %v1871
        %v1999 = vpop.xlane.xlu0 %1998
        %2000 = vadd.xlane.f32.xlu0 %v1873
        %v2001 = vpop.xlane.xlu0 %2000
        %2002 = vadd.xlane.f32.xlu0 %v1875
        %v2003 = vpop.xlane.xlu0 %2002
        %2004 = vadd.xlane.f32.xlu0 %v1877
        %v2005 = vpop.xlane.xlu0 %2004
        %2006 = vadd.xlane.f32.xlu0 %v1879
        %v2007 = vpop.xlane.xlu0 %2006
        %2008 = vadd.xlane.f32.xlu0 %v1881
        %v2009 = vpop.xlane.xlu0 %2008
        %2010 = vadd.xlane.f32.xlu0 %v1883
        %v2011 = vpop.xlane.xlu0 %2010
        %2012 = vadd.xlane.f32.xlu0 %v1885
        %v2013 = vpop.xlane.xlu0 %2012
        %2014 = vadd.xlane.f32.xlu0 %v1887
        %v2015 = vpop.xlane.xlu0 %2014
        %2016 = vadd.xlane.f32.xlu0 %v1889
        %v2017 = vpop.xlane.xlu0 %2016
        %2018 = vadd.xlane.f32.xlu0 %v1891
        %v2019 = vpop.xlane.xlu0 %2018
        %2020 = vadd.xlane.f32.xlu0 %v1893
        %v2021 = vpop.xlane.xlu0 %2020
        %2022 = vadd.xlane.f32.xlu0 %v1895
        %v2023 = vpop.xlane.xlu0 %2022
        %2024 = vadd.xlane.f32.xlu0 %v1897
        %v2025 = vpop.xlane.xlu0 %2024
        %2026 = vadd.xlane.f32.xlu0 %v1899
        %v2027 = vpop.xlane.xlu0 %2026
        %2028 = vadd.xlane.f32.xlu0 %v1901
        %v2029 = vpop.xlane.xlu0 %2028
        %2030 = vadd.xlane.f32.xlu0 %v1903
        %v2031 = vpop.xlane.xlu0 %2030
        %2032 = vadd.xlane.f32.xlu0 %v1905
        %v2033 = vpop.xlane.xlu0 %2032
        %2034 = vadd.xlane.f32.xlu0 %v1907
        %v2035 = vpop.xlane.xlu0 %2034
        %2036 = vadd.xlane.f32.xlu0 %v1909
        %v2037 = vpop.xlane.xlu0 %2036
        %2038 = vadd.xlane.f32.xlu0 %v1911
        %v2039 = vpop.xlane.xlu0 %2038
        %v2040 = vrcp.pop %v1913
        %v2041 = vrcp.pop %v1915
        %v2042 = vrcp.pop %v1917
        %v2043 = vrcp.pop %v1919
        %v2044 = vrcp.pop %v1921
        %v2045 = vrcp.pop %v1923
        %v2046 = vrcp.pop %v1925
        %v2047 = vrcp.pop %v1927
        %v2048 = vrcp.pop %v1929
        %v2049 = vrcp.pop %v1931
        %v2050 = vrcp.pop %v1933
        %v2051 = vrcp.pop %v1935
        %v2052 = vrcp.pop %v1937
        %v2053 = vrcp.pop %v1939
        %v2054 = vrcp.pop %v1941
        %v2055 = vrcp.pop %v1943
        %v2056 = vrcp.pop %v1945
        %v2057 = vrcp.pop %v1947
        %v2058 = vrcp.pop %v1949
        %v2059 = vrcp.pop %v1951
        %v2060 = vrcp.pop %v1953
        %v2061 = vrcp.pop %v1955
        %v2062 = vrcp.pop %v1957
        %v2063 = vrcp.pop %v1959
        %v2064 = vrcp.pop %v1961
        %v2065 = vrcp.pop %v1963
        %v2066 = vrcp.pop %v1965
        %v2067 = vrcp.pop %v1967
        %v2068 = vrcp.pop %v1969
        %v2069 = vrcp.pop %v1971
        %v2070 = vrcp.pop %v1973
        %v2071 = vrcp.pop %v1975
        %v2072 = vrcp.pop %v1977
        %v2073 = vrcp.pop %v1979
        %v2074 = vrcp.pop %v1981
        %v2075 = vrcp.pop %v1983
        %v2076 = vrcp.pop %v1985
        %v2077 = vrcp.pop %v1987
        %v2078 = vrcp.pop %v1989
        %v2079 = vrcp.pop %v1991
        %v2080 = vrcp.pop %v1993
        %v2081 = vrcp.pop %v1995
        %v2082 = vrcp.pop %v1997
        %v2083 = vrcp.pop %v1999
        %v2084 = vrcp.pop %v2001
        %v2085 = vrcp.pop %v2003
        %v2086 = vrcp.pop %v2005
        %v2087 = vrcp.pop %v2007
        %v2088 = vrcp.pop %v2009
        %v2089 = vrcp.pop %v2011
        %v2090 = vrcp.pop %v2013
        %v2091 = vrcp.pop %v2015
        %v2092 = vrcp.pop %v2017
        %v2093 = vrcp.pop %v2019
        %v2094 = vrcp.pop %v2021
        %v2095 = vrcp.pop %v2023
        %v2096 = vrcp.pop %v2025
        %v2097 = vrcp.pop %v2027
        %v2098 = vrcp.pop %v2029
        %v2099 = vrcp.pop %v2031
        %v2100 = vrcp.pop %v2033
        %v2101 = vrcp.pop %v2035
        %v2102 = vrcp.pop %v2037
        %v2103 = vrcp.pop %v2039
        %v2104 = vmul.f32 %v1913, %v2040
        %v2105 = vmul.f32 %v1915, %v2041
        %v2106 = vmul.f32 %v1917, %v2042
        %v2107 = vmul.f32 %v1919, %v2043
        %v2108 = vmul.f32 %v1921, %v2044
        %v2109 = vmul.f32 %v1923, %v2045
        %v2110 = vmul.f32 %v1925, %v2046
        %v2111 = vmul.f32 %v1927, %v2047
        %v2112 = vmul.f32 %v1929, %v2048
        %v2113 = vmul.f32 %v1931, %v2049
        %v2114 = vmul.f32 %v1933, %v2050
        %v2115 = vmul.f32 %v1935, %v2051
        %v2116 = vmul.f32 %v1937, %v2052
        %v2117 = vmul.f32 %v1939, %v2053
        %v2118 = vmul.f32 %v1941, %v2054
        %v2119 = vmul.f32 %v1943, %v2055
        %v2120 = vmul.f32 %v1945, %v2056
        %v2121 = vmul.f32 %v1947, %v2057
        %v2122 = vmul.f32 %v1949, %v2058
        %v2123 = vmul.f32 %v1951, %v2059
        %v2124 = vmul.f32 %v1953, %v2060
        %v2125 = vmul.f32 %v1955, %v2061
        %v2126 = vmul.f32 %v1957, %v2062
        %v2127 = vmul.f32 %v1959, %v2063
        %v2128 = vmul.f32 %v1961, %v2064
        %v2129 = vmul.f32 %v1963, %v2065
        %v2130 = vmul.f32 %v1965, %v2066
        %v2131 = vmul.f32 %v1967, %v2067
        %v2132 = vmul.f32 %v1969, %v2068
        %v2133 = vmul.f32 %v1971, %v2069
        %v2134 = vmul.f32 %v1973, %v2070
        %v2135 = vmul.f32 %v1975, %v2071
        %v2136 = vmul.f32 %v1977, %v2072
        %v2137 = vmul.f32 %v1979, %v2073
        %v2138 = vmul.f32 %v1981, %v2074
        %v2139 = vmul.f32 %v1983, %v2075
        %v2140 = vmul.f32 %v1985, %v2076
        %v2141 = vmul.f32 %v1987, %v2077
        %v2142 = vmul.f32 %v1989, %v2078
        %v2143 = vmul.f32 %v1991, %v2079
        %v2144 = vmul.f32 %v1993, %v2080
        %v2145 = vmul.f32 %v1995, %v2081
        %v2146 = vmul.f32 %v1997, %v2082
        %v2147 = vmul.f32 %v1999, %v2083
        %v2148 = vmul.f32 %v2001, %v2084
        %v2149 = vmul.f32 %v2003, %v2085
        %v2150 = vmul.f32 %v2005, %v2086
        %v2151 = vmul.f32 %v2007, %v2087
        %v2152 = vmul.f32 %v2009, %v2088
        %v2153 = vmul.f32 %v2011, %v2089
        %v2154 = vmul.f32 %v2013, %v2090
        %v2155 = vmul.f32 %v2015, %v2091
        %v2156 = vmul.f32 %v2017, %v2092
        %v2157 = vmul.f32 %v2019, %v2093
        %v2158 = vmul.f32 %v2021, %v2094
        %v2159 = vmul.f32 %v2023, %v2095
        %v2160 = vmul.f32 %v2025, %v2096
        %v2161 = vmul.f32 %v2027, %v2097
        %v2162 = vmul.f32 %v2029, %v2098
        %v2163 = vmul.f32 %v2031, %v2099
        %v2164 = vmul.f32 %v2033, %v2100
        %v2165 = vmul.f32 %v2035, %v2101
        %v2166 = vmul.f32 %v2037, %v2102
        %v2167 = vmul.f32 %v2039, %v2103
        %v2168 = vsub.f32 2.0, %v2104
        %v2169 = vsub.f32 2.0, %v2105
        %v2170 = vsub.f32 2.0, %v2106
        %v2171 = vsub.f32 2.0, %v2107
        %v2172 = vsub.f32 2.0, %v2108
        %v2173 = vsub.f32 2.0, %v2109
        %v2174 = vsub.f32 2.0, %v2110
        %v2175 = vsub.f32 2.0, %v2111
        %v2176 = vsub.f32 2.0, %v2112
        %v2177 = vsub.f32 2.0, %v2113
        %v2178 = vsub.f32 2.0, %v2114
        %v2179 = vsub.f32 2.0, %v2115
        %v2180 = vsub.f32 2.0, %v2116
        %v2181 = vsub.f32 2.0, %v2117
        %v2182 = vsub.f32 2.0, %v2118
        %v2183 = vsub.f32 2.0, %v2119
        %v2184 = vsub.f32 2.0, %v2120
        %v2185 = vsub.f32 2.0, %v2121
        %v2186 = vsub.f32 2.0, %v2122
        %v2187 = vsub.f32 2.0, %v2123
        %v2188 = vsub.f32 2.0, %v2124
        %v2189 = vsub.f32 2.0, %v2125
        %v2190 = vsub.f32 2.0, %v2126
        %v2191 = vsub.f32 2.0, %v2127
        %v2192 = vsub.f32 2.0, %v2128
        %v2193 = vsub.f32 2.0, %v2129
        %v2194 = vsub.f32 2.0, %v2130
        %v2195 = vsub.f32 2.0, %v2131
        %v2196 = vsub.f32 2.0, %v2132
        %v2197 = vsub.f32 2.0, %v2133
        %v2198 = vsub.f32 2.0, %v2134
        %v2199 = vsub.f32 2.0, %v2135
        %v2200 = vsub.f32 2.0, %v2136
        %v2201 = vsub.f32 2.0, %v2137
        %v2202 = vsub.f32 2.0, %v2138
        %v2203 = vsub.f32 2.0, %v2139
        %v2204 = vsub.f32 2.0, %v2140
        %v2205 = vsub.f32 2.0, %v2141
        %v2206 = vsub.f32 2.0, %v2142
        %v2207 = vsub.f32 2.0, %v2143
        %v2208 = vsub.f32 2.0, %v2144
        %v2209 = vsub.f32 2.0, %v2145
        %v2210 = vsub.f32 2.0, %v2146
        %v2211 = vsub.f32 2.0, %v2147
        %v2212 = vsub.f32 2.0, %v2148
        %v2213 = vsub.f32 2.0, %v2149
        %v2214 = vsub.f32 2.0, %v2150
        %v2215 = vsub.f32 2.0, %v2151
        %v2216 = vsub.f32 2.0, %v2152
        %v2217 = vsub.f32 2.0, %v2153
        %v2218 = vsub.f32 2.0, %v2154
        %v2219 = vsub.f32 2.0, %v2155
        %v2220 = vsub.f32 2.0, %v2156
        %v2221 = vsub.f32 2.0, %v2157
        %v2222 = vsub.f32 2.0, %v2158
        %v2223 = vsub.f32 2.0, %v2159
        %v2224 = vsub.f32 2.0, %v2160
        %v2225 = vsub.f32 2.0, %v2161
        %v2226 = vsub.f32 2.0, %v2162
        %v2227 = vsub.f32 2.0, %v2163
        %v2228 = vsub.f32 2.0, %v2164
        %v2229 = vsub.f32 2.0, %v2165
        %v2230 = vsub.f32 2.0, %v2166
        %v2231 = vsub.f32 2.0, %v2167
        %v2232 = vmul.f32 %v2040, %v2168
        %v2233 = vmul.f32 %v2041, %v2169
        %v2234 = vmul.f32 %v2042, %v2170
        %v2235 = vmul.f32 %v2043, %v2171
        %v2236 = vmul.f32 %v2044, %v2172
        %v2237 = vmul.f32 %v2045, %v2173
        %v2238 = vmul.f32 %v2046, %v2174
        %v2239 = vmul.f32 %v2047, %v2175
        %v2240 = vmul.f32 %v2048, %v2176
        %v2241 = vmul.f32 %v2049, %v2177
        %v2242 = vmul.f32 %v2050, %v2178
        %v2243 = vmul.f32 %v2051, %v2179
        %v2244 = vmul.f32 %v2052, %v2180
        %v2245 = vmul.f32 %v2053, %v2181
        %v2246 = vmul.f32 %v2054, %v2182
        %v2247 = vmul.f32 %v2055, %v2183
        %v2248 = vmul.f32 %v2056, %v2184
        %v2249 = vmul.f32 %v2057, %v2185
        %v2250 = vmul.f32 %v2058, %v2186
        %v2251 = vmul.f32 %v2059, %v2187
        %v2252 = vmul.f32 %v2060, %v2188
        %v2253 = vmul.f32 %v2061, %v2189
        %v2254 = vmul.f32 %v2062, %v2190
        %v2255 = vmul.f32 %v2063, %v2191
        %v2256 = vmul.f32 %v2064, %v2192
        %v2257 = vmul.f32 %v2065, %v2193
        %v2258 = vmul.f32 %v2066, %v2194
        %v2259 = vmul.f32 %v2067, %v2195
        %v2260 = vmul.f32 %v2068, %v2196
        %v2261 = vmul.f32 %v2069, %v2197
        %v2262 = vmul.f32 %v2070, %v2198
        %v2263 = vmul.f32 %v2071, %v2199
        %v2264 = vmul.f32 %v2072, %v2200
        %v2265 = vmul.f32 %v2073, %v2201
        %v2266 = vmul.f32 %v2074, %v2202
        %v2267 = vmul.f32 %v2075, %v2203
        %v2268 = vmul.f32 %v2076, %v2204
        %v2269 = vmul.f32 %v2077, %v2205
        %v2270 = vmul.f32 %v2078, %v2206
        %v2271 = vmul.f32 %v2079, %v2207
        %v2272 = vmul.f32 %v2080, %v2208
        %v2273 = vmul.f32 %v2081, %v2209
        %v2274 = vmul.f32 %v2082, %v2210
        %v2275 = vmul.f32 %v2083, %v2211
        %v2276 = vmul.f32 %v2084, %v2212
        %v2277 = vmul.f32 %v2085, %v2213
        %v2278 = vmul.f32 %v2086, %v2214
        %v2279 = vmul.f32 %v2087, %v2215
        %v2280 = vmul.f32 %v2088, %v2216
        %v2281 = vmul.f32 %v2089, %v2217
        %v2282 = vmul.f32 %v2090, %v2218
        %v2283 = vmul.f32 %v2091, %v2219
        %v2284 = vmul.f32 %v2092, %v2220
        %v2285 = vmul.f32 %v2093, %v2221
        %v2286 = vmul.f32 %v2094, %v2222
        %v2287 = vmul.f32 %v2095, %v2223
        %v2288 = vmul.f32 %v2096, %v2224
        %v2289 = vmul.f32 %v2097, %v2225
        %v2290 = vmul.f32 %v2098, %v2226
        %v2291 = vmul.f32 %v2099, %v2227
        %v2292 = vmul.f32 %v2100, %v2228
        %v2293 = vmul.f32 %v2101, %v2229
        %v2294 = vmul.f32 %v2102, %v2230
        %v2295 = vmul.f32 %v2103, %v2231
        %v2296 = vmul.f32 %v1785, %v2232
        %v2297 = vmul.f32 %v1787, %v2233
        %v2298 = vmul.f32 %v1789, %v2234
        %v2299 = vmul.f32 %v1791, %v2235
        %v2300 = vmul.f32 %v1793, %v2236
        %v2301 = vmul.f32 %v1795, %v2237
        %v2302 = vmul.f32 %v1797, %v2238
        %v2303 = vmul.f32 %v1799, %v2239
        %v2304 = vmul.f32 %v1801, %v2240
        %v2305 = vmul.f32 %v1803, %v2241
        %v2306 = vmul.f32 %v1805, %v2242
        %v2307 = vmul.f32 %v1807, %v2243
        %v2308 = vmul.f32 %v1809, %v2244
        %v2309 = vmul.f32 %v1811, %v2245
        %v2310 = vmul.f32 %v1813, %v2246
        %v2311 = vmul.f32 %v1815, %v2247
        %v2312 = vmul.f32 %v1817, %v2248
        %v2313 = vmul.f32 %v1819, %v2249
        %v2314 = vmul.f32 %v1821, %v2250
        %v2315 = vmul.f32 %v1823, %v2251
        %v2316 = vmul.f32 %v1825, %v2252
        %v2317 = vmul.f32 %v1827, %v2253
        %v2318 = vmul.f32 %v1829, %v2254
        %v2319 = vmul.f32 %v1831, %v2255
        %v2320 = vmul.f32 %v1833, %v2256
        %v2321 = vmul.f32 %v1835, %v2257
        %v2322 = vmul.f32 %v1837, %v2258
        %v2323 = vmul.f32 %v1839, %v2259
        %v2324 = vmul.f32 %v1841, %v2260
        %v2325 = vmul.f32 %v1843, %v2261
        %v2326 = vmul.f32 %v1845, %v2262
        %v2327 = vmul.f32 %v1847, %v2263
        %v2328 = vmul.f32 %v1849, %v2264
        %v2329 = vmul.f32 %v1851, %v2265
        %v2330 = vmul.f32 %v1853, %v2266
        %v2331 = vmul.f32 %v1855, %v2267
        %v2332 = vmul.f32 %v1857, %v2268
        %v2333 = vmul.f32 %v1859, %v2269
        %v2334 = vmul.f32 %v1861, %v2270
        %v2335 = vmul.f32 %v1863, %v2271
        %v2336 = vmul.f32 %v1865, %v2272
        %v2337 = vmul.f32 %v1867, %v2273
        %v2338 = vmul.f32 %v1869, %v2274
        %v2339 = vmul.f32 %v1871, %v2275
        %v2340 = vmul.f32 %v1873, %v2276
        %v2341 = vmul.f32 %v1875, %v2277
        %v2342 = vmul.f32 %v1877, %v2278
        %v2343 = vmul.f32 %v1879, %v2279
        %v2344 = vmul.f32 %v1881, %v2280
        %v2345 = vmul.f32 %v1883, %v2281
        %v2346 = vmul.f32 %v1885, %v2282
        %v2347 = vmul.f32 %v1887, %v2283
        %v2348 = vmul.f32 %v1889, %v2284
        %v2349 = vmul.f32 %v1891, %v2285
        %v2350 = vmul.f32 %v1893, %v2286
        %v2351 = vmul.f32 %v1895, %v2287
        %v2352 = vmul.f32 %v1897, %v2288
        %v2353 = vmul.f32 %v1899, %v2289
        %v2354 = vmul.f32 %v1901, %v2290
        %v2355 = vmul.f32 %v1903, %v2291
        %v2356 = vmul.f32 %v1905, %v2292
        %v2357 = vmul.f32 %v1907, %v2293
        %v2358 = vmul.f32 %v1909, %v2294
        %v2359 = vmul.f32 %v1911, %v2295
        %v2360 = vpack.c.bf16 %v2296, %v2296
        %v2361 = vpack.c.bf16 %v2297, %v2297
        %v2362 = vpack.c.bf16 %v2298, %v2298
        %v2363 = vpack.c.bf16 %v2299, %v2299
        %v2364 = vpack.c.bf16 %v2300, %v2300
        %v2365 = vpack.c.bf16 %v2301, %v2301
        %v2366 = vpack.c.bf16 %v2302, %v2302
        %v2367 = vpack.c.bf16 %v2303, %v2303
        %v2368 = vpack.c.bf16 %v2304, %v2304
        %v2369 = vpack.c.bf16 %v2305, %v2305
        %v2370 = vpack.c.bf16 %v2306, %v2306
        %v2371 = vpack.c.bf16 %v2307, %v2307
        %v2372 = vpack.c.bf16 %v2308, %v2308
        %v2373 = vpack.c.bf16 %v2309, %v2309
        %v2374 = vpack.c.bf16 %v2310, %v2310
        %v2375 = vpack.c.bf16 %v2311, %v2311
        %v2376 = vpack.c.bf16 %v2312, %v2312
        %v2377 = vpack.c.bf16 %v2313, %v2313
        %v2378 = vpack.c.bf16 %v2314, %v2314
        %v2379 = vpack.c.bf16 %v2315, %v2315
        %v2380 = vpack.c.bf16 %v2316, %v2316
        %v2381 = vpack.c.bf16 %v2317, %v2317
        %v2382 = vpack.c.bf16 %v2318, %v2318
        %v2383 = vpack.c.bf16 %v2319, %v2319
        %v2384 = vpack.c.bf16 %v2320, %v2320
        %v2385 = vpack.c.bf16 %v2321, %v2321
        %v2386 = vpack.c.bf16 %v2322, %v2322
        %v2387 = vpack.c.bf16 %v2323, %v2323
        %v2388 = vpack.c.bf16 %v2324, %v2324
        %v2389 = vpack.c.bf16 %v2325, %v2325
        %v2390 = vpack.c.bf16 %v2326, %v2326
        %v2391 = vpack.c.bf16 %v2327, %v2327
        %v2392 = vpack.c.bf16 %v2328, %v2328
        %v2393 = vpack.c.bf16 %v2329, %v2329
        %v2394 = vpack.c.bf16 %v2330, %v2330
        %v2395 = vpack.c.bf16 %v2331, %v2331
        %v2396 = vpack.c.bf16 %v2332, %v2332
        %v2397 = vpack.c.bf16 %v2333, %v2333
        %v2398 = vpack.c.bf16 %v2334, %v2334
        %v2399 = vpack.c.bf16 %v2335, %v2335
        %v2400 = vpack.c.bf16 %v2336, %v2336
        %v2401 = vpack.c.bf16 %v2337, %v2337
        %v2402 = vpack.c.bf16 %v2338, %v2338
        %v2403 = vpack.c.bf16 %v2339, %v2339
        %v2404 = vpack.c.bf16 %v2340, %v2340
        %v2405 = vpack.c.bf16 %v2341, %v2341
        %v2406 = vpack.c.bf16 %v2342, %v2342
        %v2407 = vpack.c.bf16 %v2343, %v2343
        %v2408 = vpack.c.bf16 %v2344, %v2344
        %v2409 = vpack.c.bf16 %v2345, %v2345
        %v2410 = vpack.c.bf16 %v2346, %v2346
        %v2411 = vpack.c.bf16 %v2347, %v2347
        %v2412 = vpack.c.bf16 %v2348, %v2348
        %v2413 = vpack.c.bf16 %v2349, %v2349
        %v2414 = vpack.c.bf16 %v2350, %v2350
        %v2415 = vpack.c.bf16 %v2351, %v2351
        %v2416 = vpack.c.bf16 %v2352, %v2352
        %v2417 = vpack.c.bf16 %v2353, %v2353
        %v2418 = vpack.c.bf16 %v2354, %v2354
        %v2419 = vpack.c.bf16 %v2355, %v2355
        %v2420 = vpack.c.bf16 %v2356, %v2356
        %v2421 = vpack.c.bf16 %v2357, %v2357
        %v2422 = vpack.c.bf16 %v2358, %v2358
        %v2423 = vpack.c.bf16 %v2359, %v2359
        %v2424 = vpack.c.bf16 %v682, %v682
        %v2425 = vpack.c.bf16 %v684, %v684
        %v2426 = vpack.c.bf16 %v687, %v687
        %v2427 = vpack.c.bf16 %v689, %v689
        %v2428 = vpack.c.bf16 %v692, %v692
        %v2429 = vpack.c.bf16 %v694, %v694
        %v2430 = vpack.c.bf16 %v697, %v697
        %v2431 = vpack.c.bf16 %v699, %v699
        %v2432 = vpack.c.bf16 %v702, %v702
        %v2433 = vpack.c.bf16 %v704, %v704
        %v2434 = vpack.c.bf16 %v707, %v707
        %v2435 = vpack.c.bf16 %v709, %v709
        %v2436 = vpack.c.bf16 %v712, %v712
        %v2437 = vpack.c.bf16 %v714, %v714
        %v2438 = vpack.c.bf16 %v717, %v717
        %v2439 = vpack.c.bf16 %v719, %v719
        %v2456 = vunpack.c.l.b16 %v2360
        %v2457 = vunpack.c.l.b16 %v2361
        %v2458 = vunpack.c.l.b16 %v2362
        %v2459 = vunpack.c.l.b16 %v2363
        %v2460 = vunpack.c.l.b16 %v2364
        %v2461 = vunpack.c.l.b16 %v2365
        %v2462 = vunpack.c.l.b16 %v2366
        %v2463 = vunpack.c.l.b16 %v2367
        %v2464 = vunpack.c.l.b16 %v2368
        %v2465 = vunpack.c.l.b16 %v2369
        %v2466 = vunpack.c.l.b16 %v2370
        %v2467 = vunpack.c.l.b16 %v2371
        %v2468 = vunpack.c.l.b16 %v2372
        %v2469 = vunpack.c.l.b16 %v2373
        %v2470 = vunpack.c.l.b16 %v2374
        %v2471 = vunpack.c.l.b16 %v2375
        %v2472 = vpack.c.b16 %v2457, %v2456
        %v2473 = vpack.c.b16 %v2459, %v2458
        %v2474 = vpack.c.b16 %v2461, %v2460
        %v2475 = vpack.c.b16 %v2463, %v2462
        %v2476 = vpack.c.b16 %v2465, %v2464
        %v2477 = vpack.c.b16 %v2467, %v2466
        %v2478 = vpack.c.b16 %v2469, %v2468
        %v2479 = vpack.c.b16 %v2471, %v2470
        %v2504 = vunpack.c.l.b16 %v2424
        %v2505 = vunpack.c.l.b16 %v2425
        %v2506 = vunpack.c.l.b16 %v2426
        %v2507 = vunpack.c.l.b16 %v2427
        %v2508 = vunpack.c.l.b16 %v2428
        %v2509 = vunpack.c.l.b16 %v2429
        %v2510 = vunpack.c.l.b16 %v2430
        %v2511 = vunpack.c.l.b16 %v2431
        %v2512 = vunpack.c.l.b16 %v2432
        %v2513 = vunpack.c.l.b16 %v2433
        %v2514 = vunpack.c.l.b16 %v2434
        %v2515 = vunpack.c.l.b16 %v2435
        %v2516 = vunpack.c.l.b16 %v2436
        %v2517 = vunpack.c.l.b16 %v2437
        %v2518 = vunpack.c.l.b16 %v2438
        %v2519 = vunpack.c.l.b16 %v2439
        %v2520 = vpack.c.b16 %v2505, %v2504
        %v2521 = vpack.c.b16 %v2507, %v2506
        %v2522 = vpack.c.b16 %v2509, %v2508
        %v2523 = vpack.c.b16 %v2511, %v2510
        %v2524 = vpack.c.b16 %v2513, %v2512
        %v2525 = vpack.c.b16 %v2515, %v2514
        %v2526 = vpack.c.b16 %v2517, %v2516
        %v2527 = vpack.c.b16 %v2519, %v2518
        %2536 = vmatpush.bf16.msra.mxu0 %v2527
        %2537 = vmatpush.bf16.msra.mxu0 %v2526
        %2538 = vmatpush.bf16.msra.mxu0 %v2525
        %2539 = vmatpush.bf16.msra.mxu0 %v2524
        %2540 = vmatpush.bf16.msra.mxu0 %v2523
        %2541 = vmatpush.bf16.msra.mxu0 %v2522
        %2542 = vmatpush.bf16.msra.mxu0 %v2521
        %2543 = vmatpush.bf16.msra.mxu0 %v2520
        %2544 = vmatmul.bf16.gmra.mxu0 %v2472
        %v2545 = vpop.f32.mrf.mxu0
        %v2546 = vadd.f32 0.0, %v2545
        %v2547 = vpop.f32.mrf.mxu0
        %v2548 = vadd.f32 0.0, %v2547
        %2549 = vmatmul.bf16.gmra.mxu0 %v2473
        %v2550 = vpop.f32.mrf.mxu0
        %v2551 = vadd.f32 0.0, %v2550
        %v2552 = vpop.f32.mrf.mxu0
        %v2553 = vadd.f32 0.0, %v2552
        %2554 = vmatmul.bf16.gmra.mxu0 %v2474
        %v2555 = vpop.f32.mrf.mxu0
        %v2556 = vadd.f32 0.0, %v2555
        %v2557 = vpop.f32.mrf.mxu0
        %v2558 = vadd.f32 0.0, %v2557
        %2559 = vmatmul.bf16.gmra.mxu0 %v2475
        %v2560 = vpop.f32.mrf.mxu0
        %v2561 = vadd.f32 0.0, %v2560
        %v2562 = vpop.f32.mrf.mxu0
        %v2563 = vadd.f32 0.0, %v2562
        %2564 = vmatmul.bf16.gmra.mxu0 %v2476
        %v2565 = vpop.f32.mrf.mxu0
        %v2566 = vadd.f32 0.0, %v2565
        %v2567 = vpop.f32.mrf.mxu0
        %v2568 = vadd.f32 0.0, %v2567
        %2569 = vmatmul.bf16.gmra.mxu0 %v2477
        %v2570 = vpop.f32.mrf.mxu0
        %v2571 = vadd.f32 0.0, %v2570
        %v2572 = vpop.f32.mrf.mxu0
        %v2573 = vadd.f32 0.0, %v2572
        %2574 = vmatmul.bf16.gmra.mxu0 %v2478
        %v2575 = vpop.f32.mrf.mxu0
        %v2576 = vadd.f32 0.0, %v2575
        %v2577 = vpop.f32.mrf.mxu0
        %v2578 = vadd.f32 0.0, %v2577
        %2579 = vmatmul.bf16.gmra.mxu0 %v2479
        %v2580 = vpop.f32.mrf.mxu0
        %v2581 = vadd.f32 0.0, %v2580
        %v2582 = vpop.f32.mrf.mxu0
        %v2583 = vadd.f32 0.0, %v2582
        %2584 = vdwg.mxu0
        %v2601 = vunpack.c.l.b16 %v2376
        %v2602 = vunpack.c.l.b16 %v2377
        %v2603 = vunpack.c.l.b16 %v2378
        %v2604 = vunpack.c.l.b16 %v2379
        %v2605 = vunpack.c.l.b16 %v2380
        %v2606 = vunpack.c.l.b16 %v2381
        %v2607 = vunpack.c.l.b16 %v2382
        %v2608 = vunpack.c.l.b16 %v2383
        %v2609 = vunpack.c.l.b16 %v2384
        %v2610 = vunpack.c.l.b16 %v2385
        %v2611 = vunpack.c.l.b16 %v2386
        %v2612 = vunpack.c.l.b16 %v2387
        %v2613 = vunpack.c.l.b16 %v2388
        %v2614 = vunpack.c.l.b16 %v2389
        %v2615 = vunpack.c.l.b16 %v2390
        %v2616 = vunpack.c.l.b16 %v2391
        %v2617 = vpack.c.b16 %v2602, %v2601
        %v2618 = vpack.c.b16 %v2604, %v2603
        %v2619 = vpack.c.b16 %v2606, %v2605
        %v2620 = vpack.c.b16 %v2608, %v2607
        %v2621 = vpack.c.b16 %v2610, %v2609
        %v2622 = vpack.c.b16 %v2612, %v2611
        %v2623 = vpack.c.b16 %v2614, %v2613
        %v2624 = vpack.c.b16 %v2616, %v2615
        %2633 = vrot.lane.b32.xlu0 %v2520, 112
        %v2634 = vpop.permute.xlu0 %2633
        %2635 = vrot.lane.b32.xlu0 %v2521, 112
        %v2636 = vpop.permute.xlu0 %2635
        %2637 = vrot.lane.b32.xlu0 %v2522, 112
        %v2638 = vpop.permute.xlu0 %2637
        %2639 = vrot.lane.b32.xlu0 %v2523, 112
        %v2640 = vpop.permute.xlu0 %2639
        %2641 = vrot.lane.b32.xlu0 %v2524, 112
        %v2642 = vpop.permute.xlu0 %2641
        %2643 = vrot.lane.b32.xlu0 %v2525, 112
        %v2644 = vpop.permute.xlu0 %2643
        %2645 = vrot.lane.b32.xlu0 %v2526, 112
        %v2646 = vpop.permute.xlu0 %2645
        %2647 = vrot.lane.b32.xlu0 %v2527, 112
        %v2648 = vpop.permute.xlu0 %2647
        %2657 = vmatpush.bf16.msra.mxu0 %v2648
        %2658 = vmatpush.bf16.msra.mxu0 %v2646
        %2659 = vmatpush.bf16.msra.mxu0 %v2644
        %2660 = vmatpush.bf16.msra.mxu0 %v2642
        %2661 = vmatpush.bf16.msra.mxu0 %v2640
        %2662 = vmatpush.bf16.msra.mxu0 %v2638
        %2663 = vmatpush.bf16.msra.mxu0 %v2636
        %2664 = vmatpush.bf16.msra.mxu0 %v2634
        %2665 = vmatmul.bf16.gmra.mxu0 %v2617
        %v2666 = vpop.f32.mrf.mxu0
        %v2667 = vadd.f32 0.0, %v2666
        %v2668 = vpop.f32.mrf.mxu0
        %v2669 = vadd.f32 0.0, %v2668
        %2670 = vmatmul.bf16.gmra.mxu0 %v2618
        %v2671 = vpop.f32.mrf.mxu0
        %v2672 = vadd.f32 0.0, %v2671
        %v2673 = vpop.f32.mrf.mxu0
        %v2674 = vadd.f32 0.0, %v2673
        %2675 = vmatmul.bf16.gmra.mxu0 %v2619
        %v2676 = vpop.f32.mrf.mxu0
        %v2677 = vadd.f32 0.0, %v2676
        %v2678 = vpop.f32.mrf.mxu0
        %v2679 = vadd.f32 0.0, %v2678
        %2680 = vmatmul.bf16.gmra.mxu0 %v2620
        %v2681 = vpop.f32.mrf.mxu0
        %v2682 = vadd.f32 0.0, %v2681
        %v2683 = vpop.f32.mrf.mxu0
        %v2684 = vadd.f32 0.0, %v2683
        %2685 = vmatmul.bf16.gmra.mxu0 %v2621
        %v2686 = vpop.f32.mrf.mxu0
        %v2687 = vadd.f32 0.0, %v2686
        %v2688 = vpop.f32.mrf.mxu0
        %v2689 = vadd.f32 0.0, %v2688
        %2690 = vmatmul.bf16.gmra.mxu0 %v2622
        %v2691 = vpop.f32.mrf.mxu0
        %v2692 = vadd.f32 0.0, %v2691
        %v2693 = vpop.f32.mrf.mxu0
        %v2694 = vadd.f32 0.0, %v2693
        %2695 = vmatmul.bf16.gmra.mxu0 %v2623
        %v2696 = vpop.f32.mrf.mxu0
        %v2697 = vadd.f32 0.0, %v2696
        %v2698 = vpop.f32.mrf.mxu0
        %v2699 = vadd.f32 0.0, %v2698
        %2700 = vmatmul.bf16.gmra.mxu0 %v2624
        %v2701 = vpop.f32.mrf.mxu0
        %v2702 = vadd.f32 0.0, %v2701
        %v2703 = vpop.f32.mrf.mxu0
        %v2704 = vadd.f32 0.0, %v2703
        %2705 = vdwg.mxu0
        %2722 = vrot.lane.b32.xlu0 %v2667, 16
        %v2723 = vpop.permute.xlu0 %2722
        %2724 = vrot.lane.b32.xlu0 %v2669, 16
        %v2725 = vpop.permute.xlu0 %2724
        %2726 = vrot.lane.b32.xlu0 %v2672, 16
        %v2727 = vpop.permute.xlu0 %2726
        %2728 = vrot.lane.b32.xlu0 %v2674, 16
        %v2729 = vpop.permute.xlu0 %2728
        %2730 = vrot.lane.b32.xlu0 %v2677, 16
        %v2731 = vpop.permute.xlu0 %2730
        %2732 = vrot.lane.b32.xlu0 %v2679, 16
        %v2733 = vpop.permute.xlu0 %2732
        %2734 = vrot.lane.b32.xlu0 %v2682, 16
        %v2735 = vpop.permute.xlu0 %2734
        %2736 = vrot.lane.b32.xlu0 %v2684, 16
        %v2737 = vpop.permute.xlu0 %2736
        %2738 = vrot.lane.b32.xlu0 %v2687, 16
        %v2739 = vpop.permute.xlu0 %2738
        %2740 = vrot.lane.b32.xlu0 %v2689, 16
        %v2741 = vpop.permute.xlu0 %2740
        %2742 = vrot.lane.b32.xlu0 %v2692, 16
        %v2743 = vpop.permute.xlu0 %2742
        %2744 = vrot.lane.b32.xlu0 %v2694, 16
        %v2745 = vpop.permute.xlu0 %2744
        %2746 = vrot.lane.b32.xlu0 %v2697, 16
        %v2747 = vpop.permute.xlu0 %2746
        %2748 = vrot.lane.b32.xlu0 %v2699, 16
        %v2749 = vpop.permute.xlu0 %2748
        %2750 = vrot.lane.b32.xlu0 %v2702, 16
        %v2751 = vpop.permute.xlu0 %2750
        %2752 = vrot.lane.b32.xlu0 %v2704, 16
        %v2753 = vpop.permute.xlu0 %2752
        %vm2770 = vcmask 130048
        %v2771 = vsel %vm2770, %v2546, %v2723
        %v2772 = vsel %vm2770, %v2548, %v2725
        %v2773 = vsel %vm2770, %v2551, %v2727
        %v2774 = vsel %vm2770, %v2553, %v2729
        %v2775 = vsel %vm2770, %v2556, %v2731
        %v2776 = vsel %vm2770, %v2558, %v2733
        %v2777 = vsel %vm2770, %v2561, %v2735
        %v2778 = vsel %vm2770, %v2563, %v2737
        %v2779 = vsel %vm2770, %v2566, %v2739
        %v2780 = vsel %vm2770, %v2568, %v2741
        %v2781 = vsel %vm2770, %v2571, %v2743
        %v2782 = vsel %vm2770, %v2573, %v2745
        %v2783 = vsel %vm2770, %v2576, %v2747
        %v2784 = vsel %vm2770, %v2578, %v2749
        %v2785 = vsel %vm2770, %v2581, %v2751
        %v2786 = vsel %vm2770, %v2583, %v2753
        %v2787 = vperm.slane %v634, 0
        %v2788 = vadd.f32 %v2771, %v2787
        %v2789 = vadd.f32 %v2772, %v2787
        %v2790 = vadd.f32 %v2773, %v2787
        %v2791 = vadd.f32 %v2774, %v2787
        %v2792 = vadd.f32 %v2775, %v2787
        %v2793 = vadd.f32 %v2776, %v2787
        %v2794 = vadd.f32 %v2777, %v2787
        %v2795 = vadd.f32 %v2778, %v2787
        %v2796 = vadd.f32 %v2779, %v2787
        %v2797 = vadd.f32 %v2780, %v2787
        %v2798 = vadd.f32 %v2781, %v2787
        %v2799 = vadd.f32 %v2782, %v2787
        %v2800 = vadd.f32 %v2783, %v2787
        %v2801 = vadd.f32 %v2784, %v2787
        %v2802 = vadd.f32 %v2785, %v2787
        %v2803 = vadd.f32 %v2786, %v2787
        %vm2804 = vcmp.gt.f32.partialorder %v2788, 0.0
        %vm2805 = vcmp.gt.f32.partialorder %v2789, 0.0
        %vm2806 = vcmp.gt.f32.partialorder %v2790, 0.0
        %vm2807 = vcmp.gt.f32.partialorder %v2791, 0.0
        %vm2808 = vcmp.gt.f32.partialorder %v2792, 0.0
        %vm2809 = vcmp.gt.f32.partialorder %v2793, 0.0
        %vm2810 = vcmp.gt.f32.partialorder %v2794, 0.0
        %vm2811 = vcmp.gt.f32.partialorder %v2795, 0.0
        %vm2812 = vcmp.gt.f32.partialorder %v2796, 0.0
        %vm2813 = vcmp.gt.f32.partialorder %v2797, 0.0
        %vm2814 = vcmp.gt.f32.partialorder %v2798, 0.0
        %vm2815 = vcmp.gt.f32.partialorder %v2799, 0.0
        %vm2816 = vcmp.gt.f32.partialorder %v2800, 0.0
        %vm2817 = vcmp.gt.f32.partialorder %v2801, 0.0
        %vm2818 = vcmp.gt.f32.partialorder %v2802, 0.0
        %vm2819 = vcmp.gt.f32.partialorder %v2803, 0.0
        %v2820 = vmin.f32 %v2788, 0.0
        %v2821 = vmin.f32 %v2789, 0.0
        %v2822 = vmin.f32 %v2790, 0.0
        %v2823 = vmin.f32 %v2791, 0.0
        %v2824 = vmin.f32 %v2792, 0.0
        %v2825 = vmin.f32 %v2793, 0.0
        %v2826 = vmin.f32 %v2794, 0.0
        %v2827 = vmin.f32 %v2795, 0.0
        %v2828 = vmin.f32 %v2796, 0.0
        %v2829 = vmin.f32 %v2797, 0.0
        %v2830 = vmin.f32 %v2798, 0.0
        %v2831 = vmin.f32 %v2799, 0.0
        %v2832 = vmin.f32 %v2800, 0.0
        %v2833 = vmin.f32 %v2801, 0.0
        %v2834 = vmin.f32 %v2802, 0.0
        %v2835 = vmin.f32 %v2803, 0.0
        %v2836 = vmul.f32 %v2820, 1.442695
        %v2837 = vpow.pop %v2836
        %v2838 = vmul.f32 %v2821, 1.442695
        %v2839 = vpow.pop %v2838
        %v2840 = vmul.f32 %v2822, 1.442695
        %v2841 = vpow.pop %v2840
        %v2842 = vmul.f32 %v2823, 1.442695
        %v2843 = vpow.pop %v2842
        %v2844 = vmul.f32 %v2824, 1.442695
        %v2845 = vpow.pop %v2844
        %v2846 = vmul.f32 %v2825, 1.442695
        %v2847 = vpow.pop %v2846
        %v2848 = vmul.f32 %v2826, 1.442695
        %v2849 = vpow.pop %v2848
        %v2850 = vmul.f32 %v2827, 1.442695
        %v2851 = vpow.pop %v2850
        %v2852 = vmul.f32 %v2828, 1.442695
        %v2853 = vpow.pop %v2852
        %v2854 = vmul.f32 %v2829, 1.442695
        %v2855 = vpow.pop %v2854
        %v2856 = vmul.f32 %v2830, 1.442695
        %v2857 = vpow.pop %v2856
        %v2858 = vmul.f32 %v2831, 1.442695
        %v2859 = vpow.pop %v2858
        %v2860 = vmul.f32 %v2832, 1.442695
        %v2861 = vpow.pop %v2860
        %v2862 = vmul.f32 %v2833, 1.442695
        %v2863 = vpow.pop %v2862
        %v2864 = vmul.f32 %v2834, 1.442695
        %v2865 = vpow.pop %v2864
        %v2866 = vmul.f32 %v2835, 1.442695
        %v2867 = vpow.pop %v2866
        %v2868 = vsub.f32 %v2837, 1.0
        %v2869 = vsub.f32 %v2839, 1.0
        %v2870 = vsub.f32 %v2841, 1.0
        %v2871 = vsub.f32 %v2843, 1.0
        %v2872 = vsub.f32 %v2845, 1.0
        %v2873 = vsub.f32 %v2847, 1.0
        %v2874 = vsub.f32 %v2849, 1.0
        %v2875 = vsub.f32 %v2851, 1.0
        %v2876 = vsub.f32 %v2853, 1.0
        %v2877 = vsub.f32 %v2855, 1.0
        %v2878 = vsub.f32 %v2857, 1.0
        %v2879 = vsub.f32 %v2859, 1.0
        %v2880 = vsub.f32 %v2861, 1.0
        %v2881 = vsub.f32 %v2863, 1.0
        %v2882 = vsub.f32 %v2865, 1.0
        %v2883 = vsub.f32 %v2867, 1.0
        %v2884 = vsel %vm2804, %v2788, %v2868
        %v2885 = vsel %vm2805, %v2789, %v2869
        %v2886 = vsel %vm2806, %v2790, %v2870
        %v2887 = vsel %vm2807, %v2791, %v2871
        %v2888 = vsel %vm2808, %v2792, %v2872
        %v2889 = vsel %vm2809, %v2793, %v2873
        %v2890 = vsel %vm2810, %v2794, %v2874
        %v2891 = vsel %vm2811, %v2795, %v2875
        %v2892 = vsel %vm2812, %v2796, %v2876
        %v2893 = vsel %vm2813, %v2797, %v2877
        %v2894 = vsel %vm2814, %v2798, %v2878
        %v2895 = vsel %vm2815, %v2799, %v2879
        %v2896 = vsel %vm2816, %v2800, %v2880
        %v2897 = vsel %vm2817, %v2801, %v2881
        %v2898 = vsel %vm2818, %v2802, %v2882
        %v2899 = vsel %vm2819, %v2803, %v2883
        %v2916 = vunpack.c.l.b16 %v2392
        %v2917 = vunpack.c.l.b16 %v2393
        %v2918 = vunpack.c.l.b16 %v2394
        %v2919 = vunpack.c.l.b16 %v2395
        %v2920 = vunpack.c.l.b16 %v2396
        %v2921 = vunpack.c.l.b16 %v2397
        %v2922 = vunpack.c.l.b16 %v2398
        %v2923 = vunpack.c.l.b16 %v2399
        %v2924 = vunpack.c.l.b16 %v2400
        %v2925 = vunpack.c.l.b16 %v2401
        %v2926 = vunpack.c.l.b16 %v2402
        %v2927 = vunpack.c.l.b16 %v2403
        %v2928 = vunpack.c.l.b16 %v2404
        %v2929 = vunpack.c.l.b16 %v2405
        %v2930 = vunpack.c.l.b16 %v2406
        %v2931 = vunpack.c.l.b16 %v2407
        %v2932 = vpack.c.b16 %v2917, %v2916
        %v2933 = vpack.c.b16 %v2919, %v2918
        %v2934 = vpack.c.b16 %v2921, %v2920
        %v2935 = vpack.c.b16 %v2923, %v2922
        %v2936 = vpack.c.b16 %v2925, %v2924
        %v2937 = vpack.c.b16 %v2927, %v2926
        %v2938 = vpack.c.b16 %v2929, %v2928
        %v2939 = vpack.c.b16 %v2931, %v2930
        %2948 = vrot.lane.b32.xlu0 %v2520, 96
        %v2949 = vpop.permute.xlu0 %2948
        %2950 = vrot.lane.b32.xlu0 %v2521, 96
        %v2951 = vpop.permute.xlu0 %2950
        %2952 = vrot.lane.b32.xlu0 %v2522, 96
        %v2953 = vpop.permute.xlu0 %2952
        %2954 = vrot.lane.b32.xlu0 %v2523, 96
        %v2955 = vpop.permute.xlu0 %2954
        %2956 = vrot.lane.b32.xlu0 %v2524, 96
        %v2957 = vpop.permute.xlu0 %2956
        %2958 = vrot.lane.b32.xlu0 %v2525, 96
        %v2959 = vpop.permute.xlu0 %2958
        %2960 = vrot.lane.b32.xlu0 %v2526, 96
        %v2961 = vpop.permute.xlu0 %2960
        %2962 = vrot.lane.b32.xlu0 %v2527, 96
        %v2963 = vpop.permute.xlu0 %2962
        %2972 = vmatpush.bf16.msra.mxu0 %v2963
        %2973 = vmatpush.bf16.msra.mxu0 %v2961
        %2974 = vmatpush.bf16.msra.mxu0 %v2959
        %2975 = vmatpush.bf16.msra.mxu0 %v2957
        %2976 = vmatpush.bf16.msra.mxu0 %v2955
        %2977 = vmatpush.bf16.msra.mxu0 %v2953
        %2978 = vmatpush.bf16.msra.mxu0 %v2951
        %2979 = vmatpush.bf16.msra.mxu0 %v2949
        %2980 = vmatmul.bf16.gmra.mxu0 %v2932
        %v2981 = vpop.f32.mrf.mxu0
        %v2982 = vadd.f32 0.0, %v2981
        %v2983 = vpop.f32.mrf.mxu0
        %v2984 = vadd.f32 0.0, %v2983
        %2985 = vmatmul.bf16.gmra.mxu0 %v2933
        %v2986 = vpop.f32.mrf.mxu0
        %v2987 = vadd.f32 0.0, %v2986
        %v2988 = vpop.f32.mrf.mxu0
        %v2989 = vadd.f32 0.0, %v2988
        %2990 = vmatmul.bf16.gmra.mxu0 %v2934
        %v2991 = vpop.f32.mrf.mxu0
        %v2992 = vadd.f32 0.0, %v2991
        %v2993 = vpop.f32.mrf.mxu0
        %v2994 = vadd.f32 0.0, %v2993
        %2995 = vmatmul.bf16.gmra.mxu0 %v2935
        %v2996 = vpop.f32.mrf.mxu0
        %v2997 = vadd.f32 0.0, %v2996
        %v2998 = vpop.f32.mrf.mxu0
        %v2999 = vadd.f32 0.0, %v2998
        %3000 = vmatmul.bf16.gmra.mxu0 %v2936
        %v3001 = vpop.f32.mrf.mxu0
        %v3002 = vadd.f32 0.0, %v3001
        %v3003 = vpop.f32.mrf.mxu0
        %v3004 = vadd.f32 0.0, %v3003
        %3005 = vmatmul.bf16.gmra.mxu0 %v2937
        %v3006 = vpop.f32.mrf.mxu0
        %v3007 = vadd.f32 0.0, %v3006
        %v3008 = vpop.f32.mrf.mxu0
        %v3009 = vadd.f32 0.0, %v3008
        %3010 = vmatmul.bf16.gmra.mxu0 %v2938
        %v3011 = vpop.f32.mrf.mxu0
        %v3012 = vadd.f32 0.0, %v3011
        %v3013 = vpop.f32.mrf.mxu0
        %v3014 = vadd.f32 0.0, %v3013
        %3015 = vmatmul.bf16.gmra.mxu0 %v2939
        %v3016 = vpop.f32.mrf.mxu0
        %v3017 = vadd.f32 0.0, %v3016
        %v3018 = vpop.f32.mrf.mxu0
        %v3019 = vadd.f32 0.0, %v3018
        %3020 = vdwg.mxu0
        %v3037 = vunpack.c.l.b16 %v2408
        %v3038 = vunpack.c.l.b16 %v2409
        %v3039 = vunpack.c.l.b16 %v2410
        %v3040 = vunpack.c.l.b16 %v2411
        %v3041 = vunpack.c.l.b16 %v2412
        %v3042 = vunpack.c.l.b16 %v2413
        %v3043 = vunpack.c.l.b16 %v2414
        %v3044 = vunpack.c.l.b16 %v2415
        %v3045 = vunpack.c.l.b16 %v2416
        %v3046 = vunpack.c.l.b16 %v2417
        %v3047 = vunpack.c.l.b16 %v2418
        %v3048 = vunpack.c.l.b16 %v2419
        %v3049 = vunpack.c.l.b16 %v2420
        %v3050 = vunpack.c.l.b16 %v2421
        %v3051 = vunpack.c.l.b16 %v2422
        %v3052 = vunpack.c.l.b16 %v2423
        %v3053 = vpack.c.b16 %v3038, %v3037
        %v3054 = vpack.c.b16 %v3040, %v3039
        %v3055 = vpack.c.b16 %v3042, %v3041
        %v3056 = vpack.c.b16 %v3044, %v3043
        %v3057 = vpack.c.b16 %v3046, %v3045
        %v3058 = vpack.c.b16 %v3048, %v3047
        %v3059 = vpack.c.b16 %v3050, %v3049
        %v3060 = vpack.c.b16 %v3052, %v3051
        %3069 = vrot.lane.b32.xlu0 %v2520, 80
        %v3070 = vpop.permute.xlu0 %3069
        %3071 = vrot.lane.b32.xlu0 %v2521, 80
        %v3072 = vpop.permute.xlu0 %3071
        %3073 = vrot.lane.b32.xlu0 %v2522, 80
        %v3074 = vpop.permute.xlu0 %3073
        %3075 = vrot.lane.b32.xlu0 %v2523, 80
        %v3076 = vpop.permute.xlu0 %3075
        %3077 = vrot.lane.b32.xlu0 %v2524, 80
        %v3078 = vpop.permute.xlu0 %3077
        %3079 = vrot.lane.b32.xlu0 %v2525, 80
        %v3080 = vpop.permute.xlu0 %3079
        %3081 = vrot.lane.b32.xlu0 %v2526, 80
        %v3082 = vpop.permute.xlu0 %3081
        %3083 = vrot.lane.b32.xlu0 %v2527, 80
        %v3084 = vpop.permute.xlu0 %3083
        %3093 = vmatpush.bf16.msra.mxu0 %v3084
        %3094 = vmatpush.bf16.msra.mxu0 %v3082
        %3095 = vmatpush.bf16.msra.mxu0 %v3080
        %3096 = vmatpush.bf16.msra.mxu0 %v3078
        %3097 = vmatpush.bf16.msra.mxu0 %v3076
        %3098 = vmatpush.bf16.msra.mxu0 %v3074
        %3099 = vmatpush.bf16.msra.mxu0 %v3072
        %3100 = vmatpush.bf16.msra.mxu0 %v3070
        %3101 = vmatmul.bf16.gmra.mxu0 %v3053
        %v3102 = vpop.f32.mrf.mxu0
        %v3103 = vadd.f32 0.0, %v3102
        %v3104 = vpop.f32.mrf.mxu0
        %v3105 = vadd.f32 0.0, %v3104
        %3106 = vmatmul.bf16.gmra.mxu0 %v3054
        %v3107 = vpop.f32.mrf.mxu0
        %v3108 = vadd.f32 0.0, %v3107
        %v3109 = vpop.f32.mrf.mxu0
        %v3110 = vadd.f32 0.0, %v3109
        %3111 = vmatmul.bf16.gmra.mxu0 %v3055
        %v3112 = vpop.f32.mrf.mxu0
        %v3113 = vadd.f32 0.0, %v3112
        %v3114 = vpop.f32.mrf.mxu0
        %v3115 = vadd.f32 0.0, %v3114
        %3116 = vmatmul.bf16.gmra.mxu0 %v3056
        %v3117 = vpop.f32.mrf.mxu0
        %v3118 = vadd.f32 0.0, %v3117
        %v3119 = vpop.f32.mrf.mxu0
        %v3120 = vadd.f32 0.0, %v3119
        %3121 = vmatmul.bf16.gmra.mxu0 %v3057
        %v3122 = vpop.f32.mrf.mxu0
        %v3123 = vadd.f32 0.0, %v3122
        %v3124 = vpop.f32.mrf.mxu0
        %v3125 = vadd.f32 0.0, %v3124
        %3126 = vmatmul.bf16.gmra.mxu0 %v3058
        %v3127 = vpop.f32.mrf.mxu0
        %v3128 = vadd.f32 0.0, %v3127
        %v3129 = vpop.f32.mrf.mxu0
        %v3130 = vadd.f32 0.0, %v3129
        %3131 = vmatmul.bf16.gmra.mxu0 %v3059
        %v3132 = vpop.f32.mrf.mxu0
        %v3133 = vadd.f32 0.0, %v3132
        %v3134 = vpop.f32.mrf.mxu0
        %v3135 = vadd.f32 0.0, %v3134
        %3136 = vmatmul.bf16.gmra.mxu0 %v3060
        %v3137 = vpop.f32.mrf.mxu0
        %v3138 = vadd.f32 0.0, %v3137
        %v3139 = vpop.f32.mrf.mxu0
        %v3140 = vadd.f32 0.0, %v3139
        %3141 = vdwg.mxu0
        %3158 = vrot.lane.b32.xlu0 %v3103, 16
        %v3159 = vpop.permute.xlu0 %3158
        %3160 = vrot.lane.b32.xlu0 %v3105, 16
        %v3161 = vpop.permute.xlu0 %3160
        %3162 = vrot.lane.b32.xlu0 %v3108, 16
        %v3163 = vpop.permute.xlu0 %3162
        %3164 = vrot.lane.b32.xlu0 %v3110, 16
        %v3165 = vpop.permute.xlu0 %3164
        %3166 = vrot.lane.b32.xlu0 %v3113, 16
        %v3167 = vpop.permute.xlu0 %3166
        %3168 = vrot.lane.b32.xlu0 %v3115, 16
        %v3169 = vpop.permute.xlu0 %3168
        %3170 = vrot.lane.b32.xlu0 %v3118, 16
        %v3171 = vpop.permute.xlu0 %3170
        %3172 = vrot.lane.b32.xlu0 %v3120, 16
        %v3173 = vpop.permute.xlu0 %3172
        %3174 = vrot.lane.b32.xlu0 %v3123, 16
        %v3175 = vpop.permute.xlu0 %3174
        %3176 = vrot.lane.b32.xlu0 %v3125, 16
        %v3177 = vpop.permute.xlu0 %3176
        %3178 = vrot.lane.b32.xlu0 %v3128, 16
        %v3179 = vpop.permute.xlu0 %3178
        %3180 = vrot.lane.b32.xlu0 %v3130, 16
        %v3181 = vpop.permute.xlu0 %3180
        %3182 = vrot.lane.b32.xlu0 %v3133, 16
        %v3183 = vpop.permute.xlu0 %3182
        %3184 = vrot.lane.b32.xlu0 %v3135, 16
        %v3185 = vpop.permute.xlu0 %3184
        %3186 = vrot.lane.b32.xlu0 %v3138, 16
        %v3187 = vpop.permute.xlu0 %3186
        %3188 = vrot.lane.b32.xlu0 %v3140, 16
        %v3189 = vpop.permute.xlu0 %3188
        %v3206 = vsel %vm2770, %v2982, %v3159
        %v3207 = vsel %vm2770, %v2984, %v3161
        %v3208 = vsel %vm2770, %v2987, %v3163
        %v3209 = vsel %vm2770, %v2989, %v3165
        %v3210 = vsel %vm2770, %v2992, %v3167
        %v3211 = vsel %vm2770, %v2994, %v3169
        %v3212 = vsel %vm2770, %v2997, %v3171
        %v3213 = vsel %vm2770, %v2999, %v3173
        %v3214 = vsel %vm2770, %v3002, %v3175
        %v3215 = vsel %vm2770, %v3004, %v3177
        %v3216 = vsel %vm2770, %v3007, %v3179
        %v3217 = vsel %vm2770, %v3009, %v3181
        %v3218 = vsel %vm2770, %v3012, %v3183
        %v3219 = vsel %vm2770, %v3014, %v3185
        %v3220 = vsel %vm2770, %v3017, %v3187
        %v3221 = vsel %vm2770, %v3019, %v3189
        %v3222 = vperm.slane %v634, 1
        %v3223 = vadd.f32 %v3206, %v3222
        %v3224 = vadd.f32 %v3207, %v3222
        %v3225 = vadd.f32 %v3208, %v3222
        %v3226 = vadd.f32 %v3209, %v3222
        %v3227 = vadd.f32 %v3210, %v3222
        %v3228 = vadd.f32 %v3211, %v3222
        %v3229 = vadd.f32 %v3212, %v3222
        %v3230 = vadd.f32 %v3213, %v3222
        %v3231 = vadd.f32 %v3214, %v3222
        %v3232 = vadd.f32 %v3215, %v3222
        %v3233 = vadd.f32 %v3216, %v3222
        %v3234 = vadd.f32 %v3217, %v3222
        %v3235 = vadd.f32 %v3218, %v3222
        %v3236 = vadd.f32 %v3219, %v3222
        %v3237 = vadd.f32 %v3220, %v3222
        %v3238 = vadd.f32 %v3221, %v3222
        %vm3239 = vcmp.gt.f32.partialorder %v3223, 0.0
        %vm3240 = vcmp.gt.f32.partialorder %v3224, 0.0
        %vm3241 = vcmp.gt.f32.partialorder %v3225, 0.0
        %vm3242 = vcmp.gt.f32.partialorder %v3226, 0.0
        %vm3243 = vcmp.gt.f32.partialorder %v3227, 0.0
        %vm3244 = vcmp.gt.f32.partialorder %v3228, 0.0
        %vm3245 = vcmp.gt.f32.partialorder %v3229, 0.0
        %vm3246 = vcmp.gt.f32.partialorder %v3230, 0.0
        %vm3247 = vcmp.gt.f32.partialorder %v3231, 0.0
        %vm3248 = vcmp.gt.f32.partialorder %v3232, 0.0
        %vm3249 = vcmp.gt.f32.partialorder %v3233, 0.0
        %vm3250 = vcmp.gt.f32.partialorder %v3234, 0.0
        %vm3251 = vcmp.gt.f32.partialorder %v3235, 0.0
        %vm3252 = vcmp.gt.f32.partialorder %v3236, 0.0
        %vm3253 = vcmp.gt.f32.partialorder %v3237, 0.0
        %vm3254 = vcmp.gt.f32.partialorder %v3238, 0.0
        %v3255 = vmin.f32 %v3223, 0.0
        %v3256 = vmin.f32 %v3224, 0.0
        %v3257 = vmin.f32 %v3225, 0.0
        %v3258 = vmin.f32 %v3226, 0.0
        %v3259 = vmin.f32 %v3227, 0.0
        %v3260 = vmin.f32 %v3228, 0.0
        %v3261 = vmin.f32 %v3229, 0.0
        %v3262 = vmin.f32 %v3230, 0.0
        %v3263 = vmin.f32 %v3231, 0.0
        %v3264 = vmin.f32 %v3232, 0.0
        %v3265 = vmin.f32 %v3233, 0.0
        %v3266 = vmin.f32 %v3234, 0.0
        %v3267 = vmin.f32 %v3235, 0.0
        %v3268 = vmin.f32 %v3236, 0.0
        %v3269 = vmin.f32 %v3237, 0.0
        %v3270 = vmin.f32 %v3238, 0.0
        %v3271 = vmul.f32 %v3255, 1.442695
        %v3272 = vpow.pop %v3271
        %v3273 = vmul.f32 %v3256, 1.442695
        %v3274 = vpow.pop %v3273
        %v3275 = vmul.f32 %v3257, 1.442695
        %v3276 = vpow.pop %v3275
        %v3277 = vmul.f32 %v3258, 1.442695
        %v3278 = vpow.pop %v3277
        %v3279 = vmul.f32 %v3259, 1.442695
        %v3280 = vpow.pop %v3279
        %v3281 = vmul.f32 %v3260, 1.442695
        %v3282 = vpow.pop %v3281
        %v3283 = vmul.f32 %v3261, 1.442695
        %v3284 = vpow.pop %v3283
        %v3285 = vmul.f32 %v3262, 1.442695
        %v3286 = vpow.pop %v3285
        %v3287 = vmul.f32 %v3263, 1.442695
        %v3288 = vpow.pop %v3287
        %v3289 = vmul.f32 %v3264, 1.442695
        %v3290 = vpow.pop %v3289
        %v3291 = vmul.f32 %v3265, 1.442695
        %v3292 = vpow.pop %v3291
        %v3293 = vmul.f32 %v3266, 1.442695
        %v3294 = vpow.pop %v3293
        %v3295 = vmul.f32 %v3267, 1.442695
        %v3296 = vpow.pop %v3295
        %v3297 = vmul.f32 %v3268, 1.442695
        %v3298 = vpow.pop %v3297
        %v3299 = vmul.f32 %v3269, 1.442695
        %v3300 = vpow.pop %v3299
        %v3301 = vmul.f32 %v3270, 1.442695
        %v3302 = vpow.pop %v3301
        %v3303 = vsub.f32 %v3272, 1.0
        %v3304 = vsub.f32 %v3274, 1.0
        %v3305 = vsub.f32 %v3276, 1.0
        %v3306 = vsub.f32 %v3278, 1.0
        %v3307 = vsub.f32 %v3280, 1.0
        %v3308 = vsub.f32 %v3282, 1.0
        %v3309 = vsub.f32 %v3284, 1.0
        %v3310 = vsub.f32 %v3286, 1.0
        %v3311 = vsub.f32 %v3288, 1.0
        %v3312 = vsub.f32 %v3290, 1.0
        %v3313 = vsub.f32 %v3292, 1.0
        %v3314 = vsub.f32 %v3294, 1.0
        %v3315 = vsub.f32 %v3296, 1.0
        %v3316 = vsub.f32 %v3298, 1.0
        %v3317 = vsub.f32 %v3300, 1.0
        %v3318 = vsub.f32 %v3302, 1.0
        %v3319 = vsel %vm3239, %v3223, %v3303
        %v3320 = vsel %vm3240, %v3224, %v3304
        %v3321 = vsel %vm3241, %v3225, %v3305
        %v3322 = vsel %vm3242, %v3226, %v3306
        %v3323 = vsel %vm3243, %v3227, %v3307
        %v3324 = vsel %vm3244, %v3228, %v3308
        %v3325 = vsel %vm3245, %v3229, %v3309
        %v3326 = vsel %vm3246, %v3230, %v3310
        %v3327 = vsel %vm3247, %v3231, %v3311
        %v3328 = vsel %vm3248, %v3232, %v3312
        %v3329 = vsel %vm3249, %v3233, %v3313
        %v3330 = vsel %vm3250, %v3234, %v3314
        %v3331 = vsel %vm3251, %v3235, %v3315
        %v3332 = vsel %vm3252, %v3236, %v3316
        %v3333 = vsel %vm3253, %v3237, %v3317
        %v3334 = vsel %vm3254, %v3238, %v3318
        %v3335 = vadd.f32 %v2884, %v3319
        %v3336 = vadd.f32 %v2885, %v3320
        %v3337 = vadd.f32 %v2886, %v3321
        %v3338 = vadd.f32 %v2887, %v3322
        %v3339 = vadd.f32 %v2888, %v3323
        %v3340 = vadd.f32 %v2889, %v3324
        %v3341 = vadd.f32 %v2890, %v3325
        %v3342 = vadd.f32 %v2891, %v3326
        %v3343 = vadd.f32 %v2892, %v3327
        %v3344 = vadd.f32 %v2893, %v3328
        %v3345 = vadd.f32 %v2894, %v3329
        %v3346 = vadd.f32 %v2895, %v3330
        %v3347 = vadd.f32 %v2896, %v3331
        %v3348 = vadd.f32 %v2897, %v3332
        %v3349 = vadd.f32 %v2898, %v3333
        %v3350 = vadd.f32 %v2899, %v3334
        %v3351 = vmul.f32 %v3335, 0.5
        %v3352 = vmul.f32 %v3336, 0.5
        %v3353 = vmul.f32 %v3337, 0.5
        %v3354 = vmul.f32 %v3338, 0.5
        %v3355 = vmul.f32 %v3339, 0.5
        %v3356 = vmul.f32 %v3340, 0.5
        %v3357 = vmul.f32 %v3341, 0.5
        %v3358 = vmul.f32 %v3342, 0.5
        %v3359 = vmul.f32 %v3343, 0.5
        %v3360 = vmul.f32 %v3344, 0.5
        %v3361 = vmul.f32 %v3345, 0.5
        %v3362 = vmul.f32 %v3346, 0.5
        %v3363 = vmul.f32 %v3347, 0.5
        %v3364 = vmul.f32 %v3348, 0.5
        %v3365 = vmul.f32 %v3349, 0.5
        %v3366 = vmul.f32 %v3350, 0.5
        %v3367 = vld [vmem:[%s6] sm:$0xf]
        %v3368 = vld [vmem:[%s6 + $0x4] sm:$0xf]
        %v3369 = vld [vmem:[%s6 + $0x8] sm:$0xf]
        %v3370 = vld [vmem:[%s6 + $0xc] sm:$0xf]
        %v3371 = vld [vmem:[%s7] sm:$0xff]
        %v3372 = vld [vmem:[%s7 + $0x8] sm:$0xff]
        %v3373 = vld [vmem:[%s7 + $0x10] sm:$0xff]
        %v3374 = vld [vmem:[%s7 + $0x18] sm:$0xff]
        %v3375 = vld [vmem:[%s8] sm:$0x3]
        %v3376 = vpack.c.bf16 %v3352, %v3351
        %v3377 = vpack.c.bf16 %v3354, %v3353
        %v3378 = vpack.c.bf16 %v3356, %v3355
        %v3379 = vpack.c.bf16 %v3358, %v3357
        %v3380 = vpack.c.bf16 %v3360, %v3359
        %v3381 = vpack.c.bf16 %v3362, %v3361
        %v3382 = vpack.c.bf16 %v3364, %v3363
        %v3383 = vpack.c.bf16 %v3366, %v3365
        %v3388 = vunpack.c.l.b16 %v3367
        %v3389 = vunpack.c.l.b16 %v3368
        %v3390 = vunpack.c.l.b16 %v3369
        %v3391 = vunpack.c.l.b16 %v3370
        %v3392 = vpack.c.b16 %v3389, %v3388
        %v3393 = vpack.c.b16 %v3391, %v3390
        %vm3396 = vcmask 261120
        %v3398 = vsel %vm3396, %v3376, 0
        %v3401 = vsel %vm3396, %v3377, 0
        %v3404 = vsel %vm3396, %v3378, 0
        %v3407 = vsel %vm3396, %v3379, 0
        %v3410 = vsel %vm3396, %v3380, 0
        %v3413 = vsel %vm3396, %v3381, 0
        %v3416 = vsel %vm3396, %v3382, 0
        %v3419 = vsel %vm3396, %v3383, 0
        %3421 = vmatpush.bf16.msra.mxu0 0
        %3422 = vmatpush.bf16.msra.mxu0 0
        %3423 = vmatpush.bf16.msra.mxu0 0
        %3424 = vmatpush.bf16.msra.mxu0 0
        %3425 = vmatpush.bf16.msra.mxu0 0
        %3426 = vmatpush.bf16.msra.mxu0 0
        %3427 = vmatpush.bf16.msra.mxu0 %v3393
        %3428 = vmatpush.bf16.msra.mxu0 %v3392
        %3429 = vmatmul.bf16.gmra.mxu0 %v3398
        %v3430 = vpop.f32.mrf.mxu0
        %v3431 = vadd.f32 0.0, %v3430
        %v3432 = vpop.f32.mrf.mxu0
        %v3433 = vadd.f32 0.0, %v3432
        %3434 = vmatmul.bf16.gmra.mxu0 %v3401
        %v3435 = vpop.f32.mrf.mxu0
        %v3436 = vadd.f32 0.0, %v3435
        %v3437 = vpop.f32.mrf.mxu0
        %v3438 = vadd.f32 0.0, %v3437
        %3439 = vmatmul.bf16.gmra.mxu0 %v3404
        %v3440 = vpop.f32.mrf.mxu0
        %v3441 = vadd.f32 0.0, %v3440
        %v3442 = vpop.f32.mrf.mxu0
        %v3443 = vadd.f32 0.0, %v3442
        %3444 = vmatmul.bf16.gmra.mxu0 %v3407
        %v3445 = vpop.f32.mrf.mxu0
        %v3446 = vadd.f32 0.0, %v3445
        %v3447 = vpop.f32.mrf.mxu0
        %v3448 = vadd.f32 0.0, %v3447
        %3449 = vmatmul.bf16.gmra.mxu0 %v3410
        %v3450 = vpop.f32.mrf.mxu0
        %v3451 = vadd.f32 0.0, %v3450
        %v3452 = vpop.f32.mrf.mxu0
        %v3453 = vadd.f32 0.0, %v3452
        %3454 = vmatmul.bf16.gmra.mxu0 %v3413
        %v3455 = vpop.f32.mrf.mxu0
        %v3456 = vadd.f32 0.0, %v3455
        %v3457 = vpop.f32.mrf.mxu0
        %v3458 = vadd.f32 0.0, %v3457
        %3459 = vmatmul.bf16.gmra.mxu0 %v3416
        %v3460 = vpop.f32.mrf.mxu0
        %v3461 = vadd.f32 0.0, %v3460
        %v3462 = vpop.f32.mrf.mxu0
        %v3463 = vadd.f32 0.0, %v3462
        %3464 = vmatmul.bf16.gmra.mxu0 %v3419
        %v3465 = vpop.f32.mrf.mxu0
        %v3466 = vadd.f32 0.0, %v3465
        %v3467 = vpop.f32.mrf.mxu0
        %v3468 = vadd.f32 0.0, %v3467
        %3469 = vdwg.mxu0
        %v3471 = vsel %vm3396, %v3351, 0
        %v3474 = vsel %vm3396, %v3352, 0
        %v3477 = vsel %vm3396, %v3353, 0
        %v3480 = vsel %vm3396, %v3354, 0
        %v3483 = vsel %vm3396, %v3355, 0
        %v3486 = vsel %vm3396, %v3356, 0
        %v3489 = vsel %vm3396, %v3357, 0
        %v3492 = vsel %vm3396, %v3358, 0
        %v3495 = vsel %vm3396, %v3359, 0
        %v3498 = vsel %vm3396, %v3360, 0
        %v3501 = vsel %vm3396, %v3361, 0
        %v3504 = vsel %vm3396, %v3362, 0
        %v3507 = vsel %vm3396, %v3363, 0
        %v3510 = vsel %vm3396, %v3364, 0
        %v3513 = vsel %vm3396, %v3365, 0
        %v3516 = vsel %vm3396, %v3366, 0
        %3518 = vmatpush.msra.mxu0 0.0
        %3519 = vmatpush.msra.mxu0 0.0
        %3520 = vmatpush.msra.mxu0 0.0
        %3521 = vmatpush.msra.mxu0 0.0
        %3522 = vmatpush.msra.mxu0 0.0
        %3523 = vmatpush.msra.mxu0 0.0
        %3524 = vmatpush.msra.mxu0 0.0
        %3525 = vmatpush.msra.mxu0 0.0
        %3526 = vmatpush.msra.mxu0 0.0
        %3527 = vmatpush.msra.mxu0 0.0
        %3528 = vmatpush.msra.mxu0 0.0
        %3529 = vmatpush.msra.mxu0 0.0
        %3530 = vmatpush.msra.mxu0 %v3374
        %3531 = vmatpush.msra.mxu0 %v3373
        %3532 = vmatpush.msra.mxu0 %v3372
        %3533 = vmatpush.msra.mxu0 %v3371
        %3534 = vmatmul.f32.gmra.mxu0 %v3471
        %v3535 = vpop.f32.mrf.mxu0
        %v3536 = vadd.f32 0.0, %v3535
        %3537 = vmatmul.f32.gmra.mxu0 %v3474
        %v3538 = vpop.f32.mrf.mxu0
        %v3539 = vadd.f32 0.0, %v3538
        %3540 = vmatmul.f32.gmra.mxu0 %v3477
        %v3541 = vpop.f32.mrf.mxu0
        %v3542 = vadd.f32 0.0, %v3541
        %3543 = vmatmul.f32.gmra.mxu0 %v3480
        %v3544 = vpop.f32.mrf.mxu0
        %v3545 = vadd.f32 0.0, %v3544
        %3546 = vmatmul.f32.gmra.mxu0 %v3483
        %v3547 = vpop.f32.mrf.mxu0
        %v3548 = vadd.f32 0.0, %v3547
        %3549 = vmatmul.f32.gmra.mxu0 %v3486
        %v3550 = vpop.f32.mrf.mxu0
        %v3551 = vadd.f32 0.0, %v3550
        %3552 = vmatmul.f32.gmra.mxu0 %v3489
        %v3553 = vpop.f32.mrf.mxu0
        %v3554 = vadd.f32 0.0, %v3553
        %3555 = vmatmul.f32.gmra.mxu0 %v3492
        %v3556 = vpop.f32.mrf.mxu0
        %v3557 = vadd.f32 0.0, %v3556
        %3558 = vmatmul.f32.gmra.mxu0 %v3495
        %v3559 = vpop.f32.mrf.mxu0
        %v3560 = vadd.f32 0.0, %v3559
        %3561 = vmatmul.f32.gmra.mxu0 %v3498
        %v3562 = vpop.f32.mrf.mxu0
        %v3563 = vadd.f32 0.0, %v3562
        %3564 = vmatmul.f32.gmra.mxu0 %v3501
        %v3565 = vpop.f32.mrf.mxu0
        %v3566 = vadd.f32 0.0, %v3565
        %3567 = vmatmul.f32.gmra.mxu0 %v3504
        %v3568 = vpop.f32.mrf.mxu0
        %v3569 = vadd.f32 0.0, %v3568
        %3570 = vmatmul.f32.gmra.mxu0 %v3507
        %v3571 = vpop.f32.mrf.mxu0
        %v3572 = vadd.f32 0.0, %v3571
        %3573 = vmatmul.f32.gmra.mxu0 %v3510
        %v3574 = vpop.f32.mrf.mxu0
        %v3575 = vadd.f32 0.0, %v3574
        %3576 = vmatmul.f32.gmra.mxu0 %v3513
        %v3577 = vpop.f32.mrf.mxu0
        %v3578 = vadd.f32 0.0, %v3577
        %3579 = vmatmul.f32.gmra.mxu0 %v3516
        %v3580 = vpop.f32.mrf.mxu0
        %v3581 = vadd.f32 0.0, %v3580
        %3582 = vdwg.mxu0
        %3583 = vxpose.xlu0.b32.start [1/16] %v3536, 128
        %3584 = vxpose.xlu0.b32.cont [2/16] %v3539, 128
        %3585 = vxpose.xlu0.b32.cont [3/16] %v3542, 128
        %3586 = vxpose.xlu0.b32.cont [4/16] %v3545, 128
        %3587 = vxpose.xlu0.b32.cont [5/16] %v3548, 128
        %3588 = vxpose.xlu0.b32.cont [6/16] %v3551, 128
        %3589 = vxpose.xlu0.b32.cont [7/16] %v3554, 128
        %3590 = vxpose.xlu0.b32.cont [8/16] %v3557, 128
        %3591 = vxpose.xlu0.b32.cont [9/16] %v3560, 128
        %3592 = vxpose.xlu0.b32.cont [10/16] %v3563, 128
        %3593 = vxpose.xlu0.b32.cont [11/16] %v3566, 128
        %3594 = vxpose.xlu0.b32.cont [12/16] %v3569, 128
        %3595 = vxpose.xlu0.b32.cont [13/16] %v3572, 128
        %3596 = vxpose.xlu0.b32.cont [14/16] %v3575, 128
        %3597 = vxpose.xlu0.b32.cont [15/16] %v3578, 128
        %3598 = vxpose.xlu0.b32.end [16/16] %v3581, 128
        %v3599 = vpop.trf.xlu0
        %v3600 = vpop.trf.xlu0
        %v3601 = vpop.trf.xlu0
        %v3602 = vpop.trf.xlu0
        %v3603 = vpop.trf.xlu0
        %v3604 = vpop.trf.xlu0
        %v3605 = vpop.trf.xlu0
        %v3606 = vpop.trf.xlu0
        %v3607 = vpop.trf.xlu0
        %v3608 = vpop.trf.xlu0
        %v3609 = vpop.trf.xlu0
        %v3610 = vpop.trf.xlu0
        %v3611 = vpop.trf.xlu0
        %v3612 = vpop.trf.xlu0
        %v3613 = vpop.trf.xlu0
        %v3614 = vpop.trf.xlu0
        %v3615 = vperm.slane %v3599, 0
        %v3616 = vlaneseq
        %v3617 = vshrl.u32 %v3616, 7
        %3619 = vset.pattern.permute.xlu0 %v3617
        %3620 = vperm.xlu0 %3619, %v3615
        %v3621 = vpop.permute.xlu0 %3620
        %v3622 = vlaneseq
        %v3623 = vshrl.u32 %v3622, 7
        %v3624 = vadd.s32 %v3623, 8
        %3625 = vset.pattern.permute.xlu0 %v3624
        %3626 = vperm.xlu0 %3625, %v3615
        %v3627 = vpop.permute.xlu0 %3626
        %v3628 = vlaneseq
        %v3629 = vshrl.u32 %v3628, 7
        %v3630 = vadd.s32 %v3629, 16
        %3631 = vset.pattern.permute.xlu0 %v3630
        %3632 = vperm.xlu0 %3631, %v3615
        %v3633 = vpop.permute.xlu0 %3632
        %v3634 = vlaneseq
        %v3635 = vshrl.u32 %v3634, 7
        %v3636 = vadd.s32 %v3635, 24
        %3637 = vset.pattern.permute.xlu0 %v3636
        %3638 = vperm.xlu0 %3637, %v3615
        %v3639 = vpop.permute.xlu0 %3638
        %v3640 = vlaneseq
        %v3641 = vshrl.u32 %v3640, 7
        %v3642 = vadd.s32 %v3641, 32
        %3643 = vset.pattern.permute.xlu0 %v3642
        %3644 = vperm.xlu0 %3643, %v3615
        %v3645 = vpop.permute.xlu0 %3644
        %v3646 = vlaneseq
        %v3647 = vshrl.u32 %v3646, 7
        %v3648 = vadd.s32 %v3647, 40
        %3649 = vset.pattern.permute.xlu0 %v3648
        %3650 = vperm.xlu0 %3649, %v3615
        %v3651 = vpop.permute.xlu0 %3650
        %v3652 = vlaneseq
        %v3653 = vshrl.u32 %v3652, 7
        %v3654 = vadd.s32 %v3653, 48
        %3655 = vset.pattern.permute.xlu0 %v3654
        %3656 = vperm.xlu0 %3655, %v3615
        %v3657 = vpop.permute.xlu0 %3656
        %v3658 = vlaneseq
        %v3659 = vshrl.u32 %v3658, 7
        %v3660 = vadd.s32 %v3659, 56
        %3661 = vset.pattern.permute.xlu0 %v3660
        %3662 = vperm.xlu0 %3661, %v3615
        %v3663 = vpop.permute.xlu0 %3662
        %v3664 = vlaneseq
        %v3665 = vshrl.u32 %v3664, 7
        %v3666 = vadd.s32 %v3665, 64
        %3667 = vset.pattern.permute.xlu0 %v3666
        %3668 = vperm.xlu0 %3667, %v3615
        %v3669 = vpop.permute.xlu0 %3668
        %v3670 = vlaneseq
        %v3671 = vshrl.u32 %v3670, 7
        %v3672 = vadd.s32 %v3671, 72
        %3673 = vset.pattern.permute.xlu0 %v3672
        %3674 = vperm.xlu0 %3673, %v3615
        %v3675 = vpop.permute.xlu0 %3674
        %v3676 = vlaneseq
        %v3677 = vshrl.u32 %v3676, 7
        %v3678 = vadd.s32 %v3677, 80
        %3679 = vset.pattern.permute.xlu0 %v3678
        %3680 = vperm.xlu0 %3679, %v3615
        %v3681 = vpop.permute.xlu0 %3680
        %v3682 = vlaneseq
        %v3683 = vshrl.u32 %v3682, 7
        %v3684 = vadd.s32 %v3683, 88
        %3685 = vset.pattern.permute.xlu0 %v3684
        %3686 = vperm.xlu0 %3685, %v3615
        %v3687 = vpop.permute.xlu0 %3686
        %v3688 = vlaneseq
        %v3689 = vshrl.u32 %v3688, 7
        %v3690 = vadd.s32 %v3689, 96
        %3691 = vset.pattern.permute.xlu0 %v3690
        %3692 = vperm.xlu0 %3691, %v3615
        %v3693 = vpop.permute.xlu0 %3692
        %v3694 = vlaneseq
        %v3695 = vshrl.u32 %v3694, 7
        %v3696 = vadd.s32 %v3695, 104
        %3697 = vset.pattern.permute.xlu0 %v3696
        %3698 = vperm.xlu0 %3697, %v3615
        %v3699 = vpop.permute.xlu0 %3698
        %v3700 = vlaneseq
        %v3701 = vshrl.u32 %v3700, 7
        %v3702 = vadd.s32 %v3701, 112
        %3703 = vset.pattern.permute.xlu0 %v3702
        %3704 = vperm.xlu0 %3703, %v3615
        %v3705 = vpop.permute.xlu0 %3704
        %v3706 = vlaneseq
        %v3707 = vshrl.u32 %v3706, 7
        %v3708 = vadd.s32 %v3707, 120
        %3709 = vset.pattern.permute.xlu0 %v3708
        %3710 = vperm.xlu0 %3709, %v3615
        %v3711 = vpop.permute.xlu0 %3710
        %v3712 = vperm.slane %v3599, 1
        %v3713 = vlaneseq
        %v3714 = vshrl.u32 %v3713, 7
        %3716 = vset.pattern.permute.xlu0 %v3714
        %3717 = vperm.xlu0 %3716, %v3712
        %v3718 = vpop.permute.xlu0 %3717
        %v3719 = vlaneseq
        %v3720 = vshrl.u32 %v3719, 7
        %v3721 = vadd.s32 %v3720, 8
        %3722 = vset.pattern.permute.xlu0 %v3721
        %3723 = vperm.xlu0 %3722, %v3712
        %v3724 = vpop.permute.xlu0 %3723
        %v3725 = vlaneseq
        %v3726 = vshrl.u32 %v3725, 7
        %v3727 = vadd.s32 %v3726, 16
        %3728 = vset.pattern.permute.xlu0 %v3727
        %3729 = vperm.xlu0 %3728, %v3712
        %v3730 = vpop.permute.xlu0 %3729
        %v3731 = vlaneseq
        %v3732 = vshrl.u32 %v3731, 7
        %v3733 = vadd.s32 %v3732, 24
        %3734 = vset.pattern.permute.xlu0 %v3733
        %3735 = vperm.xlu0 %3734, %v3712
        %v3736 = vpop.permute.xlu0 %3735
        %v3737 = vlaneseq
        %v3738 = vshrl.u32 %v3737, 7
        %v3739 = vadd.s32 %v3738, 32
        %3740 = vset.pattern.permute.xlu0 %v3739
        %3741 = vperm.xlu0 %3740, %v3712
        %v3742 = vpop.permute.xlu0 %3741
        %v3743 = vlaneseq
        %v3744 = vshrl.u32 %v3743, 7
        %v3745 = vadd.s32 %v3744, 40
        %3746 = vset.pattern.permute.xlu0 %v3745
        %3747 = vperm.xlu0 %3746, %v3712
        %v3748 = vpop.permute.xlu0 %3747
        %v3749 = vlaneseq
        %v3750 = vshrl.u32 %v3749, 7
        %v3751 = vadd.s32 %v3750, 48
        %3752 = vset.pattern.permute.xlu0 %v3751
        %3753 = vperm.xlu0 %3752, %v3712
        %v3754 = vpop.permute.xlu0 %3753
        %v3755 = vlaneseq
        %v3756 = vshrl.u32 %v3755, 7
        %v3757 = vadd.s32 %v3756, 56
        %3758 = vset.pattern.permute.xlu0 %v3757
        %3759 = vperm.xlu0 %3758, %v3712
        %v3760 = vpop.permute.xlu0 %3759
        %v3761 = vlaneseq
        %v3762 = vshrl.u32 %v3761, 7
        %v3763 = vadd.s32 %v3762, 64
        %3764 = vset.pattern.permute.xlu0 %v3763
        %3765 = vperm.xlu0 %3764, %v3712
        %v3766 = vpop.permute.xlu0 %3765
        %v3767 = vlaneseq
        %v3768 = vshrl.u32 %v3767, 7
        %v3769 = vadd.s32 %v3768, 72
        %3770 = vset.pattern.permute.xlu0 %v3769
        %3771 = vperm.xlu0 %3770, %v3712
        %v3772 = vpop.permute.xlu0 %3771
        %v3773 = vlaneseq
        %v3774 = vshrl.u32 %v3773, 7
        %v3775 = vadd.s32 %v3774, 80
        %3776 = vset.pattern.permute.xlu0 %v3775
        %3777 = vperm.xlu0 %3776, %v3712
        %v3778 = vpop.permute.xlu0 %3777
        %v3779 = vlaneseq
        %v3780 = vshrl.u32 %v3779, 7
        %v3781 = vadd.s32 %v3780, 88
        %3782 = vset.pattern.permute.xlu0 %v3781
        %3783 = vperm.xlu0 %3782, %v3712
        %v3784 = vpop.permute.xlu0 %3783
        %v3785 = vlaneseq
        %v3786 = vshrl.u32 %v3785, 7
        %v3787 = vadd.s32 %v3786, 96
        %3788 = vset.pattern.permute.xlu0 %v3787
        %3789 = vperm.xlu0 %3788, %v3712
        %v3790 = vpop.permute.xlu0 %3789
        %v3791 = vlaneseq
        %v3792 = vshrl.u32 %v3791, 7
        %v3793 = vadd.s32 %v3792, 104
        %3794 = vset.pattern.permute.xlu0 %v3793
        %3795 = vperm.xlu0 %3794, %v3712
        %v3796 = vpop.permute.xlu0 %3795
        %v3797 = vlaneseq
        %v3798 = vshrl.u32 %v3797, 7
        %v3799 = vadd.s32 %v3798, 112
        %3800 = vset.pattern.permute.xlu0 %v3799
        %3801 = vperm.xlu0 %3800, %v3712
        %v3802 = vpop.permute.xlu0 %3801
        %v3803 = vlaneseq
        %v3804 = vshrl.u32 %v3803, 7
        %v3805 = vadd.s32 %v3804, 120
        %3806 = vset.pattern.permute.xlu0 %v3805
        %3807 = vperm.xlu0 %3806, %v3712
        %v3808 = vpop.permute.xlu0 %3807
        %v3809 = vperm.slane %v3599, 2
        %v3810 = vlaneseq
        %v3811 = vshrl.u32 %v3810, 7
        %3813 = vset.pattern.permute.xlu0 %v3811
        %3814 = vperm.xlu0 %3813, %v3809
        %v3815 = vpop.permute.xlu0 %3814
        %v3816 = vlaneseq
        %v3817 = vshrl.u32 %v3816, 7
        %v3818 = vadd.s32 %v3817, 8
        %3819 = vset.pattern.permute.xlu0 %v3818
        %3820 = vperm.xlu0 %3819, %v3809
        %v3821 = vpop.permute.xlu0 %3820
        %v3822 = vlaneseq
        %v3823 = vshrl.u32 %v3822, 7
        %v3824 = vadd.s32 %v3823, 16
        %3825 = vset.pattern.permute.xlu0 %v3824
        %3826 = vperm.xlu0 %3825, %v3809
        %v3827 = vpop.permute.xlu0 %3826
        %v3828 = vlaneseq
        %v3829 = vshrl.u32 %v3828, 7
        %v3830 = vadd.s32 %v3829, 24
        %3831 = vset.pattern.permute.xlu0 %v3830
        %3832 = vperm.xlu0 %3831, %v3809
        %v3833 = vpop.permute.xlu0 %3832
        %v3834 = vlaneseq
        %v3835 = vshrl.u32 %v3834, 7
        %v3836 = vadd.s32 %v3835, 32
        %3837 = vset.pattern.permute.xlu0 %v3836
        %3838 = vperm.xlu0 %3837, %v3809
        %v3839 = vpop.permute.xlu0 %3838
        %v3840 = vlaneseq
        %v3841 = vshrl.u32 %v3840, 7
        %v3842 = vadd.s32 %v3841, 40
        %3843 = vset.pattern.permute.xlu0 %v3842
        %3844 = vperm.xlu0 %3843, %v3809
        %v3845 = vpop.permute.xlu0 %3844
        %v3846 = vlaneseq
        %v3847 = vshrl.u32 %v3846, 7
        %v3848 = vadd.s32 %v3847, 48
        %3849 = vset.pattern.permute.xlu0 %v3848
        %3850 = vperm.xlu0 %3849, %v3809
        %v3851 = vpop.permute.xlu0 %3850
        %v3852 = vlaneseq
        %v3853 = vshrl.u32 %v3852, 7
        %v3854 = vadd.s32 %v3853, 56
        %3855 = vset.pattern.permute.xlu0 %v3854
        %3856 = vperm.xlu0 %3855, %v3809
        %v3857 = vpop.permute.xlu0 %3856
        %v3858 = vlaneseq
        %v3859 = vshrl.u32 %v3858, 7
        %v3860 = vadd.s32 %v3859, 64
        %3861 = vset.pattern.permute.xlu0 %v3860
        %3862 = vperm.xlu0 %3861, %v3809
        %v3863 = vpop.permute.xlu0 %3862
        %v3864 = vlaneseq
        %v3865 = vshrl.u32 %v3864, 7
        %v3866 = vadd.s32 %v3865, 72
        %3867 = vset.pattern.permute.xlu0 %v3866
        %3868 = vperm.xlu0 %3867, %v3809
        %v3869 = vpop.permute.xlu0 %3868
        %v3870 = vlaneseq
        %v3871 = vshrl.u32 %v3870, 7
        %v3872 = vadd.s32 %v3871, 80
        %3873 = vset.pattern.permute.xlu0 %v3872
        %3874 = vperm.xlu0 %3873, %v3809
        %v3875 = vpop.permute.xlu0 %3874
        %v3876 = vlaneseq
        %v3877 = vshrl.u32 %v3876, 7
        %v3878 = vadd.s32 %v3877, 88
        %3879 = vset.pattern.permute.xlu0 %v3878
        %3880 = vperm.xlu0 %3879, %v3809
        %v3881 = vpop.permute.xlu0 %3880
        %v3882 = vlaneseq
        %v3883 = vshrl.u32 %v3882, 7
        %v3884 = vadd.s32 %v3883, 96
        %3885 = vset.pattern.permute.xlu0 %v3884
        %3886 = vperm.xlu0 %3885, %v3809
        %v3887 = vpop.permute.xlu0 %3886
        %v3888 = vlaneseq
        %v3889 = vshrl.u32 %v3888, 7
        %v3890 = vadd.s32 %v3889, 104
        %3891 = vset.pattern.permute.xlu0 %v3890
        %3892 = vperm.xlu0 %3891, %v3809
        %v3893 = vpop.permute.xlu0 %3892
        %v3894 = vlaneseq
        %v3895 = vshrl.u32 %v3894, 7
        %v3896 = vadd.s32 %v3895, 112
        %3897 = vset.pattern.permute.xlu0 %v3896
        %3898 = vperm.xlu0 %3897, %v3809
        %v3899 = vpop.permute.xlu0 %3898
        %v3900 = vlaneseq
        %v3901 = vshrl.u32 %v3900, 7
        %v3902 = vadd.s32 %v3901, 120
        %3903 = vset.pattern.permute.xlu0 %v3902
        %3904 = vperm.xlu0 %3903, %v3809
        %v3905 = vpop.permute.xlu0 %3904
        %v3906 = vperm.slane %v3599, 3
        %v3907 = vlaneseq
        %v3908 = vshrl.u32 %v3907, 7
        %3910 = vset.pattern.permute.xlu0 %v3908
        %3911 = vperm.xlu0 %3910, %v3906
        %v3912 = vpop.permute.xlu0 %3911
        %v3913 = vlaneseq
        %v3914 = vshrl.u32 %v3913, 7
        %v3915 = vadd.s32 %v3914, 8
        %3916 = vset.pattern.permute.xlu0 %v3915
        %3917 = vperm.xlu0 %3916, %v3906
        %v3918 = vpop.permute.xlu0 %3917
        %v3919 = vlaneseq
        %v3920 = vshrl.u32 %v3919, 7
        %v3921 = vadd.s32 %v3920, 16
        %3922 = vset.pattern.permute.xlu0 %v3921
        %3923 = vperm.xlu0 %3922, %v3906
        %v3924 = vpop.permute.xlu0 %3923
        %v3925 = vlaneseq
        %v3926 = vshrl.u32 %v3925, 7
        %v3927 = vadd.s32 %v3926, 24
        %3928 = vset.pattern.permute.xlu0 %v3927
        %3929 = vperm.xlu0 %3928, %v3906
        %v3930 = vpop.permute.xlu0 %3929
        %v3931 = vlaneseq
        %v3932 = vshrl.u32 %v3931, 7
        %v3933 = vadd.s32 %v3932, 32
        %3934 = vset.pattern.permute.xlu0 %v3933
        %3935 = vperm.xlu0 %3934, %v3906
        %v3936 = vpop.permute.xlu0 %3935
        %v3937 = vlaneseq
        %v3938 = vshrl.u32 %v3937, 7
        %v3939 = vadd.s32 %v3938, 40
        %3940 = vset.pattern.permute.xlu0 %v3939
        %3941 = vperm.xlu0 %3940, %v3906
        %v3942 = vpop.permute.xlu0 %3941
        %v3943 = vlaneseq
        %v3944 = vshrl.u32 %v3943, 7
        %v3945 = vadd.s32 %v3944, 48
        %3946 = vset.pattern.permute.xlu0 %v3945
        %3947 = vperm.xlu0 %3946, %v3906
        %v3948 = vpop.permute.xlu0 %3947
        %v3949 = vlaneseq
        %v3950 = vshrl.u32 %v3949, 7
        %v3951 = vadd.s32 %v3950, 56
        %3952 = vset.pattern.permute.xlu0 %v3951
        %3953 = vperm.xlu0 %3952, %v3906
        %v3954 = vpop.permute.xlu0 %3953
        %v3955 = vlaneseq
        %v3956 = vshrl.u32 %v3955, 7
        %v3957 = vadd.s32 %v3956, 64
        %3958 = vset.pattern.permute.xlu0 %v3957
        %3959 = vperm.xlu0 %3958, %v3906
        %v3960 = vpop.permute.xlu0 %3959
        %v3961 = vlaneseq
        %v3962 = vshrl.u32 %v3961, 7
        %v3963 = vadd.s32 %v3962, 72
        %3964 = vset.pattern.permute.xlu0 %v3963
        %3965 = vperm.xlu0 %3964, %v3906
        %v3966 = vpop.permute.xlu0 %3965
        %v3967 = vlaneseq
        %v3968 = vshrl.u32 %v3967, 7
        %v3969 = vadd.s32 %v3968, 80
        %3970 = vset.pattern.permute.xlu0 %v3969
        %3971 = vperm.xlu0 %3970, %v3906
        %v3972 = vpop.permute.xlu0 %3971
        %v3973 = vlaneseq
        %v3974 = vshrl.u32 %v3973, 7
        %v3975 = vadd.s32 %v3974, 88
        %3976 = vset.pattern.permute.xlu0 %v3975
        %3977 = vperm.xlu0 %3976, %v3906
        %v3978 = vpop.permute.xlu0 %3977
        %v3979 = vlaneseq
        %v3980 = vshrl.u32 %v3979, 7
        %v3981 = vadd.s32 %v3980, 96
        %3982 = vset.pattern.permute.xlu0 %v3981
        %3983 = vperm.xlu0 %3982, %v3906
        %v3984 = vpop.permute.xlu0 %3983
        %v3985 = vlaneseq
        %v3986 = vshrl.u32 %v3985, 7
        %v3987 = vadd.s32 %v3986, 104
        %3988 = vset.pattern.permute.xlu0 %v3987
        %3989 = vperm.xlu0 %3988, %v3906
        %v3990 = vpop.permute.xlu0 %3989
        %v3991 = vlaneseq
        %v3992 = vshrl.u32 %v3991, 7
        %v3993 = vadd.s32 %v3992, 112
        %3994 = vset.pattern.permute.xlu0 %v3993
        %3995 = vperm.xlu0 %3994, %v3906
        %v3996 = vpop.permute.xlu0 %3995
        %v3997 = vlaneseq
        %v3998 = vshrl.u32 %v3997, 7
        %v3999 = vadd.s32 %v3998, 120
        %4000 = vset.pattern.permute.xlu0 %v3999
        %4001 = vperm.xlu0 %4000, %v3906
        %v4002 = vpop.permute.xlu0 %4001
        %4004 = vst [vmem:[#allocation1] sm:$0xff] %v3599
        %s4005 = scalar_lea.vmem [#allocation1], 4
        %v4006 = vld [vmem:[%s4005] ss:$9 sm:$0xff]
        %s4007 = scalar_lea.vmem [#allocation1], 5
        %v4008 = vld [vmem:[%s4007] ss:$9 sm:$0xff]
        %s4009 = scalar_lea.vmem [#allocation1], 6
        %v4010 = vld [vmem:[%s4009] ss:$9 sm:$0xff]
        %s4011 = scalar_lea.vmem [#allocation1], 7
        %v4012 = vld [vmem:[%s4011] ss:$9 sm:$0xff]
        %v4013 = vperm.slane %v4006, 0
        %v4014 = vperm.slane %v4008, 0
        %v4015 = vperm.slane %v4010, 0
        %v4016 = vperm.slane %v4012, 0
        %v4021 = vadd.f32 %v3621, %v4013
        %v4022 = vadd.f32 %v3627, %v4013
        %v4023 = vadd.f32 %v3633, %v4013
        %v4024 = vadd.f32 %v3639, %v4013
        %v4025 = vadd.f32 %v3645, %v4013
        %v4026 = vadd.f32 %v3651, %v4013
        %v4027 = vadd.f32 %v3657, %v4013
        %v4028 = vadd.f32 %v3663, %v4013
        %v4029 = vadd.f32 %v3669, %v4013
        %v4030 = vadd.f32 %v3675, %v4013
        %v4031 = vadd.f32 %v3681, %v4013
        %v4032 = vadd.f32 %v3687, %v4013
        %v4033 = vadd.f32 %v3693, %v4013
        %v4034 = vadd.f32 %v3699, %v4013
        %v4035 = vadd.f32 %v3705, %v4013
        %v4036 = vadd.f32 %v3711, %v4013
        %v4037 = vadd.f32 %v3718, %v4014
        %v4038 = vadd.f32 %v3724, %v4014
        %v4039 = vadd.f32 %v3730, %v4014
        %v4040 = vadd.f32 %v3736, %v4014
        %v4041 = vadd.f32 %v3742, %v4014
        %v4042 = vadd.f32 %v3748, %v4014
        %v4043 = vadd.f32 %v3754, %v4014
        %v4044 = vadd.f32 %v3760, %v4014
        %v4045 = vadd.f32 %v3766, %v4014
        %v4046 = vadd.f32 %v3772, %v4014
        %v4047 = vadd.f32 %v3778, %v4014
        %v4048 = vadd.f32 %v3784, %v4014
        %v4049 = vadd.f32 %v3790, %v4014
        %v4050 = vadd.f32 %v3796, %v4014
        %v4051 = vadd.f32 %v3802, %v4014
        %v4052 = vadd.f32 %v3808, %v4014
        %v4053 = vadd.f32 %v3815, %v4015
        %v4054 = vadd.f32 %v3821, %v4015
        %v4055 = vadd.f32 %v3827, %v4015
        %v4056 = vadd.f32 %v3833, %v4015
        %v4057 = vadd.f32 %v3839, %v4015
        %v4058 = vadd.f32 %v3845, %v4015
        %v4059 = vadd.f32 %v3851, %v4015
        %v4060 = vadd.f32 %v3857, %v4015
        %v4061 = vadd.f32 %v3863, %v4015
        %v4062 = vadd.f32 %v3869, %v4015
        %v4063 = vadd.f32 %v3875, %v4015
        %v4064 = vadd.f32 %v3881, %v4015
        %v4065 = vadd.f32 %v3887, %v4015
        %v4066 = vadd.f32 %v3893, %v4015
        %v4067 = vadd.f32 %v3899, %v4015
        %v4068 = vadd.f32 %v3905, %v4015
        %v4069 = vadd.f32 %v3912, %v4016
        %v4070 = vadd.f32 %v3918, %v4016
        %v4071 = vadd.f32 %v3924, %v4016
        %v4072 = vadd.f32 %v3930, %v4016
        %v4073 = vadd.f32 %v3936, %v4016
        %v4074 = vadd.f32 %v3942, %v4016
        %v4075 = vadd.f32 %v3948, %v4016
        %v4076 = vadd.f32 %v3954, %v4016
        %v4077 = vadd.f32 %v3960, %v4016
        %v4078 = vadd.f32 %v3966, %v4016
        %v4079 = vadd.f32 %v3972, %v4016
        %v4080 = vadd.f32 %v3978, %v4016
        %v4081 = vadd.f32 %v3984, %v4016
        %v4082 = vadd.f32 %v3990, %v4016
        %v4083 = vadd.f32 %v3996, %v4016
        %v4084 = vadd.f32 %v4002, %v4016
        %vm4085 = vcmp.gt.f32.partialorder %v4021, 0.0
        %vm4086 = vcmp.gt.f32.partialorder %v4022, 0.0
        %vm4087 = vcmp.gt.f32.partialorder %v4023, 0.0
        %vm4088 = vcmp.gt.f32.partialorder %v4024, 0.0
        %vm4089 = vcmp.gt.f32.partialorder %v4025, 0.0
        %vm4090 = vcmp.gt.f32.partialorder %v4026, 0.0
        %vm4091 = vcmp.gt.f32.partialorder %v4027, 0.0
        %vm4092 = vcmp.gt.f32.partialorder %v4028, 0.0
        %vm4093 = vcmp.gt.f32.partialorder %v4029, 0.0
        %vm4094 = vcmp.gt.f32.partialorder %v4030, 0.0
        %vm4095 = vcmp.gt.f32.partialorder %v4031, 0.0
        %vm4096 = vcmp.gt.f32.partialorder %v4032, 0.0
        %vm4097 = vcmp.gt.f32.partialorder %v4033, 0.0
        %vm4098 = vcmp.gt.f32.partialorder %v4034, 0.0
        %vm4099 = vcmp.gt.f32.partialorder %v4035, 0.0
        %vm4100 = vcmp.gt.f32.partialorder %v4036, 0.0
        %vm4101 = vcmp.gt.f32.partialorder %v4037, 0.0
        %vm4102 = vcmp.gt.f32.partialorder %v4038, 0.0
        %vm4103 = vcmp.gt.f32.partialorder %v4039, 0.0
        %vm4104 = vcmp.gt.f32.partialorder %v4040, 0.0
        %vm4105 = vcmp.gt.f32.partialorder %v4041, 0.0
        %vm4106 = vcmp.gt.f32.partialorder %v4042, 0.0
        %vm4107 = vcmp.gt.f32.partialorder %v4043, 0.0
        %vm4108 = vcmp.gt.f32.partialorder %v4044, 0.0
        %vm4109 = vcmp.gt.f32.partialorder %v4045, 0.0
        %vm4110 = vcmp.gt.f32.partialorder %v4046, 0.0
        %vm4111 = vcmp.gt.f32.partialorder %v4047, 0.0
        %vm4112 = vcmp.gt.f32.partialorder %v4048, 0.0
        %vm4113 = vcmp.gt.f32.partialorder %v4049, 0.0
        %vm4114 = vcmp.gt.f32.partialorder %v4050, 0.0
        %vm4115 = vcmp.gt.f32.partialorder %v4051, 0.0
        %vm4116 = vcmp.gt.f32.partialorder %v4052, 0.0
        %vm4117 = vcmp.gt.f32.partialorder %v4053, 0.0
        %vm4118 = vcmp.gt.f32.partialorder %v4054, 0.0
        %vm4119 = vcmp.gt.f32.partialorder %v4055, 0.0
        %vm4120 = vcmp.gt.f32.partialorder %v4056, 0.0
        %vm4121 = vcmp.gt.f32.partialorder %v4057, 0.0
        %vm4122 = vcmp.gt.f32.partialorder %v4058, 0.0
        %vm4123 = vcmp.gt.f32.partialorder %v4059, 0.0
        %vm4124 = vcmp.gt.f32.partialorder %v4060, 0.0
        %vm4125 = vcmp.gt.f32.partialorder %v4061, 0.0
        %vm4126 = vcmp.gt.f32.partialorder %v4062, 0.0
        %vm4127 = vcmp.gt.f32.partialorder %v4063, 0.0
        %vm4128 = vcmp.gt.f32.partialorder %v4064, 0.0
        %vm4129 = vcmp.gt.f32.partialorder %v4065, 0.0
        %vm4130 = vcmp.gt.f32.partialorder %v4066, 0.0
        %vm4131 = vcmp.gt.f32.partialorder %v4067, 0.0
        %vm4132 = vcmp.gt.f32.partialorder %v4068, 0.0
        %vm4133 = vcmp.gt.f32.partialorder %v4069, 0.0
        %vm4134 = vcmp.gt.f32.partialorder %v4070, 0.0
        %vm4135 = vcmp.gt.f32.partialorder %v4071, 0.0
        %vm4136 = vcmp.gt.f32.partialorder %v4072, 0.0
        %vm4137 = vcmp.gt.f32.partialorder %v4073, 0.0
        %vm4138 = vcmp.gt.f32.partialorder %v4074, 0.0
        %vm4139 = vcmp.gt.f32.partialorder %v4075, 0.0
        %vm4140 = vcmp.gt.f32.partialorder %v4076, 0.0
        %vm4141 = vcmp.gt.f32.partialorder %v4077, 0.0
        %vm4142 = vcmp.gt.f32.partialorder %v4078, 0.0
        %vm4143 = vcmp.gt.f32.partialorder %v4079, 0.0
        %vm4144 = vcmp.gt.f32.partialorder %v4080, 0.0
        %vm4145 = vcmp.gt.f32.partialorder %v4081, 0.0
        %vm4146 = vcmp.gt.f32.partialorder %v4082, 0.0
        %vm4147 = vcmp.gt.f32.partialorder %v4083, 0.0
        %vm4148 = vcmp.gt.f32.partialorder %v4084, 0.0
        %v4149 = vmul.f32 %v4021, 0.2
        %v4150 = vmul.f32 %v4022, 0.2
        %v4151 = vmul.f32 %v4023, 0.2
        %v4152 = vmul.f32 %v4024, 0.2
        %v4153 = vmul.f32 %v4025, 0.2
        %v4154 = vmul.f32 %v4026, 0.2
        %v4155 = vmul.f32 %v4027, 0.2
        %v4156 = vmul.f32 %v4028, 0.2
        %v4157 = vmul.f32 %v4029, 0.2
        %v4158 = vmul.f32 %v4030, 0.2
        %v4159 = vmul.f32 %v4031, 0.2
        %v4160 = vmul.f32 %v4032, 0.2
        %v4161 = vmul.f32 %v4033, 0.2
        %v4162 = vmul.f32 %v4034, 0.2
        %v4163 = vmul.f32 %v4035, 0.2
        %v4164 = vmul.f32 %v4036, 0.2
        %v4165 = vmul.f32 %v4037, 0.2
        %v4166 = vmul.f32 %v4038, 0.2
        %v4167 = vmul.f32 %v4039, 0.2
        %v4168 = vmul.f32 %v4040, 0.2
        %v4169 = vmul.f32 %v4041, 0.2
        %v4170 = vmul.f32 %v4042, 0.2
        %v4171 = vmul.f32 %v4043, 0.2
        %v4172 = vmul.f32 %v4044, 0.2
        %v4173 = vmul.f32 %v4045, 0.2
        %v4174 = vmul.f32 %v4046, 0.2
        %v4175 = vmul.f32 %v4047, 0.2
        %v4176 = vmul.f32 %v4048, 0.2
        %v4177 = vmul.f32 %v4049, 0.2
        %v4178 = vmul.f32 %v4050, 0.2
        %v4179 = vmul.f32 %v4051, 0.2
        %v4180 = vmul.f32 %v4052, 0.2
        %v4181 = vmul.f32 %v4053, 0.2
        %v4182 = vmul.f32 %v4054, 0.2
        %v4183 = vmul.f32 %v4055, 0.2
        %v4184 = vmul.f32 %v4056, 0.2
        %v4185 = vmul.f32 %v4057, 0.2
        %v4186 = vmul.f32 %v4058, 0.2
        %v4187 = vmul.f32 %v4059, 0.2
        %v4188 = vmul.f32 %v4060, 0.2
        %v4189 = vmul.f32 %v4061, 0.2
        %v4190 = vmul.f32 %v4062, 0.2
        %v4191 = vmul.f32 %v4063, 0.2
        %v4192 = vmul.f32 %v4064, 0.2
        %v4193 = vmul.f32 %v4065, 0.2
        %v4194 = vmul.f32 %v4066, 0.2
        %v4195 = vmul.f32 %v4067, 0.2
        %v4196 = vmul.f32 %v4068, 0.2
        %v4197 = vmul.f32 %v4069, 0.2
        %v4198 = vmul.f32 %v4070, 0.2
        %v4199 = vmul.f32 %v4071, 0.2
        %v4200 = vmul.f32 %v4072, 0.2
        %v4201 = vmul.f32 %v4073, 0.2
        %v4202 = vmul.f32 %v4074, 0.2
        %v4203 = vmul.f32 %v4075, 0.2
        %v4204 = vmul.f32 %v4076, 0.2
        %v4205 = vmul.f32 %v4077, 0.2
        %v4206 = vmul.f32 %v4078, 0.2
        %v4207 = vmul.f32 %v4079, 0.2
        %v4208 = vmul.f32 %v4080, 0.2
        %v4209 = vmul.f32 %v4081, 0.2
        %v4210 = vmul.f32 %v4082, 0.2
        %v4211 = vmul.f32 %v4083, 0.2
        %v4212 = vmul.f32 %v4084, 0.2
        %v4213 = vsel %vm4085, %v4021, %v4149
        %v4214 = vsel %vm4086, %v4022, %v4150
        %v4215 = vsel %vm4087, %v4023, %v4151
        %v4216 = vsel %vm4088, %v4024, %v4152
        %v4217 = vsel %vm4089, %v4025, %v4153
        %v4218 = vsel %vm4090, %v4026, %v4154
        %v4219 = vsel %vm4091, %v4027, %v4155
        %v4220 = vsel %vm4092, %v4028, %v4156
        %v4221 = vsel %vm4093, %v4029, %v4157
        %v4222 = vsel %vm4094, %v4030, %v4158
        %v4223 = vsel %vm4095, %v4031, %v4159
        %v4224 = vsel %vm4096, %v4032, %v4160
        %v4225 = vsel %vm4097, %v4033, %v4161
        %v4226 = vsel %vm4098, %v4034, %v4162
        %v4227 = vsel %vm4099, %v4035, %v4163
        %v4228 = vsel %vm4100, %v4036, %v4164
        %v4229 = vsel %vm4101, %v4037, %v4165
        %v4230 = vsel %vm4102, %v4038, %v4166
        %v4231 = vsel %vm4103, %v4039, %v4167
        %v4232 = vsel %vm4104, %v4040, %v4168
        %v4233 = vsel %vm4105, %v4041, %v4169
        %v4234 = vsel %vm4106, %v4042, %v4170
        %v4235 = vsel %vm4107, %v4043, %v4171
        %v4236 = vsel %vm4108, %v4044, %v4172
        %v4237 = vsel %vm4109, %v4045, %v4173
        %v4238 = vsel %vm4110, %v4046, %v4174
        %v4239 = vsel %vm4111, %v4047, %v4175
        %v4240 = vsel %vm4112, %v4048, %v4176
        %v4241 = vsel %vm4113, %v4049, %v4177
        %v4242 = vsel %vm4114, %v4050, %v4178
        %v4243 = vsel %vm4115, %v4051, %v4179
        %v4244 = vsel %vm4116, %v4052, %v4180
        %v4245 = vsel %vm4117, %v4053, %v4181
        %v4246 = vsel %vm4118, %v4054, %v4182
        %v4247 = vsel %vm4119, %v4055, %v4183
        %v4248 = vsel %vm4120, %v4056, %v4184
        %v4249 = vsel %vm4121, %v4057, %v4185
        %v4250 = vsel %vm4122, %v4058, %v4186
        %v4251 = vsel %vm4123, %v4059, %v4187
        %v4252 = vsel %vm4124, %v4060, %v4188
        %v4253 = vsel %vm4125, %v4061, %v4189
        %v4254 = vsel %vm4126, %v4062, %v4190
        %v4255 = vsel %vm4127, %v4063, %v4191
        %v4256 = vsel %vm4128, %v4064, %v4192
        %v4257 = vsel %vm4129, %v4065, %v4193
        %v4258 = vsel %vm4130, %v4066, %v4194
        %v4259 = vsel %vm4131, %v4067, %v4195
        %v4260 = vsel %vm4132, %v4068, %v4196
        %v4261 = vsel %vm4133, %v4069, %v4197
        %v4262 = vsel %vm4134, %v4070, %v4198
        %v4263 = vsel %vm4135, %v4071, %v4199
        %v4264 = vsel %vm4136, %v4072, %v4200
        %v4265 = vsel %vm4137, %v4073, %v4201
        %v4266 = vsel %vm4138, %v4074, %v4202
        %v4267 = vsel %vm4139, %v4075, %v4203
        %v4268 = vsel %vm4140, %v4076, %v4204
        %v4269 = vsel %vm4141, %v4077, %v4205
        %v4270 = vsel %vm4142, %v4078, %v4206
        %v4271 = vsel %vm4143, %v4079, %v4207
        %v4272 = vsel %vm4144, %v4080, %v4208
        %v4273 = vsel %vm4145, %v4081, %v4209
        %v4274 = vsel %vm4146, %v4082, %v4210
        %v4275 = vsel %vm4147, %v4083, %v4211
        %v4276 = vsel %vm4148, %v4084, %v4212
        %v4277 = vadd.f32 %v4213, %v600
        %v4278 = vadd.f32 %v4214, %v601
        %v4279 = vadd.f32 %v4215, %v602
        %v4280 = vadd.f32 %v4216, %v603
        %v4281 = vadd.f32 %v4217, %v604
        %v4282 = vadd.f32 %v4218, %v605
        %v4283 = vadd.f32 %v4219, %v606
        %v4284 = vadd.f32 %v4220, %v607
        %v4285 = vadd.f32 %v4221, %v608
        %v4286 = vadd.f32 %v4222, %v609
        %v4287 = vadd.f32 %v4223, %v610
        %v4288 = vadd.f32 %v4224, %v611
        %v4289 = vadd.f32 %v4225, %v612
        %v4290 = vadd.f32 %v4226, %v613
        %v4291 = vadd.f32 %v4227, %v614
        %v4292 = vadd.f32 %v4228, %v615
        %v4293 = vadd.f32 %v4229, %v600
        %v4294 = vadd.f32 %v4230, %v601
        %v4295 = vadd.f32 %v4231, %v602
        %v4296 = vadd.f32 %v4232, %v603
        %v4297 = vadd.f32 %v4233, %v604
        %v4298 = vadd.f32 %v4234, %v605
        %v4299 = vadd.f32 %v4235, %v606
        %v4300 = vadd.f32 %v4236, %v607
        %v4301 = vadd.f32 %v4237, %v608
        %v4302 = vadd.f32 %v4238, %v609
        %v4303 = vadd.f32 %v4239, %v610
        %v4304 = vadd.f32 %v4240, %v611
        %v4305 = vadd.f32 %v4241, %v612
        %v4306 = vadd.f32 %v4242, %v613
        %v4307 = vadd.f32 %v4243, %v614
        %v4308 = vadd.f32 %v4244, %v615
        %v4309 = vadd.f32 %v4245, %v616
        %v4310 = vadd.f32 %v4246, %v617
        %v4311 = vadd.f32 %v4247, %v618
        %v4312 = vadd.f32 %v4248, %v619
        %v4313 = vadd.f32 %v4249, %v620
        %v4314 = vadd.f32 %v4250, %v621
        %v4315 = vadd.f32 %v4251, %v622
        %v4316 = vadd.f32 %v4252, %v623
        %v4317 = vadd.f32 %v4253, %v624
        %v4318 = vadd.f32 %v4254, %v625
        %v4319 = vadd.f32 %v4255, %v626
        %v4320 = vadd.f32 %v4256, %v627
        %v4321 = vadd.f32 %v4257, %v628
        %v4322 = vadd.f32 %v4258, %v629
        %v4323 = vadd.f32 %v4259, %v630
        %v4324 = vadd.f32 %v4260, %v631
        %v4325 = vadd.f32 %v4261, %v616
        %v4326 = vadd.f32 %v4262, %v617
        %v4327 = vadd.f32 %v4263, %v618
        %v4328 = vadd.f32 %v4264, %v619
        %v4329 = vadd.f32 %v4265, %v620
        %v4330 = vadd.f32 %v4266, %v621
        %v4331 = vadd.f32 %v4267, %v622
        %v4332 = vadd.f32 %v4268, %v623
        %v4333 = vadd.f32 %v4269, %v624
        %v4334 = vadd.f32 %v4270, %v625
        %v4335 = vadd.f32 %v4271, %v626
        %v4336 = vadd.f32 %v4272, %v627
        %v4337 = vadd.f32 %v4273, %v628
        %v4338 = vadd.f32 %v4274, %v629
        %v4339 = vadd.f32 %v4275, %v630
        %v4340 = vadd.f32 %v4276, %v631
        %4341 = vmax.xlane.f32.xlu0 %v4277
        %v4342 = vpop.xlane.xlu0 %4341
        %4343 = vmax.xlane.f32.xlu0 %v4278
        %v4344 = vpop.xlane.xlu0 %4343
        %4345 = vmax.xlane.f32.xlu0 %v4279
        %v4346 = vpop.xlane.xlu0 %4345
        %4347 = vmax.xlane.f32.xlu0 %v4280
        %v4348 = vpop.xlane.xlu0 %4347
        %4349 = vmax.xlane.f32.xlu0 %v4281
        %v4350 = vpop.xlane.xlu0 %4349
        %4351 = vmax.xlane.f32.xlu0 %v4282
        %v4352 = vpop.xlane.xlu0 %4351
        %4353 = vmax.xlane.f32.xlu0 %v4283
        %v4354 = vpop.xlane.xlu0 %4353
        %4355 = vmax.xlane.f32.xlu0 %v4284
        %v4356 = vpop.xlane.xlu0 %4355
        %4357 = vmax.xlane.f32.xlu0 %v4285
        %v4358 = vpop.xlane.xlu0 %4357
        %4359 = vmax.xlane.f32.xlu0 %v4286
        %v4360 = vpop.xlane.xlu0 %4359
        %4361 = vmax.xlane.f32.xlu0 %v4287
        %v4362 = vpop.xlane.xlu0 %4361
        %4363 = vmax.xlane.f32.xlu0 %v4288
        %v4364 = vpop.xlane.xlu0 %4363
        %4365 = vmax.xlane.f32.xlu0 %v4289
        %v4366 = vpop.xlane.xlu0 %4365
        %4367 = vmax.xlane.f32.xlu0 %v4290
        %v4368 = vpop.xlane.xlu0 %4367
        %4369 = vmax.xlane.f32.xlu0 %v4291
        %v4370 = vpop.xlane.xlu0 %4369
        %4371 = vmax.xlane.f32.xlu0 %v4292
        %v4372 = vpop.xlane.xlu0 %4371
        %4373 = vmax.xlane.f32.xlu0 %v4293
        %v4374 = vpop.xlane.xlu0 %4373
        %4375 = vmax.xlane.f32.xlu0 %v4294
        %v4376 = vpop.xlane.xlu0 %4375
        %4377 = vmax.xlane.f32.xlu0 %v4295
        %v4378 = vpop.xlane.xlu0 %4377
        %4379 = vmax.xlane.f32.xlu0 %v4296
        %v4380 = vpop.xlane.xlu0 %4379
        %4381 = vmax.xlane.f32.xlu0 %v4297
        %v4382 = vpop.xlane.xlu0 %4381
        %4383 = vmax.xlane.f32.xlu0 %v4298
        %v4384 = vpop.xlane.xlu0 %4383
        %4385 = vmax.xlane.f32.xlu0 %v4299
        %v4386 = vpop.xlane.xlu0 %4385
        %4387 = vmax.xlane.f32.xlu0 %v4300
        %v4388 = vpop.xlane.xlu0 %4387
        %4389 = vmax.xlane.f32.xlu0 %v4301
        %v4390 = vpop.xlane.xlu0 %4389
        %4391 = vmax.xlane.f32.xlu0 %v4302
        %v4392 = vpop.xlane.xlu0 %4391
        %4393 = vmax.xlane.f32.xlu0 %v4303
        %v4394 = vpop.xlane.xlu0 %4393
        %4395 = vmax.xlane.f32.xlu0 %v4304
        %v4396 = vpop.xlane.xlu0 %4395
        %4397 = vmax.xlane.f32.xlu0 %v4305
        %v4398 = vpop.xlane.xlu0 %4397
        %4399 = vmax.xlane.f32.xlu0 %v4306
        %v4400 = vpop.xlane.xlu0 %4399
        %4401 = vmax.xlane.f32.xlu0 %v4307
        %v4402 = vpop.xlane.xlu0 %4401
        %4403 = vmax.xlane.f32.xlu0 %v4308
        %v4404 = vpop.xlane.xlu0 %4403
        %4405 = vmax.xlane.f32.xlu0 %v4309
        %v4406 = vpop.xlane.xlu0 %4405
        %4407 = vmax.xlane.f32.xlu0 %v4310
        %v4408 = vpop.xlane.xlu0 %4407
        %4409 = vmax.xlane.f32.xlu0 %v4311
        %v4410 = vpop.xlane.xlu0 %4409
        %4411 = vmax.xlane.f32.xlu0 %v4312
        %v4412 = vpop.xlane.xlu0 %4411
        %4413 = vmax.xlane.f32.xlu0 %v4313
        %v4414 = vpop.xlane.xlu0 %4413
        %4415 = vmax.xlane.f32.xlu0 %v4314
        %v4416 = vpop.xlane.xlu0 %4415
        %4417 = vmax.xlane.f32.xlu0 %v4315
        %v4418 = vpop.xlane.xlu0 %4417
        %4419 = vmax.xlane.f32.xlu0 %v4316
        %v4420 = vpop.xlane.xlu0 %4419
        %4421 = vmax.xlane.f32.xlu0 %v4317
        %v4422 = vpop.xlane.xlu0 %4421
        %4423 = vmax.xlane.f32.xlu0 %v4318
        %v4424 = vpop.xlane.xlu0 %4423
        %4425 = vmax.xlane.f32.xlu0 %v4319
        %v4426 = vpop.xlane.xlu0 %4425
        %4427 = vmax.xlane.f32.xlu0 %v4320
        %v4428 = vpop.xlane.xlu0 %4427
        %4429 = vmax.xlane.f32.xlu0 %v4321
        %v4430 = vpop.xlane.xlu0 %4429
        %4431 = vmax.xlane.f32.xlu0 %v4322
        %v4432 = vpop.xlane.xlu0 %4431
        %4433 = vmax.xlane.f32.xlu0 %v4323
        %v4434 = vpop.xlane.xlu0 %4433
        %4435 = vmax.xlane.f32.xlu0 %v4324
        %v4436 = vpop.xlane.xlu0 %4435
        %4437 = vmax.xlane.f32.xlu0 %v4325
        %v4438 = vpop.xlane.xlu0 %4437
        %4439 = vmax.xlane.f32.xlu0 %v4326
        %v4440 = vpop.xlane.xlu0 %4439
        %4441 = vmax.xlane.f32.xlu0 %v4327
        %v4442 = vpop.xlane.xlu0 %4441
        %4443 = vmax.xlane.f32.xlu0 %v4328
        %v4444 = vpop.xlane.xlu0 %4443
        %4445 = vmax.xlane.f32.xlu0 %v4329
        %v4446 = vpop.xlane.xlu0 %4445
        %4447 = vmax.xlane.f32.xlu0 %v4330
        %v4448 = vpop.xlane.xlu0 %4447
        %4449 = vmax.xlane.f32.xlu0 %v4331
        %v4450 = vpop.xlane.xlu0 %4449
        %4451 = vmax.xlane.f32.xlu0 %v4332
        %v4452 = vpop.xlane.xlu0 %4451
        %4453 = vmax.xlane.f32.xlu0 %v4333
        %v4454 = vpop.xlane.xlu0 %4453
        %4455 = vmax.xlane.f32.xlu0 %v4334
        %v4456 = vpop.xlane.xlu0 %4455
        %4457 = vmax.xlane.f32.xlu0 %v4335
        %v4458 = vpop.xlane.xlu0 %4457
        %4459 = vmax.xlane.f32.xlu0 %v4336
        %v4460 = vpop.xlane.xlu0 %4459
        %4461 = vmax.xlane.f32.xlu0 %v4337
        %v4462 = vpop.xlane.xlu0 %4461
        %4463 = vmax.xlane.f32.xlu0 %v4338
        %v4464 = vpop.xlane.xlu0 %4463
        %4465 = vmax.xlane.f32.xlu0 %v4339
        %v4466 = vpop.xlane.xlu0 %4465
        %4467 = vmax.xlane.f32.xlu0 %v4340
        %v4468 = vpop.xlane.xlu0 %4467
        %v4469 = vsub.f32 %v4277, %v4342
        %v4470 = vsub.f32 %v4278, %v4344
        %v4471 = vsub.f32 %v4279, %v4346
        %v4472 = vsub.f32 %v4280, %v4348
        %v4473 = vsub.f32 %v4281, %v4350
        %v4474 = vsub.f32 %v4282, %v4352
        %v4475 = vsub.f32 %v4283, %v4354
        %v4476 = vsub.f32 %v4284, %v4356
        %v4477 = vsub.f32 %v4285, %v4358
        %v4478 = vsub.f32 %v4286, %v4360
        %v4479 = vsub.f32 %v4287, %v4362
        %v4480 = vsub.f32 %v4288, %v4364
        %v4481 = vsub.f32 %v4289, %v4366
        %v4482 = vsub.f32 %v4290, %v4368
        %v4483 = vsub.f32 %v4291, %v4370
        %v4484 = vsub.f32 %v4292, %v4372
        %v4485 = vsub.f32 %v4293, %v4374
        %v4486 = vsub.f32 %v4294, %v4376
        %v4487 = vsub.f32 %v4295, %v4378
        %v4488 = vsub.f32 %v4296, %v4380
        %v4489 = vsub.f32 %v4297, %v4382
        %v4490 = vsub.f32 %v4298, %v4384
        %v4491 = vsub.f32 %v4299, %v4386
        %v4492 = vsub.f32 %v4300, %v4388
        %v4493 = vsub.f32 %v4301, %v4390
        %v4494 = vsub.f32 %v4302, %v4392
        %v4495 = vsub.f32 %v4303, %v4394
        %v4496 = vsub.f32 %v4304, %v4396
        %v4497 = vsub.f32 %v4305, %v4398
        %v4498 = vsub.f32 %v4306, %v4400
        %v4499 = vsub.f32 %v4307, %v4402
        %v4500 = vsub.f32 %v4308, %v4404
        %v4501 = vsub.f32 %v4309, %v4406
        %v4502 = vsub.f32 %v4310, %v4408
        %v4503 = vsub.f32 %v4311, %v4410
        %v4504 = vsub.f32 %v4312, %v4412
        %v4505 = vsub.f32 %v4313, %v4414
        %v4506 = vsub.f32 %v4314, %v4416
        %v4507 = vsub.f32 %v4315, %v4418
        %v4508 = vsub.f32 %v4316, %v4420
        %v4509 = vsub.f32 %v4317, %v4422
        %v4510 = vsub.f32 %v4318, %v4424
        %v4511 = vsub.f32 %v4319, %v4426
        %v4512 = vsub.f32 %v4320, %v4428
        %v4513 = vsub.f32 %v4321, %v4430
        %v4514 = vsub.f32 %v4322, %v4432
        %v4515 = vsub.f32 %v4323, %v4434
        %v4516 = vsub.f32 %v4324, %v4436
        %v4517 = vsub.f32 %v4325, %v4438
        %v4518 = vsub.f32 %v4326, %v4440
        %v4519 = vsub.f32 %v4327, %v4442
        %v4520 = vsub.f32 %v4328, %v4444
        %v4521 = vsub.f32 %v4329, %v4446
        %v4522 = vsub.f32 %v4330, %v4448
        %v4523 = vsub.f32 %v4331, %v4450
        %v4524 = vsub.f32 %v4332, %v4452
        %v4525 = vsub.f32 %v4333, %v4454
        %v4526 = vsub.f32 %v4334, %v4456
        %v4527 = vsub.f32 %v4335, %v4458
        %v4528 = vsub.f32 %v4336, %v4460
        %v4529 = vsub.f32 %v4337, %v4462
        %v4530 = vsub.f32 %v4338, %v4464
        %v4531 = vsub.f32 %v4339, %v4466
        %v4532 = vsub.f32 %v4340, %v4468
        %v4533 = vmul.f32 %v4469, 1.442695
        %v4534 = vpow.pop %v4533
        %v4535 = vmul.f32 %v4470, 1.442695
        %v4536 = vpow.pop %v4535
        %v4537 = vmul.f32 %v4471, 1.442695
        %v4538 = vpow.pop %v4537
        %v4539 = vmul.f32 %v4472, 1.442695
        %v4540 = vpow.pop %v4539
        %v4541 = vmul.f32 %v4473, 1.442695
        %v4542 = vpow.pop %v4541
        %v4543 = vmul.f32 %v4474, 1.442695
        %v4544 = vpow.pop %v4543
        %v4545 = vmul.f32 %v4475, 1.442695
        %v4546 = vpow.pop %v4545
        %v4547 = vmul.f32 %v4476, 1.442695
        %v4548 = vpow.pop %v4547
        %v4549 = vmul.f32 %v4477, 1.442695
        %v4550 = vpow.pop %v4549
        %v4551 = vmul.f32 %v4478, 1.442695
        %v4552 = vpow.pop %v4551
        %v4553 = vmul.f32 %v4479, 1.442695
        %v4554 = vpow.pop %v4553
        %v4555 = vmul.f32 %v4480, 1.442695
        %v4556 = vpow.pop %v4555
        %v4557 = vmul.f32 %v4481, 1.442695
        %v4558 = vpow.pop %v4557
        %v4559 = vmul.f32 %v4482, 1.442695
        %v4560 = vpow.pop %v4559
        %v4561 = vmul.f32 %v4483, 1.442695
        %v4562 = vpow.pop %v4561
        %v4563 = vmul.f32 %v4484, 1.442695
        %v4564 = vpow.pop %v4563
        %v4565 = vmul.f32 %v4485, 1.442695
        %v4566 = vpow.pop %v4565
        %v4567 = vmul.f32 %v4486, 1.442695
        %v4568 = vpow.pop %v4567
        %v4569 = vmul.f32 %v4487, 1.442695
        %v4570 = vpow.pop %v4569
        %v4571 = vmul.f32 %v4488, 1.442695
        %v4572 = vpow.pop %v4571
        %v4573 = vmul.f32 %v4489, 1.442695
        %v4574 = vpow.pop %v4573
        %v4575 = vmul.f32 %v4490, 1.442695
        %v4576 = vpow.pop %v4575
        %v4577 = vmul.f32 %v4491, 1.442695
        %v4578 = vpow.pop %v4577
        %v4579 = vmul.f32 %v4492, 1.442695
        %v4580 = vpow.pop %v4579
        %v4581 = vmul.f32 %v4493, 1.442695
        %v4582 = vpow.pop %v4581
        %v4583 = vmul.f32 %v4494, 1.442695
        %v4584 = vpow.pop %v4583
        %v4585 = vmul.f32 %v4495, 1.442695
        %v4586 = vpow.pop %v4585
        %v4587 = vmul.f32 %v4496, 1.442695
        %v4588 = vpow.pop %v4587
        %v4589 = vmul.f32 %v4497, 1.442695
        %v4590 = vpow.pop %v4589
        %v4591 = vmul.f32 %v4498, 1.442695
        %v4592 = vpow.pop %v4591
        %v4593 = vmul.f32 %v4499, 1.442695
        %v4594 = vpow.pop %v4593
        %v4595 = vmul.f32 %v4500, 1.442695
        %v4596 = vpow.pop %v4595
        %v4597 = vmul.f32 %v4501, 1.442695
        %v4598 = vpow.pop %v4597
        %v4599 = vmul.f32 %v4502, 1.442695
        %v4600 = vpow.pop %v4599
        %v4601 = vmul.f32 %v4503, 1.442695
        %v4602 = vpow.pop %v4601
        %v4603 = vmul.f32 %v4504, 1.442695
        %v4604 = vpow.pop %v4603
        %v4605 = vmul.f32 %v4505, 1.442695
        %v4606 = vpow.pop %v4605
        %v4607 = vmul.f32 %v4506, 1.442695
        %v4608 = vpow.pop %v4607
        %v4609 = vmul.f32 %v4507, 1.442695
        %v4610 = vpow.pop %v4609
        %v4611 = vmul.f32 %v4508, 1.442695
        %v4612 = vpow.pop %v4611
        %v4613 = vmul.f32 %v4509, 1.442695
        %v4614 = vpow.pop %v4613
        %v4615 = vmul.f32 %v4510, 1.442695
        %v4616 = vpow.pop %v4615
        %v4617 = vmul.f32 %v4511, 1.442695
        %v4618 = vpow.pop %v4617
        %v4619 = vmul.f32 %v4512, 1.442695
        %v4620 = vpow.pop %v4619
        %v4621 = vmul.f32 %v4513, 1.442695
        %v4622 = vpow.pop %v4621
        %v4623 = vmul.f32 %v4514, 1.442695
        %v4624 = vpow.pop %v4623
        %v4625 = vmul.f32 %v4515, 1.442695
        %v4626 = vpow.pop %v4625
        %v4627 = vmul.f32 %v4516, 1.442695
        %v4628 = vpow.pop %v4627
        %v4629 = vmul.f32 %v4517, 1.442695
        %v4630 = vpow.pop %v4629
        %v4631 = vmul.f32 %v4518, 1.442695
        %v4632 = vpow.pop %v4631
        %v4633 = vmul.f32 %v4519, 1.442695
        %v4634 = vpow.pop %v4633
        %v4635 = vmul.f32 %v4520, 1.442695
        %v4636 = vpow.pop %v4635
        %v4637 = vmul.f32 %v4521, 1.442695
        %v4638 = vpow.pop %v4637
        %v4639 = vmul.f32 %v4522, 1.442695
        %v4640 = vpow.pop %v4639
        %v4641 = vmul.f32 %v4523, 1.442695
        %v4642 = vpow.pop %v4641
        %v4643 = vmul.f32 %v4524, 1.442695
        %v4644 = vpow.pop %v4643
        %v4645 = vmul.f32 %v4525, 1.442695
        %v4646 = vpow.pop %v4645
        %v4647 = vmul.f32 %v4526, 1.442695
        %v4648 = vpow.pop %v4647
        %v4649 = vmul.f32 %v4527, 1.442695
        %v4650 = vpow.pop %v4649
        %v4651 = vmul.f32 %v4528, 1.442695
        %v4652 = vpow.pop %v4651
        %v4653 = vmul.f32 %v4529, 1.442695
        %v4654 = vpow.pop %v4653
        %v4655 = vmul.f32 %v4530, 1.442695
        %v4656 = vpow.pop %v4655
        %v4657 = vmul.f32 %v4531, 1.442695
        %v4658 = vpow.pop %v4657
        %v4659 = vmul.f32 %v4532, 1.442695
        %v4660 = vpow.pop %v4659
        %4661 = vadd.xlane.f32.xlu0 %v4534
        %v4662 = vpop.xlane.xlu0 %4661
        %4663 = vadd.xlane.f32.xlu0 %v4536
        %v4664 = vpop.xlane.xlu0 %4663
        %4665 = vadd.xlane.f32.xlu0 %v4538
        %v4666 = vpop.xlane.xlu0 %4665
        %4667 = vadd.xlane.f32.xlu0 %v4540
        %v4668 = vpop.xlane.xlu0 %4667
        %4669 = vadd.xlane.f32.xlu0 %v4542
        %v4670 = vpop.xlane.xlu0 %4669
        %4671 = vadd.xlane.f32.xlu0 %v4544
        %v4672 = vpop.xlane.xlu0 %4671
        %4673 = vadd.xlane.f32.xlu0 %v4546
        %v4674 = vpop.xlane.xlu0 %4673
        %4675 = vadd.xlane.f32.xlu0 %v4548
        %v4676 = vpop.xlane.xlu0 %4675
        %4677 = vadd.xlane.f32.xlu0 %v4550
        %v4678 = vpop.xlane.xlu0 %4677
        %4679 = vadd.xlane.f32.xlu0 %v4552
        %v4680 = vpop.xlane.xlu0 %4679
        %4681 = vadd.xlane.f32.xlu0 %v4554
        %v4682 = vpop.xlane.xlu0 %4681
        %4683 = vadd.xlane.f32.xlu0 %v4556
        %v4684 = vpop.xlane.xlu0 %4683
        %4685 = vadd.xlane.f32.xlu0 %v4558
        %v4686 = vpop.xlane.xlu0 %4685
        %4687 = vadd.xlane.f32.xlu0 %v4560
        %v4688 = vpop.xlane.xlu0 %4687
        %4689 = vadd.xlane.f32.xlu0 %v4562
        %v4690 = vpop.xlane.xlu0 %4689
        %4691 = vadd.xlane.f32.xlu0 %v4564
        %v4692 = vpop.xlane.xlu0 %4691
        %4693 = vadd.xlane.f32.xlu0 %v4566
        %v4694 = vpop.xlane.xlu0 %4693
        %4695 = vadd.xlane.f32.xlu0 %v4568
        %v4696 = vpop.xlane.xlu0 %4695
        %4697 = vadd.xlane.f32.xlu0 %v4570
        %v4698 = vpop.xlane.xlu0 %4697
        %4699 = vadd.xlane.f32.xlu0 %v4572
        %v4700 = vpop.xlane.xlu0 %4699
        %4701 = vadd.xlane.f32.xlu0 %v4574
        %v4702 = vpop.xlane.xlu0 %4701
        %4703 = vadd.xlane.f32.xlu0 %v4576
        %v4704 = vpop.xlane.xlu0 %4703
        %4705 = vadd.xlane.f32.xlu0 %v4578
        %v4706 = vpop.xlane.xlu0 %4705
        %4707 = vadd.xlane.f32.xlu0 %v4580
        %v4708 = vpop.xlane.xlu0 %4707
        %4709 = vadd.xlane.f32.xlu0 %v4582
        %v4710 = vpop.xlane.xlu0 %4709
        %4711 = vadd.xlane.f32.xlu0 %v4584
        %v4712 = vpop.xlane.xlu0 %4711
        %4713 = vadd.xlane.f32.xlu0 %v4586
        %v4714 = vpop.xlane.xlu0 %4713
        %4715 = vadd.xlane.f32.xlu0 %v4588
        %v4716 = vpop.xlane.xlu0 %4715
        %4717 = vadd.xlane.f32.xlu0 %v4590
        %v4718 = vpop.xlane.xlu0 %4717
        %4719 = vadd.xlane.f32.xlu0 %v4592
        %v4720 = vpop.xlane.xlu0 %4719
        %4721 = vadd.xlane.f32.xlu0 %v4594
        %v4722 = vpop.xlane.xlu0 %4721
        %4723 = vadd.xlane.f32.xlu0 %v4596
        %v4724 = vpop.xlane.xlu0 %4723
        %4725 = vadd.xlane.f32.xlu0 %v4598
        %v4726 = vpop.xlane.xlu0 %4725
        %4727 = vadd.xlane.f32.xlu0 %v4600
        %v4728 = vpop.xlane.xlu0 %4727
        %4729 = vadd.xlane.f32.xlu0 %v4602
        %v4730 = vpop.xlane.xlu0 %4729
        %4731 = vadd.xlane.f32.xlu0 %v4604
        %v4732 = vpop.xlane.xlu0 %4731
        %4733 = vadd.xlane.f32.xlu0 %v4606
        %v4734 = vpop.xlane.xlu0 %4733
        %4735 = vadd.xlane.f32.xlu0 %v4608
        %v4736 = vpop.xlane.xlu0 %4735
        %4737 = vadd.xlane.f32.xlu0 %v4610
        %v4738 = vpop.xlane.xlu0 %4737
        %4739 = vadd.xlane.f32.xlu0 %v4612
        %v4740 = vpop.xlane.xlu0 %4739
        %4741 = vadd.xlane.f32.xlu0 %v4614
        %v4742 = vpop.xlane.xlu0 %4741
        %4743 = vadd.xlane.f32.xlu0 %v4616
        %v4744 = vpop.xlane.xlu0 %4743
        %4745 = vadd.xlane.f32.xlu0 %v4618
        %v4746 = vpop.xlane.xlu0 %4745
        %4747 = vadd.xlane.f32.xlu0 %v4620
        %v4748 = vpop.xlane.xlu0 %4747
        %4749 = vadd.xlane.f32.xlu0 %v4622
        %v4750 = vpop.xlane.xlu0 %4749
        %4751 = vadd.xlane.f32.xlu0 %v4624
        %v4752 = vpop.xlane.xlu0 %4751
        %4753 = vadd.xlane.f32.xlu0 %v4626
        %v4754 = vpop.xlane.xlu0 %4753
        %4755 = vadd.xlane.f32.xlu0 %v4628
        %v4756 = vpop.xlane.xlu0 %4755
        %4757 = vadd.xlane.f32.xlu0 %v4630
        %v4758 = vpop.xlane.xlu0 %4757
        %4759 = vadd.xlane.f32.xlu0 %v4632
        %v4760 = vpop.xlane.xlu0 %4759
        %4761 = vadd.xlane.f32.xlu0 %v4634
        %v4762 = vpop.xlane.xlu0 %4761
        %4763 = vadd.xlane.f32.xlu0 %v4636
        %v4764 = vpop.xlane.xlu0 %4763
        %4765 = vadd.xlane.f32.xlu0 %v4638
        %v4766 = vpop.xlane.xlu0 %4765
        %4767 = vadd.xlane.f32.xlu0 %v4640
        %v4768 = vpop.xlane.xlu0 %4767
        %4769 = vadd.xlane.f32.xlu0 %v4642
        %v4770 = vpop.xlane.xlu0 %4769
        %4771 = vadd.xlane.f32.xlu0 %v4644
        %v4772 = vpop.xlane.xlu0 %4771
        %4773 = vadd.xlane.f32.xlu0 %v4646
        %v4774 = vpop.xlane.xlu0 %4773
        %4775 = vadd.xlane.f32.xlu0 %v4648
        %v4776 = vpop.xlane.xlu0 %4775
        %4777 = vadd.xlane.f32.xlu0 %v4650
        %v4778 = vpop.xlane.xlu0 %4777
        %4779 = vadd.xlane.f32.xlu0 %v4652
        %v4780 = vpop.xlane.xlu0 %4779
        %4781 = vadd.xlane.f32.xlu0 %v4654
        %v4782 = vpop.xlane.xlu0 %4781
        %4783 = vadd.xlane.f32.xlu0 %v4656
        %v4784 = vpop.xlane.xlu0 %4783
        %4785 = vadd.xlane.f32.xlu0 %v4658
        %v4786 = vpop.xlane.xlu0 %4785
        %4787 = vadd.xlane.f32.xlu0 %v4660
        %v4788 = vpop.xlane.xlu0 %4787
        %v4789 = vrcp.pop %v4662
        %v4790 = vrcp.pop %v4664
        %v4791 = vrcp.pop %v4666
        %v4792 = vrcp.pop %v4668
        %v4793 = vrcp.pop %v4670
        %v4794 = vrcp.pop %v4672
        %v4795 = vrcp.pop %v4674
        %v4796 = vrcp.pop %v4676
        %v4797 = vrcp.pop %v4678
        %v4798 = vrcp.pop %v4680
        %v4799 = vrcp.pop %v4682
        %v4800 = vrcp.pop %v4684
        %v4801 = vrcp.pop %v4686
        %v4802 = vrcp.pop %v4688
        %v4803 = vrcp.pop %v4690
        %v4804 = vrcp.pop %v4692
        %v4805 = vrcp.pop %v4694
        %v4806 = vrcp.pop %v4696
        %v4807 = vrcp.pop %v4698
        %v4808 = vrcp.pop %v4700
        %v4809 = vrcp.pop %v4702
        %v4810 = vrcp.pop %v4704
        %v4811 = vrcp.pop %v4706
        %v4812 = vrcp.pop %v4708
        %v4813 = vrcp.pop %v4710
        %v4814 = vrcp.pop %v4712
        %v4815 = vrcp.pop %v4714
        %v4816 = vrcp.pop %v4716
        %v4817 = vrcp.pop %v4718
        %v4818 = vrcp.pop %v4720
        %v4819 = vrcp.pop %v4722
        %v4820 = vrcp.pop %v4724
        %v4821 = vrcp.pop %v4726
        %v4822 = vrcp.pop %v4728
        %v4823 = vrcp.pop %v4730
        %v4824 = vrcp.pop %v4732
        %v4825 = vrcp.pop %v4734
        %v4826 = vrcp.pop %v4736
        %v4827 = vrcp.pop %v4738
        %v4828 = vrcp.pop %v4740
        %v4829 = vrcp.pop %v4742
        %v4830 = vrcp.pop %v4744
        %v4831 = vrcp.pop %v4746
        %v4832 = vrcp.pop %v4748
        %v4833 = vrcp.pop %v4750
        %v4834 = vrcp.pop %v4752
        %v4835 = vrcp.pop %v4754
        %v4836 = vrcp.pop %v4756
        %v4837 = vrcp.pop %v4758
        %v4838 = vrcp.pop %v4760
        %v4839 = vrcp.pop %v4762
        %v4840 = vrcp.pop %v4764
        %v4841 = vrcp.pop %v4766
        %v4842 = vrcp.pop %v4768
        %v4843 = vrcp.pop %v4770
        %v4844 = vrcp.pop %v4772
        %v4845 = vrcp.pop %v4774
        %v4846 = vrcp.pop %v4776
        %v4847 = vrcp.pop %v4778
        %v4848 = vrcp.pop %v4780
        %v4849 = vrcp.pop %v4782
        %v4850 = vrcp.pop %v4784
        %v4851 = vrcp.pop %v4786
        %v4852 = vrcp.pop %v4788
        %v4853 = vmul.f32 %v4662, %v4789
        %v4854 = vmul.f32 %v4664, %v4790
        %v4855 = vmul.f32 %v4666, %v4791
        %v4856 = vmul.f32 %v4668, %v4792
        %v4857 = vmul.f32 %v4670, %v4793
        %v4858 = vmul.f32 %v4672, %v4794
        %v4859 = vmul.f32 %v4674, %v4795
        %v4860 = vmul.f32 %v4676, %v4796
        %v4861 = vmul.f32 %v4678, %v4797
        %v4862 = vmul.f32 %v4680, %v4798
        %v4863 = vmul.f32 %v4682, %v4799
        %v4864 = vmul.f32 %v4684, %v4800
        %v4865 = vmul.f32 %v4686, %v4801
        %v4866 = vmul.f32 %v4688, %v4802
        %v4867 = vmul.f32 %v4690, %v4803
        %v4868 = vmul.f32 %v4692, %v4804
        %v4869 = vmul.f32 %v4694, %v4805
        %v4870 = vmul.f32 %v4696, %v4806
        %v4871 = vmul.f32 %v4698, %v4807
        %v4872 = vmul.f32 %v4700, %v4808
        %v4873 = vmul.f32 %v4702, %v4809
        %v4874 = vmul.f32 %v4704, %v4810
        %v4875 = vmul.f32 %v4706, %v4811
        %v4876 = vmul.f32 %v4708, %v4812
        %v4877 = vmul.f32 %v4710, %v4813
        %v4878 = vmul.f32 %v4712, %v4814
        %v4879 = vmul.f32 %v4714, %v4815
        %v4880 = vmul.f32 %v4716, %v4816
        %v4881 = vmul.f32 %v4718, %v4817
        %v4882 = vmul.f32 %v4720, %v4818
        %v4883 = vmul.f32 %v4722, %v4819
        %v4884 = vmul.f32 %v4724, %v4820
        %v4885 = vmul.f32 %v4726, %v4821
        %v4886 = vmul.f32 %v4728, %v4822
        %v4887 = vmul.f32 %v4730, %v4823
        %v4888 = vmul.f32 %v4732, %v4824
        %v4889 = vmul.f32 %v4734, %v4825
        %v4890 = vmul.f32 %v4736, %v4826
        %v4891 = vmul.f32 %v4738, %v4827
        %v4892 = vmul.f32 %v4740, %v4828
        %v4893 = vmul.f32 %v4742, %v4829
        %v4894 = vmul.f32 %v4744, %v4830
        %v4895 = vmul.f32 %v4746, %v4831
        %v4896 = vmul.f32 %v4748, %v4832
        %v4897 = vmul.f32 %v4750, %v4833
        %v4898 = vmul.f32 %v4752, %v4834
        %v4899 = vmul.f32 %v4754, %v4835
        %v4900 = vmul.f32 %v4756, %v4836
        %v4901 = vmul.f32 %v4758, %v4837
        %v4902 = vmul.f32 %v4760, %v4838
        %v4903 = vmul.f32 %v4762, %v4839
        %v4904 = vmul.f32 %v4764, %v4840
        %v4905 = vmul.f32 %v4766, %v4841
        %v4906 = vmul.f32 %v4768, %v4842
        %v4907 = vmul.f32 %v4770, %v4843
        %v4908 = vmul.f32 %v4772, %v4844
        %v4909 = vmul.f32 %v4774, %v4845
        %v4910 = vmul.f32 %v4776, %v4846
        %v4911 = vmul.f32 %v4778, %v4847
        %v4912 = vmul.f32 %v4780, %v4848
        %v4913 = vmul.f32 %v4782, %v4849
        %v4914 = vmul.f32 %v4784, %v4850
        %v4915 = vmul.f32 %v4786, %v4851
        %v4916 = vmul.f32 %v4788, %v4852
        %v4917 = vsub.f32 2.0, %v4853
        %v4918 = vsub.f32 2.0, %v4854
        %v4919 = vsub.f32 2.0, %v4855
        %v4920 = vsub.f32 2.0, %v4856
        %v4921 = vsub.f32 2.0, %v4857
        %v4922 = vsub.f32 2.0, %v4858
        %v4923 = vsub.f32 2.0, %v4859
        %v4924 = vsub.f32 2.0, %v4860
        %v4925 = vsub.f32 2.0, %v4861
        %v4926 = vsub.f32 2.0, %v4862
        %v4927 = vsub.f32 2.0, %v4863
        %v4928 = vsub.f32 2.0, %v4864
        %v4929 = vsub.f32 2.0, %v4865
        %v4930 = vsub.f32 2.0, %v4866
        %v4931 = vsub.f32 2.0, %v4867
        %v4932 = vsub.f32 2.0, %v4868
        %v4933 = vsub.f32 2.0, %v4869
        %v4934 = vsub.f32 2.0, %v4870
        %v4935 = vsub.f32 2.0, %v4871
        %v4936 = vsub.f32 2.0, %v4872
        %v4937 = vsub.f32 2.0, %v4873
        %v4938 = vsub.f32 2.0, %v4874
        %v4939 = vsub.f32 2.0, %v4875
        %v4940 = vsub.f32 2.0, %v4876
        %v4941 = vsub.f32 2.0, %v4877
        %v4942 = vsub.f32 2.0, %v4878
        %v4943 = vsub.f32 2.0, %v4879
        %v4944 = vsub.f32 2.0, %v4880
        %v4945 = vsub.f32 2.0, %v4881
        %v4946 = vsub.f32 2.0, %v4882
        %v4947 = vsub.f32 2.0, %v4883
        %v4948 = vsub.f32 2.0, %v4884
        %v4949 = vsub.f32 2.0, %v4885
        %v4950 = vsub.f32 2.0, %v4886
        %v4951 = vsub.f32 2.0, %v4887
        %v4952 = vsub.f32 2.0, %v4888
        %v4953 = vsub.f32 2.0, %v4889
        %v4954 = vsub.f32 2.0, %v4890
        %v4955 = vsub.f32 2.0, %v4891
        %v4956 = vsub.f32 2.0, %v4892
        %v4957 = vsub.f32 2.0, %v4893
        %v4958 = vsub.f32 2.0, %v4894
        %v4959 = vsub.f32 2.0, %v4895
        %v4960 = vsub.f32 2.0, %v4896
        %v4961 = vsub.f32 2.0, %v4897
        %v4962 = vsub.f32 2.0, %v4898
        %v4963 = vsub.f32 2.0, %v4899
        %v4964 = vsub.f32 2.0, %v4900
        %v4965 = vsub.f32 2.0, %v4901
        %v4966 = vsub.f32 2.0, %v4902
        %v4967 = vsub.f32 2.0, %v4903
        %v4968 = vsub.f32 2.0, %v4904
        %v4969 = vsub.f32 2.0, %v4905
        %v4970 = vsub.f32 2.0, %v4906
        %v4971 = vsub.f32 2.0, %v4907
        %v4972 = vsub.f32 2.0, %v4908
        %v4973 = vsub.f32 2.0, %v4909
        %v4974 = vsub.f32 2.0, %v4910
        %v4975 = vsub.f32 2.0, %v4911
        %v4976 = vsub.f32 2.0, %v4912
        %v4977 = vsub.f32 2.0, %v4913
        %v4978 = vsub.f32 2.0, %v4914
        %v4979 = vsub.f32 2.0, %v4915
        %v4980 = vsub.f32 2.0, %v4916
        %v4981 = vmul.f32 %v4789, %v4917
        %v4982 = vmul.f32 %v4790, %v4918
        %v4983 = vmul.f32 %v4791, %v4919
        %v4984 = vmul.f32 %v4792, %v4920
        %v4985 = vmul.f32 %v4793, %v4921
        %v4986 = vmul.f32 %v4794, %v4922
        %v4987 = vmul.f32 %v4795, %v4923
        %v4988 = vmul.f32 %v4796, %v4924
        %v4989 = vmul.f32 %v4797, %v4925
        %v4990 = vmul.f32 %v4798, %v4926
        %v4991 = vmul.f32 %v4799, %v4927
        %v4992 = vmul.f32 %v4800, %v4928
        %v4993 = vmul.f32 %v4801, %v4929
        %v4994 = vmul.f32 %v4802, %v4930
        %v4995 = vmul.f32 %v4803, %v4931
        %v4996 = vmul.f32 %v4804, %v4932
        %v4997 = vmul.f32 %v4805, %v4933
        %v4998 = vmul.f32 %v4806, %v4934
        %v4999 = vmul.f32 %v4807, %v4935
        %v5000 = vmul.f32 %v4808, %v4936
        %v5001 = vmul.f32 %v4809, %v4937
        %v5002 = vmul.f32 %v4810, %v4938
        %v5003 = vmul.f32 %v4811, %v4939
        %v5004 = vmul.f32 %v4812, %v4940
        %v5005 = vmul.f32 %v4813, %v4941
        %v5006 = vmul.f32 %v4814, %v4942
        %v5007 = vmul.f32 %v4815, %v4943
        %v5008 = vmul.f32 %v4816, %v4944
        %v5009 = vmul.f32 %v4817, %v4945
        %v5010 = vmul.f32 %v4818, %v4946
        %v5011 = vmul.f32 %v4819, %v4947
        %v5012 = vmul.f32 %v4820, %v4948
        %v5013 = vmul.f32 %v4821, %v4949
        %v5014 = vmul.f32 %v4822, %v4950
        %v5015 = vmul.f32 %v4823, %v4951
        %v5016 = vmul.f32 %v4824, %v4952
        %v5017 = vmul.f32 %v4825, %v4953
        %v5018 = vmul.f32 %v4826, %v4954
        %v5019 = vmul.f32 %v4827, %v4955
        %v5020 = vmul.f32 %v4828, %v4956
        %v5021 = vmul.f32 %v4829, %v4957
        %v5022 = vmul.f32 %v4830, %v4958
        %v5023 = vmul.f32 %v4831, %v4959
        %v5024 = vmul.f32 %v4832, %v4960
        %v5025 = vmul.f32 %v4833, %v4961
        %v5026 = vmul.f32 %v4834, %v4962
        %v5027 = vmul.f32 %v4835, %v4963
        %v5028 = vmul.f32 %v4836, %v4964
        %v5029 = vmul.f32 %v4837, %v4965
        %v5030 = vmul.f32 %v4838, %v4966
        %v5031 = vmul.f32 %v4839, %v4967
        %v5032 = vmul.f32 %v4840, %v4968
        %v5033 = vmul.f32 %v4841, %v4969
        %v5034 = vmul.f32 %v4842, %v4970
        %v5035 = vmul.f32 %v4843, %v4971
        %v5036 = vmul.f32 %v4844, %v4972
        %v5037 = vmul.f32 %v4845, %v4973
        %v5038 = vmul.f32 %v4846, %v4974
        %v5039 = vmul.f32 %v4847, %v4975
        %v5040 = vmul.f32 %v4848, %v4976
        %v5041 = vmul.f32 %v4849, %v4977
        %v5042 = vmul.f32 %v4850, %v4978
        %v5043 = vmul.f32 %v4851, %v4979
        %v5044 = vmul.f32 %v4852, %v4980
        %v5045 = vmul.f32 %v4534, %v4981
        %v5046 = vmul.f32 %v4536, %v4982
        %v5047 = vmul.f32 %v4538, %v4983
        %v5048 = vmul.f32 %v4540, %v4984
        %v5049 = vmul.f32 %v4542, %v4985
        %v5050 = vmul.f32 %v4544, %v4986
        %v5051 = vmul.f32 %v4546, %v4987
        %v5052 = vmul.f32 %v4548, %v4988
        %v5053 = vmul.f32 %v4550, %v4989
        %v5054 = vmul.f32 %v4552, %v4990
        %v5055 = vmul.f32 %v4554, %v4991
        %v5056 = vmul.f32 %v4556, %v4992
        %v5057 = vmul.f32 %v4558, %v4993
        %v5058 = vmul.f32 %v4560, %v4994
        %v5059 = vmul.f32 %v4562, %v4995
        %v5060 = vmul.f32 %v4564, %v4996
        %v5061 = vmul.f32 %v4566, %v4997
        %v5062 = vmul.f32 %v4568, %v4998
        %v5063 = vmul.f32 %v4570, %v4999
        %v5064 = vmul.f32 %v4572, %v5000
        %v5065 = vmul.f32 %v4574, %v5001
        %v5066 = vmul.f32 %v4576, %v5002
        %v5067 = vmul.f32 %v4578, %v5003
        %v5068 = vmul.f32 %v4580, %v5004
        %v5069 = vmul.f32 %v4582, %v5005
        %v5070 = vmul.f32 %v4584, %v5006
        %v5071 = vmul.f32 %v4586, %v5007
        %v5072 = vmul.f32 %v4588, %v5008
        %v5073 = vmul.f32 %v4590, %v5009
        %v5074 = vmul.f32 %v4592, %v5010
        %v5075 = vmul.f32 %v4594, %v5011
        %v5076 = vmul.f32 %v4596, %v5012
        %v5077 = vmul.f32 %v4598, %v5013
        %v5078 = vmul.f32 %v4600, %v5014
        %v5079 = vmul.f32 %v4602, %v5015
        %v5080 = vmul.f32 %v4604, %v5016
        %v5081 = vmul.f32 %v4606, %v5017
        %v5082 = vmul.f32 %v4608, %v5018
        %v5083 = vmul.f32 %v4610, %v5019
        %v5084 = vmul.f32 %v4612, %v5020
        %v5085 = vmul.f32 %v4614, %v5021
        %v5086 = vmul.f32 %v4616, %v5022
        %v5087 = vmul.f32 %v4618, %v5023
        %v5088 = vmul.f32 %v4620, %v5024
        %v5089 = vmul.f32 %v4622, %v5025
        %v5090 = vmul.f32 %v4624, %v5026
        %v5091 = vmul.f32 %v4626, %v5027
        %v5092 = vmul.f32 %v4628, %v5028
        %v5093 = vmul.f32 %v4630, %v5029
        %v5094 = vmul.f32 %v4632, %v5030
        %v5095 = vmul.f32 %v4634, %v5031
        %v5096 = vmul.f32 %v4636, %v5032
        %v5097 = vmul.f32 %v4638, %v5033
        %v5098 = vmul.f32 %v4640, %v5034
        %v5099 = vmul.f32 %v4642, %v5035
        %v5100 = vmul.f32 %v4644, %v5036
        %v5101 = vmul.f32 %v4646, %v5037
        %v5102 = vmul.f32 %v4648, %v5038
        %v5103 = vmul.f32 %v4650, %v5039
        %v5104 = vmul.f32 %v4652, %v5040
        %v5105 = vmul.f32 %v4654, %v5041
        %v5106 = vmul.f32 %v4656, %v5042
        %v5107 = vmul.f32 %v4658, %v5043
        %v5108 = vmul.f32 %v4660, %v5044
        %v5109 = vpack.c.bf16 %v5045, %v5045
        %v5110 = vpack.c.bf16 %v5046, %v5046
        %v5111 = vpack.c.bf16 %v5047, %v5047
        %v5112 = vpack.c.bf16 %v5048, %v5048
        %v5113 = vpack.c.bf16 %v5049, %v5049
        %v5114 = vpack.c.bf16 %v5050, %v5050
        %v5115 = vpack.c.bf16 %v5051, %v5051
        %v5116 = vpack.c.bf16 %v5052, %v5052
        %v5117 = vpack.c.bf16 %v5053, %v5053
        %v5118 = vpack.c.bf16 %v5054, %v5054
        %v5119 = vpack.c.bf16 %v5055, %v5055
        %v5120 = vpack.c.bf16 %v5056, %v5056
        %v5121 = vpack.c.bf16 %v5057, %v5057
        %v5122 = vpack.c.bf16 %v5058, %v5058
        %v5123 = vpack.c.bf16 %v5059, %v5059
        %v5124 = vpack.c.bf16 %v5060, %v5060
        %v5125 = vpack.c.bf16 %v5061, %v5061
        %v5126 = vpack.c.bf16 %v5062, %v5062
        %v5127 = vpack.c.bf16 %v5063, %v5063
        %v5128 = vpack.c.bf16 %v5064, %v5064
        %v5129 = vpack.c.bf16 %v5065, %v5065
        %v5130 = vpack.c.bf16 %v5066, %v5066
        %v5131 = vpack.c.bf16 %v5067, %v5067
        %v5132 = vpack.c.bf16 %v5068, %v5068
        %v5133 = vpack.c.bf16 %v5069, %v5069
        %v5134 = vpack.c.bf16 %v5070, %v5070
        %v5135 = vpack.c.bf16 %v5071, %v5071
        %v5136 = vpack.c.bf16 %v5072, %v5072
        %v5137 = vpack.c.bf16 %v5073, %v5073
        %v5138 = vpack.c.bf16 %v5074, %v5074
        %v5139 = vpack.c.bf16 %v5075, %v5075
        %v5140 = vpack.c.bf16 %v5076, %v5076
        %v5141 = vpack.c.bf16 %v5077, %v5077
        %v5142 = vpack.c.bf16 %v5078, %v5078
        %v5143 = vpack.c.bf16 %v5079, %v5079
        %v5144 = vpack.c.bf16 %v5080, %v5080
        %v5145 = vpack.c.bf16 %v5081, %v5081
        %v5146 = vpack.c.bf16 %v5082, %v5082
        %v5147 = vpack.c.bf16 %v5083, %v5083
        %v5148 = vpack.c.bf16 %v5084, %v5084
        %v5149 = vpack.c.bf16 %v5085, %v5085
        %v5150 = vpack.c.bf16 %v5086, %v5086
        %v5151 = vpack.c.bf16 %v5087, %v5087
        %v5152 = vpack.c.bf16 %v5088, %v5088
        %v5153 = vpack.c.bf16 %v5089, %v5089
        %v5154 = vpack.c.bf16 %v5090, %v5090
        %v5155 = vpack.c.bf16 %v5091, %v5091
        %v5156 = vpack.c.bf16 %v5092, %v5092
        %v5157 = vpack.c.bf16 %v5093, %v5093
        %v5158 = vpack.c.bf16 %v5094, %v5094
        %v5159 = vpack.c.bf16 %v5095, %v5095
        %v5160 = vpack.c.bf16 %v5096, %v5096
        %v5161 = vpack.c.bf16 %v5097, %v5097
        %v5162 = vpack.c.bf16 %v5098, %v5098
        %v5163 = vpack.c.bf16 %v5099, %v5099
        %v5164 = vpack.c.bf16 %v5100, %v5100
        %v5165 = vpack.c.bf16 %v5101, %v5101
        %v5166 = vpack.c.bf16 %v5102, %v5102
        %v5167 = vpack.c.bf16 %v5103, %v5103
        %v5168 = vpack.c.bf16 %v5104, %v5104
        %v5169 = vpack.c.bf16 %v5105, %v5105
        %v5170 = vpack.c.bf16 %v5106, %v5106
        %v5171 = vpack.c.bf16 %v5107, %v5107
        %v5172 = vpack.c.bf16 %v5108, %v5108
        %v5173 = vpack.c.bf16 %v3431, %v3431
        %v5174 = vpack.c.bf16 %v3433, %v3433
        %v5175 = vpack.c.bf16 %v3436, %v3436
        %v5176 = vpack.c.bf16 %v3438, %v3438
        %v5177 = vpack.c.bf16 %v3441, %v3441
        %v5178 = vpack.c.bf16 %v3443, %v3443
        %v5179 = vpack.c.bf16 %v3446, %v3446
        %v5180 = vpack.c.bf16 %v3448, %v3448
        %v5181 = vpack.c.bf16 %v3451, %v3451
        %v5182 = vpack.c.bf16 %v3453, %v3453
        %v5183 = vpack.c.bf16 %v3456, %v3456
        %v5184 = vpack.c.bf16 %v3458, %v3458
        %v5185 = vpack.c.bf16 %v3461, %v3461
        %v5186 = vpack.c.bf16 %v3463, %v3463
        %v5187 = vpack.c.bf16 %v3466, %v3466
        %v5188 = vpack.c.bf16 %v3468, %v3468
        %v5205 = vunpack.c.l.b16 %v5109
        %v5206 = vunpack.c.l.b16 %v5110
        %v5207 = vunpack.c.l.b16 %v5111
        %v5208 = vunpack.c.l.b16 %v5112
        %v5209 = vunpack.c.l.b16 %v5113
        %v5210 = vunpack.c.l.b16 %v5114
        %v5211 = vunpack.c.l.b16 %v5115
        %v5212 = vunpack.c.l.b16 %v5116
        %v5213 = vunpack.c.l.b16 %v5117
        %v5214 = vunpack.c.l.b16 %v5118
        %v5215 = vunpack.c.l.b16 %v5119
        %v5216 = vunpack.c.l.b16 %v5120
        %v5217 = vunpack.c.l.b16 %v5121
        %v5218 = vunpack.c.l.b16 %v5122
        %v5219 = vunpack.c.l.b16 %v5123
        %v5220 = vunpack.c.l.b16 %v5124
        %v5221 = vpack.c.b16 %v5206, %v5205
        %v5222 = vpack.c.b16 %v5208, %v5207
        %v5223 = vpack.c.b16 %v5210, %v5209
        %v5224 = vpack.c.b16 %v5212, %v5211
        %v5225 = vpack.c.b16 %v5214, %v5213
        %v5226 = vpack.c.b16 %v5216, %v5215
        %v5227 = vpack.c.b16 %v5218, %v5217
        %v5228 = vpack.c.b16 %v5220, %v5219
        %v5253 = vunpack.c.l.b16 %v5173
        %v5254 = vunpack.c.l.b16 %v5174
        %v5255 = vunpack.c.l.b16 %v5175
        %v5256 = vunpack.c.l.b16 %v5176
        %v5257 = vunpack.c.l.b16 %v5177
        %v5258 = vunpack.c.l.b16 %v5178
        %v5259 = vunpack.c.l.b16 %v5179
        %v5260 = vunpack.c.l.b16 %v5180
        %v5261 = vunpack.c.l.b16 %v5181
        %v5262 = vunpack.c.l.b16 %v5182
        %v5263 = vunpack.c.l.b16 %v5183
        %v5264 = vunpack.c.l.b16 %v5184
        %v5265 = vunpack.c.l.b16 %v5185
        %v5266 = vunpack.c.l.b16 %v5186
        %v5267 = vunpack.c.l.b16 %v5187
        %v5268 = vunpack.c.l.b16 %v5188
        %v5269 = vpack.c.b16 %v5254, %v5253
        %v5270 = vpack.c.b16 %v5256, %v5255
        %v5271 = vpack.c.b16 %v5258, %v5257
        %v5272 = vpack.c.b16 %v5260, %v5259
        %v5273 = vpack.c.b16 %v5262, %v5261
        %v5274 = vpack.c.b16 %v5264, %v5263
        %v5275 = vpack.c.b16 %v5266, %v5265
        %v5276 = vpack.c.b16 %v5268, %v5267
        %5285 = vmatpush.bf16.msra.mxu0 %v5276
        %5286 = vmatpush.bf16.msra.mxu0 %v5275
        %5287 = vmatpush.bf16.msra.mxu0 %v5274
        %5288 = vmatpush.bf16.msra.mxu0 %v5273
        %5289 = vmatpush.bf16.msra.mxu0 %v5272
        %5290 = vmatpush.bf16.msra.mxu0 %v5271
        %5291 = vmatpush.bf16.msra.mxu0 %v5270
        %5292 = vmatpush.bf16.msra.mxu0 %v5269
        %5293 = vmatmul.bf16.gmra.mxu0 %v5221
        %v5294 = vpop.f32.mrf.mxu0
        %v5295 = vadd.f32 0.0, %v5294
        %v5296 = vpop.f32.mrf.mxu0
        %v5297 = vadd.f32 0.0, %v5296
        %5298 = vmatmul.bf16.gmra.mxu0 %v5222
        %v5299 = vpop.f32.mrf.mxu0
        %v5300 = vadd.f32 0.0, %v5299
        %v5301 = vpop.f32.mrf.mxu0
        %v5302 = vadd.f32 0.0, %v5301
        %5303 = vmatmul.bf16.gmra.mxu0 %v5223
        %v5304 = vpop.f32.mrf.mxu0
        %v5305 = vadd.f32 0.0, %v5304
        %v5306 = vpop.f32.mrf.mxu0
        %v5307 = vadd.f32 0.0, %v5306
        %5308 = vmatmul.bf16.gmra.mxu0 %v5224
        %v5309 = vpop.f32.mrf.mxu0
        %v5310 = vadd.f32 0.0, %v5309
        %v5311 = vpop.f32.mrf.mxu0
        %v5312 = vadd.f32 0.0, %v5311
        %5313 = vmatmul.bf16.gmra.mxu0 %v5225
        %v5314 = vpop.f32.mrf.mxu0
        %v5315 = vadd.f32 0.0, %v5314
        %v5316 = vpop.f32.mrf.mxu0
        %v5317 = vadd.f32 0.0, %v5316
        %5318 = vmatmul.bf16.gmra.mxu0 %v5226
        %v5319 = vpop.f32.mrf.mxu0
        %v5320 = vadd.f32 0.0, %v5319
        %v5321 = vpop.f32.mrf.mxu0
        %v5322 = vadd.f32 0.0, %v5321
        %5323 = vmatmul.bf16.gmra.mxu0 %v5227
        %v5324 = vpop.f32.mrf.mxu0
        %v5325 = vadd.f32 0.0, %v5324
        %v5326 = vpop.f32.mrf.mxu0
        %v5327 = vadd.f32 0.0, %v5326
        %5328 = vmatmul.bf16.gmra.mxu0 %v5228
        %v5329 = vpop.f32.mrf.mxu0
        %v5330 = vadd.f32 0.0, %v5329
        %v5331 = vpop.f32.mrf.mxu0
        %v5332 = vadd.f32 0.0, %v5331
        %5333 = vdwg.mxu0
        %v5350 = vunpack.c.l.b16 %v5125
        %v5351 = vunpack.c.l.b16 %v5126
        %v5352 = vunpack.c.l.b16 %v5127
        %v5353 = vunpack.c.l.b16 %v5128
        %v5354 = vunpack.c.l.b16 %v5129
        %v5355 = vunpack.c.l.b16 %v5130
        %v5356 = vunpack.c.l.b16 %v5131
        %v5357 = vunpack.c.l.b16 %v5132
        %v5358 = vunpack.c.l.b16 %v5133
        %v5359 = vunpack.c.l.b16 %v5134
        %v5360 = vunpack.c.l.b16 %v5135
        %v5361 = vunpack.c.l.b16 %v5136
        %v5362 = vunpack.c.l.b16 %v5137
        %v5363 = vunpack.c.l.b16 %v5138
        %v5364 = vunpack.c.l.b16 %v5139
        %v5365 = vunpack.c.l.b16 %v5140
        %v5366 = vpack.c.b16 %v5351, %v5350
        %v5367 = vpack.c.b16 %v5353, %v5352
        %v5368 = vpack.c.b16 %v5355, %v5354
        %v5369 = vpack.c.b16 %v5357, %v5356
        %v5370 = vpack.c.b16 %v5359, %v5358
        %v5371 = vpack.c.b16 %v5361, %v5360
        %v5372 = vpack.c.b16 %v5363, %v5362
        %v5373 = vpack.c.b16 %v5365, %v5364
        %5382 = vrot.lane.b32.xlu0 %v5269, 112
        %v5383 = vpop.permute.xlu0 %5382
        %5384 = vrot.lane.b32.xlu0 %v5270, 112
        %v5385 = vpop.permute.xlu0 %5384
        %5386 = vrot.lane.b32.xlu0 %v5271, 112
        %v5387 = vpop.permute.xlu0 %5386
        %5388 = vrot.lane.b32.xlu0 %v5272, 112
        %v5389 = vpop.permute.xlu0 %5388
        %5390 = vrot.lane.b32.xlu0 %v5273, 112
        %v5391 = vpop.permute.xlu0 %5390
        %5392 = vrot.lane.b32.xlu0 %v5274, 112
        %v5393 = vpop.permute.xlu0 %5392
        %5394 = vrot.lane.b32.xlu0 %v5275, 112
        %v5395 = vpop.permute.xlu0 %5394
        %5396 = vrot.lane.b32.xlu0 %v5276, 112
        %v5397 = vpop.permute.xlu0 %5396
        %5406 = vmatpush.bf16.msra.mxu0 %v5397
        %5407 = vmatpush.bf16.msra.mxu0 %v5395
        %5408 = vmatpush.bf16.msra.mxu0 %v5393
        %5409 = vmatpush.bf16.msra.mxu0 %v5391
        %5410 = vmatpush.bf16.msra.mxu0 %v5389
        %5411 = vmatpush.bf16.msra.mxu0 %v5387
        %5412 = vmatpush.bf16.msra.mxu0 %v5385
        %5413 = vmatpush.bf16.msra.mxu0 %v5383
        %5414 = vmatmul.bf16.gmra.mxu0 %v5366
        %v5415 = vpop.f32.mrf.mxu0
        %v5416 = vadd.f32 0.0, %v5415
        %v5417 = vpop.f32.mrf.mxu0
        %v5418 = vadd.f32 0.0, %v5417
        %5419 = vmatmul.bf16.gmra.mxu0 %v5367
        %v5420 = vpop.f32.mrf.mxu0
        %v5421 = vadd.f32 0.0, %v5420
        %v5422 = vpop.f32.mrf.mxu0
        %v5423 = vadd.f32 0.0, %v5422
        %5424 = vmatmul.bf16.gmra.mxu0 %v5368
        %v5425 = vpop.f32.mrf.mxu0
        %v5426 = vadd.f32 0.0, %v5425
        %v5427 = vpop.f32.mrf.mxu0
        %v5428 = vadd.f32 0.0, %v5427
        %5429 = vmatmul.bf16.gmra.mxu0 %v5369
        %v5430 = vpop.f32.mrf.mxu0
        %v5431 = vadd.f32 0.0, %v5430
        %v5432 = vpop.f32.mrf.mxu0
        %v5433 = vadd.f32 0.0, %v5432
        %5434 = vmatmul.bf16.gmra.mxu0 %v5370
        %v5435 = vpop.f32.mrf.mxu0
        %v5436 = vadd.f32 0.0, %v5435
        %v5437 = vpop.f32.mrf.mxu0
        %v5438 = vadd.f32 0.0, %v5437
        %5439 = vmatmul.bf16.gmra.mxu0 %v5371
        %v5440 = vpop.f32.mrf.mxu0
        %v5441 = vadd.f32 0.0, %v5440
        %v5442 = vpop.f32.mrf.mxu0
        %v5443 = vadd.f32 0.0, %v5442
        %5444 = vmatmul.bf16.gmra.mxu0 %v5372
        %v5445 = vpop.f32.mrf.mxu0
        %v5446 = vadd.f32 0.0, %v5445
        %v5447 = vpop.f32.mrf.mxu0
        %v5448 = vadd.f32 0.0, %v5447
        %5449 = vmatmul.bf16.gmra.mxu0 %v5373
        %v5450 = vpop.f32.mrf.mxu0
        %v5451 = vadd.f32 0.0, %v5450
        %v5452 = vpop.f32.mrf.mxu0
        %v5453 = vadd.f32 0.0, %v5452
        %5454 = vdwg.mxu0
        %5471 = vrot.lane.b32.xlu0 %v5416, 16
        %v5472 = vpop.permute.xlu0 %5471
        %5473 = vrot.lane.b32.xlu0 %v5418, 16
        %v5474 = vpop.permute.xlu0 %5473
        %5475 = vrot.lane.b32.xlu0 %v5421, 16
        %v5476 = vpop.permute.xlu0 %5475
        %5477 = vrot.lane.b32.xlu0 %v5423, 16
        %v5478 = vpop.permute.xlu0 %5477
        %5479 = vrot.lane.b32.xlu0 %v5426, 16
        %v5480 = vpop.permute.xlu0 %5479
        %5481 = vrot.lane.b32.xlu0 %v5428, 16
        %v5482 = vpop.permute.xlu0 %5481
        %5483 = vrot.lane.b32.xlu0 %v5431, 16
        %v5484 = vpop.permute.xlu0 %5483
        %5485 = vrot.lane.b32.xlu0 %v5433, 16
        %v5486 = vpop.permute.xlu0 %5485
        %5487 = vrot.lane.b32.xlu0 %v5436, 16
        %v5488 = vpop.permute.xlu0 %5487
        %5489 = vrot.lane.b32.xlu0 %v5438, 16
        %v5490 = vpop.permute.xlu0 %5489
        %5491 = vrot.lane.b32.xlu0 %v5441, 16
        %v5492 = vpop.permute.xlu0 %5491
        %5493 = vrot.lane.b32.xlu0 %v5443, 16
        %v5494 = vpop.permute.xlu0 %5493
        %5495 = vrot.lane.b32.xlu0 %v5446, 16
        %v5496 = vpop.permute.xlu0 %5495
        %5497 = vrot.lane.b32.xlu0 %v5448, 16
        %v5498 = vpop.permute.xlu0 %5497
        %5499 = vrot.lane.b32.xlu0 %v5451, 16
        %v5500 = vpop.permute.xlu0 %5499
        %5501 = vrot.lane.b32.xlu0 %v5453, 16
        %v5502 = vpop.permute.xlu0 %5501
        %v5519 = vsel %vm2770, %v5295, %v5472
        %v5520 = vsel %vm2770, %v5297, %v5474
        %v5521 = vsel %vm2770, %v5300, %v5476
        %v5522 = vsel %vm2770, %v5302, %v5478
        %v5523 = vsel %vm2770, %v5305, %v5480
        %v5524 = vsel %vm2770, %v5307, %v5482
        %v5525 = vsel %vm2770, %v5310, %v5484
        %v5526 = vsel %vm2770, %v5312, %v5486
        %v5527 = vsel %vm2770, %v5315, %v5488
        %v5528 = vsel %vm2770, %v5317, %v5490
        %v5529 = vsel %vm2770, %v5320, %v5492
        %v5530 = vsel %vm2770, %v5322, %v5494
        %v5531 = vsel %vm2770, %v5325, %v5496
        %v5532 = vsel %vm2770, %v5327, %v5498
        %v5533 = vsel %vm2770, %v5330, %v5500
        %v5534 = vsel %vm2770, %v5332, %v5502
        %v5535 = vperm.slane %v3375, 0
        %v5536 = vadd.f32 %v5519, %v5535
        %v5537 = vadd.f32 %v5520, %v5535
        %v5538 = vadd.f32 %v5521, %v5535
        %v5539 = vadd.f32 %v5522, %v5535
        %v5540 = vadd.f32 %v5523, %v5535
        %v5541 = vadd.f32 %v5524, %v5535
        %v5542 = vadd.f32 %v5525, %v5535
        %v5543 = vadd.f32 %v5526, %v5535
        %v5544 = vadd.f32 %v5527, %v5535
        %v5545 = vadd.f32 %v5528, %v5535
        %v5546 = vadd.f32 %v5529, %v5535
        %v5547 = vadd.f32 %v5530, %v5535
        %v5548 = vadd.f32 %v5531, %v5535
        %v5549 = vadd.f32 %v5532, %v5535
        %v5550 = vadd.f32 %v5533, %v5535
        %v5551 = vadd.f32 %v5534, %v5535
        %vm5552 = vcmp.gt.f32.partialorder %v5536, 0.0
        %vm5553 = vcmp.gt.f32.partialorder %v5537, 0.0
        %vm5554 = vcmp.gt.f32.partialorder %v5538, 0.0
        %vm5555 = vcmp.gt.f32.partialorder %v5539, 0.0
        %vm5556 = vcmp.gt.f32.partialorder %v5540, 0.0
        %vm5557 = vcmp.gt.f32.partialorder %v5541, 0.0
        %vm5558 = vcmp.gt.f32.partialorder %v5542, 0.0
        %vm5559 = vcmp.gt.f32.partialorder %v5543, 0.0
        %vm5560 = vcmp.gt.f32.partialorder %v5544, 0.0
        %vm5561 = vcmp.gt.f32.partialorder %v5545, 0.0
        %vm5562 = vcmp.gt.f32.partialorder %v5546, 0.0
        %vm5563 = vcmp.gt.f32.partialorder %v5547, 0.0
        %vm5564 = vcmp.gt.f32.partialorder %v5548, 0.0
        %vm5565 = vcmp.gt.f32.partialorder %v5549, 0.0
        %vm5566 = vcmp.gt.f32.partialorder %v5550, 0.0
        %vm5567 = vcmp.gt.f32.partialorder %v5551, 0.0
        %v5568 = vmin.f32 %v5536, 0.0
        %v5569 = vmin.f32 %v5537, 0.0
        %v5570 = vmin.f32 %v5538, 0.0
        %v5571 = vmin.f32 %v5539, 0.0
        %v5572 = vmin.f32 %v5540, 0.0
        %v5573 = vmin.f32 %v5541, 0.0
        %v5574 = vmin.f32 %v5542, 0.0
        %v5575 = vmin.f32 %v5543, 0.0
        %v5576 = vmin.f32 %v5544, 0.0
        %v5577 = vmin.f32 %v5545, 0.0
        %v5578 = vmin.f32 %v5546, 0.0
        %v5579 = vmin.f32 %v5547, 0.0
        %v5580 = vmin.f32 %v5548, 0.0
        %v5581 = vmin.f32 %v5549, 0.0
        %v5582 = vmin.f32 %v5550, 0.0
        %v5583 = vmin.f32 %v5551, 0.0
        %v5584 = vmul.f32 %v5568, 1.442695
        %v5585 = vpow.pop %v5584
        %v5586 = vmul.f32 %v5569, 1.442695
        %v5587 = vpow.pop %v5586
        %v5588 = vmul.f32 %v5570, 1.442695
        %v5589 = vpow.pop %v5588
        %v5590 = vmul.f32 %v5571, 1.442695
        %v5591 = vpow.pop %v5590
        %v5592 = vmul.f32 %v5572, 1.442695
        %v5593 = vpow.pop %v5592
        %v5594 = vmul.f32 %v5573, 1.442695
        %v5595 = vpow.pop %v5594
        %v5596 = vmul.f32 %v5574, 1.442695
        %v5597 = vpow.pop %v5596
        %v5598 = vmul.f32 %v5575, 1.442695
        %v5599 = vpow.pop %v5598
        %v5600 = vmul.f32 %v5576, 1.442695
        %v5601 = vpow.pop %v5600
        %v5602 = vmul.f32 %v5577, 1.442695
        %v5603 = vpow.pop %v5602
        %v5604 = vmul.f32 %v5578, 1.442695
        %v5605 = vpow.pop %v5604
        %v5606 = vmul.f32 %v5579, 1.442695
        %v5607 = vpow.pop %v5606
        %v5608 = vmul.f32 %v5580, 1.442695
        %v5609 = vpow.pop %v5608
        %v5610 = vmul.f32 %v5581, 1.442695
        %v5611 = vpow.pop %v5610
        %v5612 = vmul.f32 %v5582, 1.442695
        %v5613 = vpow.pop %v5612
        %v5614 = vmul.f32 %v5583, 1.442695
        %v5615 = vpow.pop %v5614
        %v5616 = vsub.f32 %v5585, 1.0
        %v5617 = vsub.f32 %v5587, 1.0
        %v5618 = vsub.f32 %v5589, 1.0
        %v5619 = vsub.f32 %v5591, 1.0
        %v5620 = vsub.f32 %v5593, 1.0
        %v5621 = vsub.f32 %v5595, 1.0
        %v5622 = vsub.f32 %v5597, 1.0
        %v5623 = vsub.f32 %v5599, 1.0
        %v5624 = vsub.f32 %v5601, 1.0
        %v5625 = vsub.f32 %v5603, 1.0
        %v5626 = vsub.f32 %v5605, 1.0
        %v5627 = vsub.f32 %v5607, 1.0
        %v5628 = vsub.f32 %v5609, 1.0
        %v5629 = vsub.f32 %v5611, 1.0
        %v5630 = vsub.f32 %v5613, 1.0
        %v5631 = vsub.f32 %v5615, 1.0
        %v5632 = vsel %vm5552, %v5536, %v5616
        %v5633 = vsel %vm5553, %v5537, %v5617
        %v5634 = vsel %vm5554, %v5538, %v5618
        %v5635 = vsel %vm5555, %v5539, %v5619
        %v5636 = vsel %vm5556, %v5540, %v5620
        %v5637 = vsel %vm5557, %v5541, %v5621
        %v5638 = vsel %vm5558, %v5542, %v5622
        %v5639 = vsel %vm5559, %v5543, %v5623
        %v5640 = vsel %vm5560, %v5544, %v5624
        %v5641 = vsel %vm5561, %v5545, %v5625
        %v5642 = vsel %vm5562, %v5546, %v5626
        %v5643 = vsel %vm5563, %v5547, %v5627
        %v5644 = vsel %vm5564, %v5548, %v5628
        %v5645 = vsel %vm5565, %v5549, %v5629
        %v5646 = vsel %vm5566, %v5550, %v5630
        %v5647 = vsel %vm5567, %v5551, %v5631
        %v5664 = vunpack.c.l.b16 %v5141
        %v5665 = vunpack.c.l.b16 %v5142
        %v5666 = vunpack.c.l.b16 %v5143
        %v5667 = vunpack.c.l.b16 %v5144
        %v5668 = vunpack.c.l.b16 %v5145
        %v5669 = vunpack.c.l.b16 %v5146
        %v5670 = vunpack.c.l.b16 %v5147
        %v5671 = vunpack.c.l.b16 %v5148
        %v5672 = vunpack.c.l.b16 %v5149
        %v5673 = vunpack.c.l.b16 %v5150
        %v5674 = vunpack.c.l.b16 %v5151
        %v5675 = vunpack.c.l.b16 %v5152
        %v5676 = vunpack.c.l.b16 %v5153
        %v5677 = vunpack.c.l.b16 %v5154
        %v5678 = vunpack.c.l.b16 %v5155
        %v5679 = vunpack.c.l.b16 %v5156
        %v5680 = vpack.c.b16 %v5665, %v5664
        %v5681 = vpack.c.b16 %v5667, %v5666
        %v5682 = vpack.c.b16 %v5669, %v5668
        %v5683 = vpack.c.b16 %v5671, %v5670
        %v5684 = vpack.c.b16 %v5673, %v5672
        %v5685 = vpack.c.b16 %v5675, %v5674
        %v5686 = vpack.c.b16 %v5677, %v5676
        %v5687 = vpack.c.b16 %v5679, %v5678
        %5696 = vrot.lane.b32.xlu0 %v5269, 96
        %v5697 = vpop.permute.xlu0 %5696
        %5698 = vrot.lane.b32.xlu0 %v5270, 96
        %v5699 = vpop.permute.xlu0 %5698
        %5700 = vrot.lane.b32.xlu0 %v5271, 96
        %v5701 = vpop.permute.xlu0 %5700
        %5702 = vrot.lane.b32.xlu0 %v5272, 96
        %v5703 = vpop.permute.xlu0 %5702
        %5704 = vrot.lane.b32.xlu0 %v5273, 96
        %v5705 = vpop.permute.xlu0 %5704
        %5706 = vrot.lane.b32.xlu0 %v5274, 96
        %v5707 = vpop.permute.xlu0 %5706
        %5708 = vrot.lane.b32.xlu0 %v5275, 96
        %v5709 = vpop.permute.xlu0 %5708
        %5710 = vrot.lane.b32.xlu0 %v5276, 96
        %v5711 = vpop.permute.xlu0 %5710
        %5720 = vmatpush.bf16.msra.mxu0 %v5711
        %5721 = vmatpush.bf16.msra.mxu0 %v5709
        %5722 = vmatpush.bf16.msra.mxu0 %v5707
        %5723 = vmatpush.bf16.msra.mxu0 %v5705
        %5724 = vmatpush.bf16.msra.mxu0 %v5703
        %5725 = vmatpush.bf16.msra.mxu0 %v5701
        %5726 = vmatpush.bf16.msra.mxu0 %v5699
        %5727 = vmatpush.bf16.msra.mxu0 %v5697
        %5728 = vmatmul.bf16.gmra.mxu0 %v5680
        %v5729 = vpop.f32.mrf.mxu0
        %v5730 = vadd.f32 0.0, %v5729
        %v5731 = vpop.f32.mrf.mxu0
        %v5732 = vadd.f32 0.0, %v5731
        %5733 = vmatmul.bf16.gmra.mxu0 %v5681
        %v5734 = vpop.f32.mrf.mxu0
        %v5735 = vadd.f32 0.0, %v5734
        %v5736 = vpop.f32.mrf.mxu0
        %v5737 = vadd.f32 0.0, %v5736
        %5738 = vmatmul.bf16.gmra.mxu0 %v5682
        %v5739 = vpop.f32.mrf.mxu0
        %v5740 = vadd.f32 0.0, %v5739
        %v5741 = vpop.f32.mrf.mxu0
        %v5742 = vadd.f32 0.0, %v5741
        %5743 = vmatmul.bf16.gmra.mxu0 %v5683
        %v5744 = vpop.f32.mrf.mxu0
        %v5745 = vadd.f32 0.0, %v5744
        %v5746 = vpop.f32.mrf.mxu0
        %v5747 = vadd.f32 0.0, %v5746
        %5748 = vmatmul.bf16.gmra.mxu0 %v5684
        %v5749 = vpop.f32.mrf.mxu0
        %v5750 = vadd.f32 0.0, %v5749
        %v5751 = vpop.f32.mrf.mxu0
        %v5752 = vadd.f32 0.0, %v5751
        %5753 = vmatmul.bf16.gmra.mxu0 %v5685
        %v5754 = vpop.f32.mrf.mxu0
        %v5755 = vadd.f32 0.0, %v5754
        %v5756 = vpop.f32.mrf.mxu0
        %v5757 = vadd.f32 0.0, %v5756
        %5758 = vmatmul.bf16.gmra.mxu0 %v5686
        %v5759 = vpop.f32.mrf.mxu0
        %v5760 = vadd.f32 0.0, %v5759
        %v5761 = vpop.f32.mrf.mxu0
        %v5762 = vadd.f32 0.0, %v5761
        %5763 = vmatmul.bf16.gmra.mxu0 %v5687
        %v5764 = vpop.f32.mrf.mxu0
        %v5765 = vadd.f32 0.0, %v5764
        %v5766 = vpop.f32.mrf.mxu0
        %v5767 = vadd.f32 0.0, %v5766
        %5768 = vdwg.mxu0
        %v5785 = vunpack.c.l.b16 %v5157
        %v5786 = vunpack.c.l.b16 %v5158
        %v5787 = vunpack.c.l.b16 %v5159
        %v5788 = vunpack.c.l.b16 %v5160
        %v5789 = vunpack.c.l.b16 %v5161
        %v5790 = vunpack.c.l.b16 %v5162
        %v5791 = vunpack.c.l.b16 %v5163
        %v5792 = vunpack.c.l.b16 %v5164
        %v5793 = vunpack.c.l.b16 %v5165
        %v5794 = vunpack.c.l.b16 %v5166
        %v5795 = vunpack.c.l.b16 %v5167
        %v5796 = vunpack.c.l.b16 %v5168
        %v5797 = vunpack.c.l.b16 %v5169
        %v5798 = vunpack.c.l.b16 %v5170
        %v5799 = vunpack.c.l.b16 %v5171
        %v5800 = vunpack.c.l.b16 %v5172
        %v5801 = vpack.c.b16 %v5786, %v5785
        %v5802 = vpack.c.b16 %v5788, %v5787
        %v5803 = vpack.c.b16 %v5790, %v5789
        %v5804 = vpack.c.b16 %v5792, %v5791
        %v5805 = vpack.c.b16 %v5794, %v5793
        %v5806 = vpack.c.b16 %v5796, %v5795
        %v5807 = vpack.c.b16 %v5798, %v5797
        %v5808 = vpack.c.b16 %v5800, %v5799
        %5817 = vrot.lane.b32.xlu0 %v5269, 80
        %v5818 = vpop.permute.xlu0 %5817
        %5819 = vrot.lane.b32.xlu0 %v5270, 80
        %v5820 = vpop.permute.xlu0 %5819
        %5821 = vrot.lane.b32.xlu0 %v5271, 80
        %v5822 = vpop.permute.xlu0 %5821
        %5823 = vrot.lane.b32.xlu0 %v5272, 80
        %v5824 = vpop.permute.xlu0 %5823
        %5825 = vrot.lane.b32.xlu0 %v5273, 80
        %v5826 = vpop.permute.xlu0 %5825
        %5827 = vrot.lane.b32.xlu0 %v5274, 80
        %v5828 = vpop.permute.xlu0 %5827
        %5829 = vrot.lane.b32.xlu0 %v5275, 80
        %v5830 = vpop.permute.xlu0 %5829
        %5831 = vrot.lane.b32.xlu0 %v5276, 80
        %v5832 = vpop.permute.xlu0 %5831
        %5841 = vmatpush.bf16.msra.mxu0 %v5832
        %5842 = vmatpush.bf16.msra.mxu0 %v5830
        %5843 = vmatpush.bf16.msra.mxu0 %v5828
        %5844 = vmatpush.bf16.msra.mxu0 %v5826
        %5845 = vmatpush.bf16.msra.mxu0 %v5824
        %5846 = vmatpush.bf16.msra.mxu0 %v5822
        %5847 = vmatpush.bf16.msra.mxu0 %v5820
        %5848 = vmatpush.bf16.msra.mxu0 %v5818
        %5849 = vmatmul.bf16.gmra.mxu0 %v5801
        %v5850 = vpop.f32.mrf.mxu0
        %v5851 = vadd.f32 0.0, %v5850
        %v5852 = vpop.f32.mrf.mxu0
        %v5853 = vadd.f32 0.0, %v5852
        %5854 = vmatmul.bf16.gmra.mxu0 %v5802
        %v5855 = vpop.f32.mrf.mxu0
        %v5856 = vadd.f32 0.0, %v5855
        %v5857 = vpop.f32.mrf.mxu0
        %v5858 = vadd.f32 0.0, %v5857
        %5859 = vmatmul.bf16.gmra.mxu0 %v5803
        %v5860 = vpop.f32.mrf.mxu0
        %v5861 = vadd.f32 0.0, %v5860
        %v5862 = vpop.f32.mrf.mxu0
        %v5863 = vadd.f32 0.0, %v5862
        %5864 = vmatmul.bf16.gmra.mxu0 %v5804
        %v5865 = vpop.f32.mrf.mxu0
        %v5866 = vadd.f32 0.0, %v5865
        %v5867 = vpop.f32.mrf.mxu0
        %v5868 = vadd.f32 0.0, %v5867
        %5869 = vmatmul.bf16.gmra.mxu0 %v5805
        %v5870 = vpop.f32.mrf.mxu0
        %v5871 = vadd.f32 0.0, %v5870
        %v5872 = vpop.f32.mrf.mxu0
        %v5873 = vadd.f32 0.0, %v5872
        %5874 = vmatmul.bf16.gmra.mxu0 %v5806
        %v5875 = vpop.f32.mrf.mxu0
        %v5876 = vadd.f32 0.0, %v5875
        %v5877 = vpop.f32.mrf.mxu0
        %v5878 = vadd.f32 0.0, %v5877
        %5879 = vmatmul.bf16.gmra.mxu0 %v5807
        %v5880 = vpop.f32.mrf.mxu0
        %v5881 = vadd.f32 0.0, %v5880
        %v5882 = vpop.f32.mrf.mxu0
        %v5883 = vadd.f32 0.0, %v5882
        %5884 = vmatmul.bf16.gmra.mxu0 %v5808
        %v5885 = vpop.f32.mrf.mxu0
        %v5886 = vadd.f32 0.0, %v5885
        %v5887 = vpop.f32.mrf.mxu0
        %v5888 = vadd.f32 0.0, %v5887
        %5889 = vdwg.mxu0
        %5906 = vrot.lane.b32.xlu0 %v5851, 16
        %v5907 = vpop.permute.xlu0 %5906
        %5908 = vrot.lane.b32.xlu0 %v5853, 16
        %v5909 = vpop.permute.xlu0 %5908
        %5910 = vrot.lane.b32.xlu0 %v5856, 16
        %v5911 = vpop.permute.xlu0 %5910
        %5912 = vrot.lane.b32.xlu0 %v5858, 16
        %v5913 = vpop.permute.xlu0 %5912
        %5914 = vrot.lane.b32.xlu0 %v5861, 16
        %v5915 = vpop.permute.xlu0 %5914
        %5916 = vrot.lane.b32.xlu0 %v5863, 16
        %v5917 = vpop.permute.xlu0 %5916
        %5918 = vrot.lane.b32.xlu0 %v5866, 16
        %v5919 = vpop.permute.xlu0 %5918
        %5920 = vrot.lane.b32.xlu0 %v5868, 16
        %v5921 = vpop.permute.xlu0 %5920
        %5922 = vrot.lane.b32.xlu0 %v5871, 16
        %v5923 = vpop.permute.xlu0 %5922
        %5924 = vrot.lane.b32.xlu0 %v5873, 16
        %v5925 = vpop.permute.xlu0 %5924
        %5926 = vrot.lane.b32.xlu0 %v5876, 16
        %v5927 = vpop.permute.xlu0 %5926
        %5928 = vrot.lane.b32.xlu0 %v5878, 16
        %v5929 = vpop.permute.xlu0 %5928
        %5930 = vrot.lane.b32.xlu0 %v5881, 16
        %v5931 = vpop.permute.xlu0 %5930
        %5932 = vrot.lane.b32.xlu0 %v5883, 16
        %v5933 = vpop.permute.xlu0 %5932
        %5934 = vrot.lane.b32.xlu0 %v5886, 16
        %v5935 = vpop.permute.xlu0 %5934
        %5936 = vrot.lane.b32.xlu0 %v5888, 16
        %v5937 = vpop.permute.xlu0 %5936
        %v5954 = vsel %vm2770, %v5730, %v5907
        %v5955 = vsel %vm2770, %v5732, %v5909
        %v5956 = vsel %vm2770, %v5735, %v5911
        %v5957 = vsel %vm2770, %v5737, %v5913
        %v5958 = vsel %vm2770, %v5740, %v5915
        %v5959 = vsel %vm2770, %v5742, %v5917
        %v5960 = vsel %vm2770, %v5745, %v5919
        %v5961 = vsel %vm2770, %v5747, %v5921
        %v5962 = vsel %vm2770, %v5750, %v5923
        %v5963 = vsel %vm2770, %v5752, %v5925
        %v5964 = vsel %vm2770, %v5755, %v5927
        %v5965 = vsel %vm2770, %v5757, %v5929
        %v5966 = vsel %vm2770, %v5760, %v5931
        %v5967 = vsel %vm2770, %v5762, %v5933
        %v5968 = vsel %vm2770, %v5765, %v5935
        %v5969 = vsel %vm2770, %v5767, %v5937
        %v5970 = vperm.slane %v3375, 1
        %v5971 = vadd.f32 %v5954, %v5970
        %v5972 = vadd.f32 %v5955, %v5970
        %v5973 = vadd.f32 %v5956, %v5970
        %v5974 = vadd.f32 %v5957, %v5970
        %v5975 = vadd.f32 %v5958, %v5970
        %v5976 = vadd.f32 %v5959, %v5970
        %v5977 = vadd.f32 %v5960, %v5970
        %v5978 = vadd.f32 %v5961, %v5970
        %v5979 = vadd.f32 %v5962, %v5970
        %v5980 = vadd.f32 %v5963, %v5970
        %v5981 = vadd.f32 %v5964, %v5970
        %v5982 = vadd.f32 %v5965, %v5970
        %v5983 = vadd.f32 %v5966, %v5970
        %v5984 = vadd.f32 %v5967, %v5970
        %v5985 = vadd.f32 %v5968, %v5970
        %v5986 = vadd.f32 %v5969, %v5970
        %vm5987 = vcmp.gt.f32.partialorder %v5971, 0.0
        %vm5988 = vcmp.gt.f32.partialorder %v5972, 0.0
        %vm5989 = vcmp.gt.f32.partialorder %v5973, 0.0
        %vm5990 = vcmp.gt.f32.partialorder %v5974, 0.0
        %vm5991 = vcmp.gt.f32.partialorder %v5975, 0.0
        %vm5992 = vcmp.gt.f32.partialorder %v5976, 0.0
        %vm5993 = vcmp.gt.f32.partialorder %v5977, 0.0
        %vm5994 = vcmp.gt.f32.partialorder %v5978, 0.0
        %vm5995 = vcmp.gt.f32.partialorder %v5979, 0.0
        %vm5996 = vcmp.gt.f32.partialorder %v5980, 0.0
        %vm5997 = vcmp.gt.f32.partialorder %v5981, 0.0
        %vm5998 = vcmp.gt.f32.partialorder %v5982, 0.0
        %vm5999 = vcmp.gt.f32.partialorder %v5983, 0.0
        %vm6000 = vcmp.gt.f32.partialorder %v5984, 0.0
        %vm6001 = vcmp.gt.f32.partialorder %v5985, 0.0
        %vm6002 = vcmp.gt.f32.partialorder %v5986, 0.0
        %v6003 = vmin.f32 %v5971, 0.0
        %v6004 = vmin.f32 %v5972, 0.0
        %v6005 = vmin.f32 %v5973, 0.0
        %v6006 = vmin.f32 %v5974, 0.0
        %v6007 = vmin.f32 %v5975, 0.0
        %v6008 = vmin.f32 %v5976, 0.0
        %v6009 = vmin.f32 %v5977, 0.0
        %v6010 = vmin.f32 %v5978, 0.0
        %v6011 = vmin.f32 %v5979, 0.0
        %v6012 = vmin.f32 %v5980, 0.0
        %v6013 = vmin.f32 %v5981, 0.0
        %v6014 = vmin.f32 %v5982, 0.0
        %v6015 = vmin.f32 %v5983, 0.0
        %v6016 = vmin.f32 %v5984, 0.0
        %v6017 = vmin.f32 %v5985, 0.0
        %v6018 = vmin.f32 %v5986, 0.0
        %v6019 = vmul.f32 %v6003, 1.442695
        %v6020 = vpow.pop %v6019
        %v6021 = vmul.f32 %v6004, 1.442695
        %v6022 = vpow.pop %v6021
        %v6023 = vmul.f32 %v6005, 1.442695
        %v6024 = vpow.pop %v6023
        %v6025 = vmul.f32 %v6006, 1.442695
        %v6026 = vpow.pop %v6025
        %v6027 = vmul.f32 %v6007, 1.442695
        %v6028 = vpow.pop %v6027
        %v6029 = vmul.f32 %v6008, 1.442695
        %v6030 = vpow.pop %v6029
        %v6031 = vmul.f32 %v6009, 1.442695
        %v6032 = vpow.pop %v6031
        %v6033 = vmul.f32 %v6010, 1.442695
        %v6034 = vpow.pop %v6033
        %v6035 = vmul.f32 %v6011, 1.442695
        %v6036 = vpow.pop %v6035
        %v6037 = vmul.f32 %v6012, 1.442695
        %v6038 = vpow.pop %v6037
        %v6039 = vmul.f32 %v6013, 1.442695
        %v6040 = vpow.pop %v6039
        %v6041 = vmul.f32 %v6014, 1.442695
        %v6042 = vpow.pop %v6041
        %v6043 = vmul.f32 %v6015, 1.442695
        %v6044 = vpow.pop %v6043
        %v6045 = vmul.f32 %v6016, 1.442695
        %v6046 = vpow.pop %v6045
        %v6047 = vmul.f32 %v6017, 1.442695
        %v6048 = vpow.pop %v6047
        %v6049 = vmul.f32 %v6018, 1.442695
        %v6050 = vpow.pop %v6049
        %v6051 = vsub.f32 %v6020, 1.0
        %v6052 = vsub.f32 %v6022, 1.0
        %v6053 = vsub.f32 %v6024, 1.0
        %v6054 = vsub.f32 %v6026, 1.0
        %v6055 = vsub.f32 %v6028, 1.0
        %v6056 = vsub.f32 %v6030, 1.0
        %v6057 = vsub.f32 %v6032, 1.0
        %v6058 = vsub.f32 %v6034, 1.0
        %v6059 = vsub.f32 %v6036, 1.0
        %v6060 = vsub.f32 %v6038, 1.0
        %v6061 = vsub.f32 %v6040, 1.0
        %v6062 = vsub.f32 %v6042, 1.0
        %v6063 = vsub.f32 %v6044, 1.0
        %v6064 = vsub.f32 %v6046, 1.0
        %v6065 = vsub.f32 %v6048, 1.0
        %v6066 = vsub.f32 %v6050, 1.0
        %v6067 = vsel %vm5987, %v5971, %v6051
        %v6068 = vsel %vm5988, %v5972, %v6052
        %v6069 = vsel %vm5989, %v5973, %v6053
        %v6070 = vsel %vm5990, %v5974, %v6054
        %v6071 = vsel %vm5991, %v5975, %v6055
        %v6072 = vsel %vm5992, %v5976, %v6056
        %v6073 = vsel %vm5993, %v5977, %v6057
        %v6074 = vsel %vm5994, %v5978, %v6058
        %v6075 = vsel %vm5995, %v5979, %v6059
        %v6076 = vsel %vm5996, %v5980, %v6060
        %v6077 = vsel %vm5997, %v5981, %v6061
        %v6078 = vsel %vm5998, %v5982, %v6062
        %v6079 = vsel %vm5999, %v5983, %v6063
        %v6080 = vsel %vm6000, %v5984, %v6064
        %v6081 = vsel %vm6001, %v5985, %v6065
        %v6082 = vsel %vm6002, %v5986, %v6066
        %v6083 = vadd.f32 %v5632, %v6067
        %v6084 = vadd.f32 %v5633, %v6068
        %v6085 = vadd.f32 %v5634, %v6069
        %v6086 = vadd.f32 %v5635, %v6070
        %v6087 = vadd.f32 %v5636, %v6071
        %v6088 = vadd.f32 %v5637, %v6072
        %v6089 = vadd.f32 %v5638, %v6073
        %v6090 = vadd.f32 %v5639, %v6074
        %v6091 = vadd.f32 %v5640, %v6075
        %v6092 = vadd.f32 %v5641, %v6076
        %v6093 = vadd.f32 %v5642, %v6077
        %v6094 = vadd.f32 %v5643, %v6078
        %v6095 = vadd.f32 %v5644, %v6079
        %v6096 = vadd.f32 %v5645, %v6080
        %v6097 = vadd.f32 %v5646, %v6081
        %v6098 = vadd.f32 %v5647, %v6082
        %v6099 = vmul.f32 %v6083, 0.5
        %v6100 = vmul.f32 %v6084, 0.5
        %v6101 = vmul.f32 %v6085, 0.5
        %v6102 = vmul.f32 %v6086, 0.5
        %v6103 = vmul.f32 %v6087, 0.5
        %v6104 = vmul.f32 %v6088, 0.5
        %v6105 = vmul.f32 %v6089, 0.5
        %v6106 = vmul.f32 %v6090, 0.5
        %v6107 = vmul.f32 %v6091, 0.5
        %v6108 = vmul.f32 %v6092, 0.5
        %v6109 = vmul.f32 %v6093, 0.5
        %v6110 = vmul.f32 %v6094, 0.5
        %v6111 = vmul.f32 %v6095, 0.5
        %v6112 = vmul.f32 %v6096, 0.5
        %v6113 = vmul.f32 %v6097, 0.5
        %v6114 = vmul.f32 %v6098, 0.5
        %v6115 = vld [vmem:[%s9] sm:$0xf]
        %v6116 = vld [vmem:[%s9 + $0x4] sm:$0xf]
        %v6117 = vld [vmem:[%s9 + $0x8] sm:$0xf]
        %v6118 = vld [vmem:[%s9 + $0xc] sm:$0xf]
        %v6119 = vld [vmem:[%s10] sm:$0xff]
        %v6120 = vld [vmem:[%s10 + $0x8] sm:$0xff]
        %v6121 = vld [vmem:[%s10 + $0x10] sm:$0xff]
        %v6122 = vld [vmem:[%s10 + $0x18] sm:$0xff]
        %v6123 = vld [vmem:[%s11] sm:$0x3]
        %v6124 = vpack.c.bf16 %v6100, %v6099
        %v6125 = vpack.c.bf16 %v6102, %v6101
        %v6126 = vpack.c.bf16 %v6104, %v6103
        %v6127 = vpack.c.bf16 %v6106, %v6105
        %v6128 = vpack.c.bf16 %v6108, %v6107
        %v6129 = vpack.c.bf16 %v6110, %v6109
        %v6130 = vpack.c.bf16 %v6112, %v6111
        %v6131 = vpack.c.bf16 %v6114, %v6113
        %v6136 = vunpack.c.l.b16 %v6115
        %v6137 = vunpack.c.l.b16 %v6116
        %v6138 = vunpack.c.l.b16 %v6117
        %v6139 = vunpack.c.l.b16 %v6118
        %v6140 = vpack.c.b16 %v6137, %v6136
        %v6141 = vpack.c.b16 %v6139, %v6138
        %v6145 = vsel %vm3396, %v6124, 0
        %v6148 = vsel %vm3396, %v6125, 0
        %v6151 = vsel %vm3396, %v6126, 0
        %v6154 = vsel %vm3396, %v6127, 0
        %v6157 = vsel %vm3396, %v6128, 0
        %v6160 = vsel %vm3396, %v6129, 0
        %v6163 = vsel %vm3396, %v6130, 0
        %v6166 = vsel %vm3396, %v6131, 0
        %6168 = vmatpush.bf16.msra.mxu0 0
        %6169 = vmatpush.bf16.msra.mxu0 0
        %6170 = vmatpush.bf16.msra.mxu0 0
        %6171 = vmatpush.bf16.msra.mxu0 0
        %6172 = vmatpush.bf16.msra.mxu0 0
        %6173 = vmatpush.bf16.msra.mxu0 0
        %6174 = vmatpush.bf16.msra.mxu0 %v6141
        %6175 = vmatpush.bf16.msra.mxu0 %v6140
        %6176 = vmatmul.bf16.gmra.mxu0 %v6145
        %v6177 = vpop.f32.mrf.mxu0
        %v6178 = vadd.f32 0.0, %v6177
        %v6179 = vpop.f32.mrf.mxu0
        %v6180 = vadd.f32 0.0, %v6179
        %6181 = vmatmul.bf16.gmra.mxu0 %v6148
        %v6182 = vpop.f32.mrf.mxu0
        %v6183 = vadd.f32 0.0, %v6182
        %v6184 = vpop.f32.mrf.mxu0
        %v6185 = vadd.f32 0.0, %v6184
        %6186 = vmatmul.bf16.gmra.mxu0 %v6151
        %v6187 = vpop.f32.mrf.mxu0
        %v6188 = vadd.f32 0.0, %v6187
        %v6189 = vpop.f32.mrf.mxu0
        %v6190 = vadd.f32 0.0, %v6189
        %6191 = vmatmul.bf16.gmra.mxu0 %v6154
        %v6192 = vpop.f32.mrf.mxu0
        %v6193 = vadd.f32 0.0, %v6192
        %v6194 = vpop.f32.mrf.mxu0
        %v6195 = vadd.f32 0.0, %v6194
        %6196 = vmatmul.bf16.gmra.mxu0 %v6157
        %v6197 = vpop.f32.mrf.mxu0
        %v6198 = vadd.f32 0.0, %v6197
        %v6199 = vpop.f32.mrf.mxu0
        %v6200 = vadd.f32 0.0, %v6199
        %6201 = vmatmul.bf16.gmra.mxu0 %v6160
        %v6202 = vpop.f32.mrf.mxu0
        %v6203 = vadd.f32 0.0, %v6202
        %v6204 = vpop.f32.mrf.mxu0
        %v6205 = vadd.f32 0.0, %v6204
        %6206 = vmatmul.bf16.gmra.mxu0 %v6163
        %v6207 = vpop.f32.mrf.mxu0
        %v6208 = vadd.f32 0.0, %v6207
        %v6209 = vpop.f32.mrf.mxu0
        %v6210 = vadd.f32 0.0, %v6209
        %6211 = vmatmul.bf16.gmra.mxu0 %v6166
        %v6212 = vpop.f32.mrf.mxu0
        %v6213 = vadd.f32 0.0, %v6212
        %v6214 = vpop.f32.mrf.mxu0
        %v6215 = vadd.f32 0.0, %v6214
        %6216 = vdwg.mxu0
        %v6218 = vsel %vm3396, %v6099, 0
        %v6221 = vsel %vm3396, %v6100, 0
        %v6224 = vsel %vm3396, %v6101, 0
        %v6227 = vsel %vm3396, %v6102, 0
        %v6230 = vsel %vm3396, %v6103, 0
        %v6233 = vsel %vm3396, %v6104, 0
        %v6236 = vsel %vm3396, %v6105, 0
        %v6239 = vsel %vm3396, %v6106, 0
        %v6242 = vsel %vm3396, %v6107, 0
        %v6245 = vsel %vm3396, %v6108, 0
        %v6248 = vsel %vm3396, %v6109, 0
        %v6251 = vsel %vm3396, %v6110, 0
        %v6254 = vsel %vm3396, %v6111, 0
        %v6257 = vsel %vm3396, %v6112, 0
        %v6260 = vsel %vm3396, %v6113, 0
        %v6263 = vsel %vm3396, %v6114, 0
        %6265 = vmatpush.msra.mxu0 0.0
        %6266 = vmatpush.msra.mxu0 0.0
        %6267 = vmatpush.msra.mxu0 0.0
        %6268 = vmatpush.msra.mxu0 0.0
        %6269 = vmatpush.msra.mxu0 0.0
        %6270 = vmatpush.msra.mxu0 0.0
        %6271 = vmatpush.msra.mxu0 0.0
        %6272 = vmatpush.msra.mxu0 0.0
        %6273 = vmatpush.msra.mxu0 0.0
        %6274 = vmatpush.msra.mxu0 0.0
        %6275 = vmatpush.msra.mxu0 0.0
        %6276 = vmatpush.msra.mxu0 0.0
        %6277 = vmatpush.msra.mxu0 %v6122
        %6278 = vmatpush.msra.mxu0 %v6121
        %6279 = vmatpush.msra.mxu0 %v6120
        %6280 = vmatpush.msra.mxu0 %v6119
        %6281 = vmatmul.f32.gmra.mxu0 %v6218
        %v6282 = vpop.f32.mrf.mxu0
        %v6283 = vadd.f32 0.0, %v6282
        %6284 = vmatmul.f32.gmra.mxu0 %v6221
        %v6285 = vpop.f32.mrf.mxu0
        %v6286 = vadd.f32 0.0, %v6285
        %6287 = vmatmul.f32.gmra.mxu0 %v6224
        %v6288 = vpop.f32.mrf.mxu0
        %v6289 = vadd.f32 0.0, %v6288
        %6290 = vmatmul.f32.gmra.mxu0 %v6227
        %v6291 = vpop.f32.mrf.mxu0
        %v6292 = vadd.f32 0.0, %v6291
        %6293 = vmatmul.f32.gmra.mxu0 %v6230
        %v6294 = vpop.f32.mrf.mxu0
        %v6295 = vadd.f32 0.0, %v6294
        %6296 = vmatmul.f32.gmra.mxu0 %v6233
        %v6297 = vpop.f32.mrf.mxu0
        %v6298 = vadd.f32 0.0, %v6297
        %6299 = vmatmul.f32.gmra.mxu0 %v6236
        %v6300 = vpop.f32.mrf.mxu0
        %v6301 = vadd.f32 0.0, %v6300
        %6302 = vmatmul.f32.gmra.mxu0 %v6239
        %v6303 = vpop.f32.mrf.mxu0
        %v6304 = vadd.f32 0.0, %v6303
        %6305 = vmatmul.f32.gmra.mxu0 %v6242
        %v6306 = vpop.f32.mrf.mxu0
        %v6307 = vadd.f32 0.0, %v6306
        %6308 = vmatmul.f32.gmra.mxu0 %v6245
        %v6309 = vpop.f32.mrf.mxu0
        %v6310 = vadd.f32 0.0, %v6309
        %6311 = vmatmul.f32.gmra.mxu0 %v6248
        %v6312 = vpop.f32.mrf.mxu0
        %v6313 = vadd.f32 0.0, %v6312
        %6314 = vmatmul.f32.gmra.mxu0 %v6251
        %v6315 = vpop.f32.mrf.mxu0
        %v6316 = vadd.f32 0.0, %v6315
        %6317 = vmatmul.f32.gmra.mxu0 %v6254
        %v6318 = vpop.f32.mrf.mxu0
        %v6319 = vadd.f32 0.0, %v6318
        %6320 = vmatmul.f32.gmra.mxu0 %v6257
        %v6321 = vpop.f32.mrf.mxu0
        %v6322 = vadd.f32 0.0, %v6321
        %6323 = vmatmul.f32.gmra.mxu0 %v6260
        %v6324 = vpop.f32.mrf.mxu0
        %v6325 = vadd.f32 0.0, %v6324
        %6326 = vmatmul.f32.gmra.mxu0 %v6263
        %v6327 = vpop.f32.mrf.mxu0
        %v6328 = vadd.f32 0.0, %v6327
        %6329 = vdwg.mxu0
        %6330 = vxpose.xlu0.b32.start [1/16] %v6283, 128
        %6331 = vxpose.xlu0.b32.cont [2/16] %v6286, 128
        %6332 = vxpose.xlu0.b32.cont [3/16] %v6289, 128
        %6333 = vxpose.xlu0.b32.cont [4/16] %v6292, 128
        %6334 = vxpose.xlu0.b32.cont [5/16] %v6295, 128
        %6335 = vxpose.xlu0.b32.cont [6/16] %v6298, 128
        %6336 = vxpose.xlu0.b32.cont [7/16] %v6301, 128
        %6337 = vxpose.xlu0.b32.cont [8/16] %v6304, 128
        %6338 = vxpose.xlu0.b32.cont [9/16] %v6307, 128
        %6339 = vxpose.xlu0.b32.cont [10/16] %v6310, 128
        %6340 = vxpose.xlu0.b32.cont [11/16] %v6313, 128
        %6341 = vxpose.xlu0.b32.cont [12/16] %v6316, 128
        %6342 = vxpose.xlu0.b32.cont [13/16] %v6319, 128
        %6343 = vxpose.xlu0.b32.cont [14/16] %v6322, 128
        %6344 = vxpose.xlu0.b32.cont [15/16] %v6325, 128
        %6345 = vxpose.xlu0.b32.end [16/16] %v6328, 128
        %v6346 = vpop.trf.xlu0
        %v6347 = vpop.trf.xlu0
        %v6348 = vpop.trf.xlu0
        %v6349 = vpop.trf.xlu0
        %v6350 = vpop.trf.xlu0
        %v6351 = vpop.trf.xlu0
        %v6352 = vpop.trf.xlu0
        %v6353 = vpop.trf.xlu0
        %v6354 = vpop.trf.xlu0
        %v6355 = vpop.trf.xlu0
        %v6356 = vpop.trf.xlu0
        %v6357 = vpop.trf.xlu0
        %v6358 = vpop.trf.xlu0
        %v6359 = vpop.trf.xlu0
        %v6360 = vpop.trf.xlu0
        %v6361 = vpop.trf.xlu0
        %v6362 = vperm.slane %v6346, 0
        %v6363 = vlaneseq
        %v6364 = vshrl.u32 %v6363, 7
        %6366 = vset.pattern.permute.xlu0 %v6364
        %6367 = vperm.xlu0 %6366, %v6362
        %v6368 = vpop.permute.xlu0 %6367
        %v6369 = vlaneseq
        %v6370 = vshrl.u32 %v6369, 7
        %v6371 = vadd.s32 %v6370, 8
        %6372 = vset.pattern.permute.xlu0 %v6371
        %6373 = vperm.xlu0 %6372, %v6362
        %v6374 = vpop.permute.xlu0 %6373
        %v6375 = vlaneseq
        %v6376 = vshrl.u32 %v6375, 7
        %v6377 = vadd.s32 %v6376, 16
        %6378 = vset.pattern.permute.xlu0 %v6377
        %6379 = vperm.xlu0 %6378, %v6362
        %v6380 = vpop.permute.xlu0 %6379
        %v6381 = vlaneseq
        %v6382 = vshrl.u32 %v6381, 7
        %v6383 = vadd.s32 %v6382, 24
        %6384 = vset.pattern.permute.xlu0 %v6383
        %6385 = vperm.xlu0 %6384, %v6362
        %v6386 = vpop.permute.xlu0 %6385
        %v6387 = vlaneseq
        %v6388 = vshrl.u32 %v6387, 7
        %v6389 = vadd.s32 %v6388, 32
        %6390 = vset.pattern.permute.xlu0 %v6389
        %6391 = vperm.xlu0 %6390, %v6362
        %v6392 = vpop.permute.xlu0 %6391
        %v6393 = vlaneseq
        %v6394 = vshrl.u32 %v6393, 7
        %v6395 = vadd.s32 %v6394, 40
        %6396 = vset.pattern.permute.xlu0 %v6395
        %6397 = vperm.xlu0 %6396, %v6362
        %v6398 = vpop.permute.xlu0 %6397
        %v6399 = vlaneseq
        %v6400 = vshrl.u32 %v6399, 7
        %v6401 = vadd.s32 %v6400, 48
        %6402 = vset.pattern.permute.xlu0 %v6401
        %6403 = vperm.xlu0 %6402, %v6362
        %v6404 = vpop.permute.xlu0 %6403
        %v6405 = vlaneseq
        %v6406 = vshrl.u32 %v6405, 7
        %v6407 = vadd.s32 %v6406, 56
        %6408 = vset.pattern.permute.xlu0 %v6407
        %6409 = vperm.xlu0 %6408, %v6362
        %v6410 = vpop.permute.xlu0 %6409
        %v6411 = vlaneseq
        %v6412 = vshrl.u32 %v6411, 7
        %v6413 = vadd.s32 %v6412, 64
        %6414 = vset.pattern.permute.xlu0 %v6413
        %6415 = vperm.xlu0 %6414, %v6362
        %v6416 = vpop.permute.xlu0 %6415
        %v6417 = vlaneseq
        %v6418 = vshrl.u32 %v6417, 7
        %v6419 = vadd.s32 %v6418, 72
        %6420 = vset.pattern.permute.xlu0 %v6419
        %6421 = vperm.xlu0 %6420, %v6362
        %v6422 = vpop.permute.xlu0 %6421
        %v6423 = vlaneseq
        %v6424 = vshrl.u32 %v6423, 7
        %v6425 = vadd.s32 %v6424, 80
        %6426 = vset.pattern.permute.xlu0 %v6425
        %6427 = vperm.xlu0 %6426, %v6362
        %v6428 = vpop.permute.xlu0 %6427
        %v6429 = vlaneseq
        %v6430 = vshrl.u32 %v6429, 7
        %v6431 = vadd.s32 %v6430, 88
        %6432 = vset.pattern.permute.xlu0 %v6431
        %6433 = vperm.xlu0 %6432, %v6362
        %v6434 = vpop.permute.xlu0 %6433
        %v6435 = vlaneseq
        %v6436 = vshrl.u32 %v6435, 7
        %v6437 = vadd.s32 %v6436, 96
        %6438 = vset.pattern.permute.xlu0 %v6437
        %6439 = vperm.xlu0 %6438, %v6362
        %v6440 = vpop.permute.xlu0 %6439
        %v6441 = vlaneseq
        %v6442 = vshrl.u32 %v6441, 7
        %v6443 = vadd.s32 %v6442, 104
        %6444 = vset.pattern.permute.xlu0 %v6443
        %6445 = vperm.xlu0 %6444, %v6362
        %v6446 = vpop.permute.xlu0 %6445
        %v6447 = vlaneseq
        %v6448 = vshrl.u32 %v6447, 7
        %v6449 = vadd.s32 %v6448, 112
        %6450 = vset.pattern.permute.xlu0 %v6449
        %6451 = vperm.xlu0 %6450, %v6362
        %v6452 = vpop.permute.xlu0 %6451
        %v6453 = vlaneseq
        %v6454 = vshrl.u32 %v6453, 7
        %v6455 = vadd.s32 %v6454, 120
        %6456 = vset.pattern.permute.xlu0 %v6455
        %6457 = vperm.xlu0 %6456, %v6362
        %v6458 = vpop.permute.xlu0 %6457
        %v6459 = vperm.slane %v6346, 1
        %v6460 = vlaneseq
        %v6461 = vshrl.u32 %v6460, 7
        %6463 = vset.pattern.permute.xlu0 %v6461
        %6464 = vperm.xlu0 %6463, %v6459
        %v6465 = vpop.permute.xlu0 %6464
        %v6466 = vlaneseq
        %v6467 = vshrl.u32 %v6466, 7
        %v6468 = vadd.s32 %v6467, 8
        %6469 = vset.pattern.permute.xlu0 %v6468
        %6470 = vperm.xlu0 %6469, %v6459
        %v6471 = vpop.permute.xlu0 %6470
        %v6472 = vlaneseq
        %v6473 = vshrl.u32 %v6472, 7
        %v6474 = vadd.s32 %v6473, 16
        %6475 = vset.pattern.permute.xlu0 %v6474
        %6476 = vperm.xlu0 %6475, %v6459
        %v6477 = vpop.permute.xlu0 %6476
        %v6478 = vlaneseq
        %v6479 = vshrl.u32 %v6478, 7
        %v6480 = vadd.s32 %v6479, 24
        %6481 = vset.pattern.permute.xlu0 %v6480
        %6482 = vperm.xlu0 %6481, %v6459
        %v6483 = vpop.permute.xlu0 %6482
        %v6484 = vlaneseq
        %v6485 = vshrl.u32 %v6484, 7
        %v6486 = vadd.s32 %v6485, 32
        %6487 = vset.pattern.permute.xlu0 %v6486
        %6488 = vperm.xlu0 %6487, %v6459
        %v6489 = vpop.permute.xlu0 %6488
        %v6490 = vlaneseq
        %v6491 = vshrl.u32 %v6490, 7
        %v6492 = vadd.s32 %v6491, 40
        %6493 = vset.pattern.permute.xlu0 %v6492
        %6494 = vperm.xlu0 %6493, %v6459
        %v6495 = vpop.permute.xlu0 %6494
        %v6496 = vlaneseq
        %v6497 = vshrl.u32 %v6496, 7
        %v6498 = vadd.s32 %v6497, 48
        %6499 = vset.pattern.permute.xlu0 %v6498
        %6500 = vperm.xlu0 %6499, %v6459
        %v6501 = vpop.permute.xlu0 %6500
        %v6502 = vlaneseq
        %v6503 = vshrl.u32 %v6502, 7
        %v6504 = vadd.s32 %v6503, 56
        %6505 = vset.pattern.permute.xlu0 %v6504
        %6506 = vperm.xlu0 %6505, %v6459
        %v6507 = vpop.permute.xlu0 %6506
        %v6508 = vlaneseq
        %v6509 = vshrl.u32 %v6508, 7
        %v6510 = vadd.s32 %v6509, 64
        %6511 = vset.pattern.permute.xlu0 %v6510
        %6512 = vperm.xlu0 %6511, %v6459
        %v6513 = vpop.permute.xlu0 %6512
        %v6514 = vlaneseq
        %v6515 = vshrl.u32 %v6514, 7
        %v6516 = vadd.s32 %v6515, 72
        %6517 = vset.pattern.permute.xlu0 %v6516
        %6518 = vperm.xlu0 %6517, %v6459
        %v6519 = vpop.permute.xlu0 %6518
        %v6520 = vlaneseq
        %v6521 = vshrl.u32 %v6520, 7
        %v6522 = vadd.s32 %v6521, 80
        %6523 = vset.pattern.permute.xlu0 %v6522
        %6524 = vperm.xlu0 %6523, %v6459
        %v6525 = vpop.permute.xlu0 %6524
        %v6526 = vlaneseq
        %v6527 = vshrl.u32 %v6526, 7
        %v6528 = vadd.s32 %v6527, 88
        %6529 = vset.pattern.permute.xlu0 %v6528
        %6530 = vperm.xlu0 %6529, %v6459
        %v6531 = vpop.permute.xlu0 %6530
        %v6532 = vlaneseq
        %v6533 = vshrl.u32 %v6532, 7
        %v6534 = vadd.s32 %v6533, 96
        %6535 = vset.pattern.permute.xlu0 %v6534
        %6536 = vperm.xlu0 %6535, %v6459
        %v6537 = vpop.permute.xlu0 %6536
        %v6538 = vlaneseq
        %v6539 = vshrl.u32 %v6538, 7
        %v6540 = vadd.s32 %v6539, 104
        %6541 = vset.pattern.permute.xlu0 %v6540
        %6542 = vperm.xlu0 %6541, %v6459
        %v6543 = vpop.permute.xlu0 %6542
        %v6544 = vlaneseq
        %v6545 = vshrl.u32 %v6544, 7
        %v6546 = vadd.s32 %v6545, 112
        %6547 = vset.pattern.permute.xlu0 %v6546
        %6548 = vperm.xlu0 %6547, %v6459
        %v6549 = vpop.permute.xlu0 %6548
        %v6550 = vlaneseq
        %v6551 = vshrl.u32 %v6550, 7
        %v6552 = vadd.s32 %v6551, 120
        %6553 = vset.pattern.permute.xlu0 %v6552
        %6554 = vperm.xlu0 %6553, %v6459
        %v6555 = vpop.permute.xlu0 %6554
        %v6556 = vperm.slane %v6346, 2
        %v6557 = vlaneseq
        %v6558 = vshrl.u32 %v6557, 7
        %6560 = vset.pattern.permute.xlu0 %v6558
        %6561 = vperm.xlu0 %6560, %v6556
        %v6562 = vpop.permute.xlu0 %6561
        %v6563 = vlaneseq
        %v6564 = vshrl.u32 %v6563, 7
        %v6565 = vadd.s32 %v6564, 8
        %6566 = vset.pattern.permute.xlu0 %v6565
        %6567 = vperm.xlu0 %6566, %v6556
        %v6568 = vpop.permute.xlu0 %6567
        %v6569 = vlaneseq
        %v6570 = vshrl.u32 %v6569, 7
        %v6571 = vadd.s32 %v6570, 16
        %6572 = vset.pattern.permute.xlu0 %v6571
        %6573 = vperm.xlu0 %6572, %v6556
        %v6574 = vpop.permute.xlu0 %6573
        %v6575 = vlaneseq
        %v6576 = vshrl.u32 %v6575, 7
        %v6577 = vadd.s32 %v6576, 24
        %6578 = vset.pattern.permute.xlu0 %v6577
        %6579 = vperm.xlu0 %6578, %v6556
        %v6580 = vpop.permute.xlu0 %6579
        %v6581 = vlaneseq
        %v6582 = vshrl.u32 %v6581, 7
        %v6583 = vadd.s32 %v6582, 32
        %6584 = vset.pattern.permute.xlu0 %v6583
        %6585 = vperm.xlu0 %6584, %v6556
        %v6586 = vpop.permute.xlu0 %6585
        %v6587 = vlaneseq
        %v6588 = vshrl.u32 %v6587, 7
        %v6589 = vadd.s32 %v6588, 40
        %6590 = vset.pattern.permute.xlu0 %v6589
        %6591 = vperm.xlu0 %6590, %v6556
        %v6592 = vpop.permute.xlu0 %6591
        %v6593 = vlaneseq
        %v6594 = vshrl.u32 %v6593, 7
        %v6595 = vadd.s32 %v6594, 48
        %6596 = vset.pattern.permute.xlu0 %v6595
        %6597 = vperm.xlu0 %6596, %v6556
        %v6598 = vpop.permute.xlu0 %6597
        %v6599 = vlaneseq
        %v6600 = vshrl.u32 %v6599, 7
        %v6601 = vadd.s32 %v6600, 56
        %6602 = vset.pattern.permute.xlu0 %v6601
        %6603 = vperm.xlu0 %6602, %v6556
        %v6604 = vpop.permute.xlu0 %6603
        %v6605 = vlaneseq
        %v6606 = vshrl.u32 %v6605, 7
        %v6607 = vadd.s32 %v6606, 64
        %6608 = vset.pattern.permute.xlu0 %v6607
        %6609 = vperm.xlu0 %6608, %v6556
        %v6610 = vpop.permute.xlu0 %6609
        %v6611 = vlaneseq
        %v6612 = vshrl.u32 %v6611, 7
        %v6613 = vadd.s32 %v6612, 72
        %6614 = vset.pattern.permute.xlu0 %v6613
        %6615 = vperm.xlu0 %6614, %v6556
        %v6616 = vpop.permute.xlu0 %6615
        %v6617 = vlaneseq
        %v6618 = vshrl.u32 %v6617, 7
        %v6619 = vadd.s32 %v6618, 80
        %6620 = vset.pattern.permute.xlu0 %v6619
        %6621 = vperm.xlu0 %6620, %v6556
        %v6622 = vpop.permute.xlu0 %6621
        %v6623 = vlaneseq
        %v6624 = vshrl.u32 %v6623, 7
        %v6625 = vadd.s32 %v6624, 88
        %6626 = vset.pattern.permute.xlu0 %v6625
        %6627 = vperm.xlu0 %6626, %v6556
        %v6628 = vpop.permute.xlu0 %6627
        %v6629 = vlaneseq
        %v6630 = vshrl.u32 %v6629, 7
        %v6631 = vadd.s32 %v6630, 96
        %6632 = vset.pattern.permute.xlu0 %v6631
        %6633 = vperm.xlu0 %6632, %v6556
        %v6634 = vpop.permute.xlu0 %6633
        %v6635 = vlaneseq
        %v6636 = vshrl.u32 %v6635, 7
        %v6637 = vadd.s32 %v6636, 104
        %6638 = vset.pattern.permute.xlu0 %v6637
        %6639 = vperm.xlu0 %6638, %v6556
        %v6640 = vpop.permute.xlu0 %6639
        %v6641 = vlaneseq
        %v6642 = vshrl.u32 %v6641, 7
        %v6643 = vadd.s32 %v6642, 112
        %6644 = vset.pattern.permute.xlu0 %v6643
        %6645 = vperm.xlu0 %6644, %v6556
        %v6646 = vpop.permute.xlu0 %6645
        %v6647 = vlaneseq
        %v6648 = vshrl.u32 %v6647, 7
        %v6649 = vadd.s32 %v6648, 120
        %6650 = vset.pattern.permute.xlu0 %v6649
        %6651 = vperm.xlu0 %6650, %v6556
        %v6652 = vpop.permute.xlu0 %6651
        %v6653 = vperm.slane %v6346, 3
        %v6654 = vlaneseq
        %v6655 = vshrl.u32 %v6654, 7
        %6657 = vset.pattern.permute.xlu0 %v6655
        %6658 = vperm.xlu0 %6657, %v6653
        %v6659 = vpop.permute.xlu0 %6658
        %v6660 = vlaneseq
        %v6661 = vshrl.u32 %v6660, 7
        %v6662 = vadd.s32 %v6661, 8
        %6663 = vset.pattern.permute.xlu0 %v6662
        %6664 = vperm.xlu0 %6663, %v6653
        %v6665 = vpop.permute.xlu0 %6664
        %v6666 = vlaneseq
        %v6667 = vshrl.u32 %v6666, 7
        %v6668 = vadd.s32 %v6667, 16
        %6669 = vset.pattern.permute.xlu0 %v6668
        %6670 = vperm.xlu0 %6669, %v6653
        %v6671 = vpop.permute.xlu0 %6670
        %v6672 = vlaneseq
        %v6673 = vshrl.u32 %v6672, 7
        %v6674 = vadd.s32 %v6673, 24
        %6675 = vset.pattern.permute.xlu0 %v6674
        %6676 = vperm.xlu0 %6675, %v6653
        %v6677 = vpop.permute.xlu0 %6676
        %v6678 = vlaneseq
        %v6679 = vshrl.u32 %v6678, 7
        %v6680 = vadd.s32 %v6679, 32
        %6681 = vset.pattern.permute.xlu0 %v6680
        %6682 = vperm.xlu0 %6681, %v6653
        %v6683 = vpop.permute.xlu0 %6682
        %v6684 = vlaneseq
        %v6685 = vshrl.u32 %v6684, 7
        %v6686 = vadd.s32 %v6685, 40
        %6687 = vset.pattern.permute.xlu0 %v6686
        %6688 = vperm.xlu0 %6687, %v6653
        %v6689 = vpop.permute.xlu0 %6688
        %v6690 = vlaneseq
        %v6691 = vshrl.u32 %v6690, 7
        %v6692 = vadd.s32 %v6691, 48
        %6693 = vset.pattern.permute.xlu0 %v6692
        %6694 = vperm.xlu0 %6693, %v6653
        %v6695 = vpop.permute.xlu0 %6694
        %v6696 = vlaneseq
        %v6697 = vshrl.u32 %v6696, 7
        %v6698 = vadd.s32 %v6697, 56
        %6699 = vset.pattern.permute.xlu0 %v6698
        %6700 = vperm.xlu0 %6699, %v6653
        %v6701 = vpop.permute.xlu0 %6700
        %v6702 = vlaneseq
        %v6703 = vshrl.u32 %v6702, 7
        %v6704 = vadd.s32 %v6703, 64
        %6705 = vset.pattern.permute.xlu0 %v6704
        %6706 = vperm.xlu0 %6705, %v6653
        %v6707 = vpop.permute.xlu0 %6706
        %v6708 = vlaneseq
        %v6709 = vshrl.u32 %v6708, 7
        %v6710 = vadd.s32 %v6709, 72
        %6711 = vset.pattern.permute.xlu0 %v6710
        %6712 = vperm.xlu0 %6711, %v6653
        %v6713 = vpop.permute.xlu0 %6712
        %v6714 = vlaneseq
        %v6715 = vshrl.u32 %v6714, 7
        %v6716 = vadd.s32 %v6715, 80
        %6717 = vset.pattern.permute.xlu0 %v6716
        %6718 = vperm.xlu0 %6717, %v6653
        %v6719 = vpop.permute.xlu0 %6718
        %v6720 = vlaneseq
        %v6721 = vshrl.u32 %v6720, 7
        %v6722 = vadd.s32 %v6721, 88
        %6723 = vset.pattern.permute.xlu0 %v6722
        %6724 = vperm.xlu0 %6723, %v6653
        %v6725 = vpop.permute.xlu0 %6724
        %v6726 = vlaneseq
        %v6727 = vshrl.u32 %v6726, 7
        %v6728 = vadd.s32 %v6727, 96
        %6729 = vset.pattern.permute.xlu0 %v6728
        %6730 = vperm.xlu0 %6729, %v6653
        %v6731 = vpop.permute.xlu0 %6730
        %v6732 = vlaneseq
        %v6733 = vshrl.u32 %v6732, 7
        %v6734 = vadd.s32 %v6733, 104
        %6735 = vset.pattern.permute.xlu0 %v6734
        %6736 = vperm.xlu0 %6735, %v6653
        %v6737 = vpop.permute.xlu0 %6736
        %v6738 = vlaneseq
        %v6739 = vshrl.u32 %v6738, 7
        %v6740 = vadd.s32 %v6739, 112
        %6741 = vset.pattern.permute.xlu0 %v6740
        %6742 = vperm.xlu0 %6741, %v6653
        %v6743 = vpop.permute.xlu0 %6742
        %v6744 = vlaneseq
        %v6745 = vshrl.u32 %v6744, 7
        %v6746 = vadd.s32 %v6745, 120
        %6747 = vset.pattern.permute.xlu0 %v6746
        %6748 = vperm.xlu0 %6747, %v6653
        %v6749 = vpop.permute.xlu0 %6748
        %6751 = vst [vmem:[#allocation1] sm:$0xff] %v6346
        %s6752 = scalar_lea.vmem [#allocation1], 4
        %v6753 = vld [vmem:[%s6752] ss:$9 sm:$0xff]
        %s6754 = scalar_lea.vmem [#allocation1], 5
        %v6755 = vld [vmem:[%s6754] ss:$9 sm:$0xff]
        %s6756 = scalar_lea.vmem [#allocation1], 6
        %v6757 = vld [vmem:[%s6756] ss:$9 sm:$0xff]
        %s6758 = scalar_lea.vmem [#allocation1], 7
        %v6759 = vld [vmem:[%s6758] ss:$9 sm:$0xff]
        %v6760 = vperm.slane %v6753, 0
        %v6761 = vperm.slane %v6755, 0
        %v6762 = vperm.slane %v6757, 0
        %v6763 = vperm.slane %v6759, 0
        %v6768 = vadd.f32 %v6368, %v6760
        %v6769 = vadd.f32 %v6374, %v6760
        %v6770 = vadd.f32 %v6380, %v6760
        %v6771 = vadd.f32 %v6386, %v6760
        %v6772 = vadd.f32 %v6392, %v6760
        %v6773 = vadd.f32 %v6398, %v6760
        %v6774 = vadd.f32 %v6404, %v6760
        %v6775 = vadd.f32 %v6410, %v6760
        %v6776 = vadd.f32 %v6416, %v6760
        %v6777 = vadd.f32 %v6422, %v6760
        %v6778 = vadd.f32 %v6428, %v6760
        %v6779 = vadd.f32 %v6434, %v6760
        %v6780 = vadd.f32 %v6440, %v6760
        %v6781 = vadd.f32 %v6446, %v6760
        %v6782 = vadd.f32 %v6452, %v6760
        %v6783 = vadd.f32 %v6458, %v6760
        %v6784 = vadd.f32 %v6465, %v6761
        %v6785 = vadd.f32 %v6471, %v6761
        %v6786 = vadd.f32 %v6477, %v6761
        %v6787 = vadd.f32 %v6483, %v6761
        %v6788 = vadd.f32 %v6489, %v6761
        %v6789 = vadd.f32 %v6495, %v6761
        %v6790 = vadd.f32 %v6501, %v6761
        %v6791 = vadd.f32 %v6507, %v6761
        %v6792 = vadd.f32 %v6513, %v6761
        %v6793 = vadd.f32 %v6519, %v6761
        %v6794 = vadd.f32 %v6525, %v6761
        %v6795 = vadd.f32 %v6531, %v6761
        %v6796 = vadd.f32 %v6537, %v6761
        %v6797 = vadd.f32 %v6543, %v6761
        %v6798 = vadd.f32 %v6549, %v6761
        %v6799 = vadd.f32 %v6555, %v6761
        %v6800 = vadd.f32 %v6562, %v6762
        %v6801 = vadd.f32 %v6568, %v6762
        %v6802 = vadd.f32 %v6574, %v6762
        %v6803 = vadd.f32 %v6580, %v6762
        %v6804 = vadd.f32 %v6586, %v6762
        %v6805 = vadd.f32 %v6592, %v6762
        %v6806 = vadd.f32 %v6598, %v6762
        %v6807 = vadd.f32 %v6604, %v6762
        %v6808 = vadd.f32 %v6610, %v6762
        %v6809 = vadd.f32 %v6616, %v6762
        %v6810 = vadd.f32 %v6622, %v6762
        %v6811 = vadd.f32 %v6628, %v6762
        %v6812 = vadd.f32 %v6634, %v6762
        %v6813 = vadd.f32 %v6640, %v6762
        %v6814 = vadd.f32 %v6646, %v6762
        %v6815 = vadd.f32 %v6652, %v6762
        %v6816 = vadd.f32 %v6659, %v6763
        %v6817 = vadd.f32 %v6665, %v6763
        %v6818 = vadd.f32 %v6671, %v6763
        %v6819 = vadd.f32 %v6677, %v6763
        %v6820 = vadd.f32 %v6683, %v6763
        %v6821 = vadd.f32 %v6689, %v6763
        %v6822 = vadd.f32 %v6695, %v6763
        %v6823 = vadd.f32 %v6701, %v6763
        %v6824 = vadd.f32 %v6707, %v6763
        %v6825 = vadd.f32 %v6713, %v6763
        %v6826 = vadd.f32 %v6719, %v6763
        %v6827 = vadd.f32 %v6725, %v6763
        %v6828 = vadd.f32 %v6731, %v6763
        %v6829 = vadd.f32 %v6737, %v6763
        %v6830 = vadd.f32 %v6743, %v6763
        %v6831 = vadd.f32 %v6749, %v6763
        %vm6832 = vcmp.gt.f32.partialorder %v6768, 0.0
        %vm6833 = vcmp.gt.f32.partialorder %v6769, 0.0
        %vm6834 = vcmp.gt.f32.partialorder %v6770, 0.0
        %vm6835 = vcmp.gt.f32.partialorder %v6771, 0.0
        %vm6836 = vcmp.gt.f32.partialorder %v6772, 0.0
        %vm6837 = vcmp.gt.f32.partialorder %v6773, 0.0
        %vm6838 = vcmp.gt.f32.partialorder %v6774, 0.0
        %vm6839 = vcmp.gt.f32.partialorder %v6775, 0.0
        %vm6840 = vcmp.gt.f32.partialorder %v6776, 0.0
        %vm6841 = vcmp.gt.f32.partialorder %v6777, 0.0
        %vm6842 = vcmp.gt.f32.partialorder %v6778, 0.0
        %vm6843 = vcmp.gt.f32.partialorder %v6779, 0.0
        %vm6844 = vcmp.gt.f32.partialorder %v6780, 0.0
        %vm6845 = vcmp.gt.f32.partialorder %v6781, 0.0
        %vm6846 = vcmp.gt.f32.partialorder %v6782, 0.0
        %vm6847 = vcmp.gt.f32.partialorder %v6783, 0.0
        %vm6848 = vcmp.gt.f32.partialorder %v6784, 0.0
        %vm6849 = vcmp.gt.f32.partialorder %v6785, 0.0
        %vm6850 = vcmp.gt.f32.partialorder %v6786, 0.0
        %vm6851 = vcmp.gt.f32.partialorder %v6787, 0.0
        %vm6852 = vcmp.gt.f32.partialorder %v6788, 0.0
        %vm6853 = vcmp.gt.f32.partialorder %v6789, 0.0
        %vm6854 = vcmp.gt.f32.partialorder %v6790, 0.0
        %vm6855 = vcmp.gt.f32.partialorder %v6791, 0.0
        %vm6856 = vcmp.gt.f32.partialorder %v6792, 0.0
        %vm6857 = vcmp.gt.f32.partialorder %v6793, 0.0
        %vm6858 = vcmp.gt.f32.partialorder %v6794, 0.0
        %vm6859 = vcmp.gt.f32.partialorder %v6795, 0.0
        %vm6860 = vcmp.gt.f32.partialorder %v6796, 0.0
        %vm6861 = vcmp.gt.f32.partialorder %v6797, 0.0
        %vm6862 = vcmp.gt.f32.partialorder %v6798, 0.0
        %vm6863 = vcmp.gt.f32.partialorder %v6799, 0.0
        %vm6864 = vcmp.gt.f32.partialorder %v6800, 0.0
        %vm6865 = vcmp.gt.f32.partialorder %v6801, 0.0
        %vm6866 = vcmp.gt.f32.partialorder %v6802, 0.0
        %vm6867 = vcmp.gt.f32.partialorder %v6803, 0.0
        %vm6868 = vcmp.gt.f32.partialorder %v6804, 0.0
        %vm6869 = vcmp.gt.f32.partialorder %v6805, 0.0
        %vm6870 = vcmp.gt.f32.partialorder %v6806, 0.0
        %vm6871 = vcmp.gt.f32.partialorder %v6807, 0.0
        %vm6872 = vcmp.gt.f32.partialorder %v6808, 0.0
        %vm6873 = vcmp.gt.f32.partialorder %v6809, 0.0
        %vm6874 = vcmp.gt.f32.partialorder %v6810, 0.0
        %vm6875 = vcmp.gt.f32.partialorder %v6811, 0.0
        %vm6876 = vcmp.gt.f32.partialorder %v6812, 0.0
        %vm6877 = vcmp.gt.f32.partialorder %v6813, 0.0
        %vm6878 = vcmp.gt.f32.partialorder %v6814, 0.0
        %vm6879 = vcmp.gt.f32.partialorder %v6815, 0.0
        %vm6880 = vcmp.gt.f32.partialorder %v6816, 0.0
        %vm6881 = vcmp.gt.f32.partialorder %v6817, 0.0
        %vm6882 = vcmp.gt.f32.partialorder %v6818, 0.0
        %vm6883 = vcmp.gt.f32.partialorder %v6819, 0.0
        %vm6884 = vcmp.gt.f32.partialorder %v6820, 0.0
        %vm6885 = vcmp.gt.f32.partialorder %v6821, 0.0
        %vm6886 = vcmp.gt.f32.partialorder %v6822, 0.0
        %vm6887 = vcmp.gt.f32.partialorder %v6823, 0.0
        %vm6888 = vcmp.gt.f32.partialorder %v6824, 0.0
        %vm6889 = vcmp.gt.f32.partialorder %v6825, 0.0
        %vm6890 = vcmp.gt.f32.partialorder %v6826, 0.0
        %vm6891 = vcmp.gt.f32.partialorder %v6827, 0.0
        %vm6892 = vcmp.gt.f32.partialorder %v6828, 0.0
        %vm6893 = vcmp.gt.f32.partialorder %v6829, 0.0
        %vm6894 = vcmp.gt.f32.partialorder %v6830, 0.0
        %vm6895 = vcmp.gt.f32.partialorder %v6831, 0.0
        %v6896 = vmul.f32 %v6768, 0.2
        %v6897 = vmul.f32 %v6769, 0.2
        %v6898 = vmul.f32 %v6770, 0.2
        %v6899 = vmul.f32 %v6771, 0.2
        %v6900 = vmul.f32 %v6772, 0.2
        %v6901 = vmul.f32 %v6773, 0.2
        %v6902 = vmul.f32 %v6774, 0.2
        %v6903 = vmul.f32 %v6775, 0.2
        %v6904 = vmul.f32 %v6776, 0.2
        %v6905 = vmul.f32 %v6777, 0.2
        %v6906 = vmul.f32 %v6778, 0.2
        %v6907 = vmul.f32 %v6779, 0.2
        %v6908 = vmul.f32 %v6780, 0.2
        %v6909 = vmul.f32 %v6781, 0.2
        %v6910 = vmul.f32 %v6782, 0.2
        %v6911 = vmul.f32 %v6783, 0.2
        %v6912 = vmul.f32 %v6784, 0.2
        %v6913 = vmul.f32 %v6785, 0.2
        %v6914 = vmul.f32 %v6786, 0.2
        %v6915 = vmul.f32 %v6787, 0.2
        %v6916 = vmul.f32 %v6788, 0.2
        %v6917 = vmul.f32 %v6789, 0.2
        %v6918 = vmul.f32 %v6790, 0.2
        %v6919 = vmul.f32 %v6791, 0.2
        %v6920 = vmul.f32 %v6792, 0.2
        %v6921 = vmul.f32 %v6793, 0.2
        %v6922 = vmul.f32 %v6794, 0.2
        %v6923 = vmul.f32 %v6795, 0.2
        %v6924 = vmul.f32 %v6796, 0.2
        %v6925 = vmul.f32 %v6797, 0.2
        %v6926 = vmul.f32 %v6798, 0.2
        %v6927 = vmul.f32 %v6799, 0.2
        %v6928 = vmul.f32 %v6800, 0.2
        %v6929 = vmul.f32 %v6801, 0.2
        %v6930 = vmul.f32 %v6802, 0.2
        %v6931 = vmul.f32 %v6803, 0.2
        %v6932 = vmul.f32 %v6804, 0.2
        %v6933 = vmul.f32 %v6805, 0.2
        %v6934 = vmul.f32 %v6806, 0.2
        %v6935 = vmul.f32 %v6807, 0.2
        %v6936 = vmul.f32 %v6808, 0.2
        %v6937 = vmul.f32 %v6809, 0.2
        %v6938 = vmul.f32 %v6810, 0.2
        %v6939 = vmul.f32 %v6811, 0.2
        %v6940 = vmul.f32 %v6812, 0.2
        %v6941 = vmul.f32 %v6813, 0.2
        %v6942 = vmul.f32 %v6814, 0.2
        %v6943 = vmul.f32 %v6815, 0.2
        %v6944 = vmul.f32 %v6816, 0.2
        %v6945 = vmul.f32 %v6817, 0.2
        %v6946 = vmul.f32 %v6818, 0.2
        %v6947 = vmul.f32 %v6819, 0.2
        %v6948 = vmul.f32 %v6820, 0.2
        %v6949 = vmul.f32 %v6821, 0.2
        %v6950 = vmul.f32 %v6822, 0.2
        %v6951 = vmul.f32 %v6823, 0.2
        %v6952 = vmul.f32 %v6824, 0.2
        %v6953 = vmul.f32 %v6825, 0.2
        %v6954 = vmul.f32 %v6826, 0.2
        %v6955 = vmul.f32 %v6827, 0.2
        %v6956 = vmul.f32 %v6828, 0.2
        %v6957 = vmul.f32 %v6829, 0.2
        %v6958 = vmul.f32 %v6830, 0.2
        %v6959 = vmul.f32 %v6831, 0.2
        %v6960 = vsel %vm6832, %v6768, %v6896
        %v6961 = vsel %vm6833, %v6769, %v6897
        %v6962 = vsel %vm6834, %v6770, %v6898
        %v6963 = vsel %vm6835, %v6771, %v6899
        %v6964 = vsel %vm6836, %v6772, %v6900
        %v6965 = vsel %vm6837, %v6773, %v6901
        %v6966 = vsel %vm6838, %v6774, %v6902
        %v6967 = vsel %vm6839, %v6775, %v6903
        %v6968 = vsel %vm6840, %v6776, %v6904
        %v6969 = vsel %vm6841, %v6777, %v6905
        %v6970 = vsel %vm6842, %v6778, %v6906
        %v6971 = vsel %vm6843, %v6779, %v6907
        %v6972 = vsel %vm6844, %v6780, %v6908
        %v6973 = vsel %vm6845, %v6781, %v6909
        %v6974 = vsel %vm6846, %v6782, %v6910
        %v6975 = vsel %vm6847, %v6783, %v6911
        %v6976 = vsel %vm6848, %v6784, %v6912
        %v6977 = vsel %vm6849, %v6785, %v6913
        %v6978 = vsel %vm6850, %v6786, %v6914
        %v6979 = vsel %vm6851, %v6787, %v6915
        %v6980 = vsel %vm6852, %v6788, %v6916
        %v6981 = vsel %vm6853, %v6789, %v6917
        %v6982 = vsel %vm6854, %v6790, %v6918
        %v6983 = vsel %vm6855, %v6791, %v6919
        %v6984 = vsel %vm6856, %v6792, %v6920
        %v6985 = vsel %vm6857, %v6793, %v6921
        %v6986 = vsel %vm6858, %v6794, %v6922
        %v6987 = vsel %vm6859, %v6795, %v6923
        %v6988 = vsel %vm6860, %v6796, %v6924
        %v6989 = vsel %vm6861, %v6797, %v6925
        %v6990 = vsel %vm6862, %v6798, %v6926
        %v6991 = vsel %vm6863, %v6799, %v6927
        %v6992 = vsel %vm6864, %v6800, %v6928
        %v6993 = vsel %vm6865, %v6801, %v6929
        %v6994 = vsel %vm6866, %v6802, %v6930
        %v6995 = vsel %vm6867, %v6803, %v6931
        %v6996 = vsel %vm6868, %v6804, %v6932
        %v6997 = vsel %vm6869, %v6805, %v6933
        %v6998 = vsel %vm6870, %v6806, %v6934
        %v6999 = vsel %vm6871, %v6807, %v6935
        %v7000 = vsel %vm6872, %v6808, %v6936
        %v7001 = vsel %vm6873, %v6809, %v6937
        %v7002 = vsel %vm6874, %v6810, %v6938
        %v7003 = vsel %vm6875, %v6811, %v6939
        %v7004 = vsel %vm6876, %v6812, %v6940
        %v7005 = vsel %vm6877, %v6813, %v6941
        %v7006 = vsel %vm6878, %v6814, %v6942
        %v7007 = vsel %vm6879, %v6815, %v6943
        %v7008 = vsel %vm6880, %v6816, %v6944
        %v7009 = vsel %vm6881, %v6817, %v6945
        %v7010 = vsel %vm6882, %v6818, %v6946
        %v7011 = vsel %vm6883, %v6819, %v6947
        %v7012 = vsel %vm6884, %v6820, %v6948
        %v7013 = vsel %vm6885, %v6821, %v6949
        %v7014 = vsel %vm6886, %v6822, %v6950
        %v7015 = vsel %vm6887, %v6823, %v6951
        %v7016 = vsel %vm6888, %v6824, %v6952
        %v7017 = vsel %vm6889, %v6825, %v6953
        %v7018 = vsel %vm6890, %v6826, %v6954
        %v7019 = vsel %vm6891, %v6827, %v6955
        %v7020 = vsel %vm6892, %v6828, %v6956
        %v7021 = vsel %vm6893, %v6829, %v6957
        %v7022 = vsel %vm6894, %v6830, %v6958
        %v7023 = vsel %vm6895, %v6831, %v6959
        %v7024 = vadd.f32 %v6960, %v600
        %v7025 = vadd.f32 %v6961, %v601
        %v7026 = vadd.f32 %v6962, %v602
        %v7027 = vadd.f32 %v6963, %v603
        %v7028 = vadd.f32 %v6964, %v604
        %v7029 = vadd.f32 %v6965, %v605
        %v7030 = vadd.f32 %v6966, %v606
        %v7031 = vadd.f32 %v6967, %v607
        %v7032 = vadd.f32 %v6968, %v608
        %v7033 = vadd.f32 %v6969, %v609
        %v7034 = vadd.f32 %v6970, %v610
        %v7035 = vadd.f32 %v6971, %v611
        %v7036 = vadd.f32 %v6972, %v612
        %v7037 = vadd.f32 %v6973, %v613
        %v7038 = vadd.f32 %v6974, %v614
        %v7039 = vadd.f32 %v6975, %v615
        %v7040 = vadd.f32 %v6976, %v600
        %v7041 = vadd.f32 %v6977, %v601
        %v7042 = vadd.f32 %v6978, %v602
        %v7043 = vadd.f32 %v6979, %v603
        %v7044 = vadd.f32 %v6980, %v604
        %v7045 = vadd.f32 %v6981, %v605
        %v7046 = vadd.f32 %v6982, %v606
        %v7047 = vadd.f32 %v6983, %v607
        %v7048 = vadd.f32 %v6984, %v608
        %v7049 = vadd.f32 %v6985, %v609
        %v7050 = vadd.f32 %v6986, %v610
        %v7051 = vadd.f32 %v6987, %v611
        %v7052 = vadd.f32 %v6988, %v612
        %v7053 = vadd.f32 %v6989, %v613
        %v7054 = vadd.f32 %v6990, %v614
        %v7055 = vadd.f32 %v6991, %v615
        %v7056 = vadd.f32 %v6992, %v616
        %v7057 = vadd.f32 %v6993, %v617
        %v7058 = vadd.f32 %v6994, %v618
        %v7059 = vadd.f32 %v6995, %v619
        %v7060 = vadd.f32 %v6996, %v620
        %v7061 = vadd.f32 %v6997, %v621
        %v7062 = vadd.f32 %v6998, %v622
        %v7063 = vadd.f32 %v6999, %v623
        %v7064 = vadd.f32 %v7000, %v624
        %v7065 = vadd.f32 %v7001, %v625
        %v7066 = vadd.f32 %v7002, %v626
        %v7067 = vadd.f32 %v7003, %v627
        %v7068 = vadd.f32 %v7004, %v628
        %v7069 = vadd.f32 %v7005, %v629
        %v7070 = vadd.f32 %v7006, %v630
        %v7071 = vadd.f32 %v7007, %v631
        %v7072 = vadd.f32 %v7008, %v616
        %v7073 = vadd.f32 %v7009, %v617
        %v7074 = vadd.f32 %v7010, %v618
        %v7075 = vadd.f32 %v7011, %v619
        %v7076 = vadd.f32 %v7012, %v620
        %v7077 = vadd.f32 %v7013, %v621
        %v7078 = vadd.f32 %v7014, %v622
        %v7079 = vadd.f32 %v7015, %v623
        %v7080 = vadd.f32 %v7016, %v624
        %v7081 = vadd.f32 %v7017, %v625
        %v7082 = vadd.f32 %v7018, %v626
        %v7083 = vadd.f32 %v7019, %v627
        %v7084 = vadd.f32 %v7020, %v628
        %v7085 = vadd.f32 %v7021, %v629
        %v7086 = vadd.f32 %v7022, %v630
        %v7087 = vadd.f32 %v7023, %v631
        %7088 = vmax.xlane.f32.xlu0 %v7024
        %v7089 = vpop.xlane.xlu0 %7088
        %7090 = vmax.xlane.f32.xlu0 %v7025
        %v7091 = vpop.xlane.xlu0 %7090
        %7092 = vmax.xlane.f32.xlu0 %v7026
        %v7093 = vpop.xlane.xlu0 %7092
        %7094 = vmax.xlane.f32.xlu0 %v7027
        %v7095 = vpop.xlane.xlu0 %7094
        %7096 = vmax.xlane.f32.xlu0 %v7028
        %v7097 = vpop.xlane.xlu0 %7096
        %7098 = vmax.xlane.f32.xlu0 %v7029
        %v7099 = vpop.xlane.xlu0 %7098
        %7100 = vmax.xlane.f32.xlu0 %v7030
        %v7101 = vpop.xlane.xlu0 %7100
        %7102 = vmax.xlane.f32.xlu0 %v7031
        %v7103 = vpop.xlane.xlu0 %7102
        %7104 = vmax.xlane.f32.xlu0 %v7032
        %v7105 = vpop.xlane.xlu0 %7104
        %7106 = vmax.xlane.f32.xlu0 %v7033
        %v7107 = vpop.xlane.xlu0 %7106
        %7108 = vmax.xlane.f32.xlu0 %v7034
        %v7109 = vpop.xlane.xlu0 %7108
        %7110 = vmax.xlane.f32.xlu0 %v7035
        %v7111 = vpop.xlane.xlu0 %7110
        %7112 = vmax.xlane.f32.xlu0 %v7036
        %v7113 = vpop.xlane.xlu0 %7112
        %7114 = vmax.xlane.f32.xlu0 %v7037
        %v7115 = vpop.xlane.xlu0 %7114
        %7116 = vmax.xlane.f32.xlu0 %v7038
        %v7117 = vpop.xlane.xlu0 %7116
        %7118 = vmax.xlane.f32.xlu0 %v7039
        %v7119 = vpop.xlane.xlu0 %7118
        %7120 = vmax.xlane.f32.xlu0 %v7040
        %v7121 = vpop.xlane.xlu0 %7120
        %7122 = vmax.xlane.f32.xlu0 %v7041
        %v7123 = vpop.xlane.xlu0 %7122
        %7124 = vmax.xlane.f32.xlu0 %v7042
        %v7125 = vpop.xlane.xlu0 %7124
        %7126 = vmax.xlane.f32.xlu0 %v7043
        %v7127 = vpop.xlane.xlu0 %7126
        %7128 = vmax.xlane.f32.xlu0 %v7044
        %v7129 = vpop.xlane.xlu0 %7128
        %7130 = vmax.xlane.f32.xlu0 %v7045
        %v7131 = vpop.xlane.xlu0 %7130
        %7132 = vmax.xlane.f32.xlu0 %v7046
        %v7133 = vpop.xlane.xlu0 %7132
        %7134 = vmax.xlane.f32.xlu0 %v7047
        %v7135 = vpop.xlane.xlu0 %7134
        %7136 = vmax.xlane.f32.xlu0 %v7048
        %v7137 = vpop.xlane.xlu0 %7136
        %7138 = vmax.xlane.f32.xlu0 %v7049
        %v7139 = vpop.xlane.xlu0 %7138
        %7140 = vmax.xlane.f32.xlu0 %v7050
        %v7141 = vpop.xlane.xlu0 %7140
        %7142 = vmax.xlane.f32.xlu0 %v7051
        %v7143 = vpop.xlane.xlu0 %7142
        %7144 = vmax.xlane.f32.xlu0 %v7052
        %v7145 = vpop.xlane.xlu0 %7144
        %7146 = vmax.xlane.f32.xlu0 %v7053
        %v7147 = vpop.xlane.xlu0 %7146
        %7148 = vmax.xlane.f32.xlu0 %v7054
        %v7149 = vpop.xlane.xlu0 %7148
        %7150 = vmax.xlane.f32.xlu0 %v7055
        %v7151 = vpop.xlane.xlu0 %7150
        %7152 = vmax.xlane.f32.xlu0 %v7056
        %v7153 = vpop.xlane.xlu0 %7152
        %7154 = vmax.xlane.f32.xlu0 %v7057
        %v7155 = vpop.xlane.xlu0 %7154
        %7156 = vmax.xlane.f32.xlu0 %v7058
        %v7157 = vpop.xlane.xlu0 %7156
        %7158 = vmax.xlane.f32.xlu0 %v7059
        %v7159 = vpop.xlane.xlu0 %7158
        %7160 = vmax.xlane.f32.xlu0 %v7060
        %v7161 = vpop.xlane.xlu0 %7160
        %7162 = vmax.xlane.f32.xlu0 %v7061
        %v7163 = vpop.xlane.xlu0 %7162
        %7164 = vmax.xlane.f32.xlu0 %v7062
        %v7165 = vpop.xlane.xlu0 %7164
        %7166 = vmax.xlane.f32.xlu0 %v7063
        %v7167 = vpop.xlane.xlu0 %7166
        %7168 = vmax.xlane.f32.xlu0 %v7064
        %v7169 = vpop.xlane.xlu0 %7168
        %7170 = vmax.xlane.f32.xlu0 %v7065
        %v7171 = vpop.xlane.xlu0 %7170
        %7172 = vmax.xlane.f32.xlu0 %v7066
        %v7173 = vpop.xlane.xlu0 %7172
        %7174 = vmax.xlane.f32.xlu0 %v7067
        %v7175 = vpop.xlane.xlu0 %7174
        %7176 = vmax.xlane.f32.xlu0 %v7068
        %v7177 = vpop.xlane.xlu0 %7176
        %7178 = vmax.xlane.f32.xlu0 %v7069
        %v7179 = vpop.xlane.xlu0 %7178
        %7180 = vmax.xlane.f32.xlu0 %v7070
        %v7181 = vpop.xlane.xlu0 %7180
        %7182 = vmax.xlane.f32.xlu0 %v7071
        %v7183 = vpop.xlane.xlu0 %7182
        %7184 = vmax.xlane.f32.xlu0 %v7072
        %v7185 = vpop.xlane.xlu0 %7184
        %7186 = vmax.xlane.f32.xlu0 %v7073
        %v7187 = vpop.xlane.xlu0 %7186
        %7188 = vmax.xlane.f32.xlu0 %v7074
        %v7189 = vpop.xlane.xlu0 %7188
        %7190 = vmax.xlane.f32.xlu0 %v7075
        %v7191 = vpop.xlane.xlu0 %7190
        %7192 = vmax.xlane.f32.xlu0 %v7076
        %v7193 = vpop.xlane.xlu0 %7192
        %7194 = vmax.xlane.f32.xlu0 %v7077
        %v7195 = vpop.xlane.xlu0 %7194
        %7196 = vmax.xlane.f32.xlu0 %v7078
        %v7197 = vpop.xlane.xlu0 %7196
        %7198 = vmax.xlane.f32.xlu0 %v7079
        %v7199 = vpop.xlane.xlu0 %7198
        %7200 = vmax.xlane.f32.xlu0 %v7080
        %v7201 = vpop.xlane.xlu0 %7200
        %7202 = vmax.xlane.f32.xlu0 %v7081
        %v7203 = vpop.xlane.xlu0 %7202
        %7204 = vmax.xlane.f32.xlu0 %v7082
        %v7205 = vpop.xlane.xlu0 %7204
        %7206 = vmax.xlane.f32.xlu0 %v7083
        %v7207 = vpop.xlane.xlu0 %7206
        %7208 = vmax.xlane.f32.xlu0 %v7084
        %v7209 = vpop.xlane.xlu0 %7208
        %7210 = vmax.xlane.f32.xlu0 %v7085
        %v7211 = vpop.xlane.xlu0 %7210
        %7212 = vmax.xlane.f32.xlu0 %v7086
        %v7213 = vpop.xlane.xlu0 %7212
        %7214 = vmax.xlane.f32.xlu0 %v7087
        %v7215 = vpop.xlane.xlu0 %7214
        %v7216 = vsub.f32 %v7024, %v7089
        %v7217 = vsub.f32 %v7025, %v7091
        %v7218 = vsub.f32 %v7026, %v7093
        %v7219 = vsub.f32 %v7027, %v7095
        %v7220 = vsub.f32 %v7028, %v7097
        %v7221 = vsub.f32 %v7029, %v7099
        %v7222 = vsub.f32 %v7030, %v7101
        %v7223 = vsub.f32 %v7031, %v7103
        %v7224 = vsub.f32 %v7032, %v7105
        %v7225 = vsub.f32 %v7033, %v7107
        %v7226 = vsub.f32 %v7034, %v7109
        %v7227 = vsub.f32 %v7035, %v7111
        %v7228 = vsub.f32 %v7036, %v7113
        %v7229 = vsub.f32 %v7037, %v7115
        %v7230 = vsub.f32 %v7038, %v7117
        %v7231 = vsub.f32 %v7039, %v7119
        %v7232 = vsub.f32 %v7040, %v7121
        %v7233 = vsub.f32 %v7041, %v7123
        %v7234 = vsub.f32 %v7042, %v7125
        %v7235 = vsub.f32 %v7043, %v7127
        %v7236 = vsub.f32 %v7044, %v7129
        %v7237 = vsub.f32 %v7045, %v7131
        %v7238 = vsub.f32 %v7046, %v7133
        %v7239 = vsub.f32 %v7047, %v7135
        %v7240 = vsub.f32 %v7048, %v7137
        %v7241 = vsub.f32 %v7049, %v7139
        %v7242 = vsub.f32 %v7050, %v7141
        %v7243 = vsub.f32 %v7051, %v7143
        %v7244 = vsub.f32 %v7052, %v7145
        %v7245 = vsub.f32 %v7053, %v7147
        %v7246 = vsub.f32 %v7054, %v7149
        %v7247 = vsub.f32 %v7055, %v7151
        %v7248 = vsub.f32 %v7056, %v7153
        %v7249 = vsub.f32 %v7057, %v7155
        %v7250 = vsub.f32 %v7058, %v7157
        %v7251 = vsub.f32 %v7059, %v7159
        %v7252 = vsub.f32 %v7060, %v7161
        %v7253 = vsub.f32 %v7061, %v7163
        %v7254 = vsub.f32 %v7062, %v7165
        %v7255 = vsub.f32 %v7063, %v7167
        %v7256 = vsub.f32 %v7064, %v7169
        %v7257 = vsub.f32 %v7065, %v7171
        %v7258 = vsub.f32 %v7066, %v7173
        %v7259 = vsub.f32 %v7067, %v7175
        %v7260 = vsub.f32 %v7068, %v7177
        %v7261 = vsub.f32 %v7069, %v7179
        %v7262 = vsub.f32 %v7070, %v7181
        %v7263 = vsub.f32 %v7071, %v7183
        %v7264 = vsub.f32 %v7072, %v7185
        %v7265 = vsub.f32 %v7073, %v7187
        %v7266 = vsub.f32 %v7074, %v7189
        %v7267 = vsub.f32 %v7075, %v7191
        %v7268 = vsub.f32 %v7076, %v7193
        %v7269 = vsub.f32 %v7077, %v7195
        %v7270 = vsub.f32 %v7078, %v7197
        %v7271 = vsub.f32 %v7079, %v7199
        %v7272 = vsub.f32 %v7080, %v7201
        %v7273 = vsub.f32 %v7081, %v7203
        %v7274 = vsub.f32 %v7082, %v7205
        %v7275 = vsub.f32 %v7083, %v7207
        %v7276 = vsub.f32 %v7084, %v7209
        %v7277 = vsub.f32 %v7085, %v7211
        %v7278 = vsub.f32 %v7086, %v7213
        %v7279 = vsub.f32 %v7087, %v7215
        %v7280 = vmul.f32 %v7216, 1.442695
        %v7281 = vpow.pop %v7280
        %v7282 = vmul.f32 %v7217, 1.442695
        %v7283 = vpow.pop %v7282
        %v7284 = vmul.f32 %v7218, 1.442695
        %v7285 = vpow.pop %v7284
        %v7286 = vmul.f32 %v7219, 1.442695
        %v7287 = vpow.pop %v7286
        %v7288 = vmul.f32 %v7220, 1.442695
        %v7289 = vpow.pop %v7288
        %v7290 = vmul.f32 %v7221, 1.442695
        %v7291 = vpow.pop %v7290
        %v7292 = vmul.f32 %v7222, 1.442695
        %v7293 = vpow.pop %v7292
        %v7294 = vmul.f32 %v7223, 1.442695
        %v7295 = vpow.pop %v7294
        %v7296 = vmul.f32 %v7224, 1.442695
        %v7297 = vpow.pop %v7296
        %v7298 = vmul.f32 %v7225, 1.442695
        %v7299 = vpow.pop %v7298
        %v7300 = vmul.f32 %v7226, 1.442695
        %v7301 = vpow.pop %v7300
        %v7302 = vmul.f32 %v7227, 1.442695
        %v7303 = vpow.pop %v7302
        %v7304 = vmul.f32 %v7228, 1.442695
        %v7305 = vpow.pop %v7304
        %v7306 = vmul.f32 %v7229, 1.442695
        %v7307 = vpow.pop %v7306
        %v7308 = vmul.f32 %v7230, 1.442695
        %v7309 = vpow.pop %v7308
        %v7310 = vmul.f32 %v7231, 1.442695
        %v7311 = vpow.pop %v7310
        %v7312 = vmul.f32 %v7232, 1.442695
        %v7313 = vpow.pop %v7312
        %v7314 = vmul.f32 %v7233, 1.442695
        %v7315 = vpow.pop %v7314
        %v7316 = vmul.f32 %v7234, 1.442695
        %v7317 = vpow.pop %v7316
        %v7318 = vmul.f32 %v7235, 1.442695
        %v7319 = vpow.pop %v7318
        %v7320 = vmul.f32 %v7236, 1.442695
        %v7321 = vpow.pop %v7320
        %v7322 = vmul.f32 %v7237, 1.442695
        %v7323 = vpow.pop %v7322
        %v7324 = vmul.f32 %v7238, 1.442695
        %v7325 = vpow.pop %v7324
        %v7326 = vmul.f32 %v7239, 1.442695
        %v7327 = vpow.pop %v7326
        %v7328 = vmul.f32 %v7240, 1.442695
        %v7329 = vpow.pop %v7328
        %v7330 = vmul.f32 %v7241, 1.442695
        %v7331 = vpow.pop %v7330
        %v7332 = vmul.f32 %v7242, 1.442695
        %v7333 = vpow.pop %v7332
        %v7334 = vmul.f32 %v7243, 1.442695
        %v7335 = vpow.pop %v7334
        %v7336 = vmul.f32 %v7244, 1.442695
        %v7337 = vpow.pop %v7336
        %v7338 = vmul.f32 %v7245, 1.442695
        %v7339 = vpow.pop %v7338
        %v7340 = vmul.f32 %v7246, 1.442695
        %v7341 = vpow.pop %v7340
        %v7342 = vmul.f32 %v7247, 1.442695
        %v7343 = vpow.pop %v7342
        %v7344 = vmul.f32 %v7248, 1.442695
        %v7345 = vpow.pop %v7344
        %v7346 = vmul.f32 %v7249, 1.442695
        %v7347 = vpow.pop %v7346
        %v7348 = vmul.f32 %v7250, 1.442695
        %v7349 = vpow.pop %v7348
        %v7350 = vmul.f32 %v7251, 1.442695
        %v7351 = vpow.pop %v7350
        %v7352 = vmul.f32 %v7252, 1.442695
        %v7353 = vpow.pop %v7352
        %v7354 = vmul.f32 %v7253, 1.442695
        %v7355 = vpow.pop %v7354
        %v7356 = vmul.f32 %v7254, 1.442695
        %v7357 = vpow.pop %v7356
        %v7358 = vmul.f32 %v7255, 1.442695
        %v7359 = vpow.pop %v7358
        %v7360 = vmul.f32 %v7256, 1.442695
        %v7361 = vpow.pop %v7360
        %v7362 = vmul.f32 %v7257, 1.442695
        %v7363 = vpow.pop %v7362
        %v7364 = vmul.f32 %v7258, 1.442695
        %v7365 = vpow.pop %v7364
        %v7366 = vmul.f32 %v7259, 1.442695
        %v7367 = vpow.pop %v7366
        %v7368 = vmul.f32 %v7260, 1.442695
        %v7369 = vpow.pop %v7368
        %v7370 = vmul.f32 %v7261, 1.442695
        %v7371 = vpow.pop %v7370
        %v7372 = vmul.f32 %v7262, 1.442695
        %v7373 = vpow.pop %v7372
        %v7374 = vmul.f32 %v7263, 1.442695
        %v7375 = vpow.pop %v7374
        %v7376 = vmul.f32 %v7264, 1.442695
        %v7377 = vpow.pop %v7376
        %v7378 = vmul.f32 %v7265, 1.442695
        %v7379 = vpow.pop %v7378
        %v7380 = vmul.f32 %v7266, 1.442695
        %v7381 = vpow.pop %v7380
        %v7382 = vmul.f32 %v7267, 1.442695
        %v7383 = vpow.pop %v7382
        %v7384 = vmul.f32 %v7268, 1.442695
        %v7385 = vpow.pop %v7384
        %v7386 = vmul.f32 %v7269, 1.442695
        %v7387 = vpow.pop %v7386
        %v7388 = vmul.f32 %v7270, 1.442695
        %v7389 = vpow.pop %v7388
        %v7390 = vmul.f32 %v7271, 1.442695
        %v7391 = vpow.pop %v7390
        %v7392 = vmul.f32 %v7272, 1.442695
        %v7393 = vpow.pop %v7392
        %v7394 = vmul.f32 %v7273, 1.442695
        %v7395 = vpow.pop %v7394
        %v7396 = vmul.f32 %v7274, 1.442695
        %v7397 = vpow.pop %v7396
        %v7398 = vmul.f32 %v7275, 1.442695
        %v7399 = vpow.pop %v7398
        %v7400 = vmul.f32 %v7276, 1.442695
        %v7401 = vpow.pop %v7400
        %v7402 = vmul.f32 %v7277, 1.442695
        %v7403 = vpow.pop %v7402
        %v7404 = vmul.f32 %v7278, 1.442695
        %v7405 = vpow.pop %v7404
        %v7406 = vmul.f32 %v7279, 1.442695
        %v7407 = vpow.pop %v7406
        %7408 = vadd.xlane.f32.xlu0 %v7281
        %v7409 = vpop.xlane.xlu0 %7408
        %7410 = vadd.xlane.f32.xlu0 %v7283
        %v7411 = vpop.xlane.xlu0 %7410
        %7412 = vadd.xlane.f32.xlu0 %v7285
        %v7413 = vpop.xlane.xlu0 %7412
        %7414 = vadd.xlane.f32.xlu0 %v7287
        %v7415 = vpop.xlane.xlu0 %7414
        %7416 = vadd.xlane.f32.xlu0 %v7289
        %v7417 = vpop.xlane.xlu0 %7416
        %7418 = vadd.xlane.f32.xlu0 %v7291
        %v7419 = vpop.xlane.xlu0 %7418
        %7420 = vadd.xlane.f32.xlu0 %v7293
        %v7421 = vpop.xlane.xlu0 %7420
        %7422 = vadd.xlane.f32.xlu0 %v7295
        %v7423 = vpop.xlane.xlu0 %7422
        %7424 = vadd.xlane.f32.xlu0 %v7297
        %v7425 = vpop.xlane.xlu0 %7424
        %7426 = vadd.xlane.f32.xlu0 %v7299
        %v7427 = vpop.xlane.xlu0 %7426
        %7428 = vadd.xlane.f32.xlu0 %v7301
        %v7429 = vpop.xlane.xlu0 %7428
        %7430 = vadd.xlane.f32.xlu0 %v7303
        %v7431 = vpop.xlane.xlu0 %7430
        %7432 = vadd.xlane.f32.xlu0 %v7305
        %v7433 = vpop.xlane.xlu0 %7432
        %7434 = vadd.xlane.f32.xlu0 %v7307
        %v7435 = vpop.xlane.xlu0 %7434
        %7436 = vadd.xlane.f32.xlu0 %v7309
        %v7437 = vpop.xlane.xlu0 %7436
        %7438 = vadd.xlane.f32.xlu0 %v7311
        %v7439 = vpop.xlane.xlu0 %7438
        %7440 = vadd.xlane.f32.xlu0 %v7313
        %v7441 = vpop.xlane.xlu0 %7440
        %7442 = vadd.xlane.f32.xlu0 %v7315
        %v7443 = vpop.xlane.xlu0 %7442
        %7444 = vadd.xlane.f32.xlu0 %v7317
        %v7445 = vpop.xlane.xlu0 %7444
        %7446 = vadd.xlane.f32.xlu0 %v7319
        %v7447 = vpop.xlane.xlu0 %7446
        %7448 = vadd.xlane.f32.xlu0 %v7321
        %v7449 = vpop.xlane.xlu0 %7448
        %7450 = vadd.xlane.f32.xlu0 %v7323
        %v7451 = vpop.xlane.xlu0 %7450
        %7452 = vadd.xlane.f32.xlu0 %v7325
        %v7453 = vpop.xlane.xlu0 %7452
        %7454 = vadd.xlane.f32.xlu0 %v7327
        %v7455 = vpop.xlane.xlu0 %7454
        %7456 = vadd.xlane.f32.xlu0 %v7329
        %v7457 = vpop.xlane.xlu0 %7456
        %7458 = vadd.xlane.f32.xlu0 %v7331
        %v7459 = vpop.xlane.xlu0 %7458
        %7460 = vadd.xlane.f32.xlu0 %v7333
        %v7461 = vpop.xlane.xlu0 %7460
        %7462 = vadd.xlane.f32.xlu0 %v7335
        %v7463 = vpop.xlane.xlu0 %7462
        %7464 = vadd.xlane.f32.xlu0 %v7337
        %v7465 = vpop.xlane.xlu0 %7464
        %7466 = vadd.xlane.f32.xlu0 %v7339
        %v7467 = vpop.xlane.xlu0 %7466
        %7468 = vadd.xlane.f32.xlu0 %v7341
        %v7469 = vpop.xlane.xlu0 %7468
        %7470 = vadd.xlane.f32.xlu0 %v7343
        %v7471 = vpop.xlane.xlu0 %7470
        %7472 = vadd.xlane.f32.xlu0 %v7345
        %v7473 = vpop.xlane.xlu0 %7472
        %7474 = vadd.xlane.f32.xlu0 %v7347
        %v7475 = vpop.xlane.xlu0 %7474
        %7476 = vadd.xlane.f32.xlu0 %v7349
        %v7477 = vpop.xlane.xlu0 %7476
        %7478 = vadd.xlane.f32.xlu0 %v7351
        %v7479 = vpop.xlane.xlu0 %7478
        %7480 = vadd.xlane.f32.xlu0 %v7353
        %v7481 = vpop.xlane.xlu0 %7480
        %7482 = vadd.xlane.f32.xlu0 %v7355
        %v7483 = vpop.xlane.xlu0 %7482
        %7484 = vadd.xlane.f32.xlu0 %v7357
        %v7485 = vpop.xlane.xlu0 %7484
        %7486 = vadd.xlane.f32.xlu0 %v7359
        %v7487 = vpop.xlane.xlu0 %7486
        %7488 = vadd.xlane.f32.xlu0 %v7361
        %v7489 = vpop.xlane.xlu0 %7488
        %7490 = vadd.xlane.f32.xlu0 %v7363
        %v7491 = vpop.xlane.xlu0 %7490
        %7492 = vadd.xlane.f32.xlu0 %v7365
        %v7493 = vpop.xlane.xlu0 %7492
        %7494 = vadd.xlane.f32.xlu0 %v7367
        %v7495 = vpop.xlane.xlu0 %7494
        %7496 = vadd.xlane.f32.xlu0 %v7369
        %v7497 = vpop.xlane.xlu0 %7496
        %7498 = vadd.xlane.f32.xlu0 %v7371
        %v7499 = vpop.xlane.xlu0 %7498
        %7500 = vadd.xlane.f32.xlu0 %v7373
        %v7501 = vpop.xlane.xlu0 %7500
        %7502 = vadd.xlane.f32.xlu0 %v7375
        %v7503 = vpop.xlane.xlu0 %7502
        %7504 = vadd.xlane.f32.xlu0 %v7377
        %v7505 = vpop.xlane.xlu0 %7504
        %7506 = vadd.xlane.f32.xlu0 %v7379
        %v7507 = vpop.xlane.xlu0 %7506
        %7508 = vadd.xlane.f32.xlu0 %v7381
        %v7509 = vpop.xlane.xlu0 %7508
        %7510 = vadd.xlane.f32.xlu0 %v7383
        %v7511 = vpop.xlane.xlu0 %7510
        %7512 = vadd.xlane.f32.xlu0 %v7385
        %v7513 = vpop.xlane.xlu0 %7512
        %7514 = vadd.xlane.f32.xlu0 %v7387
        %v7515 = vpop.xlane.xlu0 %7514
        %7516 = vadd.xlane.f32.xlu0 %v7389
        %v7517 = vpop.xlane.xlu0 %7516
        %7518 = vadd.xlane.f32.xlu0 %v7391
        %v7519 = vpop.xlane.xlu0 %7518
        %7520 = vadd.xlane.f32.xlu0 %v7393
        %v7521 = vpop.xlane.xlu0 %7520
        %7522 = vadd.xlane.f32.xlu0 %v7395
        %v7523 = vpop.xlane.xlu0 %7522
        %7524 = vadd.xlane.f32.xlu0 %v7397
        %v7525 = vpop.xlane.xlu0 %7524
        %7526 = vadd.xlane.f32.xlu0 %v7399
        %v7527 = vpop.xlane.xlu0 %7526
        %7528 = vadd.xlane.f32.xlu0 %v7401
        %v7529 = vpop.xlane.xlu0 %7528
        %7530 = vadd.xlane.f32.xlu0 %v7403
        %v7531 = vpop.xlane.xlu0 %7530
        %7532 = vadd.xlane.f32.xlu0 %v7405
        %v7533 = vpop.xlane.xlu0 %7532
        %7534 = vadd.xlane.f32.xlu0 %v7407
        %v7535 = vpop.xlane.xlu0 %7534
        %v7536 = vrcp.pop %v7409
        %v7537 = vrcp.pop %v7411
        %v7538 = vrcp.pop %v7413
        %v7539 = vrcp.pop %v7415
        %v7540 = vrcp.pop %v7417
        %v7541 = vrcp.pop %v7419
        %v7542 = vrcp.pop %v7421
        %v7543 = vrcp.pop %v7423
        %v7544 = vrcp.pop %v7425
        %v7545 = vrcp.pop %v7427
        %v7546 = vrcp.pop %v7429
        %v7547 = vrcp.pop %v7431
        %v7548 = vrcp.pop %v7433
        %v7549 = vrcp.pop %v7435
        %v7550 = vrcp.pop %v7437
        %v7551 = vrcp.pop %v7439
        %v7552 = vrcp.pop %v7441
        %v7553 = vrcp.pop %v7443
        %v7554 = vrcp.pop %v7445
        %v7555 = vrcp.pop %v7447
        %v7556 = vrcp.pop %v7449
        %v7557 = vrcp.pop %v7451
        %v7558 = vrcp.pop %v7453
        %v7559 = vrcp.pop %v7455
        %v7560 = vrcp.pop %v7457
        %v7561 = vrcp.pop %v7459
        %v7562 = vrcp.pop %v7461
        %v7563 = vrcp.pop %v7463
        %v7564 = vrcp.pop %v7465
        %v7565 = vrcp.pop %v7467
        %v7566 = vrcp.pop %v7469
        %v7567 = vrcp.pop %v7471
        %v7568 = vrcp.pop %v7473
        %v7569 = vrcp.pop %v7475
        %v7570 = vrcp.pop %v7477
        %v7571 = vrcp.pop %v7479
        %v7572 = vrcp.pop %v7481
        %v7573 = vrcp.pop %v7483
        %v7574 = vrcp.pop %v7485
        %v7575 = vrcp.pop %v7487
        %v7576 = vrcp.pop %v7489
        %v7577 = vrcp.pop %v7491
        %v7578 = vrcp.pop %v7493
        %v7579 = vrcp.pop %v7495
        %v7580 = vrcp.pop %v7497
        %v7581 = vrcp.pop %v7499
        %v7582 = vrcp.pop %v7501
        %v7583 = vrcp.pop %v7503
        %v7584 = vrcp.pop %v7505
        %v7585 = vrcp.pop %v7507
        %v7586 = vrcp.pop %v7509
        %v7587 = vrcp.pop %v7511
        %v7588 = vrcp.pop %v7513
        %v7589 = vrcp.pop %v7515
        %v7590 = vrcp.pop %v7517
        %v7591 = vrcp.pop %v7519
        %v7592 = vrcp.pop %v7521
        %v7593 = vrcp.pop %v7523
        %v7594 = vrcp.pop %v7525
        %v7595 = vrcp.pop %v7527
        %v7596 = vrcp.pop %v7529
        %v7597 = vrcp.pop %v7531
        %v7598 = vrcp.pop %v7533
        %v7599 = vrcp.pop %v7535
        %v7600 = vmul.f32 %v7409, %v7536
        %v7601 = vmul.f32 %v7411, %v7537
        %v7602 = vmul.f32 %v7413, %v7538
        %v7603 = vmul.f32 %v7415, %v7539
        %v7604 = vmul.f32 %v7417, %v7540
        %v7605 = vmul.f32 %v7419, %v7541
        %v7606 = vmul.f32 %v7421, %v7542
        %v7607 = vmul.f32 %v7423, %v7543
        %v7608 = vmul.f32 %v7425, %v7544
        %v7609 = vmul.f32 %v7427, %v7545
        %v7610 = vmul.f32 %v7429, %v7546
        %v7611 = vmul.f32 %v7431, %v7547
        %v7612 = vmul.f32 %v7433, %v7548
        %v7613 = vmul.f32 %v7435, %v7549
        %v7614 = vmul.f32 %v7437, %v7550
        %v7615 = vmul.f32 %v7439, %v7551
        %v7616 = vmul.f32 %v7441, %v7552
        %v7617 = vmul.f32 %v7443, %v7553
        %v7618 = vmul.f32 %v7445, %v7554
        %v7619 = vmul.f32 %v7447, %v7555
        %v7620 = vmul.f32 %v7449, %v7556
        %v7621 = vmul.f32 %v7451, %v7557
        %v7622 = vmul.f32 %v7453, %v7558
        %v7623 = vmul.f32 %v7455, %v7559
        %v7624 = vmul.f32 %v7457, %v7560
        %v7625 = vmul.f32 %v7459, %v7561
        %v7626 = vmul.f32 %v7461, %v7562
        %v7627 = vmul.f32 %v7463, %v7563
        %v7628 = vmul.f32 %v7465, %v7564
        %v7629 = vmul.f32 %v7467, %v7565
        %v7630 = vmul.f32 %v7469, %v7566
        %v7631 = vmul.f32 %v7471, %v7567
        %v7632 = vmul.f32 %v7473, %v7568
        %v7633 = vmul.f32 %v7475, %v7569
        %v7634 = vmul.f32 %v7477, %v7570
        %v7635 = vmul.f32 %v7479, %v7571
        %v7636 = vmul.f32 %v7481, %v7572
        %v7637 = vmul.f32 %v7483, %v7573
        %v7638 = vmul.f32 %v7485, %v7574
        %v7639 = vmul.f32 %v7487, %v7575
        %v7640 = vmul.f32 %v7489, %v7576
        %v7641 = vmul.f32 %v7491, %v7577
        %v7642 = vmul.f32 %v7493, %v7578
        %v7643 = vmul.f32 %v7495, %v7579
        %v7644 = vmul.f32 %v7497, %v7580
        %v7645 = vmul.f32 %v7499, %v7581
        %v7646 = vmul.f32 %v7501, %v7582
        %v7647 = vmul.f32 %v7503, %v7583
        %v7648 = vmul.f32 %v7505, %v7584
        %v7649 = vmul.f32 %v7507, %v7585
        %v7650 = vmul.f32 %v7509, %v7586
        %v7651 = vmul.f32 %v7511, %v7587
        %v7652 = vmul.f32 %v7513, %v7588
        %v7653 = vmul.f32 %v7515, %v7589
        %v7654 = vmul.f32 %v7517, %v7590
        %v7655 = vmul.f32 %v7519, %v7591
        %v7656 = vmul.f32 %v7521, %v7592
        %v7657 = vmul.f32 %v7523, %v7593
        %v7658 = vmul.f32 %v7525, %v7594
        %v7659 = vmul.f32 %v7527, %v7595
        %v7660 = vmul.f32 %v7529, %v7596
        %v7661 = vmul.f32 %v7531, %v7597
        %v7662 = vmul.f32 %v7533, %v7598
        %v7663 = vmul.f32 %v7535, %v7599
        %v7664 = vsub.f32 2.0, %v7600
        %v7665 = vsub.f32 2.0, %v7601
        %v7666 = vsub.f32 2.0, %v7602
        %v7667 = vsub.f32 2.0, %v7603
        %v7668 = vsub.f32 2.0, %v7604
        %v7669 = vsub.f32 2.0, %v7605
        %v7670 = vsub.f32 2.0, %v7606
        %v7671 = vsub.f32 2.0, %v7607
        %v7672 = vsub.f32 2.0, %v7608
        %v7673 = vsub.f32 2.0, %v7609
        %v7674 = vsub.f32 2.0, %v7610
        %v7675 = vsub.f32 2.0, %v7611
        %v7676 = vsub.f32 2.0, %v7612
        %v7677 = vsub.f32 2.0, %v7613
        %v7678 = vsub.f32 2.0, %v7614
        %v7679 = vsub.f32 2.0, %v7615
        %v7680 = vsub.f32 2.0, %v7616
        %v7681 = vsub.f32 2.0, %v7617
        %v7682 = vsub.f32 2.0, %v7618
        %v7683 = vsub.f32 2.0, %v7619
        %v7684 = vsub.f32 2.0, %v7620
        %v7685 = vsub.f32 2.0, %v7621
        %v7686 = vsub.f32 2.0, %v7622
        %v7687 = vsub.f32 2.0, %v7623
        %v7688 = vsub.f32 2.0, %v7624
        %v7689 = vsub.f32 2.0, %v7625
        %v7690 = vsub.f32 2.0, %v7626
        %v7691 = vsub.f32 2.0, %v7627
        %v7692 = vsub.f32 2.0, %v7628
        %v7693 = vsub.f32 2.0, %v7629
        %v7694 = vsub.f32 2.0, %v7630
        %v7695 = vsub.f32 2.0, %v7631
        %v7696 = vsub.f32 2.0, %v7632
        %v7697 = vsub.f32 2.0, %v7633
        %v7698 = vsub.f32 2.0, %v7634
        %v7699 = vsub.f32 2.0, %v7635
        %v7700 = vsub.f32 2.0, %v7636
        %v7701 = vsub.f32 2.0, %v7637
        %v7702 = vsub.f32 2.0, %v7638
        %v7703 = vsub.f32 2.0, %v7639
        %v7704 = vsub.f32 2.0, %v7640
        %v7705 = vsub.f32 2.0, %v7641
        %v7706 = vsub.f32 2.0, %v7642
        %v7707 = vsub.f32 2.0, %v7643
        %v7708 = vsub.f32 2.0, %v7644
        %v7709 = vsub.f32 2.0, %v7645
        %v7710 = vsub.f32 2.0, %v7646
        %v7711 = vsub.f32 2.0, %v7647
        %v7712 = vsub.f32 2.0, %v7648
        %v7713 = vsub.f32 2.0, %v7649
        %v7714 = vsub.f32 2.0, %v7650
        %v7715 = vsub.f32 2.0, %v7651
        %v7716 = vsub.f32 2.0, %v7652
        %v7717 = vsub.f32 2.0, %v7653
        %v7718 = vsub.f32 2.0, %v7654
        %v7719 = vsub.f32 2.0, %v7655
        %v7720 = vsub.f32 2.0, %v7656
        %v7721 = vsub.f32 2.0, %v7657
        %v7722 = vsub.f32 2.0, %v7658
        %v7723 = vsub.f32 2.0, %v7659
        %v7724 = vsub.f32 2.0, %v7660
        %v7725 = vsub.f32 2.0, %v7661
        %v7726 = vsub.f32 2.0, %v7662
        %v7727 = vsub.f32 2.0, %v7663
        %v7728 = vmul.f32 %v7536, %v7664
        %v7729 = vmul.f32 %v7537, %v7665
        %v7730 = vmul.f32 %v7538, %v7666
        %v7731 = vmul.f32 %v7539, %v7667
        %v7732 = vmul.f32 %v7540, %v7668
        %v7733 = vmul.f32 %v7541, %v7669
        %v7734 = vmul.f32 %v7542, %v7670
        %v7735 = vmul.f32 %v7543, %v7671
        %v7736 = vmul.f32 %v7544, %v7672
        %v7737 = vmul.f32 %v7545, %v7673
        %v7738 = vmul.f32 %v7546, %v7674
        %v7739 = vmul.f32 %v7547, %v7675
        %v7740 = vmul.f32 %v7548, %v7676
        %v7741 = vmul.f32 %v7549, %v7677
        %v7742 = vmul.f32 %v7550, %v7678
        %v7743 = vmul.f32 %v7551, %v7679
        %v7744 = vmul.f32 %v7552, %v7680
        %v7745 = vmul.f32 %v7553, %v7681
        %v7746 = vmul.f32 %v7554, %v7682
        %v7747 = vmul.f32 %v7555, %v7683
        %v7748 = vmul.f32 %v7556, %v7684
        %v7749 = vmul.f32 %v7557, %v7685
        %v7750 = vmul.f32 %v7558, %v7686
        %v7751 = vmul.f32 %v7559, %v7687
        %v7752 = vmul.f32 %v7560, %v7688
        %v7753 = vmul.f32 %v7561, %v7689
        %v7754 = vmul.f32 %v7562, %v7690
        %v7755 = vmul.f32 %v7563, %v7691
        %v7756 = vmul.f32 %v7564, %v7692
        %v7757 = vmul.f32 %v7565, %v7693
        %v7758 = vmul.f32 %v7566, %v7694
        %v7759 = vmul.f32 %v7567, %v7695
        %v7760 = vmul.f32 %v7568, %v7696
        %v7761 = vmul.f32 %v7569, %v7697
        %v7762 = vmul.f32 %v7570, %v7698
        %v7763 = vmul.f32 %v7571, %v7699
        %v7764 = vmul.f32 %v7572, %v7700
        %v7765 = vmul.f32 %v7573, %v7701
        %v7766 = vmul.f32 %v7574, %v7702
        %v7767 = vmul.f32 %v7575, %v7703
        %v7768 = vmul.f32 %v7576, %v7704
        %v7769 = vmul.f32 %v7577, %v7705
        %v7770 = vmul.f32 %v7578, %v7706
        %v7771 = vmul.f32 %v7579, %v7707
        %v7772 = vmul.f32 %v7580, %v7708
        %v7773 = vmul.f32 %v7581, %v7709
        %v7774 = vmul.f32 %v7582, %v7710
        %v7775 = vmul.f32 %v7583, %v7711
        %v7776 = vmul.f32 %v7584, %v7712
        %v7777 = vmul.f32 %v7585, %v7713
        %v7778 = vmul.f32 %v7586, %v7714
        %v7779 = vmul.f32 %v7587, %v7715
        %v7780 = vmul.f32 %v7588, %v7716
        %v7781 = vmul.f32 %v7589, %v7717
        %v7782 = vmul.f32 %v7590, %v7718
        %v7783 = vmul.f32 %v7591, %v7719
        %v7784 = vmul.f32 %v7592, %v7720
        %v7785 = vmul.f32 %v7593, %v7721
        %v7786 = vmul.f32 %v7594, %v7722
        %v7787 = vmul.f32 %v7595, %v7723
        %v7788 = vmul.f32 %v7596, %v7724
        %v7789 = vmul.f32 %v7597, %v7725
        %v7790 = vmul.f32 %v7598, %v7726
        %v7791 = vmul.f32 %v7599, %v7727
        %v7792 = vmul.f32 %v7281, %v7728
        %v7793 = vmul.f32 %v7283, %v7729
        %v7794 = vmul.f32 %v7285, %v7730
        %v7795 = vmul.f32 %v7287, %v7731
        %v7796 = vmul.f32 %v7289, %v7732
        %v7797 = vmul.f32 %v7291, %v7733
        %v7798 = vmul.f32 %v7293, %v7734
        %v7799 = vmul.f32 %v7295, %v7735
        %v7800 = vmul.f32 %v7297, %v7736
        %v7801 = vmul.f32 %v7299, %v7737
        %v7802 = vmul.f32 %v7301, %v7738
        %v7803 = vmul.f32 %v7303, %v7739
        %v7804 = vmul.f32 %v7305, %v7740
        %v7805 = vmul.f32 %v7307, %v7741
        %v7806 = vmul.f32 %v7309, %v7742
        %v7807 = vmul.f32 %v7311, %v7743
        %v7808 = vmul.f32 %v7313, %v7744
        %v7809 = vmul.f32 %v7315, %v7745
        %v7810 = vmul.f32 %v7317, %v7746
        %v7811 = vmul.f32 %v7319, %v7747
        %v7812 = vmul.f32 %v7321, %v7748
        %v7813 = vmul.f32 %v7323, %v7749
        %v7814 = vmul.f32 %v7325, %v7750
        %v7815 = vmul.f32 %v7327, %v7751
        %v7816 = vmul.f32 %v7329, %v7752
        %v7817 = vmul.f32 %v7331, %v7753
        %v7818 = vmul.f32 %v7333, %v7754
        %v7819 = vmul.f32 %v7335, %v7755
        %v7820 = vmul.f32 %v7337, %v7756
        %v7821 = vmul.f32 %v7339, %v7757
        %v7822 = vmul.f32 %v7341, %v7758
        %v7823 = vmul.f32 %v7343, %v7759
        %v7824 = vmul.f32 %v7345, %v7760
        %v7825 = vmul.f32 %v7347, %v7761
        %v7826 = vmul.f32 %v7349, %v7762
        %v7827 = vmul.f32 %v7351, %v7763
        %v7828 = vmul.f32 %v7353, %v7764
        %v7829 = vmul.f32 %v7355, %v7765
        %v7830 = vmul.f32 %v7357, %v7766
        %v7831 = vmul.f32 %v7359, %v7767
        %v7832 = vmul.f32 %v7361, %v7768
        %v7833 = vmul.f32 %v7363, %v7769
        %v7834 = vmul.f32 %v7365, %v7770
        %v7835 = vmul.f32 %v7367, %v7771
        %v7836 = vmul.f32 %v7369, %v7772
        %v7837 = vmul.f32 %v7371, %v7773
        %v7838 = vmul.f32 %v7373, %v7774
        %v7839 = vmul.f32 %v7375, %v7775
        %v7840 = vmul.f32 %v7377, %v7776
        %v7841 = vmul.f32 %v7379, %v7777
        %v7842 = vmul.f32 %v7381, %v7778
        %v7843 = vmul.f32 %v7383, %v7779
        %v7844 = vmul.f32 %v7385, %v7780
        %v7845 = vmul.f32 %v7387, %v7781
        %v7846 = vmul.f32 %v7389, %v7782
        %v7847 = vmul.f32 %v7391, %v7783
        %v7848 = vmul.f32 %v7393, %v7784
        %v7849 = vmul.f32 %v7395, %v7785
        %v7850 = vmul.f32 %v7397, %v7786
        %v7851 = vmul.f32 %v7399, %v7787
        %v7852 = vmul.f32 %v7401, %v7788
        %v7853 = vmul.f32 %v7403, %v7789
        %v7854 = vmul.f32 %v7405, %v7790
        %v7855 = vmul.f32 %v7407, %v7791
        %v7856 = vpack.c.bf16 %v7792, %v7792
        %v7857 = vpack.c.bf16 %v7793, %v7793
        %v7858 = vpack.c.bf16 %v7794, %v7794
        %v7859 = vpack.c.bf16 %v7795, %v7795
        %v7860 = vpack.c.bf16 %v7796, %v7796
        %v7861 = vpack.c.bf16 %v7797, %v7797
        %v7862 = vpack.c.bf16 %v7798, %v7798
        %v7863 = vpack.c.bf16 %v7799, %v7799
        %v7864 = vpack.c.bf16 %v7800, %v7800
        %v7865 = vpack.c.bf16 %v7801, %v7801
        %v7866 = vpack.c.bf16 %v7802, %v7802
        %v7867 = vpack.c.bf16 %v7803, %v7803
        %v7868 = vpack.c.bf16 %v7804, %v7804
        %v7869 = vpack.c.bf16 %v7805, %v7805
        %v7870 = vpack.c.bf16 %v7806, %v7806
        %v7871 = vpack.c.bf16 %v7807, %v7807
        %v7872 = vpack.c.bf16 %v7808, %v7808
        %v7873 = vpack.c.bf16 %v7809, %v7809
        %v7874 = vpack.c.bf16 %v7810, %v7810
        %v7875 = vpack.c.bf16 %v7811, %v7811
        %v7876 = vpack.c.bf16 %v7812, %v7812
        %v7877 = vpack.c.bf16 %v7813, %v7813
        %v7878 = vpack.c.bf16 %v7814, %v7814
        %v7879 = vpack.c.bf16 %v7815, %v7815
        %v7880 = vpack.c.bf16 %v7816, %v7816
        %v7881 = vpack.c.bf16 %v7817, %v7817
        %v7882 = vpack.c.bf16 %v7818, %v7818
        %v7883 = vpack.c.bf16 %v7819, %v7819
        %v7884 = vpack.c.bf16 %v7820, %v7820
        %v7885 = vpack.c.bf16 %v7821, %v7821
        %v7886 = vpack.c.bf16 %v7822, %v7822
        %v7887 = vpack.c.bf16 %v7823, %v7823
        %v7888 = vpack.c.bf16 %v7824, %v7824
        %v7889 = vpack.c.bf16 %v7825, %v7825
        %v7890 = vpack.c.bf16 %v7826, %v7826
        %v7891 = vpack.c.bf16 %v7827, %v7827
        %v7892 = vpack.c.bf16 %v7828, %v7828
        %v7893 = vpack.c.bf16 %v7829, %v7829
        %v7894 = vpack.c.bf16 %v7830, %v7830
        %v7895 = vpack.c.bf16 %v7831, %v7831
        %v7896 = vpack.c.bf16 %v7832, %v7832
        %v7897 = vpack.c.bf16 %v7833, %v7833
        %v7898 = vpack.c.bf16 %v7834, %v7834
        %v7899 = vpack.c.bf16 %v7835, %v7835
        %v7900 = vpack.c.bf16 %v7836, %v7836
        %v7901 = vpack.c.bf16 %v7837, %v7837
        %v7902 = vpack.c.bf16 %v7838, %v7838
        %v7903 = vpack.c.bf16 %v7839, %v7839
        %v7904 = vpack.c.bf16 %v7840, %v7840
        %v7905 = vpack.c.bf16 %v7841, %v7841
        %v7906 = vpack.c.bf16 %v7842, %v7842
        %v7907 = vpack.c.bf16 %v7843, %v7843
        %v7908 = vpack.c.bf16 %v7844, %v7844
        %v7909 = vpack.c.bf16 %v7845, %v7845
        %v7910 = vpack.c.bf16 %v7846, %v7846
        %v7911 = vpack.c.bf16 %v7847, %v7847
        %v7912 = vpack.c.bf16 %v7848, %v7848
        %v7913 = vpack.c.bf16 %v7849, %v7849
        %v7914 = vpack.c.bf16 %v7850, %v7850
        %v7915 = vpack.c.bf16 %v7851, %v7851
        %v7916 = vpack.c.bf16 %v7852, %v7852
        %v7917 = vpack.c.bf16 %v7853, %v7853
        %v7918 = vpack.c.bf16 %v7854, %v7854
        %v7919 = vpack.c.bf16 %v7855, %v7855
        %v7920 = vpack.c.bf16 %v6178, %v6178
        %v7921 = vpack.c.bf16 %v6180, %v6180
        %v7922 = vpack.c.bf16 %v6183, %v6183
        %v7923 = vpack.c.bf16 %v6185, %v6185
        %v7924 = vpack.c.bf16 %v6188, %v6188
        %v7925 = vpack.c.bf16 %v6190, %v6190
        %v7926 = vpack.c.bf16 %v6193, %v6193
        %v7927 = vpack.c.bf16 %v6195, %v6195
        %v7928 = vpack.c.bf16 %v6198, %v6198
        %v7929 = vpack.c.bf16 %v6200, %v6200
        %v7930 = vpack.c.bf16 %v6203, %v6203
        %v7931 = vpack.c.bf16 %v6205, %v6205
        %v7932 = vpack.c.bf16 %v6208, %v6208
        %v7933 = vpack.c.bf16 %v6210, %v6210
        %v7934 = vpack.c.bf16 %v6213, %v6213
        %v7935 = vpack.c.bf16 %v6215, %v6215
        %v7952 = vunpack.c.l.b16 %v7856
        %v7953 = vunpack.c.l.b16 %v7857
        %v7954 = vunpack.c.l.b16 %v7858
        %v7955 = vunpack.c.l.b16 %v7859
        %v7956 = vunpack.c.l.b16 %v7860
        %v7957 = vunpack.c.l.b16 %v7861
        %v7958 = vunpack.c.l.b16 %v7862
        %v7959 = vunpack.c.l.b16 %v7863
        %v7960 = vunpack.c.l.b16 %v7864
        %v7961 = vunpack.c.l.b16 %v7865
        %v7962 = vunpack.c.l.b16 %v7866
        %v7963 = vunpack.c.l.b16 %v7867
        %v7964 = vunpack.c.l.b16 %v7868
        %v7965 = vunpack.c.l.b16 %v7869
        %v7966 = vunpack.c.l.b16 %v7870
        %v7967 = vunpack.c.l.b16 %v7871
        %v7968 = vpack.c.b16 %v7953, %v7952
        %v7969 = vpack.c.b16 %v7955, %v7954
        %v7970 = vpack.c.b16 %v7957, %v7956
        %v7971 = vpack.c.b16 %v7959, %v7958
        %v7972 = vpack.c.b16 %v7961, %v7960
        %v7973 = vpack.c.b16 %v7963, %v7962
        %v7974 = vpack.c.b16 %v7965, %v7964
        %v7975 = vpack.c.b16 %v7967, %v7966
        %v8000 = vunpack.c.l.b16 %v7920
        %v8001 = vunpack.c.l.b16 %v7921
        %v8002 = vunpack.c.l.b16 %v7922
        %v8003 = vunpack.c.l.b16 %v7923
        %v8004 = vunpack.c.l.b16 %v7924
        %v8005 = vunpack.c.l.b16 %v7925
        %v8006 = vunpack.c.l.b16 %v7926
        %v8007 = vunpack.c.l.b16 %v7927
        %v8008 = vunpack.c.l.b16 %v7928
        %v8009 = vunpack.c.l.b16 %v7929
        %v8010 = vunpack.c.l.b16 %v7930
        %v8011 = vunpack.c.l.b16 %v7931
        %v8012 = vunpack.c.l.b16 %v7932
        %v8013 = vunpack.c.l.b16 %v7933
        %v8014 = vunpack.c.l.b16 %v7934
        %v8015 = vunpack.c.l.b16 %v7935
        %v8016 = vpack.c.b16 %v8001, %v8000
        %v8017 = vpack.c.b16 %v8003, %v8002
        %v8018 = vpack.c.b16 %v8005, %v8004
        %v8019 = vpack.c.b16 %v8007, %v8006
        %v8020 = vpack.c.b16 %v8009, %v8008
        %v8021 = vpack.c.b16 %v8011, %v8010
        %v8022 = vpack.c.b16 %v8013, %v8012
        %v8023 = vpack.c.b16 %v8015, %v8014
        %8032 = vmatpush.bf16.msra.mxu0 %v8023
        %8033 = vmatpush.bf16.msra.mxu0 %v8022
        %8034 = vmatpush.bf16.msra.mxu0 %v8021
        %8035 = vmatpush.bf16.msra.mxu0 %v8020
        %8036 = vmatpush.bf16.msra.mxu0 %v8019
        %8037 = vmatpush.bf16.msra.mxu0 %v8018
        %8038 = vmatpush.bf16.msra.mxu0 %v8017
        %8039 = vmatpush.bf16.msra.mxu0 %v8016
        %8040 = vmatmul.bf16.gmra.mxu0 %v7968
        %v8041 = vpop.f32.mrf.mxu0
        %v8042 = vadd.f32 0.0, %v8041
        %v8043 = vpop.f32.mrf.mxu0
        %v8044 = vadd.f32 0.0, %v8043
        %8045 = vmatmul.bf16.gmra.mxu0 %v7969
        %v8046 = vpop.f32.mrf.mxu0
        %v8047 = vadd.f32 0.0, %v8046
        %v8048 = vpop.f32.mrf.mxu0
        %v8049 = vadd.f32 0.0, %v8048
        %8050 = vmatmul.bf16.gmra.mxu0 %v7970
        %v8051 = vpop.f32.mrf.mxu0
        %v8052 = vadd.f32 0.0, %v8051
        %v8053 = vpop.f32.mrf.mxu0
        %v8054 = vadd.f32 0.0, %v8053
        %8055 = vmatmul.bf16.gmra.mxu0 %v7971
        %v8056 = vpop.f32.mrf.mxu0
        %v8057 = vadd.f32 0.0, %v8056
        %v8058 = vpop.f32.mrf.mxu0
        %v8059 = vadd.f32 0.0, %v8058
        %8060 = vmatmul.bf16.gmra.mxu0 %v7972
        %v8061 = vpop.f32.mrf.mxu0
        %v8062 = vadd.f32 0.0, %v8061
        %v8063 = vpop.f32.mrf.mxu0
        %v8064 = vadd.f32 0.0, %v8063
        %8065 = vmatmul.bf16.gmra.mxu0 %v7973
        %v8066 = vpop.f32.mrf.mxu0
        %v8067 = vadd.f32 0.0, %v8066
        %v8068 = vpop.f32.mrf.mxu0
        %v8069 = vadd.f32 0.0, %v8068
        %8070 = vmatmul.bf16.gmra.mxu0 %v7974
        %v8071 = vpop.f32.mrf.mxu0
        %v8072 = vadd.f32 0.0, %v8071
        %v8073 = vpop.f32.mrf.mxu0
        %v8074 = vadd.f32 0.0, %v8073
        %8075 = vmatmul.bf16.gmra.mxu0 %v7975
        %v8076 = vpop.f32.mrf.mxu0
        %v8077 = vadd.f32 0.0, %v8076
        %v8078 = vpop.f32.mrf.mxu0
        %v8079 = vadd.f32 0.0, %v8078
        %8080 = vdwg.mxu0
        %v8097 = vunpack.c.l.b16 %v7872
        %v8098 = vunpack.c.l.b16 %v7873
        %v8099 = vunpack.c.l.b16 %v7874
        %v8100 = vunpack.c.l.b16 %v7875
        %v8101 = vunpack.c.l.b16 %v7876
        %v8102 = vunpack.c.l.b16 %v7877
        %v8103 = vunpack.c.l.b16 %v7878
        %v8104 = vunpack.c.l.b16 %v7879
        %v8105 = vunpack.c.l.b16 %v7880
        %v8106 = vunpack.c.l.b16 %v7881
        %v8107 = vunpack.c.l.b16 %v7882
        %v8108 = vunpack.c.l.b16 %v7883
        %v8109 = vunpack.c.l.b16 %v7884
        %v8110 = vunpack.c.l.b16 %v7885
        %v8111 = vunpack.c.l.b16 %v7886
        %v8112 = vunpack.c.l.b16 %v7887
        %v8113 = vpack.c.b16 %v8098, %v8097
        %v8114 = vpack.c.b16 %v8100, %v8099
        %v8115 = vpack.c.b16 %v8102, %v8101
        %v8116 = vpack.c.b16 %v8104, %v8103
        %v8117 = vpack.c.b16 %v8106, %v8105
        %v8118 = vpack.c.b16 %v8108, %v8107
        %v8119 = vpack.c.b16 %v8110, %v8109
        %v8120 = vpack.c.b16 %v8112, %v8111
        %8129 = vrot.lane.b32.xlu0 %v8016, 112
        %v8130 = vpop.permute.xlu0 %8129
        %8131 = vrot.lane.b32.xlu0 %v8017, 112
        %v8132 = vpop.permute.xlu0 %8131
        %8133 = vrot.lane.b32.xlu0 %v8018, 112
        %v8134 = vpop.permute.xlu0 %8133
        %8135 = vrot.lane.b32.xlu0 %v8019, 112
        %v8136 = vpop.permute.xlu0 %8135
        %8137 = vrot.lane.b32.xlu0 %v8020, 112
        %v8138 = vpop.permute.xlu0 %8137
        %8139 = vrot.lane.b32.xlu0 %v8021, 112
        %v8140 = vpop.permute.xlu0 %8139
        %8141 = vrot.lane.b32.xlu0 %v8022, 112
        %v8142 = vpop.permute.xlu0 %8141
        %8143 = vrot.lane.b32.xlu0 %v8023, 112
        %v8144 = vpop.permute.xlu0 %8143
        %8153 = vmatpush.bf16.msra.mxu0 %v8144
        %8154 = vmatpush.bf16.msra.mxu0 %v8142
        %8155 = vmatpush.bf16.msra.mxu0 %v8140
        %8156 = vmatpush.bf16.msra.mxu0 %v8138
        %8157 = vmatpush.bf16.msra.mxu0 %v8136
        %8158 = vmatpush.bf16.msra.mxu0 %v8134
        %8159 = vmatpush.bf16.msra.mxu0 %v8132
        %8160 = vmatpush.bf16.msra.mxu0 %v8130
        %8161 = vmatmul.bf16.gmra.mxu0 %v8113
        %v8162 = vpop.f32.mrf.mxu0
        %v8163 = vadd.f32 0.0, %v8162
        %v8164 = vpop.f32.mrf.mxu0
        %v8165 = vadd.f32 0.0, %v8164
        %8166 = vmatmul.bf16.gmra.mxu0 %v8114
        %v8167 = vpop.f32.mrf.mxu0
        %v8168 = vadd.f32 0.0, %v8167
        %v8169 = vpop.f32.mrf.mxu0
        %v8170 = vadd.f32 0.0, %v8169
        %8171 = vmatmul.bf16.gmra.mxu0 %v8115
        %v8172 = vpop.f32.mrf.mxu0
        %v8173 = vadd.f32 0.0, %v8172
        %v8174 = vpop.f32.mrf.mxu0
        %v8175 = vadd.f32 0.0, %v8174
        %8176 = vmatmul.bf16.gmra.mxu0 %v8116
        %v8177 = vpop.f32.mrf.mxu0
        %v8178 = vadd.f32 0.0, %v8177
        %v8179 = vpop.f32.mrf.mxu0
        %v8180 = vadd.f32 0.0, %v8179
        %8181 = vmatmul.bf16.gmra.mxu0 %v8117
        %v8182 = vpop.f32.mrf.mxu0
        %v8183 = vadd.f32 0.0, %v8182
        %v8184 = vpop.f32.mrf.mxu0
        %v8185 = vadd.f32 0.0, %v8184
        %8186 = vmatmul.bf16.gmra.mxu0 %v8118
        %v8187 = vpop.f32.mrf.mxu0
        %v8188 = vadd.f32 0.0, %v8187
        %v8189 = vpop.f32.mrf.mxu0
        %v8190 = vadd.f32 0.0, %v8189
        %8191 = vmatmul.bf16.gmra.mxu0 %v8119
        %v8192 = vpop.f32.mrf.mxu0
        %v8193 = vadd.f32 0.0, %v8192
        %v8194 = vpop.f32.mrf.mxu0
        %v8195 = vadd.f32 0.0, %v8194
        %8196 = vmatmul.bf16.gmra.mxu0 %v8120
        %v8197 = vpop.f32.mrf.mxu0
        %v8198 = vadd.f32 0.0, %v8197
        %v8199 = vpop.f32.mrf.mxu0
        %v8200 = vadd.f32 0.0, %v8199
        %8201 = vdwg.mxu0
        %8218 = vrot.lane.b32.xlu0 %v8163, 16
        %v8219 = vpop.permute.xlu0 %8218
        %8220 = vrot.lane.b32.xlu0 %v8165, 16
        %v8221 = vpop.permute.xlu0 %8220
        %8222 = vrot.lane.b32.xlu0 %v8168, 16
        %v8223 = vpop.permute.xlu0 %8222
        %8224 = vrot.lane.b32.xlu0 %v8170, 16
        %v8225 = vpop.permute.xlu0 %8224
        %8226 = vrot.lane.b32.xlu0 %v8173, 16
        %v8227 = vpop.permute.xlu0 %8226
        %8228 = vrot.lane.b32.xlu0 %v8175, 16
        %v8229 = vpop.permute.xlu0 %8228
        %8230 = vrot.lane.b32.xlu0 %v8178, 16
        %v8231 = vpop.permute.xlu0 %8230
        %8232 = vrot.lane.b32.xlu0 %v8180, 16
        %v8233 = vpop.permute.xlu0 %8232
        %8234 = vrot.lane.b32.xlu0 %v8183, 16
        %v8235 = vpop.permute.xlu0 %8234
        %8236 = vrot.lane.b32.xlu0 %v8185, 16
        %v8237 = vpop.permute.xlu0 %8236
        %8238 = vrot.lane.b32.xlu0 %v8188, 16
        %v8239 = vpop.permute.xlu0 %8238
        %8240 = vrot.lane.b32.xlu0 %v8190, 16
        %v8241 = vpop.permute.xlu0 %8240
        %8242 = vrot.lane.b32.xlu0 %v8193, 16
        %v8243 = vpop.permute.xlu0 %8242
        %8244 = vrot.lane.b32.xlu0 %v8195, 16
        %v8245 = vpop.permute.xlu0 %8244
        %8246 = vrot.lane.b32.xlu0 %v8198, 16
        %v8247 = vpop.permute.xlu0 %8246
        %8248 = vrot.lane.b32.xlu0 %v8200, 16
        %v8249 = vpop.permute.xlu0 %8248
        %v8266 = vsel %vm2770, %v8042, %v8219
        %v8267 = vsel %vm2770, %v8044, %v8221
        %v8268 = vsel %vm2770, %v8047, %v8223
        %v8269 = vsel %vm2770, %v8049, %v8225
        %v8270 = vsel %vm2770, %v8052, %v8227
        %v8271 = vsel %vm2770, %v8054, %v8229
        %v8272 = vsel %vm2770, %v8057, %v8231
        %v8273 = vsel %vm2770, %v8059, %v8233
        %v8274 = vsel %vm2770, %v8062, %v8235
        %v8275 = vsel %vm2770, %v8064, %v8237
        %v8276 = vsel %vm2770, %v8067, %v8239
        %v8277 = vsel %vm2770, %v8069, %v8241
        %v8278 = vsel %vm2770, %v8072, %v8243
        %v8279 = vsel %vm2770, %v8074, %v8245
        %v8280 = vsel %vm2770, %v8077, %v8247
        %v8281 = vsel %vm2770, %v8079, %v8249
        %v8282 = vperm.slane %v6123, 0
        %v8283 = vadd.f32 %v8266, %v8282
        %v8284 = vadd.f32 %v8267, %v8282
        %v8285 = vadd.f32 %v8268, %v8282
        %v8286 = vadd.f32 %v8269, %v8282
        %v8287 = vadd.f32 %v8270, %v8282
        %v8288 = vadd.f32 %v8271, %v8282
        %v8289 = vadd.f32 %v8272, %v8282
        %v8290 = vadd.f32 %v8273, %v8282
        %v8291 = vadd.f32 %v8274, %v8282
        %v8292 = vadd.f32 %v8275, %v8282
        %v8293 = vadd.f32 %v8276, %v8282
        %v8294 = vadd.f32 %v8277, %v8282
        %v8295 = vadd.f32 %v8278, %v8282
        %v8296 = vadd.f32 %v8279, %v8282
        %v8297 = vadd.f32 %v8280, %v8282
        %v8298 = vadd.f32 %v8281, %v8282
        %vm8299 = vcmp.gt.f32.partialorder %v8283, 0.0
        %vm8300 = vcmp.gt.f32.partialorder %v8284, 0.0
        %vm8301 = vcmp.gt.f32.partialorder %v8285, 0.0
        %vm8302 = vcmp.gt.f32.partialorder %v8286, 0.0
        %vm8303 = vcmp.gt.f32.partialorder %v8287, 0.0
        %vm8304 = vcmp.gt.f32.partialorder %v8288, 0.0
        %vm8305 = vcmp.gt.f32.partialorder %v8289, 0.0
        %vm8306 = vcmp.gt.f32.partialorder %v8290, 0.0
        %vm8307 = vcmp.gt.f32.partialorder %v8291, 0.0
        %vm8308 = vcmp.gt.f32.partialorder %v8292, 0.0
        %vm8309 = vcmp.gt.f32.partialorder %v8293, 0.0
        %vm8310 = vcmp.gt.f32.partialorder %v8294, 0.0
        %vm8311 = vcmp.gt.f32.partialorder %v8295, 0.0
        %vm8312 = vcmp.gt.f32.partialorder %v8296, 0.0
        %vm8313 = vcmp.gt.f32.partialorder %v8297, 0.0
        %vm8314 = vcmp.gt.f32.partialorder %v8298, 0.0
        %v8315 = vmin.f32 %v8283, 0.0
        %v8316 = vmin.f32 %v8284, 0.0
        %v8317 = vmin.f32 %v8285, 0.0
        %v8318 = vmin.f32 %v8286, 0.0
        %v8319 = vmin.f32 %v8287, 0.0
        %v8320 = vmin.f32 %v8288, 0.0
        %v8321 = vmin.f32 %v8289, 0.0
        %v8322 = vmin.f32 %v8290, 0.0
        %v8323 = vmin.f32 %v8291, 0.0
        %v8324 = vmin.f32 %v8292, 0.0
        %v8325 = vmin.f32 %v8293, 0.0
        %v8326 = vmin.f32 %v8294, 0.0
        %v8327 = vmin.f32 %v8295, 0.0
        %v8328 = vmin.f32 %v8296, 0.0
        %v8329 = vmin.f32 %v8297, 0.0
        %v8330 = vmin.f32 %v8298, 0.0
        %v8331 = vmul.f32 %v8315, 1.442695
        %v8332 = vpow.pop %v8331
        %v8333 = vmul.f32 %v8316, 1.442695
        %v8334 = vpow.pop %v8333
        %v8335 = vmul.f32 %v8317, 1.442695
        %v8336 = vpow.pop %v8335
        %v8337 = vmul.f32 %v8318, 1.442695
        %v8338 = vpow.pop %v8337
        %v8339 = vmul.f32 %v8319, 1.442695
        %v8340 = vpow.pop %v8339
        %v8341 = vmul.f32 %v8320, 1.442695
        %v8342 = vpow.pop %v8341
        %v8343 = vmul.f32 %v8321, 1.442695
        %v8344 = vpow.pop %v8343
        %v8345 = vmul.f32 %v8322, 1.442695
        %v8346 = vpow.pop %v8345
        %v8347 = vmul.f32 %v8323, 1.442695
        %v8348 = vpow.pop %v8347
        %v8349 = vmul.f32 %v8324, 1.442695
        %v8350 = vpow.pop %v8349
        %v8351 = vmul.f32 %v8325, 1.442695
        %v8352 = vpow.pop %v8351
        %v8353 = vmul.f32 %v8326, 1.442695
        %v8354 = vpow.pop %v8353
        %v8355 = vmul.f32 %v8327, 1.442695
        %v8356 = vpow.pop %v8355
        %v8357 = vmul.f32 %v8328, 1.442695
        %v8358 = vpow.pop %v8357
        %v8359 = vmul.f32 %v8329, 1.442695
        %v8360 = vpow.pop %v8359
        %v8361 = vmul.f32 %v8330, 1.442695
        %v8362 = vpow.pop %v8361
        %v8363 = vsub.f32 %v8332, 1.0
        %v8364 = vsub.f32 %v8334, 1.0
        %v8365 = vsub.f32 %v8336, 1.0
        %v8366 = vsub.f32 %v8338, 1.0
        %v8367 = vsub.f32 %v8340, 1.0
        %v8368 = vsub.f32 %v8342, 1.0
        %v8369 = vsub.f32 %v8344, 1.0
        %v8370 = vsub.f32 %v8346, 1.0
        %v8371 = vsub.f32 %v8348, 1.0
        %v8372 = vsub.f32 %v8350, 1.0
        %v8373 = vsub.f32 %v8352, 1.0
        %v8374 = vsub.f32 %v8354, 1.0
        %v8375 = vsub.f32 %v8356, 1.0
        %v8376 = vsub.f32 %v8358, 1.0
        %v8377 = vsub.f32 %v8360, 1.0
        %v8378 = vsub.f32 %v8362, 1.0
        %v8379 = vsel %vm8299, %v8283, %v8363
        %v8380 = vsel %vm8300, %v8284, %v8364
        %v8381 = vsel %vm8301, %v8285, %v8365
        %v8382 = vsel %vm8302, %v8286, %v8366
        %v8383 = vsel %vm8303, %v8287, %v8367
        %v8384 = vsel %vm8304, %v8288, %v8368
        %v8385 = vsel %vm8305, %v8289, %v8369
        %v8386 = vsel %vm8306, %v8290, %v8370
        %v8387 = vsel %vm8307, %v8291, %v8371
        %v8388 = vsel %vm8308, %v8292, %v8372
        %v8389 = vsel %vm8309, %v8293, %v8373
        %v8390 = vsel %vm8310, %v8294, %v8374
        %v8391 = vsel %vm8311, %v8295, %v8375
        %v8392 = vsel %vm8312, %v8296, %v8376
        %v8393 = vsel %vm8313, %v8297, %v8377
        %v8394 = vsel %vm8314, %v8298, %v8378
        %v8411 = vunpack.c.l.b16 %v7888
        %v8412 = vunpack.c.l.b16 %v7889
        %v8413 = vunpack.c.l.b16 %v7890
        %v8414 = vunpack.c.l.b16 %v7891
        %v8415 = vunpack.c.l.b16 %v7892
        %v8416 = vunpack.c.l.b16 %v7893
        %v8417 = vunpack.c.l.b16 %v7894
        %v8418 = vunpack.c.l.b16 %v7895
        %v8419 = vunpack.c.l.b16 %v7896
        %v8420 = vunpack.c.l.b16 %v7897
        %v8421 = vunpack.c.l.b16 %v7898
        %v8422 = vunpack.c.l.b16 %v7899
        %v8423 = vunpack.c.l.b16 %v7900
        %v8424 = vunpack.c.l.b16 %v7901
        %v8425 = vunpack.c.l.b16 %v7902
        %v8426 = vunpack.c.l.b16 %v7903
        %v8427 = vpack.c.b16 %v8412, %v8411
        %v8428 = vpack.c.b16 %v8414, %v8413
        %v8429 = vpack.c.b16 %v8416, %v8415
        %v8430 = vpack.c.b16 %v8418, %v8417
        %v8431 = vpack.c.b16 %v8420, %v8419
        %v8432 = vpack.c.b16 %v8422, %v8421
        %v8433 = vpack.c.b16 %v8424, %v8423
        %v8434 = vpack.c.b16 %v8426, %v8425
        %8443 = vrot.lane.b32.xlu0 %v8016, 96
        %v8444 = vpop.permute.xlu0 %8443
        %8445 = vrot.lane.b32.xlu0 %v8017, 96
        %v8446 = vpop.permute.xlu0 %8445
        %8447 = vrot.lane.b32.xlu0 %v8018, 96
        %v8448 = vpop.permute.xlu0 %8447
        %8449 = vrot.lane.b32.xlu0 %v8019, 96
        %v8450 = vpop.permute.xlu0 %8449
        %8451 = vrot.lane.b32.xlu0 %v8020, 96
        %v8452 = vpop.permute.xlu0 %8451
        %8453 = vrot.lane.b32.xlu0 %v8021, 96
        %v8454 = vpop.permute.xlu0 %8453
        %8455 = vrot.lane.b32.xlu0 %v8022, 96
        %v8456 = vpop.permute.xlu0 %8455
        %8457 = vrot.lane.b32.xlu0 %v8023, 96
        %v8458 = vpop.permute.xlu0 %8457
        %8467 = vmatpush.bf16.msra.mxu0 %v8458
        %8468 = vmatpush.bf16.msra.mxu0 %v8456
        %8469 = vmatpush.bf16.msra.mxu0 %v8454
        %8470 = vmatpush.bf16.msra.mxu0 %v8452
        %8471 = vmatpush.bf16.msra.mxu0 %v8450
        %8472 = vmatpush.bf16.msra.mxu0 %v8448
        %8473 = vmatpush.bf16.msra.mxu0 %v8446
        %8474 = vmatpush.bf16.msra.mxu0 %v8444
        %8475 = vmatmul.bf16.gmra.mxu0 %v8427
        %v8476 = vpop.f32.mrf.mxu0
        %v8477 = vadd.f32 0.0, %v8476
        %v8478 = vpop.f32.mrf.mxu0
        %v8479 = vadd.f32 0.0, %v8478
        %8480 = vmatmul.bf16.gmra.mxu0 %v8428
        %v8481 = vpop.f32.mrf.mxu0
        %v8482 = vadd.f32 0.0, %v8481
        %v8483 = vpop.f32.mrf.mxu0
        %v8484 = vadd.f32 0.0, %v8483
        %8485 = vmatmul.bf16.gmra.mxu0 %v8429
        %v8486 = vpop.f32.mrf.mxu0
        %v8487 = vadd.f32 0.0, %v8486
        %v8488 = vpop.f32.mrf.mxu0
        %v8489 = vadd.f32 0.0, %v8488
        %8490 = vmatmul.bf16.gmra.mxu0 %v8430
        %v8491 = vpop.f32.mrf.mxu0
        %v8492 = vadd.f32 0.0, %v8491
        %v8493 = vpop.f32.mrf.mxu0
        %v8494 = vadd.f32 0.0, %v8493
        %8495 = vmatmul.bf16.gmra.mxu0 %v8431
        %v8496 = vpop.f32.mrf.mxu0
        %v8497 = vadd.f32 0.0, %v8496
        %v8498 = vpop.f32.mrf.mxu0
        %v8499 = vadd.f32 0.0, %v8498
        %8500 = vmatmul.bf16.gmra.mxu0 %v8432
        %v8501 = vpop.f32.mrf.mxu0
        %v8502 = vadd.f32 0.0, %v8501
        %v8503 = vpop.f32.mrf.mxu0
        %v8504 = vadd.f32 0.0, %v8503
        %8505 = vmatmul.bf16.gmra.mxu0 %v8433
        %v8506 = vpop.f32.mrf.mxu0
        %v8507 = vadd.f32 0.0, %v8506
        %v8508 = vpop.f32.mrf.mxu0
        %v8509 = vadd.f32 0.0, %v8508
        %8510 = vmatmul.bf16.gmra.mxu0 %v8434
        %v8511 = vpop.f32.mrf.mxu0
        %v8512 = vadd.f32 0.0, %v8511
        %v8513 = vpop.f32.mrf.mxu0
        %v8514 = vadd.f32 0.0, %v8513
        %8515 = vdwg.mxu0
        %v8532 = vunpack.c.l.b16 %v7904
        %v8533 = vunpack.c.l.b16 %v7905
        %v8534 = vunpack.c.l.b16 %v7906
        %v8535 = vunpack.c.l.b16 %v7907
        %v8536 = vunpack.c.l.b16 %v7908
        %v8537 = vunpack.c.l.b16 %v7909
        %v8538 = vunpack.c.l.b16 %v7910
        %v8539 = vunpack.c.l.b16 %v7911
        %v8540 = vunpack.c.l.b16 %v7912
        %v8541 = vunpack.c.l.b16 %v7913
        %v8542 = vunpack.c.l.b16 %v7914
        %v8543 = vunpack.c.l.b16 %v7915
        %v8544 = vunpack.c.l.b16 %v7916
        %v8545 = vunpack.c.l.b16 %v7917
        %v8546 = vunpack.c.l.b16 %v7918
        %v8547 = vunpack.c.l.b16 %v7919
        %v8548 = vpack.c.b16 %v8533, %v8532
        %v8549 = vpack.c.b16 %v8535, %v8534
        %v8550 = vpack.c.b16 %v8537, %v8536
        %v8551 = vpack.c.b16 %v8539, %v8538
        %v8552 = vpack.c.b16 %v8541, %v8540
        %v8553 = vpack.c.b16 %v8543, %v8542
        %v8554 = vpack.c.b16 %v8545, %v8544
        %v8555 = vpack.c.b16 %v8547, %v8546
        %8564 = vrot.lane.b32.xlu0 %v8016, 80
        %v8565 = vpop.permute.xlu0 %8564
        %8566 = vrot.lane.b32.xlu0 %v8017, 80
        %v8567 = vpop.permute.xlu0 %8566
        %8568 = vrot.lane.b32.xlu0 %v8018, 80
        %v8569 = vpop.permute.xlu0 %8568
        %8570 = vrot.lane.b32.xlu0 %v8019, 80
        %v8571 = vpop.permute.xlu0 %8570
        %8572 = vrot.lane.b32.xlu0 %v8020, 80
        %v8573 = vpop.permute.xlu0 %8572
        %8574 = vrot.lane.b32.xlu0 %v8021, 80
        %v8575 = vpop.permute.xlu0 %8574
        %8576 = vrot.lane.b32.xlu0 %v8022, 80
        %v8577 = vpop.permute.xlu0 %8576
        %8578 = vrot.lane.b32.xlu0 %v8023, 80
        %v8579 = vpop.permute.xlu0 %8578
        %8588 = vmatpush.bf16.msra.mxu0 %v8579
        %8589 = vmatpush.bf16.msra.mxu0 %v8577
        %8590 = vmatpush.bf16.msra.mxu0 %v8575
        %8591 = vmatpush.bf16.msra.mxu0 %v8573
        %8592 = vmatpush.bf16.msra.mxu0 %v8571
        %8593 = vmatpush.bf16.msra.mxu0 %v8569
        %8594 = vmatpush.bf16.msra.mxu0 %v8567
        %8595 = vmatpush.bf16.msra.mxu0 %v8565
        %8596 = vmatmul.bf16.gmra.mxu0 %v8548
        %v8597 = vpop.f32.mrf.mxu0
        %v8598 = vadd.f32 0.0, %v8597
        %v8599 = vpop.f32.mrf.mxu0
        %v8600 = vadd.f32 0.0, %v8599
        %8601 = vmatmul.bf16.gmra.mxu0 %v8549
        %v8602 = vpop.f32.mrf.mxu0
        %v8603 = vadd.f32 0.0, %v8602
        %v8604 = vpop.f32.mrf.mxu0
        %v8605 = vadd.f32 0.0, %v8604
        %8606 = vmatmul.bf16.gmra.mxu0 %v8550
        %v8607 = vpop.f32.mrf.mxu0
        %v8608 = vadd.f32 0.0, %v8607
        %v8609 = vpop.f32.mrf.mxu0
        %v8610 = vadd.f32 0.0, %v8609
        %8611 = vmatmul.bf16.gmra.mxu0 %v8551
        %v8612 = vpop.f32.mrf.mxu0
        %v8613 = vadd.f32 0.0, %v8612
        %v8614 = vpop.f32.mrf.mxu0
        %v8615 = vadd.f32 0.0, %v8614
        %8616 = vmatmul.bf16.gmra.mxu0 %v8552
        %v8617 = vpop.f32.mrf.mxu0
        %v8618 = vadd.f32 0.0, %v8617
        %v8619 = vpop.f32.mrf.mxu0
        %v8620 = vadd.f32 0.0, %v8619
        %8621 = vmatmul.bf16.gmra.mxu0 %v8553
        %v8622 = vpop.f32.mrf.mxu0
        %v8623 = vadd.f32 0.0, %v8622
        %v8624 = vpop.f32.mrf.mxu0
        %v8625 = vadd.f32 0.0, %v8624
        %8626 = vmatmul.bf16.gmra.mxu0 %v8554
        %v8627 = vpop.f32.mrf.mxu0
        %v8628 = vadd.f32 0.0, %v8627
        %v8629 = vpop.f32.mrf.mxu0
        %v8630 = vadd.f32 0.0, %v8629
        %8631 = vmatmul.bf16.gmra.mxu0 %v8555
        %v8632 = vpop.f32.mrf.mxu0
        %v8633 = vadd.f32 0.0, %v8632
        %v8634 = vpop.f32.mrf.mxu0
        %v8635 = vadd.f32 0.0, %v8634
        %8636 = vdwg.mxu0
        %8653 = vrot.lane.b32.xlu0 %v8598, 16
        %v8654 = vpop.permute.xlu0 %8653
        %8655 = vrot.lane.b32.xlu0 %v8600, 16
        %v8656 = vpop.permute.xlu0 %8655
        %8657 = vrot.lane.b32.xlu0 %v8603, 16
        %v8658 = vpop.permute.xlu0 %8657
        %8659 = vrot.lane.b32.xlu0 %v8605, 16
        %v8660 = vpop.permute.xlu0 %8659
        %8661 = vrot.lane.b32.xlu0 %v8608, 16
        %v8662 = vpop.permute.xlu0 %8661
        %8663 = vrot.lane.b32.xlu0 %v8610, 16
        %v8664 = vpop.permute.xlu0 %8663
        %8665 = vrot.lane.b32.xlu0 %v8613, 16
        %v8666 = vpop.permute.xlu0 %8665
        %8667 = vrot.lane.b32.xlu0 %v8615, 16
        %v8668 = vpop.permute.xlu0 %8667
        %8669 = vrot.lane.b32.xlu0 %v8618, 16
        %v8670 = vpop.permute.xlu0 %8669
        %8671 = vrot.lane.b32.xlu0 %v8620, 16
        %v8672 = vpop.permute.xlu0 %8671
        %8673 = vrot.lane.b32.xlu0 %v8623, 16
        %v8674 = vpop.permute.xlu0 %8673
        %8675 = vrot.lane.b32.xlu0 %v8625, 16
        %v8676 = vpop.permute.xlu0 %8675
        %8677 = vrot.lane.b32.xlu0 %v8628, 16
        %v8678 = vpop.permute.xlu0 %8677
        %8679 = vrot.lane.b32.xlu0 %v8630, 16
        %v8680 = vpop.permute.xlu0 %8679
        %8681 = vrot.lane.b32.xlu0 %v8633, 16
        %v8682 = vpop.permute.xlu0 %8681
        %8683 = vrot.lane.b32.xlu0 %v8635, 16
        %v8684 = vpop.permute.xlu0 %8683
        %v8701 = vsel %vm2770, %v8477, %v8654
        %v8702 = vsel %vm2770, %v8479, %v8656
        %v8703 = vsel %vm2770, %v8482, %v8658
        %v8704 = vsel %vm2770, %v8484, %v8660
        %v8705 = vsel %vm2770, %v8487, %v8662
        %v8706 = vsel %vm2770, %v8489, %v8664
        %v8707 = vsel %vm2770, %v8492, %v8666
        %v8708 = vsel %vm2770, %v8494, %v8668
        %v8709 = vsel %vm2770, %v8497, %v8670
        %v8710 = vsel %vm2770, %v8499, %v8672
        %v8711 = vsel %vm2770, %v8502, %v8674
        %v8712 = vsel %vm2770, %v8504, %v8676
        %v8713 = vsel %vm2770, %v8507, %v8678
        %v8714 = vsel %vm2770, %v8509, %v8680
        %v8715 = vsel %vm2770, %v8512, %v8682
        %v8716 = vsel %vm2770, %v8514, %v8684
        %v8717 = vperm.slane %v6123, 1
        %v8718 = vadd.f32 %v8701, %v8717
        %v8719 = vadd.f32 %v8702, %v8717
        %v8720 = vadd.f32 %v8703, %v8717
        %v8721 = vadd.f32 %v8704, %v8717
        %v8722 = vadd.f32 %v8705, %v8717
        %v8723 = vadd.f32 %v8706, %v8717
        %v8724 = vadd.f32 %v8707, %v8717
        %v8725 = vadd.f32 %v8708, %v8717
        %v8726 = vadd.f32 %v8709, %v8717
        %v8727 = vadd.f32 %v8710, %v8717
        %v8728 = vadd.f32 %v8711, %v8717
        %v8729 = vadd.f32 %v8712, %v8717
        %v8730 = vadd.f32 %v8713, %v8717
        %v8731 = vadd.f32 %v8714, %v8717
        %v8732 = vadd.f32 %v8715, %v8717
        %v8733 = vadd.f32 %v8716, %v8717
        %vm8734 = vcmp.gt.f32.partialorder %v8718, 0.0
        %vm8735 = vcmp.gt.f32.partialorder %v8719, 0.0
        %vm8736 = vcmp.gt.f32.partialorder %v8720, 0.0
        %vm8737 = vcmp.gt.f32.partialorder %v8721, 0.0
        %vm8738 = vcmp.gt.f32.partialorder %v8722, 0.0
        %vm8739 = vcmp.gt.f32.partialorder %v8723, 0.0
        %vm8740 = vcmp.gt.f32.partialorder %v8724, 0.0
        %vm8741 = vcmp.gt.f32.partialorder %v8725, 0.0
        %vm8742 = vcmp.gt.f32.partialorder %v8726, 0.0
        %vm8743 = vcmp.gt.f32.partialorder %v8727, 0.0
        %vm8744 = vcmp.gt.f32.partialorder %v8728, 0.0
        %vm8745 = vcmp.gt.f32.partialorder %v8729, 0.0
        %vm8746 = vcmp.gt.f32.partialorder %v8730, 0.0
        %vm8747 = vcmp.gt.f32.partialorder %v8731, 0.0
        %vm8748 = vcmp.gt.f32.partialorder %v8732, 0.0
        %vm8749 = vcmp.gt.f32.partialorder %v8733, 0.0
        %v8750 = vmin.f32 %v8718, 0.0
        %v8751 = vmin.f32 %v8719, 0.0
        %v8752 = vmin.f32 %v8720, 0.0
        %v8753 = vmin.f32 %v8721, 0.0
        %v8754 = vmin.f32 %v8722, 0.0
        %v8755 = vmin.f32 %v8723, 0.0
        %v8756 = vmin.f32 %v8724, 0.0
        %v8757 = vmin.f32 %v8725, 0.0
        %v8758 = vmin.f32 %v8726, 0.0
        %v8759 = vmin.f32 %v8727, 0.0
        %v8760 = vmin.f32 %v8728, 0.0
        %v8761 = vmin.f32 %v8729, 0.0
        %v8762 = vmin.f32 %v8730, 0.0
        %v8763 = vmin.f32 %v8731, 0.0
        %v8764 = vmin.f32 %v8732, 0.0
        %v8765 = vmin.f32 %v8733, 0.0
        %v8766 = vmul.f32 %v8750, 1.442695
        %v8767 = vpow.pop %v8766
        %v8768 = vmul.f32 %v8751, 1.442695
        %v8769 = vpow.pop %v8768
        %v8770 = vmul.f32 %v8752, 1.442695
        %v8771 = vpow.pop %v8770
        %v8772 = vmul.f32 %v8753, 1.442695
        %v8773 = vpow.pop %v8772
        %v8774 = vmul.f32 %v8754, 1.442695
        %v8775 = vpow.pop %v8774
        %v8776 = vmul.f32 %v8755, 1.442695
        %v8777 = vpow.pop %v8776
        %v8778 = vmul.f32 %v8756, 1.442695
        %v8779 = vpow.pop %v8778
        %v8780 = vmul.f32 %v8757, 1.442695
        %v8781 = vpow.pop %v8780
        %v8782 = vmul.f32 %v8758, 1.442695
        %v8783 = vpow.pop %v8782
        %v8784 = vmul.f32 %v8759, 1.442695
        %v8785 = vpow.pop %v8784
        %v8786 = vmul.f32 %v8760, 1.442695
        %v8787 = vpow.pop %v8786
        %v8788 = vmul.f32 %v8761, 1.442695
        %v8789 = vpow.pop %v8788
        %v8790 = vmul.f32 %v8762, 1.442695
        %v8791 = vpow.pop %v8790
        %v8792 = vmul.f32 %v8763, 1.442695
        %v8793 = vpow.pop %v8792
        %v8794 = vmul.f32 %v8764, 1.442695
        %v8795 = vpow.pop %v8794
        %v8796 = vmul.f32 %v8765, 1.442695
        %v8797 = vpow.pop %v8796
        %v8798 = vsub.f32 %v8767, 1.0
        %v8799 = vsub.f32 %v8769, 1.0
        %v8800 = vsub.f32 %v8771, 1.0
        %v8801 = vsub.f32 %v8773, 1.0
        %v8802 = vsub.f32 %v8775, 1.0
        %v8803 = vsub.f32 %v8777, 1.0
        %v8804 = vsub.f32 %v8779, 1.0
        %v8805 = vsub.f32 %v8781, 1.0
        %v8806 = vsub.f32 %v8783, 1.0
        %v8807 = vsub.f32 %v8785, 1.0
        %v8808 = vsub.f32 %v8787, 1.0
        %v8809 = vsub.f32 %v8789, 1.0
        %v8810 = vsub.f32 %v8791, 1.0
        %v8811 = vsub.f32 %v8793, 1.0
        %v8812 = vsub.f32 %v8795, 1.0
        %v8813 = vsub.f32 %v8797, 1.0
        %v8814 = vsel %vm8734, %v8718, %v8798
        %v8815 = vsel %vm8735, %v8719, %v8799
        %v8816 = vsel %vm8736, %v8720, %v8800
        %v8817 = vsel %vm8737, %v8721, %v8801
        %v8818 = vsel %vm8738, %v8722, %v8802
        %v8819 = vsel %vm8739, %v8723, %v8803
        %v8820 = vsel %vm8740, %v8724, %v8804
        %v8821 = vsel %vm8741, %v8725, %v8805
        %v8822 = vsel %vm8742, %v8726, %v8806
        %v8823 = vsel %vm8743, %v8727, %v8807
        %v8824 = vsel %vm8744, %v8728, %v8808
        %v8825 = vsel %vm8745, %v8729, %v8809
        %v8826 = vsel %vm8746, %v8730, %v8810
        %v8827 = vsel %vm8747, %v8731, %v8811
        %v8828 = vsel %vm8748, %v8732, %v8812
        %v8829 = vsel %vm8749, %v8733, %v8813
        %v8830 = vadd.f32 %v8379, %v8814
        %v8831 = vadd.f32 %v8380, %v8815
        %v8832 = vadd.f32 %v8381, %v8816
        %v8833 = vadd.f32 %v8382, %v8817
        %v8834 = vadd.f32 %v8383, %v8818
        %v8835 = vadd.f32 %v8384, %v8819
        %v8836 = vadd.f32 %v8385, %v8820
        %v8837 = vadd.f32 %v8386, %v8821
        %v8838 = vadd.f32 %v8387, %v8822
        %v8839 = vadd.f32 %v8388, %v8823
        %v8840 = vadd.f32 %v8389, %v8824
        %v8841 = vadd.f32 %v8390, %v8825
        %v8842 = vadd.f32 %v8391, %v8826
        %v8843 = vadd.f32 %v8392, %v8827
        %v8844 = vadd.f32 %v8393, %v8828
        %v8845 = vadd.f32 %v8394, %v8829
        %v8846 = vmul.f32 %v8830, 0.5
        %v8847 = vmul.f32 %v8831, 0.5
        %v8848 = vmul.f32 %v8832, 0.5
        %v8849 = vmul.f32 %v8833, 0.5
        %v8850 = vmul.f32 %v8834, 0.5
        %v8851 = vmul.f32 %v8835, 0.5
        %v8852 = vmul.f32 %v8836, 0.5
        %v8853 = vmul.f32 %v8837, 0.5
        %v8854 = vmul.f32 %v8838, 0.5
        %v8855 = vmul.f32 %v8839, 0.5
        %v8856 = vmul.f32 %v8840, 0.5
        %v8857 = vmul.f32 %v8841, 0.5
        %v8858 = vmul.f32 %v8842, 0.5
        %v8859 = vmul.f32 %v8843, 0.5
        %v8860 = vmul.f32 %v8844, 0.5
        %v8861 = vmul.f32 %v8845, 0.5
        %v8862 = vld [vmem:[%s12] sm:$0xf]
        %v8863 = vld [vmem:[%s12 + $0x4] sm:$0xf]
        %v8864 = vld [vmem:[%s12 + $0x8] sm:$0xf]
        %v8865 = vld [vmem:[%s12 + $0xc] sm:$0xf]
        %v8866 = vld [vmem:[%s13] sm:$0xff]
        %v8867 = vld [vmem:[%s13 + $0x8] sm:$0xff]
        %v8868 = vld [vmem:[%s13 + $0x10] sm:$0xff]
        %v8869 = vld [vmem:[%s13 + $0x18] sm:$0xff]
        %v8870 = vld [vmem:[%s14] sm:$0x3]
        %v8871 = vpack.c.bf16 %v8847, %v8846
        %v8872 = vpack.c.bf16 %v8849, %v8848
        %v8873 = vpack.c.bf16 %v8851, %v8850
        %v8874 = vpack.c.bf16 %v8853, %v8852
        %v8875 = vpack.c.bf16 %v8855, %v8854
        %v8876 = vpack.c.bf16 %v8857, %v8856
        %v8877 = vpack.c.bf16 %v8859, %v8858
        %v8878 = vpack.c.bf16 %v8861, %v8860
        %v8883 = vunpack.c.l.b16 %v8862
        %v8884 = vunpack.c.l.b16 %v8863
        %v8885 = vunpack.c.l.b16 %v8864
        %v8886 = vunpack.c.l.b16 %v8865
        %v8887 = vpack.c.b16 %v8884, %v8883
        %v8888 = vpack.c.b16 %v8886, %v8885
        %v8892 = vsel %vm3396, %v8871, 0
        %v8895 = vsel %vm3396, %v8872, 0
        %v8898 = vsel %vm3396, %v8873, 0
        %v8901 = vsel %vm3396, %v8874, 0
        %v8904 = vsel %vm3396, %v8875, 0
        %v8907 = vsel %vm3396, %v8876, 0
        %v8910 = vsel %vm3396, %v8877, 0
        %v8913 = vsel %vm3396, %v8878, 0
        %8915 = vmatpush.bf16.msra.mxu0 0
        %8916 = vmatpush.bf16.msra.mxu0 0
        %8917 = vmatpush.bf16.msra.mxu0 0
        %8918 = vmatpush.bf16.msra.mxu0 0
        %8919 = vmatpush.bf16.msra.mxu0 0
        %8920 = vmatpush.bf16.msra.mxu0 0
        %8921 = vmatpush.bf16.msra.mxu0 %v8888
        %8922 = vmatpush.bf16.msra.mxu0 %v8887
        %8923 = vmatmul.bf16.gmra.mxu0 %v8892
        %v8924 = vpop.f32.mrf.mxu0
        %v8925 = vadd.f32 0.0, %v8924
        %v8926 = vpop.f32.mrf.mxu0
        %v8927 = vadd.f32 0.0, %v8926
        %8928 = vmatmul.bf16.gmra.mxu0 %v8895
        %v8929 = vpop.f32.mrf.mxu0
        %v8930 = vadd.f32 0.0, %v8929
        %v8931 = vpop.f32.mrf.mxu0
        %v8932 = vadd.f32 0.0, %v8931
        %8933 = vmatmul.bf16.gmra.mxu0 %v8898
        %v8934 = vpop.f32.mrf.mxu0
        %v8935 = vadd.f32 0.0, %v8934
        %v8936 = vpop.f32.mrf.mxu0
        %v8937 = vadd.f32 0.0, %v8936
        %8938 = vmatmul.bf16.gmra.mxu0 %v8901
        %v8939 = vpop.f32.mrf.mxu0
        %v8940 = vadd.f32 0.0, %v8939
        %v8941 = vpop.f32.mrf.mxu0
        %v8942 = vadd.f32 0.0, %v8941
        %8943 = vmatmul.bf16.gmra.mxu0 %v8904
        %v8944 = vpop.f32.mrf.mxu0
        %v8945 = vadd.f32 0.0, %v8944
        %v8946 = vpop.f32.mrf.mxu0
        %v8947 = vadd.f32 0.0, %v8946
        %8948 = vmatmul.bf16.gmra.mxu0 %v8907
        %v8949 = vpop.f32.mrf.mxu0
        %v8950 = vadd.f32 0.0, %v8949
        %v8951 = vpop.f32.mrf.mxu0
        %v8952 = vadd.f32 0.0, %v8951
        %8953 = vmatmul.bf16.gmra.mxu0 %v8910
        %v8954 = vpop.f32.mrf.mxu0
        %v8955 = vadd.f32 0.0, %v8954
        %v8956 = vpop.f32.mrf.mxu0
        %v8957 = vadd.f32 0.0, %v8956
        %8958 = vmatmul.bf16.gmra.mxu0 %v8913
        %v8959 = vpop.f32.mrf.mxu0
        %v8960 = vadd.f32 0.0, %v8959
        %v8961 = vpop.f32.mrf.mxu0
        %v8962 = vadd.f32 0.0, %v8961
        %8963 = vdwg.mxu0
        %v8965 = vsel %vm3396, %v8846, 0
        %v8968 = vsel %vm3396, %v8847, 0
        %v8971 = vsel %vm3396, %v8848, 0
        %v8974 = vsel %vm3396, %v8849, 0
        %v8977 = vsel %vm3396, %v8850, 0
        %v8980 = vsel %vm3396, %v8851, 0
        %v8983 = vsel %vm3396, %v8852, 0
        %v8986 = vsel %vm3396, %v8853, 0
        %v8989 = vsel %vm3396, %v8854, 0
        %v8992 = vsel %vm3396, %v8855, 0
        %v8995 = vsel %vm3396, %v8856, 0
        %v8998 = vsel %vm3396, %v8857, 0
        %v9001 = vsel %vm3396, %v8858, 0
        %v9004 = vsel %vm3396, %v8859, 0
        %v9007 = vsel %vm3396, %v8860, 0
        %v9010 = vsel %vm3396, %v8861, 0
        %9012 = vmatpush.msra.mxu0 0.0
        %9013 = vmatpush.msra.mxu0 0.0
        %9014 = vmatpush.msra.mxu0 0.0
        %9015 = vmatpush.msra.mxu0 0.0
        %9016 = vmatpush.msra.mxu0 0.0
        %9017 = vmatpush.msra.mxu0 0.0
        %9018 = vmatpush.msra.mxu0 0.0
        %9019 = vmatpush.msra.mxu0 0.0
        %9020 = vmatpush.msra.mxu0 0.0
        %9021 = vmatpush.msra.mxu0 0.0
        %9022 = vmatpush.msra.mxu0 0.0
        %9023 = vmatpush.msra.mxu0 0.0
        %9024 = vmatpush.msra.mxu0 %v8869
        %9025 = vmatpush.msra.mxu0 %v8868
        %9026 = vmatpush.msra.mxu0 %v8867
        %9027 = vmatpush.msra.mxu0 %v8866
        %9028 = vmatmul.f32.gmra.mxu0 %v8965
        %v9029 = vpop.f32.mrf.mxu0
        %v9030 = vadd.f32 0.0, %v9029
        %9031 = vmatmul.f32.gmra.mxu0 %v8968
        %v9032 = vpop.f32.mrf.mxu0
        %v9033 = vadd.f32 0.0, %v9032
        %9034 = vmatmul.f32.gmra.mxu0 %v8971
        %v9035 = vpop.f32.mrf.mxu0
        %v9036 = vadd.f32 0.0, %v9035
        %9037 = vmatmul.f32.gmra.mxu0 %v8974
        %v9038 = vpop.f32.mrf.mxu0
        %v9039 = vadd.f32 0.0, %v9038
        %9040 = vmatmul.f32.gmra.mxu0 %v8977
        %v9041 = vpop.f32.mrf.mxu0
        %v9042 = vadd.f32 0.0, %v9041
        %9043 = vmatmul.f32.gmra.mxu0 %v8980
        %v9044 = vpop.f32.mrf.mxu0
        %v9045 = vadd.f32 0.0, %v9044
        %9046 = vmatmul.f32.gmra.mxu0 %v8983
        %v9047 = vpop.f32.mrf.mxu0
        %v9048 = vadd.f32 0.0, %v9047
        %9049 = vmatmul.f32.gmra.mxu0 %v8986
        %v9050 = vpop.f32.mrf.mxu0
        %v9051 = vadd.f32 0.0, %v9050
        %9052 = vmatmul.f32.gmra.mxu0 %v8989
        %v9053 = vpop.f32.mrf.mxu0
        %v9054 = vadd.f32 0.0, %v9053
        %9055 = vmatmul.f32.gmra.mxu0 %v8992
        %v9056 = vpop.f32.mrf.mxu0
        %v9057 = vadd.f32 0.0, %v9056
        %9058 = vmatmul.f32.gmra.mxu0 %v8995
        %v9059 = vpop.f32.mrf.mxu0
        %v9060 = vadd.f32 0.0, %v9059
        %9061 = vmatmul.f32.gmra.mxu0 %v8998
        %v9062 = vpop.f32.mrf.mxu0
        %v9063 = vadd.f32 0.0, %v9062
        %9064 = vmatmul.f32.gmra.mxu0 %v9001
        %v9065 = vpop.f32.mrf.mxu0
        %v9066 = vadd.f32 0.0, %v9065
        %9067 = vmatmul.f32.gmra.mxu0 %v9004
        %v9068 = vpop.f32.mrf.mxu0
        %v9069 = vadd.f32 0.0, %v9068
        %9070 = vmatmul.f32.gmra.mxu0 %v9007
        %v9071 = vpop.f32.mrf.mxu0
        %v9072 = vadd.f32 0.0, %v9071
        %9073 = vmatmul.f32.gmra.mxu0 %v9010
        %v9074 = vpop.f32.mrf.mxu0
        %v9075 = vadd.f32 0.0, %v9074
        %9076 = vdwg.mxu0
        %9077 = vxpose.xlu0.b32.start [1/16] %v9030, 128
        %9078 = vxpose.xlu0.b32.cont [2/16] %v9033, 128
        %9079 = vxpose.xlu0.b32.cont [3/16] %v9036, 128
        %9080 = vxpose.xlu0.b32.cont [4/16] %v9039, 128
        %9081 = vxpose.xlu0.b32.cont [5/16] %v9042, 128
        %9082 = vxpose.xlu0.b32.cont [6/16] %v9045, 128
        %9083 = vxpose.xlu0.b32.cont [7/16] %v9048, 128
        %9084 = vxpose.xlu0.b32.cont [8/16] %v9051, 128
        %9085 = vxpose.xlu0.b32.cont [9/16] %v9054, 128
        %9086 = vxpose.xlu0.b32.cont [10/16] %v9057, 128
        %9087 = vxpose.xlu0.b32.cont [11/16] %v9060, 128
        %9088 = vxpose.xlu0.b32.cont [12/16] %v9063, 128
        %9089 = vxpose.xlu0.b32.cont [13/16] %v9066, 128
        %9090 = vxpose.xlu0.b32.cont [14/16] %v9069, 128
        %9091 = vxpose.xlu0.b32.cont [15/16] %v9072, 128
        %9092 = vxpose.xlu0.b32.end [16/16] %v9075, 128
        %v9093 = vpop.trf.xlu0
        %v9094 = vpop.trf.xlu0
        %v9095 = vpop.trf.xlu0
        %v9096 = vpop.trf.xlu0
        %v9097 = vpop.trf.xlu0
        %v9098 = vpop.trf.xlu0
        %v9099 = vpop.trf.xlu0
        %v9100 = vpop.trf.xlu0
        %v9101 = vpop.trf.xlu0
        %v9102 = vpop.trf.xlu0
        %v9103 = vpop.trf.xlu0
        %v9104 = vpop.trf.xlu0
        %v9105 = vpop.trf.xlu0
        %v9106 = vpop.trf.xlu0
        %v9107 = vpop.trf.xlu0
        %v9108 = vpop.trf.xlu0
        %v9109 = vperm.slane %v9093, 0
        %v9110 = vlaneseq
        %v9111 = vshrl.u32 %v9110, 7
        %9113 = vset.pattern.permute.xlu0 %v9111
        %9114 = vperm.xlu0 %9113, %v9109
        %v9115 = vpop.permute.xlu0 %9114
        %v9116 = vlaneseq
        %v9117 = vshrl.u32 %v9116, 7
        %v9118 = vadd.s32 %v9117, 8
        %9119 = vset.pattern.permute.xlu0 %v9118
        %9120 = vperm.xlu0 %9119, %v9109
        %v9121 = vpop.permute.xlu0 %9120
        %v9122 = vlaneseq
        %v9123 = vshrl.u32 %v9122, 7
        %v9124 = vadd.s32 %v9123, 16
        %9125 = vset.pattern.permute.xlu0 %v9124
        %9126 = vperm.xlu0 %9125, %v9109
        %v9127 = vpop.permute.xlu0 %9126
        %v9128 = vlaneseq
        %v9129 = vshrl.u32 %v9128, 7
        %v9130 = vadd.s32 %v9129, 24
        %9131 = vset.pattern.permute.xlu0 %v9130
        %9132 = vperm.xlu0 %9131, %v9109
        %v9133 = vpop.permute.xlu0 %9132
        %v9134 = vlaneseq
        %v9135 = vshrl.u32 %v9134, 7
        %v9136 = vadd.s32 %v9135, 32
        %9137 = vset.pattern.permute.xlu0 %v9136
        %9138 = vperm.xlu0 %9137, %v9109
        %v9139 = vpop.permute.xlu0 %9138
        %v9140 = vlaneseq
        %v9141 = vshrl.u32 %v9140, 7
        %v9142 = vadd.s32 %v9141, 40
        %9143 = vset.pattern.permute.xlu0 %v9142
        %9144 = vperm.xlu0 %9143, %v9109
        %v9145 = vpop.permute.xlu0 %9144
        %v9146 = vlaneseq
        %v9147 = vshrl.u32 %v9146, 7
        %v9148 = vadd.s32 %v9147, 48
        %9149 = vset.pattern.permute.xlu0 %v9148
        %9150 = vperm.xlu0 %9149, %v9109
        %v9151 = vpop.permute.xlu0 %9150
        %v9152 = vlaneseq
        %v9153 = vshrl.u32 %v9152, 7
        %v9154 = vadd.s32 %v9153, 56
        %9155 = vset.pattern.permute.xlu0 %v9154
        %9156 = vperm.xlu0 %9155, %v9109
        %v9157 = vpop.permute.xlu0 %9156
        %v9158 = vlaneseq
        %v9159 = vshrl.u32 %v9158, 7
        %v9160 = vadd.s32 %v9159, 64
        %9161 = vset.pattern.permute.xlu0 %v9160
        %9162 = vperm.xlu0 %9161, %v9109
        %v9163 = vpop.permute.xlu0 %9162
        %v9164 = vlaneseq
        %v9165 = vshrl.u32 %v9164, 7
        %v9166 = vadd.s32 %v9165, 72
        %9167 = vset.pattern.permute.xlu0 %v9166
        %9168 = vperm.xlu0 %9167, %v9109
        %v9169 = vpop.permute.xlu0 %9168
        %v9170 = vlaneseq
        %v9171 = vshrl.u32 %v9170, 7
        %v9172 = vadd.s32 %v9171, 80
        %9173 = vset.pattern.permute.xlu0 %v9172
        %9174 = vperm.xlu0 %9173, %v9109
        %v9175 = vpop.permute.xlu0 %9174
        %v9176 = vlaneseq
        %v9177 = vshrl.u32 %v9176, 7
        %v9178 = vadd.s32 %v9177, 88
        %9179 = vset.pattern.permute.xlu0 %v9178
        %9180 = vperm.xlu0 %9179, %v9109
        %v9181 = vpop.permute.xlu0 %9180
        %v9182 = vlaneseq
        %v9183 = vshrl.u32 %v9182, 7
        %v9184 = vadd.s32 %v9183, 96
        %9185 = vset.pattern.permute.xlu0 %v9184
        %9186 = vperm.xlu0 %9185, %v9109
        %v9187 = vpop.permute.xlu0 %9186
        %v9188 = vlaneseq
        %v9189 = vshrl.u32 %v9188, 7
        %v9190 = vadd.s32 %v9189, 104
        %9191 = vset.pattern.permute.xlu0 %v9190
        %9192 = vperm.xlu0 %9191, %v9109
        %v9193 = vpop.permute.xlu0 %9192
        %v9194 = vlaneseq
        %v9195 = vshrl.u32 %v9194, 7
        %v9196 = vadd.s32 %v9195, 112
        %9197 = vset.pattern.permute.xlu0 %v9196
        %9198 = vperm.xlu0 %9197, %v9109
        %v9199 = vpop.permute.xlu0 %9198
        %v9200 = vlaneseq
        %v9201 = vshrl.u32 %v9200, 7
        %v9202 = vadd.s32 %v9201, 120
        %9203 = vset.pattern.permute.xlu0 %v9202
        %9204 = vperm.xlu0 %9203, %v9109
        %v9205 = vpop.permute.xlu0 %9204
        %v9206 = vperm.slane %v9093, 1
        %v9207 = vlaneseq
        %v9208 = vshrl.u32 %v9207, 7
        %9210 = vset.pattern.permute.xlu0 %v9208
        %9211 = vperm.xlu0 %9210, %v9206
        %v9212 = vpop.permute.xlu0 %9211
        %v9213 = vlaneseq
        %v9214 = vshrl.u32 %v9213, 7
        %v9215 = vadd.s32 %v9214, 8
        %9216 = vset.pattern.permute.xlu0 %v9215
        %9217 = vperm.xlu0 %9216, %v9206
        %v9218 = vpop.permute.xlu0 %9217
        %v9219 = vlaneseq
        %v9220 = vshrl.u32 %v9219, 7
        %v9221 = vadd.s32 %v9220, 16
        %9222 = vset.pattern.permute.xlu0 %v9221
        %9223 = vperm.xlu0 %9222, %v9206
        %v9224 = vpop.permute.xlu0 %9223
        %v9225 = vlaneseq
        %v9226 = vshrl.u32 %v9225, 7
        %v9227 = vadd.s32 %v9226, 24
        %9228 = vset.pattern.permute.xlu0 %v9227
        %9229 = vperm.xlu0 %9228, %v9206
        %v9230 = vpop.permute.xlu0 %9229
        %v9231 = vlaneseq
        %v9232 = vshrl.u32 %v9231, 7
        %v9233 = vadd.s32 %v9232, 32
        %9234 = vset.pattern.permute.xlu0 %v9233
        %9235 = vperm.xlu0 %9234, %v9206
        %v9236 = vpop.permute.xlu0 %9235
        %v9237 = vlaneseq
        %v9238 = vshrl.u32 %v9237, 7
        %v9239 = vadd.s32 %v9238, 40
        %9240 = vset.pattern.permute.xlu0 %v9239
        %9241 = vperm.xlu0 %9240, %v9206
        %v9242 = vpop.permute.xlu0 %9241
        %v9243 = vlaneseq
        %v9244 = vshrl.u32 %v9243, 7
        %v9245 = vadd.s32 %v9244, 48
        %9246 = vset.pattern.permute.xlu0 %v9245
        %9247 = vperm.xlu0 %9246, %v9206
        %v9248 = vpop.permute.xlu0 %9247
        %v9249 = vlaneseq
        %v9250 = vshrl.u32 %v9249, 7
        %v9251 = vadd.s32 %v9250, 56
        %9252 = vset.pattern.permute.xlu0 %v9251
        %9253 = vperm.xlu0 %9252, %v9206
        %v9254 = vpop.permute.xlu0 %9253
        %v9255 = vlaneseq
        %v9256 = vshrl.u32 %v9255, 7
        %v9257 = vadd.s32 %v9256, 64
        %9258 = vset.pattern.permute.xlu0 %v9257
        %9259 = vperm.xlu0 %9258, %v9206
        %v9260 = vpop.permute.xlu0 %9259
        %v9261 = vlaneseq
        %v9262 = vshrl.u32 %v9261, 7
        %v9263 = vadd.s32 %v9262, 72
        %9264 = vset.pattern.permute.xlu0 %v9263
        %9265 = vperm.xlu0 %9264, %v9206
        %v9266 = vpop.permute.xlu0 %9265
        %v9267 = vlaneseq
        %v9268 = vshrl.u32 %v9267, 7
        %v9269 = vadd.s32 %v9268, 80
        %9270 = vset.pattern.permute.xlu0 %v9269
        %9271 = vperm.xlu0 %9270, %v9206
        %v9272 = vpop.permute.xlu0 %9271
        %v9273 = vlaneseq
        %v9274 = vshrl.u32 %v9273, 7
        %v9275 = vadd.s32 %v9274, 88
        %9276 = vset.pattern.permute.xlu0 %v9275
        %9277 = vperm.xlu0 %9276, %v9206
        %v9278 = vpop.permute.xlu0 %9277
        %v9279 = vlaneseq
        %v9280 = vshrl.u32 %v9279, 7
        %v9281 = vadd.s32 %v9280, 96
        %9282 = vset.pattern.permute.xlu0 %v9281
        %9283 = vperm.xlu0 %9282, %v9206
        %v9284 = vpop.permute.xlu0 %9283
        %v9285 = vlaneseq
        %v9286 = vshrl.u32 %v9285, 7
        %v9287 = vadd.s32 %v9286, 104
        %9288 = vset.pattern.permute.xlu0 %v9287
        %9289 = vperm.xlu0 %9288, %v9206
        %v9290 = vpop.permute.xlu0 %9289
        %v9291 = vlaneseq
        %v9292 = vshrl.u32 %v9291, 7
        %v9293 = vadd.s32 %v9292, 112
        %9294 = vset.pattern.permute.xlu0 %v9293
        %9295 = vperm.xlu0 %9294, %v9206
        %v9296 = vpop.permute.xlu0 %9295
        %v9297 = vlaneseq
        %v9298 = vshrl.u32 %v9297, 7
        %v9299 = vadd.s32 %v9298, 120
        %9300 = vset.pattern.permute.xlu0 %v9299
        %9301 = vperm.xlu0 %9300, %v9206
        %v9302 = vpop.permute.xlu0 %9301
        %9304 = vst [vmem:[#allocation1] sm:$0xff] %v9093
        %s9305 = scalar_lea.vmem [#allocation1], 2
        %v9306 = vld [vmem:[%s9305] ss:$9 sm:$0xff]
        %s9307 = scalar_lea.vmem [#allocation1], 3
        %v9308 = vld [vmem:[%s9307] ss:$9 sm:$0xff]
        %v9309 = vperm.slane %v9306, 0
        %v9310 = vperm.slane %v9308, 0
        %v9313 = vadd.f32 %v9115, %v9309
        %v9314 = vadd.f32 %v9121, %v9309
        %v9315 = vadd.f32 %v9127, %v9309
        %v9316 = vadd.f32 %v9133, %v9309
        %v9317 = vadd.f32 %v9139, %v9309
        %v9318 = vadd.f32 %v9145, %v9309
        %v9319 = vadd.f32 %v9151, %v9309
        %v9320 = vadd.f32 %v9157, %v9309
        %v9321 = vadd.f32 %v9163, %v9309
        %v9322 = vadd.f32 %v9169, %v9309
        %v9323 = vadd.f32 %v9175, %v9309
        %v9324 = vadd.f32 %v9181, %v9309
        %v9325 = vadd.f32 %v9187, %v9309
        %v9326 = vadd.f32 %v9193, %v9309
        %v9327 = vadd.f32 %v9199, %v9309
        %v9328 = vadd.f32 %v9205, %v9309
        %v9329 = vadd.f32 %v9212, %v9310
        %v9330 = vadd.f32 %v9218, %v9310
        %v9331 = vadd.f32 %v9224, %v9310
        %v9332 = vadd.f32 %v9230, %v9310
        %v9333 = vadd.f32 %v9236, %v9310
        %v9334 = vadd.f32 %v9242, %v9310
        %v9335 = vadd.f32 %v9248, %v9310
        %v9336 = vadd.f32 %v9254, %v9310
        %v9337 = vadd.f32 %v9260, %v9310
        %v9338 = vadd.f32 %v9266, %v9310
        %v9339 = vadd.f32 %v9272, %v9310
        %v9340 = vadd.f32 %v9278, %v9310
        %v9341 = vadd.f32 %v9284, %v9310
        %v9342 = vadd.f32 %v9290, %v9310
        %v9343 = vadd.f32 %v9296, %v9310
        %v9344 = vadd.f32 %v9302, %v9310
        %vm9345 = vcmp.gt.f32.partialorder %v9313, 0.0
        %vm9346 = vcmp.gt.f32.partialorder %v9314, 0.0
        %vm9347 = vcmp.gt.f32.partialorder %v9315, 0.0
        %vm9348 = vcmp.gt.f32.partialorder %v9316, 0.0
        %vm9349 = vcmp.gt.f32.partialorder %v9317, 0.0
        %vm9350 = vcmp.gt.f32.partialorder %v9318, 0.0
        %vm9351 = vcmp.gt.f32.partialorder %v9319, 0.0
        %vm9352 = vcmp.gt.f32.partialorder %v9320, 0.0
        %vm9353 = vcmp.gt.f32.partialorder %v9321, 0.0
        %vm9354 = vcmp.gt.f32.partialorder %v9322, 0.0
        %vm9355 = vcmp.gt.f32.partialorder %v9323, 0.0
        %vm9356 = vcmp.gt.f32.partialorder %v9324, 0.0
        %vm9357 = vcmp.gt.f32.partialorder %v9325, 0.0
        %vm9358 = vcmp.gt.f32.partialorder %v9326, 0.0
        %vm9359 = vcmp.gt.f32.partialorder %v9327, 0.0
        %vm9360 = vcmp.gt.f32.partialorder %v9328, 0.0
        %vm9361 = vcmp.gt.f32.partialorder %v9329, 0.0
        %vm9362 = vcmp.gt.f32.partialorder %v9330, 0.0
        %vm9363 = vcmp.gt.f32.partialorder %v9331, 0.0
        %vm9364 = vcmp.gt.f32.partialorder %v9332, 0.0
        %vm9365 = vcmp.gt.f32.partialorder %v9333, 0.0
        %vm9366 = vcmp.gt.f32.partialorder %v9334, 0.0
        %vm9367 = vcmp.gt.f32.partialorder %v9335, 0.0
        %vm9368 = vcmp.gt.f32.partialorder %v9336, 0.0
        %vm9369 = vcmp.gt.f32.partialorder %v9337, 0.0
        %vm9370 = vcmp.gt.f32.partialorder %v9338, 0.0
        %vm9371 = vcmp.gt.f32.partialorder %v9339, 0.0
        %vm9372 = vcmp.gt.f32.partialorder %v9340, 0.0
        %vm9373 = vcmp.gt.f32.partialorder %v9341, 0.0
        %vm9374 = vcmp.gt.f32.partialorder %v9342, 0.0
        %vm9375 = vcmp.gt.f32.partialorder %v9343, 0.0
        %vm9376 = vcmp.gt.f32.partialorder %v9344, 0.0
        %v9377 = vmul.f32 %v9313, 0.2
        %v9378 = vmul.f32 %v9314, 0.2
        %v9379 = vmul.f32 %v9315, 0.2
        %v9380 = vmul.f32 %v9316, 0.2
        %v9381 = vmul.f32 %v9317, 0.2
        %v9382 = vmul.f32 %v9318, 0.2
        %v9383 = vmul.f32 %v9319, 0.2
        %v9384 = vmul.f32 %v9320, 0.2
        %v9385 = vmul.f32 %v9321, 0.2
        %v9386 = vmul.f32 %v9322, 0.2
        %v9387 = vmul.f32 %v9323, 0.2
        %v9388 = vmul.f32 %v9324, 0.2
        %v9389 = vmul.f32 %v9325, 0.2
        %v9390 = vmul.f32 %v9326, 0.2
        %v9391 = vmul.f32 %v9327, 0.2
        %v9392 = vmul.f32 %v9328, 0.2
        %v9393 = vmul.f32 %v9329, 0.2
        %v9394 = vmul.f32 %v9330, 0.2
        %v9395 = vmul.f32 %v9331, 0.2
        %v9396 = vmul.f32 %v9332, 0.2
        %v9397 = vmul.f32 %v9333, 0.2
        %v9398 = vmul.f32 %v9334, 0.2
        %v9399 = vmul.f32 %v9335, 0.2
        %v9400 = vmul.f32 %v9336, 0.2
        %v9401 = vmul.f32 %v9337, 0.2
        %v9402 = vmul.f32 %v9338, 0.2
        %v9403 = vmul.f32 %v9339, 0.2
        %v9404 = vmul.f32 %v9340, 0.2
        %v9405 = vmul.f32 %v9341, 0.2
        %v9406 = vmul.f32 %v9342, 0.2
        %v9407 = vmul.f32 %v9343, 0.2
        %v9408 = vmul.f32 %v9344, 0.2
        %v9409 = vsel %vm9345, %v9313, %v9377
        %v9410 = vsel %vm9346, %v9314, %v9378
        %v9411 = vsel %vm9347, %v9315, %v9379
        %v9412 = vsel %vm9348, %v9316, %v9380
        %v9413 = vsel %vm9349, %v9317, %v9381
        %v9414 = vsel %vm9350, %v9318, %v9382
        %v9415 = vsel %vm9351, %v9319, %v9383
        %v9416 = vsel %vm9352, %v9320, %v9384
        %v9417 = vsel %vm9353, %v9321, %v9385
        %v9418 = vsel %vm9354, %v9322, %v9386
        %v9419 = vsel %vm9355, %v9323, %v9387
        %v9420 = vsel %vm9356, %v9324, %v9388
        %v9421 = vsel %vm9357, %v9325, %v9389
        %v9422 = vsel %vm9358, %v9326, %v9390
        %v9423 = vsel %vm9359, %v9327, %v9391
        %v9424 = vsel %vm9360, %v9328, %v9392
        %v9425 = vsel %vm9361, %v9329, %v9393
        %v9426 = vsel %vm9362, %v9330, %v9394
        %v9427 = vsel %vm9363, %v9331, %v9395
        %v9428 = vsel %vm9364, %v9332, %v9396
        %v9429 = vsel %vm9365, %v9333, %v9397
        %v9430 = vsel %vm9366, %v9334, %v9398
        %v9431 = vsel %vm9367, %v9335, %v9399
        %v9432 = vsel %vm9368, %v9336, %v9400
        %v9433 = vsel %vm9369, %v9337, %v9401
        %v9434 = vsel %vm9370, %v9338, %v9402
        %v9435 = vsel %vm9371, %v9339, %v9403
        %v9436 = vsel %vm9372, %v9340, %v9404
        %v9437 = vsel %vm9373, %v9341, %v9405
        %v9438 = vsel %vm9374, %v9342, %v9406
        %v9439 = vsel %vm9375, %v9343, %v9407
        %v9440 = vsel %vm9376, %v9344, %v9408
        %v9441 = vadd.f32 %v9409, %v600
        %v9442 = vadd.f32 %v9410, %v601
        %v9443 = vadd.f32 %v9411, %v602
        %v9444 = vadd.f32 %v9412, %v603
        %v9445 = vadd.f32 %v9413, %v604
        %v9446 = vadd.f32 %v9414, %v605
        %v9447 = vadd.f32 %v9415, %v606
        %v9448 = vadd.f32 %v9416, %v607
        %v9449 = vadd.f32 %v9417, %v608
        %v9450 = vadd.f32 %v9418, %v609
        %v9451 = vadd.f32 %v9419, %v610
        %v9452 = vadd.f32 %v9420, %v611
        %v9453 = vadd.f32 %v9421, %v612
        %v9454 = vadd.f32 %v9422, %v613
        %v9455 = vadd.f32 %v9423, %v614
        %v9456 = vadd.f32 %v9424, %v615
        %v9457 = vadd.f32 %v9425, %v616
        %v9458 = vadd.f32 %v9426, %v617
        %v9459 = vadd.f32 %v9427, %v618
        %v9460 = vadd.f32 %v9428, %v619
        %v9461 = vadd.f32 %v9429, %v620
        %v9462 = vadd.f32 %v9430, %v621
        %v9463 = vadd.f32 %v9431, %v622
        %v9464 = vadd.f32 %v9432, %v623
        %v9465 = vadd.f32 %v9433, %v624
        %v9466 = vadd.f32 %v9434, %v625
        %v9467 = vadd.f32 %v9435, %v626
        %v9468 = vadd.f32 %v9436, %v627
        %v9469 = vadd.f32 %v9437, %v628
        %v9470 = vadd.f32 %v9438, %v629
        %v9471 = vadd.f32 %v9439, %v630
        %v9472 = vadd.f32 %v9440, %v631
        %9473 = vmax.xlane.f32.xlu0 %v9441
        %v9474 = vpop.xlane.xlu0 %9473
        %9475 = vmax.xlane.f32.xlu0 %v9442
        %v9476 = vpop.xlane.xlu0 %9475
        %9477 = vmax.xlane.f32.xlu0 %v9443
        %v9478 = vpop.xlane.xlu0 %9477
        %9479 = vmax.xlane.f32.xlu0 %v9444
        %v9480 = vpop.xlane.xlu0 %9479
        %9481 = vmax.xlane.f32.xlu0 %v9445
        %v9482 = vpop.xlane.xlu0 %9481
        %9483 = vmax.xlane.f32.xlu0 %v9446
        %v9484 = vpop.xlane.xlu0 %9483
        %9485 = vmax.xlane.f32.xlu0 %v9447
        %v9486 = vpop.xlane.xlu0 %9485
        %9487 = vmax.xlane.f32.xlu0 %v9448
        %v9488 = vpop.xlane.xlu0 %9487
        %9489 = vmax.xlane.f32.xlu0 %v9449
        %v9490 = vpop.xlane.xlu0 %9489
        %9491 = vmax.xlane.f32.xlu0 %v9450
        %v9492 = vpop.xlane.xlu0 %9491
        %9493 = vmax.xlane.f32.xlu0 %v9451
        %v9494 = vpop.xlane.xlu0 %9493
        %9495 = vmax.xlane.f32.xlu0 %v9452
        %v9496 = vpop.xlane.xlu0 %9495
        %9497 = vmax.xlane.f32.xlu0 %v9453
        %v9498 = vpop.xlane.xlu0 %9497
        %9499 = vmax.xlane.f32.xlu0 %v9454
        %v9500 = vpop.xlane.xlu0 %9499
        %9501 = vmax.xlane.f32.xlu0 %v9455
        %v9502 = vpop.xlane.xlu0 %9501
        %9503 = vmax.xlane.f32.xlu0 %v9456
        %v9504 = vpop.xlane.xlu0 %9503
        %9505 = vmax.xlane.f32.xlu0 %v9457
        %v9506 = vpop.xlane.xlu0 %9505
        %9507 = vmax.xlane.f32.xlu0 %v9458
        %v9508 = vpop.xlane.xlu0 %9507
        %9509 = vmax.xlane.f32.xlu0 %v9459
        %v9510 = vpop.xlane.xlu0 %9509
        %9511 = vmax.xlane.f32.xlu0 %v9460
        %v9512 = vpop.xlane.xlu0 %9511
        %9513 = vmax.xlane.f32.xlu0 %v9461
        %v9514 = vpop.xlane.xlu0 %9513
        %9515 = vmax.xlane.f32.xlu0 %v9462
        %v9516 = vpop.xlane.xlu0 %9515
        %9517 = vmax.xlane.f32.xlu0 %v9463
        %v9518 = vpop.xlane.xlu0 %9517
        %9519 = vmax.xlane.f32.xlu0 %v9464
        %v9520 = vpop.xlane.xlu0 %9519
        %9521 = vmax.xlane.f32.xlu0 %v9465
        %v9522 = vpop.xlane.xlu0 %9521
        %9523 = vmax.xlane.f32.xlu0 %v9466
        %v9524 = vpop.xlane.xlu0 %9523
        %9525 = vmax.xlane.f32.xlu0 %v9467
        %v9526 = vpop.xlane.xlu0 %9525
        %9527 = vmax.xlane.f32.xlu0 %v9468
        %v9528 = vpop.xlane.xlu0 %9527
        %9529 = vmax.xlane.f32.xlu0 %v9469
        %v9530 = vpop.xlane.xlu0 %9529
        %9531 = vmax.xlane.f32.xlu0 %v9470
        %v9532 = vpop.xlane.xlu0 %9531
        %9533 = vmax.xlane.f32.xlu0 %v9471
        %v9534 = vpop.xlane.xlu0 %9533
        %9535 = vmax.xlane.f32.xlu0 %v9472
        %v9536 = vpop.xlane.xlu0 %9535
        %v9537 = vsub.f32 %v9441, %v9474
        %v9538 = vsub.f32 %v9442, %v9476
        %v9539 = vsub.f32 %v9443, %v9478
        %v9540 = vsub.f32 %v9444, %v9480
        %v9541 = vsub.f32 %v9445, %v9482
        %v9542 = vsub.f32 %v9446, %v9484
        %v9543 = vsub.f32 %v9447, %v9486
        %v9544 = vsub.f32 %v9448, %v9488
        %v9545 = vsub.f32 %v9449, %v9490
        %v9546 = vsub.f32 %v9450, %v9492
        %v9547 = vsub.f32 %v9451, %v9494
        %v9548 = vsub.f32 %v9452, %v9496
        %v9549 = vsub.f32 %v9453, %v9498
        %v9550 = vsub.f32 %v9454, %v9500
        %v9551 = vsub.f32 %v9455, %v9502
        %v9552 = vsub.f32 %v9456, %v9504
        %v9553 = vsub.f32 %v9457, %v9506
        %v9554 = vsub.f32 %v9458, %v9508
        %v9555 = vsub.f32 %v9459, %v9510
        %v9556 = vsub.f32 %v9460, %v9512
        %v9557 = vsub.f32 %v9461, %v9514
        %v9558 = vsub.f32 %v9462, %v9516
        %v9559 = vsub.f32 %v9463, %v9518
        %v9560 = vsub.f32 %v9464, %v9520
        %v9561 = vsub.f32 %v9465, %v9522
        %v9562 = vsub.f32 %v9466, %v9524
        %v9563 = vsub.f32 %v9467, %v9526
        %v9564 = vsub.f32 %v9468, %v9528
        %v9565 = vsub.f32 %v9469, %v9530
        %v9566 = vsub.f32 %v9470, %v9532
        %v9567 = vsub.f32 %v9471, %v9534
        %v9568 = vsub.f32 %v9472, %v9536
        %v9569 = vmul.f32 %v9537, 1.442695
        %v9570 = vpow.pop %v9569
        %v9571 = vmul.f32 %v9538, 1.442695
        %v9572 = vpow.pop %v9571
        %v9573 = vmul.f32 %v9539, 1.442695
        %v9574 = vpow.pop %v9573
        %v9575 = vmul.f32 %v9540, 1.442695
        %v9576 = vpow.pop %v9575
        %v9577 = vmul.f32 %v9541, 1.442695
        %v9578 = vpow.pop %v9577
        %v9579 = vmul.f32 %v9542, 1.442695
        %v9580 = vpow.pop %v9579
        %v9581 = vmul.f32 %v9543, 1.442695
        %v9582 = vpow.pop %v9581
        %v9583 = vmul.f32 %v9544, 1.442695
        %v9584 = vpow.pop %v9583
        %v9585 = vmul.f32 %v9545, 1.442695
        %v9586 = vpow.pop %v9585
        %v9587 = vmul.f32 %v9546, 1.442695
        %v9588 = vpow.pop %v9587
        %v9589 = vmul.f32 %v9547, 1.442695
        %v9590 = vpow.pop %v9589
        %v9591 = vmul.f32 %v9548, 1.442695
        %v9592 = vpow.pop %v9591
        %v9593 = vmul.f32 %v9549, 1.442695
        %v9594 = vpow.pop %v9593
        %v9595 = vmul.f32 %v9550, 1.442695
        %v9596 = vpow.pop %v9595
        %v9597 = vmul.f32 %v9551, 1.442695
        %v9598 = vpow.pop %v9597
        %v9599 = vmul.f32 %v9552, 1.442695
        %v9600 = vpow.pop %v9599
        %v9601 = vmul.f32 %v9553, 1.442695
        %v9602 = vpow.pop %v9601
        %v9603 = vmul.f32 %v9554, 1.442695
        %v9604 = vpow.pop %v9603
        %v9605 = vmul.f32 %v9555, 1.442695
        %v9606 = vpow.pop %v9605
        %v9607 = vmul.f32 %v9556, 1.442695
        %v9608 = vpow.pop %v9607
        %v9609 = vmul.f32 %v9557, 1.442695
        %v9610 = vpow.pop %v9609
        %v9611 = vmul.f32 %v9558, 1.442695
        %v9612 = vpow.pop %v9611
        %v9613 = vmul.f32 %v9559, 1.442695
        %v9614 = vpow.pop %v9613
        %v9615 = vmul.f32 %v9560, 1.442695
        %v9616 = vpow.pop %v9615
        %v9617 = vmul.f32 %v9561, 1.442695
        %v9618 = vpow.pop %v9617
        %v9619 = vmul.f32 %v9562, 1.442695
        %v9620 = vpow.pop %v9619
        %v9621 = vmul.f32 %v9563, 1.442695
        %v9622 = vpow.pop %v9621
        %v9623 = vmul.f32 %v9564, 1.442695
        %v9624 = vpow.pop %v9623
        %v9625 = vmul.f32 %v9565, 1.442695
        %v9626 = vpow.pop %v9625
        %v9627 = vmul.f32 %v9566, 1.442695
        %v9628 = vpow.pop %v9627
        %v9629 = vmul.f32 %v9567, 1.442695
        %v9630 = vpow.pop %v9629
        %v9631 = vmul.f32 %v9568, 1.442695
        %v9632 = vpow.pop %v9631
        %9633 = vadd.xlane.f32.xlu0 %v9570
        %v9634 = vpop.xlane.xlu0 %9633
        %9635 = vadd.xlane.f32.xlu0 %v9572
        %v9636 = vpop.xlane.xlu0 %9635
        %9637 = vadd.xlane.f32.xlu0 %v9574
        %v9638 = vpop.xlane.xlu0 %9637
        %9639 = vadd.xlane.f32.xlu0 %v9576
        %v9640 = vpop.xlane.xlu0 %9639
        %9641 = vadd.xlane.f32.xlu0 %v9578
        %v9642 = vpop.xlane.xlu0 %9641
        %9643 = vadd.xlane.f32.xlu0 %v9580
        %v9644 = vpop.xlane.xlu0 %9643
        %9645 = vadd.xlane.f32.xlu0 %v9582
        %v9646 = vpop.xlane.xlu0 %9645
        %9647 = vadd.xlane.f32.xlu0 %v9584
        %v9648 = vpop.xlane.xlu0 %9647
        %9649 = vadd.xlane.f32.xlu0 %v9586
        %v9650 = vpop.xlane.xlu0 %9649
        %9651 = vadd.xlane.f32.xlu0 %v9588
        %v9652 = vpop.xlane.xlu0 %9651
        %9653 = vadd.xlane.f32.xlu0 %v9590
        %v9654 = vpop.xlane.xlu0 %9653
        %9655 = vadd.xlane.f32.xlu0 %v9592
        %v9656 = vpop.xlane.xlu0 %9655
        %9657 = vadd.xlane.f32.xlu0 %v9594
        %v9658 = vpop.xlane.xlu0 %9657
        %9659 = vadd.xlane.f32.xlu0 %v9596
        %v9660 = vpop.xlane.xlu0 %9659
        %9661 = vadd.xlane.f32.xlu0 %v9598
        %v9662 = vpop.xlane.xlu0 %9661
        %9663 = vadd.xlane.f32.xlu0 %v9600
        %v9664 = vpop.xlane.xlu0 %9663
        %9665 = vadd.xlane.f32.xlu0 %v9602
        %v9666 = vpop.xlane.xlu0 %9665
        %9667 = vadd.xlane.f32.xlu0 %v9604
        %v9668 = vpop.xlane.xlu0 %9667
        %9669 = vadd.xlane.f32.xlu0 %v9606
        %v9670 = vpop.xlane.xlu0 %9669
        %9671 = vadd.xlane.f32.xlu0 %v9608
        %v9672 = vpop.xlane.xlu0 %9671
        %9673 = vadd.xlane.f32.xlu0 %v9610
        %v9674 = vpop.xlane.xlu0 %9673
        %9675 = vadd.xlane.f32.xlu0 %v9612
        %v9676 = vpop.xlane.xlu0 %9675
        %9677 = vadd.xlane.f32.xlu0 %v9614
        %v9678 = vpop.xlane.xlu0 %9677
        %9679 = vadd.xlane.f32.xlu0 %v9616
        %v9680 = vpop.xlane.xlu0 %9679
        %9681 = vadd.xlane.f32.xlu0 %v9618
        %v9682 = vpop.xlane.xlu0 %9681
        %9683 = vadd.xlane.f32.xlu0 %v9620
        %v9684 = vpop.xlane.xlu0 %9683
        %9685 = vadd.xlane.f32.xlu0 %v9622
        %v9686 = vpop.xlane.xlu0 %9685
        %9687 = vadd.xlane.f32.xlu0 %v9624
        %v9688 = vpop.xlane.xlu0 %9687
        %9689 = vadd.xlane.f32.xlu0 %v9626
        %v9690 = vpop.xlane.xlu0 %9689
        %9691 = vadd.xlane.f32.xlu0 %v9628
        %v9692 = vpop.xlane.xlu0 %9691
        %9693 = vadd.xlane.f32.xlu0 %v9630
        %v9694 = vpop.xlane.xlu0 %9693
        %9695 = vadd.xlane.f32.xlu0 %v9632
        %v9696 = vpop.xlane.xlu0 %9695
        %v9697 = vrcp.pop %v9634
        %v9698 = vrcp.pop %v9636
        %v9699 = vrcp.pop %v9638
        %v9700 = vrcp.pop %v9640
        %v9701 = vrcp.pop %v9642
        %v9702 = vrcp.pop %v9644
        %v9703 = vrcp.pop %v9646
        %v9704 = vrcp.pop %v9648
        %v9705 = vrcp.pop %v9650
        %v9706 = vrcp.pop %v9652
        %v9707 = vrcp.pop %v9654
        %v9708 = vrcp.pop %v9656
        %v9709 = vrcp.pop %v9658
        %v9710 = vrcp.pop %v9660
        %v9711 = vrcp.pop %v9662
        %v9712 = vrcp.pop %v9664
        %v9713 = vrcp.pop %v9666
        %v9714 = vrcp.pop %v9668
        %v9715 = vrcp.pop %v9670
        %v9716 = vrcp.pop %v9672
        %v9717 = vrcp.pop %v9674
        %v9718 = vrcp.pop %v9676
        %v9719 = vrcp.pop %v9678
        %v9720 = vrcp.pop %v9680
        %v9721 = vrcp.pop %v9682
        %v9722 = vrcp.pop %v9684
        %v9723 = vrcp.pop %v9686
        %v9724 = vrcp.pop %v9688
        %v9725 = vrcp.pop %v9690
        %v9726 = vrcp.pop %v9692
        %v9727 = vrcp.pop %v9694
        %v9728 = vrcp.pop %v9696
        %v9729 = vmul.f32 %v9634, %v9697
        %v9730 = vmul.f32 %v9636, %v9698
        %v9731 = vmul.f32 %v9638, %v9699
        %v9732 = vmul.f32 %v9640, %v9700
        %v9733 = vmul.f32 %v9642, %v9701
        %v9734 = vmul.f32 %v9644, %v9702
        %v9735 = vmul.f32 %v9646, %v9703
        %v9736 = vmul.f32 %v9648, %v9704
        %v9737 = vmul.f32 %v9650, %v9705
        %v9738 = vmul.f32 %v9652, %v9706
        %v9739 = vmul.f32 %v9654, %v9707
        %v9740 = vmul.f32 %v9656, %v9708
        %v9741 = vmul.f32 %v9658, %v9709
        %v9742 = vmul.f32 %v9660, %v9710
        %v9743 = vmul.f32 %v9662, %v9711
        %v9744 = vmul.f32 %v9664, %v9712
        %v9745 = vmul.f32 %v9666, %v9713
        %v9746 = vmul.f32 %v9668, %v9714
        %v9747 = vmul.f32 %v9670, %v9715
        %v9748 = vmul.f32 %v9672, %v9716
        %v9749 = vmul.f32 %v9674, %v9717
        %v9750 = vmul.f32 %v9676, %v9718
        %v9751 = vmul.f32 %v9678, %v9719
        %v9752 = vmul.f32 %v9680, %v9720
        %v9753 = vmul.f32 %v9682, %v9721
        %v9754 = vmul.f32 %v9684, %v9722
        %v9755 = vmul.f32 %v9686, %v9723
        %v9756 = vmul.f32 %v9688, %v9724
        %v9757 = vmul.f32 %v9690, %v9725
        %v9758 = vmul.f32 %v9692, %v9726
        %v9759 = vmul.f32 %v9694, %v9727
        %v9760 = vmul.f32 %v9696, %v9728
        %v9761 = vsub.f32 2.0, %v9729
        %v9762 = vsub.f32 2.0, %v9730
        %v9763 = vsub.f32 2.0, %v9731
        %v9764 = vsub.f32 2.0, %v9732
        %v9765 = vsub.f32 2.0, %v9733
        %v9766 = vsub.f32 2.0, %v9734
        %v9767 = vsub.f32 2.0, %v9735
        %v9768 = vsub.f32 2.0, %v9736
        %v9769 = vsub.f32 2.0, %v9737
        %v9770 = vsub.f32 2.0, %v9738
        %v9771 = vsub.f32 2.0, %v9739
        %v9772 = vsub.f32 2.0, %v9740
        %v9773 = vsub.f32 2.0, %v9741
        %v9774 = vsub.f32 2.0, %v9742
        %v9775 = vsub.f32 2.0, %v9743
        %v9776 = vsub.f32 2.0, %v9744
        %v9777 = vsub.f32 2.0, %v9745
        %v9778 = vsub.f32 2.0, %v9746
        %v9779 = vsub.f32 2.0, %v9747
        %v9780 = vsub.f32 2.0, %v9748
        %v9781 = vsub.f32 2.0, %v9749
        %v9782 = vsub.f32 2.0, %v9750
        %v9783 = vsub.f32 2.0, %v9751
        %v9784 = vsub.f32 2.0, %v9752
        %v9785 = vsub.f32 2.0, %v9753
        %v9786 = vsub.f32 2.0, %v9754
        %v9787 = vsub.f32 2.0, %v9755
        %v9788 = vsub.f32 2.0, %v9756
        %v9789 = vsub.f32 2.0, %v9757
        %v9790 = vsub.f32 2.0, %v9758
        %v9791 = vsub.f32 2.0, %v9759
        %v9792 = vsub.f32 2.0, %v9760
        %v9793 = vmul.f32 %v9697, %v9761
        %v9794 = vmul.f32 %v9698, %v9762
        %v9795 = vmul.f32 %v9699, %v9763
        %v9796 = vmul.f32 %v9700, %v9764
        %v9797 = vmul.f32 %v9701, %v9765
        %v9798 = vmul.f32 %v9702, %v9766
        %v9799 = vmul.f32 %v9703, %v9767
        %v9800 = vmul.f32 %v9704, %v9768
        %v9801 = vmul.f32 %v9705, %v9769
        %v9802 = vmul.f32 %v9706, %v9770
        %v9803 = vmul.f32 %v9707, %v9771
        %v9804 = vmul.f32 %v9708, %v9772
        %v9805 = vmul.f32 %v9709, %v9773
        %v9806 = vmul.f32 %v9710, %v9774
        %v9807 = vmul.f32 %v9711, %v9775
        %v9808 = vmul.f32 %v9712, %v9776
        %v9809 = vmul.f32 %v9713, %v9777
        %v9810 = vmul.f32 %v9714, %v9778
        %v9811 = vmul.f32 %v9715, %v9779
        %v9812 = vmul.f32 %v9716, %v9780
        %v9813 = vmul.f32 %v9717, %v9781
        %v9814 = vmul.f32 %v9718, %v9782
        %v9815 = vmul.f32 %v9719, %v9783
        %v9816 = vmul.f32 %v9720, %v9784
        %v9817 = vmul.f32 %v9721, %v9785
        %v9818 = vmul.f32 %v9722, %v9786
        %v9819 = vmul.f32 %v9723, %v9787
        %v9820 = vmul.f32 %v9724, %v9788
        %v9821 = vmul.f32 %v9725, %v9789
        %v9822 = vmul.f32 %v9726, %v9790
        %v9823 = vmul.f32 %v9727, %v9791
        %v9824 = vmul.f32 %v9728, %v9792
        %v9825 = vmul.f32 %v9570, %v9793
        %v9826 = vmul.f32 %v9572, %v9794
        %v9827 = vmul.f32 %v9574, %v9795
        %v9828 = vmul.f32 %v9576, %v9796
        %v9829 = vmul.f32 %v9578, %v9797
        %v9830 = vmul.f32 %v9580, %v9798
        %v9831 = vmul.f32 %v9582, %v9799
        %v9832 = vmul.f32 %v9584, %v9800
        %v9833 = vmul.f32 %v9586, %v9801
        %v9834 = vmul.f32 %v9588, %v9802
        %v9835 = vmul.f32 %v9590, %v9803
        %v9836 = vmul.f32 %v9592, %v9804
        %v9837 = vmul.f32 %v9594, %v9805
        %v9838 = vmul.f32 %v9596, %v9806
        %v9839 = vmul.f32 %v9598, %v9807
        %v9840 = vmul.f32 %v9600, %v9808
        %v9841 = vmul.f32 %v9602, %v9809
        %v9842 = vmul.f32 %v9604, %v9810
        %v9843 = vmul.f32 %v9606, %v9811
        %v9844 = vmul.f32 %v9608, %v9812
        %v9845 = vmul.f32 %v9610, %v9813
        %v9846 = vmul.f32 %v9612, %v9814
        %v9847 = vmul.f32 %v9614, %v9815
        %v9848 = vmul.f32 %v9616, %v9816
        %v9849 = vmul.f32 %v9618, %v9817
        %v9850 = vmul.f32 %v9620, %v9818
        %v9851 = vmul.f32 %v9622, %v9819
        %v9852 = vmul.f32 %v9624, %v9820
        %v9853 = vmul.f32 %v9626, %v9821
        %v9854 = vmul.f32 %v9628, %v9822
        %v9855 = vmul.f32 %v9630, %v9823
        %v9856 = vmul.f32 %v9632, %v9824
        %v9857 = vpack.c.bf16 %v9825, %v9825
        %v9858 = vpack.c.bf16 %v9826, %v9826
        %v9859 = vpack.c.bf16 %v9827, %v9827
        %v9860 = vpack.c.bf16 %v9828, %v9828
        %v9861 = vpack.c.bf16 %v9829, %v9829
        %v9862 = vpack.c.bf16 %v9830, %v9830
        %v9863 = vpack.c.bf16 %v9831, %v9831
        %v9864 = vpack.c.bf16 %v9832, %v9832
        %v9865 = vpack.c.bf16 %v9833, %v9833
        %v9866 = vpack.c.bf16 %v9834, %v9834
        %v9867 = vpack.c.bf16 %v9835, %v9835
        %v9868 = vpack.c.bf16 %v9836, %v9836
        %v9869 = vpack.c.bf16 %v9837, %v9837
        %v9870 = vpack.c.bf16 %v9838, %v9838
        %v9871 = vpack.c.bf16 %v9839, %v9839
        %v9872 = vpack.c.bf16 %v9840, %v9840
        %v9873 = vpack.c.bf16 %v9841, %v9841
        %v9874 = vpack.c.bf16 %v9842, %v9842
        %v9875 = vpack.c.bf16 %v9843, %v9843
        %v9876 = vpack.c.bf16 %v9844, %v9844
        %v9877 = vpack.c.bf16 %v9845, %v9845
        %v9878 = vpack.c.bf16 %v9846, %v9846
        %v9879 = vpack.c.bf16 %v9847, %v9847
        %v9880 = vpack.c.bf16 %v9848, %v9848
        %v9881 = vpack.c.bf16 %v9849, %v9849
        %v9882 = vpack.c.bf16 %v9850, %v9850
        %v9883 = vpack.c.bf16 %v9851, %v9851
        %v9884 = vpack.c.bf16 %v9852, %v9852
        %v9885 = vpack.c.bf16 %v9853, %v9853
        %v9886 = vpack.c.bf16 %v9854, %v9854
        %v9887 = vpack.c.bf16 %v9855, %v9855
        %v9888 = vpack.c.bf16 %v9856, %v9856
        %v9889 = vpack.c.bf16 %v8925, %v8925
        %v9890 = vpack.c.bf16 %v8927, %v8927
        %v9891 = vpack.c.bf16 %v8930, %v8930
        %v9892 = vpack.c.bf16 %v8932, %v8932
        %v9893 = vpack.c.bf16 %v8935, %v8935
        %v9894 = vpack.c.bf16 %v8937, %v8937
        %v9895 = vpack.c.bf16 %v8940, %v8940
        %v9896 = vpack.c.bf16 %v8942, %v8942
        %v9897 = vpack.c.bf16 %v8945, %v8945
        %v9898 = vpack.c.bf16 %v8947, %v8947
        %v9899 = vpack.c.bf16 %v8950, %v8950
        %v9900 = vpack.c.bf16 %v8952, %v8952
        %v9901 = vpack.c.bf16 %v8955, %v8955
        %v9902 = vpack.c.bf16 %v8957, %v8957
        %v9903 = vpack.c.bf16 %v8960, %v8960
        %v9904 = vpack.c.bf16 %v8962, %v8962
        %v9905 = vperm.slane %v8870, 0
        %v9922 = vunpack.c.l.b16 %v9857
        %v9923 = vunpack.c.l.b16 %v9858
        %v9924 = vunpack.c.l.b16 %v9859
        %v9925 = vunpack.c.l.b16 %v9860
        %v9926 = vunpack.c.l.b16 %v9861
        %v9927 = vunpack.c.l.b16 %v9862
        %v9928 = vunpack.c.l.b16 %v9863
        %v9929 = vunpack.c.l.b16 %v9864
        %v9930 = vunpack.c.l.b16 %v9865
        %v9931 = vunpack.c.l.b16 %v9866
        %v9932 = vunpack.c.l.b16 %v9867
        %v9933 = vunpack.c.l.b16 %v9868
        %v9934 = vunpack.c.l.b16 %v9869
        %v9935 = vunpack.c.l.b16 %v9870
        %v9936 = vunpack.c.l.b16 %v9871
        %v9937 = vunpack.c.l.b16 %v9872
        %v9938 = vpack.c.b16 %v9923, %v9922
        %v9939 = vpack.c.b16 %v9925, %v9924
        %v9940 = vpack.c.b16 %v9927, %v9926
        %v9941 = vpack.c.b16 %v9929, %v9928
        %v9942 = vpack.c.b16 %v9931, %v9930
        %v9943 = vpack.c.b16 %v9933, %v9932
        %v9944 = vpack.c.b16 %v9935, %v9934
        %v9945 = vpack.c.b16 %v9937, %v9936
        %v9970 = vunpack.c.l.b16 %v9889
        %v9971 = vunpack.c.l.b16 %v9890
        %v9972 = vunpack.c.l.b16 %v9891
        %v9973 = vunpack.c.l.b16 %v9892
        %v9974 = vunpack.c.l.b16 %v9893
        %v9975 = vunpack.c.l.b16 %v9894
        %v9976 = vunpack.c.l.b16 %v9895
        %v9977 = vunpack.c.l.b16 %v9896
        %v9978 = vunpack.c.l.b16 %v9897
        %v9979 = vunpack.c.l.b16 %v9898
        %v9980 = vunpack.c.l.b16 %v9899
        %v9981 = vunpack.c.l.b16 %v9900
        %v9982 = vunpack.c.l.b16 %v9901
        %v9983 = vunpack.c.l.b16 %v9902
        %v9984 = vunpack.c.l.b16 %v9903
        %v9985 = vunpack.c.l.b16 %v9904
        %v9986 = vpack.c.b16 %v9971, %v9970
        %v9987 = vpack.c.b16 %v9973, %v9972
        %v9988 = vpack.c.b16 %v9975, %v9974
        %v9989 = vpack.c.b16 %v9977, %v9976
        %v9990 = vpack.c.b16 %v9979, %v9978
        %v9991 = vpack.c.b16 %v9981, %v9980
        %v9992 = vpack.c.b16 %v9983, %v9982
        %v9993 = vpack.c.b16 %v9985, %v9984
        %10002 = vmatpush.bf16.msra.mxu0 %v9993
        %10003 = vmatpush.bf16.msra.mxu0 %v9992
        %10004 = vmatpush.bf16.msra.mxu0 %v9991
        %10005 = vmatpush.bf16.msra.mxu0 %v9990
        %10006 = vmatpush.bf16.msra.mxu0 %v9989
        %10007 = vmatpush.bf16.msra.mxu0 %v9988
        %10008 = vmatpush.bf16.msra.mxu0 %v9987
        %10009 = vmatpush.bf16.msra.mxu0 %v9986
        %10010 = vmatmul.bf16.gmra.mxu0 %v9938
        %v10011 = vpop.f32.mrf.mxu0
        %v10012 = vadd.f32 %v9905, %v10011
        %v10013 = vpop.f32.mrf.mxu0
        %v10014 = vadd.f32 %v9905, %v10013
        %10015 = vmatmul.bf16.gmra.mxu0 %v9939
        %v10016 = vpop.f32.mrf.mxu0
        %v10017 = vadd.f32 %v9905, %v10016
        %v10018 = vpop.f32.mrf.mxu0
        %v10019 = vadd.f32 %v9905, %v10018
        %10020 = vmatmul.bf16.gmra.mxu0 %v9940
        %v10021 = vpop.f32.mrf.mxu0
        %v10022 = vadd.f32 %v9905, %v10021
        %v10023 = vpop.f32.mrf.mxu0
        %v10024 = vadd.f32 %v9905, %v10023
        %10025 = vmatmul.bf16.gmra.mxu0 %v9941
        %v10026 = vpop.f32.mrf.mxu0
        %v10027 = vadd.f32 %v9905, %v10026
        %v10028 = vpop.f32.mrf.mxu0
        %v10029 = vadd.f32 %v9905, %v10028
        %10030 = vmatmul.bf16.gmra.mxu0 %v9942
        %v10031 = vpop.f32.mrf.mxu0
        %v10032 = vadd.f32 %v9905, %v10031
        %v10033 = vpop.f32.mrf.mxu0
        %v10034 = vadd.f32 %v9905, %v10033
        %10035 = vmatmul.bf16.gmra.mxu0 %v9943
        %v10036 = vpop.f32.mrf.mxu0
        %v10037 = vadd.f32 %v9905, %v10036
        %v10038 = vpop.f32.mrf.mxu0
        %v10039 = vadd.f32 %v9905, %v10038
        %10040 = vmatmul.bf16.gmra.mxu0 %v9944
        %v10041 = vpop.f32.mrf.mxu0
        %v10042 = vadd.f32 %v9905, %v10041
        %v10043 = vpop.f32.mrf.mxu0
        %v10044 = vadd.f32 %v9905, %v10043
        %10045 = vmatmul.bf16.gmra.mxu0 %v9945
        %v10046 = vpop.f32.mrf.mxu0
        %v10047 = vadd.f32 %v9905, %v10046
        %v10048 = vpop.f32.mrf.mxu0
        %v10049 = vadd.f32 %v9905, %v10048
        %10050 = vdwg.mxu0
        %vm10051 = vcmp.gt.f32.partialorder %v10012, 0.0
        %vm10052 = vcmp.gt.f32.partialorder %v10014, 0.0
        %vm10053 = vcmp.gt.f32.partialorder %v10017, 0.0
        %vm10054 = vcmp.gt.f32.partialorder %v10019, 0.0
        %vm10055 = vcmp.gt.f32.partialorder %v10022, 0.0
        %vm10056 = vcmp.gt.f32.partialorder %v10024, 0.0
        %vm10057 = vcmp.gt.f32.partialorder %v10027, 0.0
        %vm10058 = vcmp.gt.f32.partialorder %v10029, 0.0
        %vm10059 = vcmp.gt.f32.partialorder %v10032, 0.0
        %vm10060 = vcmp.gt.f32.partialorder %v10034, 0.0
        %vm10061 = vcmp.gt.f32.partialorder %v10037, 0.0
        %vm10062 = vcmp.gt.f32.partialorder %v10039, 0.0
        %vm10063 = vcmp.gt.f32.partialorder %v10042, 0.0
        %vm10064 = vcmp.gt.f32.partialorder %v10044, 0.0
        %vm10065 = vcmp.gt.f32.partialorder %v10047, 0.0
        %vm10066 = vcmp.gt.f32.partialorder %v10049, 0.0
        %v10067 = vmin.f32 %v10012, 0.0
        %v10068 = vmin.f32 %v10014, 0.0
        %v10069 = vmin.f32 %v10017, 0.0
        %v10070 = vmin.f32 %v10019, 0.0
        %v10071 = vmin.f32 %v10022, 0.0
        %v10072 = vmin.f32 %v10024, 0.0
        %v10073 = vmin.f32 %v10027, 0.0
        %v10074 = vmin.f32 %v10029, 0.0
        %v10075 = vmin.f32 %v10032, 0.0
        %v10076 = vmin.f32 %v10034, 0.0
        %v10077 = vmin.f32 %v10037, 0.0
        %v10078 = vmin.f32 %v10039, 0.0
        %v10079 = vmin.f32 %v10042, 0.0
        %v10080 = vmin.f32 %v10044, 0.0
        %v10081 = vmin.f32 %v10047, 0.0
        %v10082 = vmin.f32 %v10049, 0.0
        %v10083 = vmul.f32 %v10067, 1.442695
        %v10084 = vpow.pop %v10083
        %v10085 = vmul.f32 %v10068, 1.442695
        %v10086 = vpow.pop %v10085
        %v10087 = vmul.f32 %v10069, 1.442695
        %v10088 = vpow.pop %v10087
        %v10089 = vmul.f32 %v10070, 1.442695
        %v10090 = vpow.pop %v10089
        %v10091 = vmul.f32 %v10071, 1.442695
        %v10092 = vpow.pop %v10091
        %v10093 = vmul.f32 %v10072, 1.442695
        %v10094 = vpow.pop %v10093
        %v10095 = vmul.f32 %v10073, 1.442695
        %v10096 = vpow.pop %v10095
        %v10097 = vmul.f32 %v10074, 1.442695
        %v10098 = vpow.pop %v10097
        %v10099 = vmul.f32 %v10075, 1.442695
        %v10100 = vpow.pop %v10099
        %v10101 = vmul.f32 %v10076, 1.442695
        %v10102 = vpow.pop %v10101
        %v10103 = vmul.f32 %v10077, 1.442695
        %v10104 = vpow.pop %v10103
        %v10105 = vmul.f32 %v10078, 1.442695
        %v10106 = vpow.pop %v10105
        %v10107 = vmul.f32 %v10079, 1.442695
        %v10108 = vpow.pop %v10107
        %v10109 = vmul.f32 %v10080, 1.442695
        %v10110 = vpow.pop %v10109
        %v10111 = vmul.f32 %v10081, 1.442695
        %v10112 = vpow.pop %v10111
        %v10113 = vmul.f32 %v10082, 1.442695
        %v10114 = vpow.pop %v10113
        %v10115 = vsub.f32 %v10084, 1.0
        %v10116 = vsub.f32 %v10086, 1.0
        %v10117 = vsub.f32 %v10088, 1.0
        %v10118 = vsub.f32 %v10090, 1.0
        %v10119 = vsub.f32 %v10092, 1.0
        %v10120 = vsub.f32 %v10094, 1.0
        %v10121 = vsub.f32 %v10096, 1.0
        %v10122 = vsub.f32 %v10098, 1.0
        %v10123 = vsub.f32 %v10100, 1.0
        %v10124 = vsub.f32 %v10102, 1.0
        %v10125 = vsub.f32 %v10104, 1.0
        %v10126 = vsub.f32 %v10106, 1.0
        %v10127 = vsub.f32 %v10108, 1.0
        %v10128 = vsub.f32 %v10110, 1.0
        %v10129 = vsub.f32 %v10112, 1.0
        %v10130 = vsub.f32 %v10114, 1.0
        %v10131 = vsel %vm10051, %v10012, %v10115
        %v10132 = vsel %vm10052, %v10014, %v10116
        %v10133 = vsel %vm10053, %v10017, %v10117
        %v10134 = vsel %vm10054, %v10019, %v10118
        %v10135 = vsel %vm10055, %v10022, %v10119
        %v10136 = vsel %vm10056, %v10024, %v10120
        %v10137 = vsel %vm10057, %v10027, %v10121
        %v10138 = vsel %vm10058, %v10029, %v10122
        %v10139 = vsel %vm10059, %v10032, %v10123
        %v10140 = vsel %vm10060, %v10034, %v10124
        %v10141 = vsel %vm10061, %v10037, %v10125
        %v10142 = vsel %vm10062, %v10039, %v10126
        %v10143 = vsel %vm10063, %v10042, %v10127
        %v10144 = vsel %vm10064, %v10044, %v10128
        %v10145 = vsel %vm10065, %v10047, %v10129
        %v10146 = vsel %vm10066, %v10049, %v10130
        %v10147 = vperm.slane %v8870, 1
        %v10164 = vunpack.c.l.b16 %v9873
        %v10165 = vunpack.c.l.b16 %v9874
        %v10166 = vunpack.c.l.b16 %v9875
        %v10167 = vunpack.c.l.b16 %v9876
        %v10168 = vunpack.c.l.b16 %v9877
        %v10169 = vunpack.c.l.b16 %v9878
        %v10170 = vunpack.c.l.b16 %v9879
        %v10171 = vunpack.c.l.b16 %v9880
        %v10172 = vunpack.c.l.b16 %v9881
        %v10173 = vunpack.c.l.b16 %v9882
        %v10174 = vunpack.c.l.b16 %v9883
        %v10175 = vunpack.c.l.b16 %v9884
        %v10176 = vunpack.c.l.b16 %v9885
        %v10177 = vunpack.c.l.b16 %v9886
        %v10178 = vunpack.c.l.b16 %v9887
        %v10179 = vunpack.c.l.b16 %v9888
        %v10180 = vpack.c.b16 %v10165, %v10164
        %v10181 = vpack.c.b16 %v10167, %v10166
        %v10182 = vpack.c.b16 %v10169, %v10168
        %v10183 = vpack.c.b16 %v10171, %v10170
        %v10184 = vpack.c.b16 %v10173, %v10172
        %v10185 = vpack.c.b16 %v10175, %v10174
        %v10186 = vpack.c.b16 %v10177, %v10176
        %v10187 = vpack.c.b16 %v10179, %v10178
        %10196 = vrot.lane.b32.xlu0 %v9986, 112
        %v10197 = vpop.permute.xlu0 %10196
        %10198 = vrot.lane.b32.xlu0 %v9987, 112
        %v10199 = vpop.permute.xlu0 %10198
        %10200 = vrot.lane.b32.xlu0 %v9988, 112
        %v10201 = vpop.permute.xlu0 %10200
        %10202 = vrot.lane.b32.xlu0 %v9989, 112
        %v10203 = vpop.permute.xlu0 %10202
        %10204 = vrot.lane.b32.xlu0 %v9990, 112
        %v10205 = vpop.permute.xlu0 %10204
        %10206 = vrot.lane.b32.xlu0 %v9991, 112
        %v10207 = vpop.permute.xlu0 %10206
        %10208 = vrot.lane.b32.xlu0 %v9992, 112
        %v10209 = vpop.permute.xlu0 %10208
        %10210 = vrot.lane.b32.xlu0 %v9993, 112
        %v10211 = vpop.permute.xlu0 %10210
        %10220 = vmatpush.bf16.msra.mxu0 %v10211
        %10221 = vmatpush.bf16.msra.mxu0 %v10209
        %10222 = vmatpush.bf16.msra.mxu0 %v10207
        %10223 = vmatpush.bf16.msra.mxu0 %v10205
        %10224 = vmatpush.bf16.msra.mxu0 %v10203
        %10225 = vmatpush.bf16.msra.mxu0 %v10201
        %10226 = vmatpush.bf16.msra.mxu0 %v10199
        %10227 = vmatpush.bf16.msra.mxu0 %v10197
        %10228 = vmatmul.bf16.gmra.mxu0 %v10180
        %v10229 = vpop.f32.mrf.mxu0
        %v10230 = vadd.f32 %v10147, %v10229
        %v10231 = vpop.f32.mrf.mxu0
        %v10232 = vadd.f32 %v10147, %v10231
        %10233 = vmatmul.bf16.gmra.mxu0 %v10181
        %v10234 = vpop.f32.mrf.mxu0
        %v10235 = vadd.f32 %v10147, %v10234
        %v10236 = vpop.f32.mrf.mxu0
        %v10237 = vadd.f32 %v10147, %v10236
        %10238 = vmatmul.bf16.gmra.mxu0 %v10182
        %v10239 = vpop.f32.mrf.mxu0
        %v10240 = vadd.f32 %v10147, %v10239
        %v10241 = vpop.f32.mrf.mxu0
        %v10242 = vadd.f32 %v10147, %v10241
        %10243 = vmatmul.bf16.gmra.mxu0 %v10183
        %v10244 = vpop.f32.mrf.mxu0
        %v10245 = vadd.f32 %v10147, %v10244
        %v10246 = vpop.f32.mrf.mxu0
        %v10247 = vadd.f32 %v10147, %v10246
        %10248 = vmatmul.bf16.gmra.mxu0 %v10184
        %v10249 = vpop.f32.mrf.mxu0
        %v10250 = vadd.f32 %v10147, %v10249
        %v10251 = vpop.f32.mrf.mxu0
        %v10252 = vadd.f32 %v10147, %v10251
        %10253 = vmatmul.bf16.gmra.mxu0 %v10185
        %v10254 = vpop.f32.mrf.mxu0
        %v10255 = vadd.f32 %v10147, %v10254
        %v10256 = vpop.f32.mrf.mxu0
        %v10257 = vadd.f32 %v10147, %v10256
        %10258 = vmatmul.bf16.gmra.mxu0 %v10186
        %v10259 = vpop.f32.mrf.mxu0
        %v10260 = vadd.f32 %v10147, %v10259
        %v10261 = vpop.f32.mrf.mxu0
        %v10262 = vadd.f32 %v10147, %v10261
        %10263 = vmatmul.bf16.gmra.mxu0 %v10187
        %v10264 = vpop.f32.mrf.mxu0
        %v10265 = vadd.f32 %v10147, %v10264
        %v10266 = vpop.f32.mrf.mxu0
        %v10267 = vadd.f32 %v10147, %v10266
        %10268 = vdwg.mxu0
        %vm10269 = vcmp.gt.f32.partialorder %v10230, 0.0
        %vm10270 = vcmp.gt.f32.partialorder %v10232, 0.0
        %vm10271 = vcmp.gt.f32.partialorder %v10235, 0.0
        %vm10272 = vcmp.gt.f32.partialorder %v10237, 0.0
        %vm10273 = vcmp.gt.f32.partialorder %v10240, 0.0
        %vm10274 = vcmp.gt.f32.partialorder %v10242, 0.0
        %vm10275 = vcmp.gt.f32.partialorder %v10245, 0.0
        %vm10276 = vcmp.gt.f32.partialorder %v10247, 0.0
        %vm10277 = vcmp.gt.f32.partialorder %v10250, 0.0
        %vm10278 = vcmp.gt.f32.partialorder %v10252, 0.0
        %vm10279 = vcmp.gt.f32.partialorder %v10255, 0.0
        %vm10280 = vcmp.gt.f32.partialorder %v10257, 0.0
        %vm10281 = vcmp.gt.f32.partialorder %v10260, 0.0
        %vm10282 = vcmp.gt.f32.partialorder %v10262, 0.0
        %vm10283 = vcmp.gt.f32.partialorder %v10265, 0.0
        %vm10284 = vcmp.gt.f32.partialorder %v10267, 0.0
        %v10285 = vmin.f32 %v10230, 0.0
        %v10286 = vmin.f32 %v10232, 0.0
        %v10287 = vmin.f32 %v10235, 0.0
        %v10288 = vmin.f32 %v10237, 0.0
        %v10289 = vmin.f32 %v10240, 0.0
        %v10290 = vmin.f32 %v10242, 0.0
        %v10291 = vmin.f32 %v10245, 0.0
        %v10292 = vmin.f32 %v10247, 0.0
        %v10293 = vmin.f32 %v10250, 0.0
        %v10294 = vmin.f32 %v10252, 0.0
        %v10295 = vmin.f32 %v10255, 0.0
        %v10296 = vmin.f32 %v10257, 0.0
        %v10297 = vmin.f32 %v10260, 0.0
        %v10298 = vmin.f32 %v10262, 0.0
        %v10299 = vmin.f32 %v10265, 0.0
        %v10300 = vmin.f32 %v10267, 0.0
        %v10301 = vmul.f32 %v10285, 1.442695
        %v10302 = vpow.pop %v10301
        %v10303 = vmul.f32 %v10286, 1.442695
        %v10304 = vpow.pop %v10303
        %v10305 = vmul.f32 %v10287, 1.442695
        %v10306 = vpow.pop %v10305
        %v10307 = vmul.f32 %v10288, 1.442695
        %v10308 = vpow.pop %v10307
        %v10309 = vmul.f32 %v10289, 1.442695
        %v10310 = vpow.pop %v10309
        %v10311 = vmul.f32 %v10290, 1.442695
        %v10312 = vpow.pop %v10311
        %v10313 = vmul.f32 %v10291, 1.442695
        %v10314 = vpow.pop %v10313
        %v10315 = vmul.f32 %v10292, 1.442695
        %v10316 = vpow.pop %v10315
        %v10317 = vmul.f32 %v10293, 1.442695
        %v10318 = vpow.pop %v10317
        %v10319 = vmul.f32 %v10294, 1.442695
        %v10320 = vpow.pop %v10319
        %v10321 = vmul.f32 %v10295, 1.442695
        %v10322 = vpow.pop %v10321
        %v10323 = vmul.f32 %v10296, 1.442695
        %v10324 = vpow.pop %v10323
        %v10325 = vmul.f32 %v10297, 1.442695
        %v10326 = vpow.pop %v10325
        %v10327 = vmul.f32 %v10298, 1.442695
        %v10328 = vpow.pop %v10327
        %v10329 = vmul.f32 %v10299, 1.442695
        %v10330 = vpow.pop %v10329
        %v10331 = vmul.f32 %v10300, 1.442695
        %v10332 = vpow.pop %v10331
        %v10333 = vsub.f32 %v10302, 1.0
        %v10334 = vsub.f32 %v10304, 1.0
        %v10335 = vsub.f32 %v10306, 1.0
        %v10336 = vsub.f32 %v10308, 1.0
        %v10337 = vsub.f32 %v10310, 1.0
        %v10338 = vsub.f32 %v10312, 1.0
        %v10339 = vsub.f32 %v10314, 1.0
        %v10340 = vsub.f32 %v10316, 1.0
        %v10341 = vsub.f32 %v10318, 1.0
        %v10342 = vsub.f32 %v10320, 1.0
        %v10343 = vsub.f32 %v10322, 1.0
        %v10344 = vsub.f32 %v10324, 1.0
        %v10345 = vsub.f32 %v10326, 1.0
        %v10346 = vsub.f32 %v10328, 1.0
        %v10347 = vsub.f32 %v10330, 1.0
        %v10348 = vsub.f32 %v10332, 1.0
        %v10349 = vsel %vm10269, %v10230, %v10333
        %v10350 = vsel %vm10270, %v10232, %v10334
        %v10351 = vsel %vm10271, %v10235, %v10335
        %v10352 = vsel %vm10272, %v10237, %v10336
        %v10353 = vsel %vm10273, %v10240, %v10337
        %v10354 = vsel %vm10274, %v10242, %v10338
        %v10355 = vsel %vm10275, %v10245, %v10339
        %v10356 = vsel %vm10276, %v10247, %v10340
        %v10357 = vsel %vm10277, %v10250, %v10341
        %v10358 = vsel %vm10278, %v10252, %v10342
        %v10359 = vsel %vm10279, %v10255, %v10343
        %v10360 = vsel %vm10280, %v10257, %v10344
        %v10361 = vsel %vm10281, %v10260, %v10345
        %v10362 = vsel %vm10282, %v10262, %v10346
        %v10363 = vsel %vm10283, %v10265, %v10347
        %v10364 = vsel %vm10284, %v10267, %v10348
        %v10365 = vadd.f32 %v10131, %v10349
        %v10366 = vadd.f32 %v10132, %v10350
        %v10367 = vadd.f32 %v10133, %v10351
        %v10368 = vadd.f32 %v10134, %v10352
        %v10369 = vadd.f32 %v10135, %v10353
        %v10370 = vadd.f32 %v10136, %v10354
        %v10371 = vadd.f32 %v10137, %v10355
        %v10372 = vadd.f32 %v10138, %v10356
        %v10373 = vadd.f32 %v10139, %v10357
        %v10374 = vadd.f32 %v10140, %v10358
        %v10375 = vadd.f32 %v10141, %v10359
        %v10376 = vadd.f32 %v10142, %v10360
        %v10377 = vadd.f32 %v10143, %v10361
        %v10378 = vadd.f32 %v10144, %v10362
        %v10379 = vadd.f32 %v10145, %v10363
        %v10380 = vadd.f32 %v10146, %v10364
        %v10381 = vmul.f32 %v10365, 0.5
        %v10382 = vmul.f32 %v10366, 0.5
        %v10383 = vmul.f32 %v10367, 0.5
        %v10384 = vmul.f32 %v10368, 0.5
        %v10385 = vmul.f32 %v10369, 0.5
        %v10386 = vmul.f32 %v10370, 0.5
        %v10387 = vmul.f32 %v10371, 0.5
        %v10388 = vmul.f32 %v10372, 0.5
        %v10389 = vmul.f32 %v10373, 0.5
        %v10390 = vmul.f32 %v10374, 0.5
        %v10391 = vmul.f32 %v10375, 0.5
        %v10392 = vmul.f32 %v10376, 0.5
        %v10393 = vmul.f32 %v10377, 0.5
        %v10394 = vmul.f32 %v10378, 0.5
        %v10395 = vmul.f32 %v10379, 0.5
        %v10396 = vmul.f32 %v10380, 0.5
        %10397 = vxpose.xlu0.b32.start [1/16] %v10381, 128
        %10398 = vxpose.xlu0.b32.cont [2/16] %v10382, 128
        %10399 = vxpose.xlu0.b32.cont [3/16] %v10383, 128
        %10400 = vxpose.xlu0.b32.cont [4/16] %v10384, 128
        %10401 = vxpose.xlu0.b32.cont [5/16] %v10385, 128
        %10402 = vxpose.xlu0.b32.cont [6/16] %v10386, 128
        %10403 = vxpose.xlu0.b32.cont [7/16] %v10387, 128
        %10404 = vxpose.xlu0.b32.cont [8/16] %v10388, 128
        %10405 = vxpose.xlu0.b32.cont [9/16] %v10389, 128
        %10406 = vxpose.xlu0.b32.cont [10/16] %v10390, 128
        %10407 = vxpose.xlu0.b32.cont [11/16] %v10391, 128
        %10408 = vxpose.xlu0.b32.cont [12/16] %v10392, 128
        %10409 = vxpose.xlu0.b32.cont [13/16] %v10393, 128
        %10410 = vxpose.xlu0.b32.cont [14/16] %v10394, 128
        %10411 = vxpose.xlu0.b32.cont [15/16] %v10395, 128
        %10412 = vxpose.xlu0.b32.end [16/16] %v10396, 128
        %v10413 = vpop.trf.xlu0
        %v10414 = vpop.trf.xlu0
        %v10415 = vpop.trf.xlu0
        %v10416 = vpop.trf.xlu0
        %v10417 = vpop.trf.xlu0
        %v10418 = vpop.trf.xlu0
        %v10419 = vpop.trf.xlu0
        %v10420 = vpop.trf.xlu0
        %v10421 = vpop.trf.xlu0
        %v10422 = vpop.trf.xlu0
        %v10423 = vpop.trf.xlu0
        %v10424 = vpop.trf.xlu0
        %v10425 = vpop.trf.xlu0
        %v10426 = vpop.trf.xlu0
        %v10427 = vpop.trf.xlu0
        %v10428 = vpop.trf.xlu0
        %10429 = vst [vmem:[%s533] sm:$0xff] %v10413
        %10430 = vst [vmem:[%s533 + $0x8] sm:$0xff] %v10414
        %v10431 = vld [vmem:[%s2] sm:$0xff]
        %v10432 = vld [vmem:[%s2 + $0x8] sm:$0xff]
        %10433 = vmatpush.msra.mxu0 %v10396
        %10434 = vmatpush.msra.mxu0 %v10395
        %10435 = vmatpush.msra.mxu0 %v10394
        %10436 = vmatpush.msra.mxu0 %v10393
        %10437 = vmatpush.msra.mxu0 %v10392
        %10438 = vmatpush.msra.mxu0 %v10391
        %10439 = vmatpush.msra.mxu0 %v10390
        %10440 = vmatpush.msra.mxu0 %v10389
        %10441 = vmatpush.msra.mxu0 %v10388
        %10442 = vmatpush.msra.mxu0 %v10387
        %10443 = vmatpush.msra.mxu0 %v10386
        %10444 = vmatpush.msra.mxu0 %v10385
        %10445 = vmatpush.msra.mxu0 %v10384
        %10446 = vmatpush.msra.mxu0 %v10383
        %10447 = vmatpush.msra.mxu0 %v10382
        %10448 = vmatpush.msra.mxu0 %v10381
        %10449 = vmatmul.f32.gmra.mxu0 %v10431
        %v10450 = vpop.f32.mrf.mxu0
        %v10451 = vadd.f32 0.0, %v10450
        %10452 = vmatmul.f32.gmra.mxu0 %v10432
        %v10453 = vpop.f32.mrf.mxu0
        %v10454 = vadd.f32 0.0, %v10453
        %10455 = vdwg.mxu0
        %10456 = vst.msk [vmem:[%s540] sm:$0xff] %vm2770, %v10451
        %10457 = vst.msk [vmem:[%s540 + $0x8] sm:$0xff] %vm2770, %v10454
        %s10458 = sand.u32 %s367, 1
        %s10459 = scalar_lea.sflag [#allocation3], %s10458
        %s10460 = sand.u32 %s367, 1
        %s10461 = smul.addr %s10460, 16
        %s10462 = scalar_lea.vmem [#allocation2], %s10461
        %s10463 = sand.u32 %s393, 1
        %s10464 = scalar_lea.sflag [#allocation5], %s10463
        %s10465 = sand.u32 %s393, 1
        %s10466 = smul.addr %s10465, 16
        %s10467 = scalar_lea.vmem [#allocation4], %s10466
        // Predicated region
        $region81: #{tpu_custom_call.1} parent=79 // pred_check
          %p10468 = pneg %p377
        $region82: #{tpu_custom_call.1} parent=79 // pred_check_branch
          %10470 = sbr.rel (%p10468) target = $region84
        $region83: #{tpu_custom_call.1} parent=79 // pred_region
          %10472 = vsyncadd %s10459, 0
          %s10473 = smul.addr %s34, 2
          %s10474 = smul.addr %s10473, 8
          %s10475 = scalar_lea.hbm %s15, %s10474
          %s10476 = sshll.u32 %s10462, 4
          %s10477 = int_to_ptr.vmem [resolvable:$true] %s10476
          %s10478 = sshll.u32 %s10475, 4
          %s10479 = int_to_ptr.hbm [resolvable:$true] %s10478
          %10484 = dma.vmem_to_hbm [thread:$0]  %s10477, 256, %s10479, %s10459, 128, 128, 8
        $region84: #{tpu_custom_call.1} parent=79 // pred_fallthru
          _
        // Predicated region
        $region85: #{tpu_custom_call.1} parent=79 // pred_check
          %p10485 = pneg %p403
        $region86: #{tpu_custom_call.1} parent=79 // pred_check_branch
          %10487 = sbr.rel (%p10485) target = $region88
        $region87: #{tpu_custom_call.1} parent=79 // pred_region
          %10489 = vsyncadd %s10464, 0
          %s10490 = smul.addr %s34, 2
          %s10491 = smul.addr %s10490, 8
          %s10492 = scalar_lea.hbm %s16, %s10491
          %s10493 = sshll.u32 %s10467, 4
          %s10494 = int_to_ptr.vmem [resolvable:$true] %s10493
          %s10495 = sshll.u32 %s10492, 4
          %s10496 = int_to_ptr.hbm [resolvable:$true] %s10495
          %10501 = dma.vmem_to_hbm [thread:$0]  %s10494, 256, %s10496, %s10464, 128, 128, 8
        $region88: #{tpu_custom_call.1} parent=79 // pred_fallthru
          _
      $region80: #{tpu_custom_call.1} parent=5 // pred_fallthru
        _
      %p10502 = scmp.le.s32.totalorder 2, %s29
      // Predicated region
      $region89: #{tpu_custom_call.1} parent=5 // pred_check
        %p10503 = pneg %p10502
      $region90: #{tpu_custom_call.1} parent=5 // pred_check_branch
        %10505 = sbr.rel (%p10503) target = $region92
      $region91: #{tpu_custom_call.1} parent=5 // pred_region
        %s10506 = ssub.s32 %s29, 2
        // Predicated region
        $region93: #{tpu_custom_call.1} parent=91 // pred_check
          %p10507 = pneg %p383
        $region94: #{tpu_custom_call.1} parent=91 // pred_check_branch
          %10509 = sbr.rel (%p10507) target = $region96
        $region95: #{tpu_custom_call.1} parent=91 // pred_region
          %s10510 = sand.u32 %s368, 1
          %s10511 = scalar_lea.sflag [#allocation3], %s10510
          %s10512 = sand.u32 %s368, 1
          %s10513 = smul.addr %s10512, 16
          %s10514 = scalar_lea.vmem [#allocation2], %s10513
          %10516 = dma.done %s10511, 256
        $region96: #{tpu_custom_call.1} parent=91 // pred_fallthru
          _
        // Predicated region
        $region97: #{tpu_custom_call.1} parent=91 // pred_check
          %p10517 = pneg %p409
        $region98: #{tpu_custom_call.1} parent=91 // pred_check_branch
          %10519 = sbr.rel (%p10517) target = $region100
        $region99: #{tpu_custom_call.1} parent=91 // pred_region
          %s10520 = sand.u32 %s394, 1
          %s10521 = scalar_lea.sflag [#allocation5], %s10520
          %s10522 = sand.u32 %s394, 1
          %s10523 = smul.addr %s10522, 16
          %s10524 = scalar_lea.vmem [#allocation4], %s10523
          %10526 = dma.done %s10521, 256
        $region100: #{tpu_custom_call.1} parent=91 // pred_fallthru
          _
      $region92: #{tpu_custom_call.1} parent=5 // pred_fallthru
        _
    $region6: #{tpu_custom_call.1} parent=1 // loop_footer
      %s33 = sadd.s32 1, %s29
    $region7: #{tpu_custom_call.1} parent=1 // loop_footer_branch
      %28 = sbr.rel target = $region3
    $region8: #{tpu_custom_call.1} parent=1 // loop_exit
      _
    %10527 = vsyncpa [#allocation3], 1
    %s10528 = scalar_lea.sflag [#allocation3], 1
    %10529 = vsyncpa %s10528, 1
    %10530 = vsyncpa [#allocation5], 1
    %s10531 = scalar_lea.sflag [#allocation5], 1
    %10532 = vsyncpa %s10531, 1

</llo_original>
